<compile_context>
chip_gen: v7x
topology: tpu7x:2x2x1
jax: 0.10.0
libtpu: 0.0.40
codegen_flags: <defaults>
</compile_context>

<pallas_src>
import functools

import jax
import jax.numpy as jnp
import numpy as np
from jax.experimental import pallas as pl
from jax.experimental.pallas import tpu as pltpu

BN_EPS = 1e-5
LEAKY_SLOPE = 0.2

# (name, out_channels, stride, use_batchnorm) -- fixed Discriminator topology.
LAYERS = (
    ("down1", 64, 2, False),
    ("down2", 128, 2, True),
    ("down3", 256, 2, True),
    ("down4", 512, 1, True),
)


def _round_up(x, m):
    return ((x + m - 1) // m) * m


def _tiles_for_weight(K, cout):
    """(tk, tn) tile sizes; must match between pack_params and the launchers."""
    # Full-K reduction tile, capped at 2048: the bf16 weight block is <= 1 MiB,
    # so double-buffering stays far below even v5e's 16 MiB scoped-VMEM default.
    tk = min(2048, _round_up(K, 128))
    # Keep >= 2 parallel N tiles when cout >= 256 (v7x has two TensorCores).
    tn = 128 if cout <= 256 else 256
    return tk, tn


# ------------------------------ Pallas kernels ------------------------------

def _mm_leaky_kernel(a_ref, w_ref, o_ref, acc_ref, *, slope):
    """o = leaky(A @ W); bf16 operands, f32 scratch accumulator, bf16 output.

    NOTE: relies on K being the last, 'arbitrary' grid axis; the output block
    is revisited across K and only written on the final visit."""
    k = pl.program_id(2)

    @pl.when(k == 0)
    def _():
        acc_ref[...] = jnp.zeros_like(acc_ref)

    acc_ref[...] += jnp.dot(a_ref[...], w_ref[...],
                            preferred_element_type=jnp.float32)

    @pl.when(k == pl.num_programs(2) - 1)
    def _():
        y = acc_ref[...]
        o_ref[...] = jnp.where(y >= 0, y, slope * y).astype(o_ref.dtype)


def _mm_bn_leaky_kernel(a_ref, w_ref, gamma_ref, beta_ref, o_ref, acc_ref, *,
                        slope, true_m, eps):
    """o = leaky(BatchNorm(A @ W)) with training-mode batch statistics.

    The A block covers ALL M rows, so per-column mean/var can be computed in
    the last-K epilogue.  Padded rows of A are zero -> they drop out of the
    sums; we divide by the true M.  Variance uses one-pass E[x^2]-E[x]^2 in
    f32, which is fine at these activation magnitudes.

    NOTE: relies on K being the last, 'arbitrary' grid axis with the output
    block revisited across it -- do not reorder the grid."""
    k = pl.program_id(1)

    @pl.when(k == 0)
    def _():
        acc_ref[...] = jnp.zeros_like(acc_ref)

    acc_ref[...] += jnp.dot(a_ref[...], w_ref[...],
                            preferred_element_type=jnp.float32)

    @pl.when(k == pl.num_programs(1) - 1)
    def _():
        x = acc_ref[...]
        inv_m = 1.0 / true_m
        mean = jnp.sum(x, axis=0, keepdims=True) * inv_m
        var = jnp.sum(x * x, axis=0, keepdims=True) * inv_m - mean * mean
        scale = gamma_ref[...] * jax.lax.rsqrt(var + eps)
        shift = beta_ref[...] - mean * scale
        y = x * scale + shift
        o_ref[...] = jnp.where(y >= 0, y, slope * y).astype(o_ref.dtype)


# ------------------------------ kernel wrappers ------------------------------

def conv_leaky(A, Wb, cout, *, slope=LEAKY_SLOPE):
    """leaky(A @ W): bf16 MXU operands, f32 VMEM accumulator, bf16 output."""
    M, K = A.shape
    Kp, Np = Wb.shape
    tk, tn = _tiles_for_weight(K, cout)
    tm = min(256, _round_up(M, 16))
    Mp = _round_up(M, tm)
    Ab = jnp.pad(A, ((0, Mp - M), (0, Kp - K)))
    out = pl.pallas_call(
        functools.partial(_mm_leaky_kernel, slope=slope),
        out_shape=jax.ShapeDtypeStruct((Mp, Np), jnp.bfloat16),
        grid=(Mp // tm, Np // tn, Kp // tk),
        in_specs=[pl.BlockSpec((tm, tk), lambda i, j, k: (i, k)),
                  pl.BlockSpec((tk, tn), lambda i, j, k: (k, j))],
        out_specs=pl.BlockSpec((tm, tn), lambda i, j, k: (i, j)),
        scratch_shapes=[pltpu.VMEM((tm, tn), jnp.float32)],
        compiler_params=pltpu.CompilerParams(
            dimension_semantics=("parallel", "parallel", "arbitrary")),
    )(Ab, Wb)
    return out[:M, :cout]


def conv_bn_leaky(A, Wb, gamma_p, beta_p, cout, *, slope=LEAKY_SLOPE, eps=BN_EPS):
    """leaky(BatchNorm(A @ W)), BN finalized inside the matmul epilogue."""
    M, K = A.shape
    Kp, Np = Wb.shape
    tk, tn = _tiles_for_weight(K, cout)
    Mp = _round_up(M, 16)  # whole M in one block so batch stats are in-tile
    assert Mp <= 1024, "in-kernel BN path assumes the whole M fits one block"
    Ab = jnp.pad(A, ((0, Mp - M), (0, Kp - K)))
    out = pl.pallas_call(
        functools.partial(_mm_bn_leaky_kernel, slope=slope,
                          true_m=float(M), eps=eps),
        out_shape=jax.ShapeDtypeStruct((Mp, Np), jnp.bfloat16),
        grid=(Np // tn, Kp // tk),
        in_specs=[pl.BlockSpec((Mp, tk), lambda j, k: (0, k)),
                  pl.BlockSpec((tk, tn), lambda j, k: (k, j)),
                  pl.BlockSpec((1, tn), lambda j, k: (0, j)),
                  pl.BlockSpec((1, tn), lambda j, k: (0, j))],
        out_specs=pl.BlockSpec((Mp, tn), lambda j, k: (0, j)),
        scratch_shapes=[pltpu.VMEM((Mp, tn), jnp.float32)],
        compiler_params=pltpu.CompilerParams(
            dimension_semantics=("parallel", "arbitrary")),
    )(Ab, Wb, gamma_p, beta_p)
    return out[:M, :cout]


# -------------------------------- XLA glue ----------------------------------

def _im2col_reflect4x4(x_nhwc, stride):
    """Reflect-pad by 1 and extract 4x4 patches -> (N*Ho*Wo, 16*Cin), bf16.
    TODO(synk): fold the 16 (kh,kw) taps into the matmul K grid via
    pl.Element / strided index maps so this tensor is never materialized."""
    kk = 4
    xp = jnp.pad(x_nhwc, ((0, 0), (1, 1), (1, 1), (0, 0)), mode="reflect")
    n, hp, wp, cin = xp.shape
    ho = (hp - kk) // stride + 1
    wo = (wp - kk) // stride + 1
    cols = [xp[:, kh:kh + stride * (ho - 1) + 1:stride,
               kw:kw + stride * (wo - 1) + 1:stride, :]
            for kh in range(kk) for kw in range(kk)]
    patches = jnp.concatenate(cols, axis=-1)            # (N, Ho, Wo, 16*Cin)
    return patches.reshape(n * ho * wo, kk * kk * cin), (n, ho, wo)


def pack_params(params):
    """One-time weight prep (outside jit): (kh,kw,cin)->cout matrices, padded
    to the kernel tiles and cast to bf16; BN affine rows reshaped to (1, Np)."""
    packed = {}
    for name, cout, _, use_norm in LAYERS:
        w = params[name + "_w"]                          # (cout, cin, 4, 4)
        cin = w.shape[1]
        K = 16 * cin
        Wm = jnp.transpose(w, (2, 3, 1, 0)).reshape(K, cout)
        tk, tn = _tiles_for_weight(K, cout)
        Kp, Np = _round_up(K, tk), _round_up(cout, tn)
        packed[name + "_w"] = jnp.pad(
            Wm, ((0, Kp - K), (0, Np - cout))).astype(jnp.bfloat16)
        if use_norm:
            packed[name + "_gamma"] = jnp.pad(
                params[name + "_gamma"], (0, Np - cout)
            ).reshape(1, Np).astype(jnp.float32)
            packed[name + "_beta"] = jnp.pad(
                params[name + "_beta"], (0, Np - cout)
            ).reshape(1, Np).astype(jnp.float32)
    wf = params["final_w"]                               # (1, 512, 4, 4)
    packed["final_w"] = jnp.transpose(wf, (2, 3, 1, 0)).reshape(-1, 1).astype(jnp.bfloat16)
    packed["final_b"] = params["final_b"].astype(jnp.float32)
    return packed


def discriminator_forward(packed, x_nchw, y_nchw):
    h = jnp.concatenate([x_nchw, y_nchw], axis=1)              # (N, 2C, H, W)
    h = jnp.transpose(h, (0, 2, 3, 1)).astype(jnp.bfloat16)    # NHWC bf16

    for name, cout, stride, use_norm in LAYERS:
        A, (n, ho, wo) = _im2col_reflect4x4(h, stride)
        if use_norm:
            o = conv_bn_leaky(A, packed[name + "_w"],
                              packed[name + "_gamma"], packed[name + "_beta"],
                              cout)
        else:
            o = conv_leaky(A, packed[name + "_w"], cout)
        h = o.reshape(n, ho, wo, cout)

    # Final 4x4/s1 conv with bias, no activation.  M=8, N=1: a plain XLA dot
    # is cheaper than a pallas_call that pads N to 128 (per perf review).
    A, (n, ho, wo) = _im2col_reflect4x4(h, 1)
    o = jnp.dot(A, packed["final_w"], preferred_element_type=jnp.float32)
    o = o + packed["final_b"]
    return jnp.transpose(o.reshape(n, ho, wo, 1), (0, 3, 1, 2))  # (N,1,Ho,Wo)


# ------------------------ params & pure-JAX reference ------------------------

def init_params(key, in_channels=3):
    ks = jax.random.split(key, 12)

    def conv_w(k, cout, cin):
        return jax.random.normal(k, (cout, cin, 4, 4), jnp.float32) * 0.05

    p = {
        "down1_w": conv_w(ks[0], 64, in_channels * 2),
        "down2_w": conv_w(ks[1], 128, 64),
        "down3_w": conv_w(ks[2], 256, 128),
        "down4_w": conv_w(ks[3], 512, 256),
        "final_w": conv_w(ks[4], 1, 512),
        "final_b": jax.random.normal(ks[5], (1,), jnp.float32) * 0.05,
    }
    for i, (name, c) in enumerate((("down2", 128), ("down3", 256), ("down4", 512))):
        p[name + "_gamma"] = 1.0 + 0.1 * jax.random.normal(ks[6 + 2 * i], (c,), jnp.float32)
        p[name + "_beta"] = 0.1 * jax.random.normal(ks[7 + 2 * i], (c,), jnp.float32)
    return p


def reference_forward(params, x, y, emulate_bf16=False):
    def rnd(v):
        # Optionally round conv operands to bf16 (what the MXU consumes) while
        # keeping f32 accumulation, to approximate the kernel's numerics.
        return v.astype(jnp.bfloat16).astype(jnp.float32) if emulate_bf16 else v

    def conv(h, w, stride):
        hp = jnp.pad(h, ((0, 0), (1, 1), (1, 1), (0, 0)), mode="reflect")
        return jax.lax.conv_general_dilated(
            rnd(hp), rnd(jnp.transpose(w, (2, 3, 1, 0))), (stride, stride), "VALID",
            dimension_numbers=("NHWC", "HWIO", "NHWC"),
            precision=jax.lax.Precision.HIGHEST,
            preferred_element_type=jnp.float32)

    def leaky(v):
        return jnp.where(v >= 0, v, LEAKY_SLOPE * v)

    def bn(v, gamma, beta):
        mean = jnp.mean(v, axis=(0, 1, 2))
        var = jnp.mean(jnp.square(v - mean), axis=(0, 1, 2))
        return (v - mean) / jnp.sqrt(var + BN_EPS) * gamma + beta

    h = jnp.transpose(jnp.concatenate([x, y], axis=1), (0, 2, 3, 1)).astype(jnp.float32)
    h = leaky(conv(h, params["down1_w"], 2))
    h = leaky(bn(conv(h, params["down2_w"], 2), params["down2_gamma"], params["down2_beta"]))
    h = leaky(bn(conv(h, params["down3_w"], 2), params["down3_gamma"], params["down3_beta"]))
    h = leaky(bn(conv(h, params["down4_w"], 1), params["down4_gamma"], params["down4_beta"]))
    h = conv(h, params["final_w"], 1) + params["final_b"]
    return jnp.transpose(h, (0, 3, 1, 2))


if __name__ == "__main__":
    key = jax.random.PRNGKey(0)
    kp, kx, ky = jax.random.split(key, 3)
    params = init_params(kp, in_channels=3)
    packed = pack_params(params)          # weights prepped once, outside jit
    x = jax.random.normal(kx, (2, 3, 32, 32), jnp.float32)
    y = jax.random.normal(ky, (2, 3, 32, 32), jnp.float32)

    fwd = jax.jit(discriminator_forward)
    out = jax.block_until_ready(fwd(packed, x, y))
    assert out.shape == (2, 1, 2, 2), out.shape

    # Check vs a reference whose conv operands are rounded to bf16 with f32
    # accumulation (apples-to-apples with the MXU path).  Tolerance accounts
    # for accumulation-order and one-pass-variance differences.
    ref_bf16 = jax.block_until_ready(reference_forward(params, x, y, emulate_bf16=True))
    np.testing.assert_allclose(np.asarray(out), np.asarray(ref_bf16),
                               rtol=2e-2, atol=2e-2)

    # Loose sanity check vs the pure-f32 reference (covers bf16 MXU drift).
    ref_f32 = jax.block_until_ready(reference_forward(params, x, y))
    np.testing.assert_allclose(np.asarray(out), np.asarray(ref_f32),
                               rtol=5e-2, atol=3e-1)

    print("KERNEL_OK")
</pallas_src>

<mosaic_0001>
module attributes {stable_mosaic.version = 11 : i64} {
  func.func @_mm_leaky_kernel(%arg0: i32, %arg1: i32, %arg2: i32, %arg3: memref<256x128xbf16, #tpu.memory_space<vmem>>, %arg4: memref<128x128xbf16, #tpu.memory_space<vmem>>, %arg5: memref<256x128xbf16, #tpu.memory_space<vmem>>, %arg6: memref<256x128xf32, #tpu.memory_space<vmem>>) attributes {dimension_semantics = [#tpu.dimension_semantics<parallel>, #tpu.dimension_semantics<parallel>, #tpu.dimension_semantics<arbitrary>], iteration_bounds = array<i64: 2, 1, 1>, scalar_prefetch = 0 : i64, scratch_operands = 1 : i64, tpu.core_type = #tpu.core_type<tc>, window_params = [{transform_indices = @transform_0, window_bounds = array<i64: 256, 128>}, {transform_indices = @transform_1, window_bounds = array<i64: 128, 128>}, {transform_indices = @transform_2, window_bounds = array<i64: 256, 128>}]} {
    %c0_i32 = arith.constant 0 : i32
    %0 = arith.cmpi eq, %arg2, %c0_i32 : i32
    %1 = arith.extui %0 : i1 to i32
    %c0_i32_0 = arith.constant 0 : i32
    %2 = arith.cmpi ne, %1, %c0_i32_0 : i32
    scf.if %2 {
      %cst_10 = arith.constant 0.000000e+00 : f32
      %12 = vector.broadcast %cst_10 : f32 to vector<256x128xf32>
      %c0_11 = arith.constant 0 : index
      %c0_12 = arith.constant 0 : index
      %13 = vector.load %arg6[%c0_11, %c0_12] : memref<256x128xf32, #tpu.memory_space<vmem>>, vector<256x128xf32>
      tpu.vector_store %arg6[%c0_11, %c0_12], %12 {strides = array<i32>} : memref<256x128xf32, #tpu.memory_space<vmem>>, vector<256x128xf32>,
    } else {
    }
    %c0 = arith.constant 0 : index
    %c0_1 = arith.constant 0 : index
    %3 = vector.load %arg6[%c0, %c0_1] : memref<256x128xf32, #tpu.memory_space<vmem>>, vector<256x128xf32>
    %c0_2 = arith.constant 0 : index
    %c0_3 = arith.constant 0 : index
    %4 = vector.load %arg3[%c0_2, %c0_3] : memref<256x128xbf16, #tpu.memory_space<vmem>>, vector<256x128xbf16>
    %c0_4 = arith.constant 0 : index
    %c0_5 = arith.constant 0 : index
    %5 = vector.load %arg4[%c0_4, %c0_5] : memref<128x128xbf16, #tpu.memory_space<vmem>>, vector<128x128xbf16>
    %cst = arith.constant dense<0.000000e+00> : vector<256x128xf32>
    %6 = tpu.matmul %4, %5, %cst {dimension_numbers = #tpu.dot_dimension_numbers<[1], [0], [0], [1], [0, 0, 1, 1], [], []>} : vector<256x128xbf16>, vector<128x128xbf16>, vector<256x128xf32> -> vector<256x128xf32>
    %7 = arith.addf %3, %6 : vector<256x128xf32>
    %c0_6 = arith.constant 0 : index
    %c0_7 = arith.constant 0 : index
    %8 = vector.load %arg6[%c0_6, %c0_7] : memref<256x128xf32, #tpu.memory_space<vmem>>, vector<256x128xf32>
    tpu.vector_store %arg6[%c0_6, %c0_7], %7 {strides = array<i32>} : memref<256x128xf32, #tpu.memory_space<vmem>>, vector<256x128xf32>,
    %c0_i32_8 = arith.constant 0 : i32
    %9 = arith.cmpi eq, %arg2, %c0_i32_8 : i32
    %10 = arith.extui %9 : i1 to i32
    %c0_i32_9 = arith.constant 0 : i32
    %11 = arith.cmpi ne, %10, %c0_i32_9 : i32
    scf.if %11 {
      %c0_10 = arith.constant 0 : index
      %c0_11 = arith.constant 0 : index
      %12 = vector.load %arg6[%c0_10, %c0_11] : memref<256x128xf32, #tpu.memory_space<vmem>>, vector<256x128xf32>
      %cst_12 = arith.constant 0.000000e+00 : f32
      %13 = vector.broadcast %cst_12 : f32 to vector<256x128xf32>
      %14 = arith.cmpf oge, %12, %13 : vector<256x128xf32>
      %cst_13 = arith.constant 2.000000e-01 : f32
      %15 = vector.broadcast %cst_13 : f32 to vector<256x128xf32>
      %16 = arith.mulf %15, %12 : vector<256x128xf32>
      %17 = arith.select %14, %12, %16 : vector<256x128xi1>, vector<256x128xf32>
      %18 = arith.truncf %17 : vector<256x128xf32> to vector<256x128xbf16>
      %c0_14 = arith.constant 0 : index
      %c0_15 = arith.constant 0 : index
      %19 = vector.load %arg5[%c0_14, %c0_15] : memref<256x128xbf16, #tpu.memory_space<vmem>>, vector<256x128xbf16>
      tpu.vector_store %arg5[%c0_14, %c0_15], %18 {strides = array<i32>} : memref<256x128xbf16, #tpu.memory_space<vmem>>, vector<256x128xbf16>,
    } else {
    }
    return
  }
  func.func @transform_0(%arg0: i32, %arg1: i32, %arg2: i32) -> (i32, i32) {
    %c0_i32 = arith.constant 0 : i32
    return %arg0, %arg2 : i32, i32
  }
  func.func @transform_1(%arg0: i32, %arg1: i32, %arg2: i32) -> (i32, i32) {
    %c0_i32 = arith.constant 0 : i32
    return %arg2, %arg1 : i32, i32
  }
  func.func @transform_2(%arg0: i32, %arg1: i32, %arg2: i32) -> (i32, i32) {
    %c0_i32 = arith.constant 0 : i32
    return %arg0, %arg1 : i32, i32
  }
}

module attributes {stable_mosaic.version = 11 : i64} {
  func.func @_mm_bn_leaky_kernel(%arg0: i32, %arg1: i32, %arg2: memref<128x1024xbf16, #tpu.memory_space<vmem>>, %arg3: memref<1024x128xbf16, #tpu.memory_space<vmem>>, %arg4: memref<1x128xf32, #tpu.memory_space<vmem>>, %arg5: memref<1x128xf32, #tpu.memory_space<vmem>>, %arg6: memref<128x128xbf16, #tpu.memory_space<vmem>>, %arg7: memref<128x128xf32, #tpu.memory_space<vmem>>) attributes {dimension_semantics = [#tpu.dimension_semantics<parallel>, #tpu.dimension_semantics<arbitrary>], iteration_bounds = array<i64: 1, 1>, scalar_prefetch = 0 : i64, scratch_operands = 1 : i64, tpu.core_type = #tpu.core_type<tc>, window_params = [{transform_indices = @transform_0, window_bounds = array<i64: 128, 1024>}, {transform_indices = @transform_1, window_bounds = array<i64: 1024, 128>}, {transform_indices = @transform_2, window_bounds = array<i64: 1, 128>}, {transform_indices = @transform_3, window_bounds = array<i64: 1, 128>}, {transform_indices = @transform_4, window_bounds = array<i64: 128, 128>}]} {
    %c0_i32 = arith.constant 0 : i32
    %0 = arith.cmpi eq, %arg1, %c0_i32 : i32
    %1 = arith.extui %0 : i1 to i32
    %c0_i32_0 = arith.constant 0 : i32
    %2 = arith.cmpi ne, %1, %c0_i32_0 : i32
    scf.if %2 {
      %cst_10 = arith.constant 0.000000e+00 : f32
      %12 = vector.broadcast %cst_10 : f32 to vector<128x128xf32>
      %c0_11 = arith.constant 0 : index
      %c0_12 = arith.constant 0 : index
      %13 = vector.load %arg7[%c0_11, %c0_12] : memref<128x128xf32, #tpu.memory_space<vmem>>, vector<128x128xf32>
      tpu.vector_store %arg7[%c0_11, %c0_12], %12 {strides = array<i32>} : memref<128x128xf32, #tpu.memory_space<vmem>>, vector<128x128xf32>,
    } else {
    }
    %c0 = arith.constant 0 : index
    %c0_1 = arith.constant 0 : index
    %3 = vector.load %arg7[%c0, %c0_1] : memref<128x128xf32, #tpu.memory_space<vmem>>, vector<128x128xf32>
    %c0_2 = arith.constant 0 : index
    %c0_3 = arith.constant 0 : index
    %4 = vector.load %arg2[%c0_2, %c0_3] : memref<128x1024xbf16, #tpu.memory_space<vmem>>, vector<128x1024xbf16>
    %c0_4 = arith.constant 0 : index
    %c0_5 = arith.constant 0 : index
    %5 = vector.load %arg3[%c0_4, %c0_5] : memref<1024x128xbf16, #tpu.memory_space<vmem>>, vector<1024x128xbf16>
    %cst = arith.constant dense<0.000000e+00> : vector<128x128xf32>
    %6 = tpu.matmul %4, %5, %cst {dimension_numbers = #tpu.dot_dimension_numbers<[1], [0], [0], [1], [0, 0, 1, 1], [], []>} : vector<128x1024xbf16>, vector<1024x128xbf16>, vector<128x128xf32> -> vector<128x128xf32>
    %7 = arith.addf %3, %6 : vector<128x128xf32>
    %c0_6 = arith.constant 0 : index
    %c0_7 = arith.constant 0 : index
    %8 = vector.load %arg7[%c0_6, %c0_7] : memref<128x128xf32, #tpu.memory_space<vmem>>, vector<128x128xf32>
    tpu.vector_store %arg7[%c0_6, %c0_7], %7 {strides = array<i32>} : memref<128x128xf32, #tpu.memory_space<vmem>>, vector<128x128xf32>,
    %c0_i32_8 = arith.constant 0 : i32
    %9 = arith.cmpi eq, %arg1, %c0_i32_8 : i32
    %10 = arith.extui %9 : i1 to i32
    %c0_i32_9 = arith.constant 0 : i32
    %11 = arith.cmpi ne, %10, %c0_i32_9 : i32
    scf.if %11 {
      %c0_10 = arith.constant 0 : index
      %c0_11 = arith.constant 0 : index
      %12 = vector.load %arg7[%c0_10, %c0_11] : memref<128x128xf32, #tpu.memory_space<vmem>>, vector<128x128xf32>
      %cst_12 = arith.constant dense<0.000000e+00> : vector<128xf32>
      %13 = vector.multi_reduction <add>, %12, %cst_12 [0] : vector<128x128xf32> to vector<128xf32>
      %14 = vector.shape_cast %13 : vector<128xf32> to vector<1x128xf32>
      %cst_13 = arith.constant 7.812500e-03 : f32
      %15 = vector.broadcast %cst_13 : f32 to vector<1x128xf32>
      %16 = arith.mulf %14, %15 : vector<1x128xf32>
      %17 = arith.mulf %12, %12 : vector<128x128xf32>
      %cst_14 = arith.constant dense<0.000000e+00> : vector<128xf32>
      %18 = vector.multi_reduction <add>, %17, %cst_14 [0] : vector<128x128xf32> to vector<128xf32>
      %19 = vector.shape_cast %18 : vector<128xf32> to vector<1x128xf32>
      %cst_15 = arith.constant 7.812500e-03 : f32
      %20 = vector.broadcast %cst_15 : f32 to vector<1x128xf32>
      %21 = arith.mulf %19, %20 : vector<1x128xf32>
      %22 = arith.mulf %16, %16 : vector<1x128xf32>
      %23 = arith.subf %21, %22 : vector<1x128xf32>
      %c0_16 = arith.constant 0 : index
      %c0_17 = arith.constant 0 : index
      %24 = vector.load %arg4[%c0_16, %c0_17] : memref<1x128xf32, #tpu.memory_space<vmem>>, vector<1x128xf32>
      %cst_18 = arith.constant 9.99999974E-6 : f32
      %25 = vector.broadcast %cst_18 : f32 to vector<1x128xf32>
      %26 = arith.addf %23, %25 : vector<1x128xf32>
      %27 = math.rsqrt %26 : vector<1x128xf32>
      %28 = arith.mulf %24, %27 : vector<1x128xf32>
      %c0_19 = arith.constant 0 : index
      %c0_20 = arith.constant 0 : index
      %29 = vector.load %arg5[%c0_19, %c0_20] : memref<1x128xf32, #tpu.memory_space<vmem>>, vector<1x128xf32>
      %30 = arith.mulf %16, %28 : vector<1x128xf32>
      %31 = arith.subf %29, %30 : vector<1x128xf32>
      %32 = vector.broadcast %28 : vector<1x128xf32> to vector<128x128xf32>
      %33 = arith.mulf %12, %32 : vector<128x128xf32>
      %34 = vector.broadcast %31 : vector<1x128xf32> to vector<128x128xf32>
      %35 = arith.addf %33, %34 : vector<128x128xf32>
      %cst_21 = arith.constant 0.000000e+00 : f32
      %36 = vector.broadcast %cst_21 : f32 to vector<128x128xf32>
      %37 = arith.cmpf oge, %35, %36 : vector<128x128xf32>
      %cst_22 = arith.constant 2.000000e-01 : f32
      %38 = vector.broadcast %cst_22 : f32 to vector<128x128xf32>
      %39 = arith.mulf %38, %35 : vector<128x128xf32>
      %40 = arith.select %37, %35, %39 : vector<128x128xi1>, vector<128x128xf32>
      %41 = arith.truncf %40 : vector<128x128xf32> to vector<128x128xbf16>
      %c0_23 = arith.constant 0 : index
      %c0_24 = arith.constant 0 : index
      %42 = vector.load %arg6[%c0_23, %c0_24] : memref<128x128xbf16, #tpu.memory_space<vmem>>, vector<128x128xbf16>
      tpu.vector_store %arg6[%c0_23, %c0_24], %41 {strides = array<i32>} : memref<128x128xbf16, #tpu.memory_space<vmem>>, vector<128x128xbf16>,
    } else {
    }
    return
  }
  func.func @transform_0(%arg0: i32, %arg1: i32) -> (i32, i32) {
    %c0_i32 = arith.constant 0 : i32
    %c0_i32_0 = arith.constant 0 : i32
    return %c0_i32, %arg1 : i32, i32
  }
  func.func @transform_1(%arg0: i32, %arg1: i32) -> (i32, i32) {
    %c0_i32 = arith.constant 0 : i32
    return %arg1, %arg0 : i32, i32
  }
  func.func @transform_2(%arg0: i32, %arg1: i32) -> (i32, i32) {
    %c0_i32 = arith.constant 0 : i32
    %c0_i32_0 = arith.constant 0 : i32
    return %c0_i32, %arg0 : i32, i32
  }
  func.func @transform_3(%arg0: i32, %arg1: i32) -> (i32, i32) {
    %c0_i32 = arith.constant 0 : i32
    %c0_i32_0 = arith.constant 0 : i32
    return %c0_i32, %arg0 : i32, i32
  }
  func.func @transform_4(%arg0: i32, %arg1: i32) -> (i32, i32) {
    %c0_i32 = arith.constant 0 : i32
    %c0_i32_0 = arith.constant 0 : i32
    return %c0_i32, %arg0 : i32, i32
  }
}

module attributes {stable_mosaic.version = 11 : i64} {
  func.func @_mm_bn_leaky_kernel(%arg0: i32, %arg1: i32, %arg2: memref<32x2048xbf16, #tpu.memory_space<vmem>>, %arg3: memref<2048x128xbf16, #tpu.memory_space<vmem>>, %arg4: memref<1x128xf32, #tpu.memory_space<vmem>>, %arg5: memref<1x128xf32, #tpu.memory_space<vmem>>, %arg6: memref<32x128xbf16, #tpu.memory_space<vmem>>, %arg7: memref<32x128xf32, #tpu.memory_space<vmem>>) attributes {dimension_semantics = [#tpu.dimension_semantics<parallel>, #tpu.dimension_semantics<arbitrary>], iteration_bounds = array<i64: 2, 1>, scalar_prefetch = 0 : i64, scratch_operands = 1 : i64, tpu.core_type = #tpu.core_type<tc>, window_params = [{transform_indices = @transform_0, window_bounds = array<i64: 32, 2048>}, {transform_indices = @transform_1, window_bounds = array<i64: 2048, 128>}, {transform_indices = @transform_2, window_bounds = array<i64: 1, 128>}, {transform_indices = @transform_3, window_bounds = array<i64: 1, 128>}, {transform_indices = @transform_4, window_bounds = array<i64: 32, 128>}]} {
    %c0_i32 = arith.constant 0 : i32
    %0 = arith.cmpi eq, %arg1, %c0_i32 : i32
    %1 = arith.extui %0 : i1 to i32
    %c0_i32_0 = arith.constant 0 : i32
    %2 = arith.cmpi ne, %1, %c0_i32_0 : i32
    scf.if %2 {
      %cst_10 = arith.constant 0.000000e+00 : f32
      %12 = vector.broadcast %cst_10 : f32 to vector<32x128xf32>
      %c0_11 = arith.constant 0 : index
      %c0_12 = arith.constant 0 : index
      %13 = vector.load %arg7[%c0_11, %c0_12] : memref<32x128xf32, #tpu.memory_space<vmem>>, vector<32x128xf32>
      tpu.vector_store %arg7[%c0_11, %c0_12], %12 {strides = array<i32>} : memref<32x128xf32, #tpu.memory_space<vmem>>, vector<32x128xf32>,
    } else {
    }
    %c0 = arith.constant 0 : index
    %c0_1 = arith.constant 0 : index
    %3 = vector.load %arg7[%c0, %c0_1] : memref<32x128xf32, #tpu.memory_space<vmem>>, vector<32x128xf32>
    %c0_2 = arith.constant 0 : index
    %c0_3 = arith.constant 0 : index
    %4 = vector.load %arg2[%c0_2, %c0_3] : memref<32x2048xbf16, #tpu.memory_space<vmem>>, vector<32x2048xbf16>
    %c0_4 = arith.constant 0 : index
    %c0_5 = arith.constant 0 : index
    %5 = vector.load %arg3[%c0_4, %c0_5] : memref<2048x128xbf16, #tpu.memory_space<vmem>>, vector<2048x128xbf16>
    %cst = arith.constant dense<0.000000e+00> : vector<32x128xf32>
    %6 = tpu.matmul %4, %5, %cst {dimension_numbers = #tpu.dot_dimension_numbers<[1], [0], [0], [1], [0, 0, 1, 1], [], []>} : vector<32x2048xbf16>, vector<2048x128xbf16>, vector<32x128xf32> -> vector<32x128xf32>
    %7 = arith.addf %3, %6 : vector<32x128xf32>
    %c0_6 = arith.constant 0 : index
    %c0_7 = arith.constant 0 : index
    %8 = vector.load %arg7[%c0_6, %c0_7] : memref<32x128xf32, #tpu.memory_space<vmem>>, vector<32x128xf32>
    tpu.vector_store %arg7[%c0_6, %c0_7], %7 {strides = array<i32>} : memref<32x128xf32, #tpu.memory_space<vmem>>, vector<32x128xf32>,
    %c0_i32_8 = arith.constant 0 : i32
    %9 = arith.cmpi eq, %arg1, %c0_i32_8 : i32
    %10 = arith.extui %9 : i1 to i32
    %c0_i32_9 = arith.constant 0 : i32
    %11 = arith.cmpi ne, %10, %c0_i32_9 : i32
    scf.if %11 {
      %c0_10 = arith.constant 0 : index
      %c0_11 = arith.constant 0 : index
      %12 = vector.load %arg7[%c0_10, %c0_11] : memref<32x128xf32, #tpu.memory_space<vmem>>, vector<32x128xf32>
      %cst_12 = arith.constant dense<0.000000e+00> : vector<128xf32>
      %13 = vector.multi_reduction <add>, %12, %cst_12 [0] : vector<32x128xf32> to vector<128xf32>
      %14 = vector.shape_cast %13 : vector<128xf32> to vector<1x128xf32>
      %cst_13 = arith.constant 3.125000e-02 : f32
      %15 = vector.broadcast %cst_13 : f32 to vector<1x128xf32>
      %16 = arith.mulf %14, %15 : vector<1x128xf32>
      %17 = arith.mulf %12, %12 : vector<32x128xf32>
      %cst_14 = arith.constant dense<0.000000e+00> : vector<128xf32>
      %18 = vector.multi_reduction <add>, %17, %cst_14 [0] : vector<32x128xf32> to vector<128xf32>
      %19 = vector.shape_cast %18 : vector<128xf32> to vector<1x128xf32>
      %cst_15 = arith.constant 3.125000e-02 : f32
      %20 = vector.broadcast %cst_15 : f32 to vector<1x128xf32>
      %21 = arith.mulf %19, %20 : vector<1x128xf32>
      %22 = arith.mulf %16, %16 : vector<1x128xf32>
      %23 = arith.subf %21, %22 : vector<1x128xf32>
      %c0_16 = arith.constant 0 : index
      %c0_17 = arith.constant 0 : index
      %24 = vector.load %arg4[%c0_16, %c0_17] : memref<1x128xf32, #tpu.memory_space<vmem>>, vector<1x128xf32>
      %cst_18 = arith.constant 9.99999974E-6 : f32
      %25 = vector.broadcast %cst_18 : f32 to vector<1x128xf32>
      %26 = arith.addf %23, %25 : vector<1x128xf32>
      %27 = math.rsqrt %26 : vector<1x128xf32>
      %28 = arith.mulf %24, %27 : vector<1x128xf32>
      %c0_19 = arith.constant 0 : index
      %c0_20 = arith.constant 0 : index
      %29 = vector.load %arg5[%c0_19, %c0_20] : memref<1x128xf32, #tpu.memory_space<vmem>>, vector<1x128xf32>
      %30 = arith.mulf %16, %28 : vector<1x128xf32>
      %31 = arith.subf %29, %30 : vector<1x128xf32>
      %32 = vector.broadcast %28 : vector<1x128xf32> to vector<32x128xf32>
      %33 = arith.mulf %12, %32 : vector<32x128xf32>
      %34 = vector.broadcast %31 : vector<1x128xf32> to vector<32x128xf32>
      %35 = arith.addf %33, %34 : vector<32x128xf32>
      %cst_21 = arith.constant 0.000000e+00 : f32
      %36 = vector.broadcast %cst_21 : f32 to vector<32x128xf32>
      %37 = arith.cmpf oge, %35, %36 : vector<32x128xf32>
      %cst_22 = arith.constant 2.000000e-01 : f32
      %38 = vector.broadcast %cst_22 : f32 to vector<32x128xf32>
      %39 = arith.mulf %38, %35 : vector<32x128xf32>
      %40 = arith.select %37, %35, %39 : vector<32x128xi1>, vector<32x128xf32>
      %41 = arith.truncf %40 : vector<32x128xf32> to vector<32x128xbf16>
      %c0_23 = arith.constant 0 : index
      %c0_24 = arith.constant 0 : index
      %42 = vector.load %arg6[%c0_23, %c0_24] : memref<32x128xbf16, #tpu.memory_space<vmem>>, vector<32x128xbf16>
      tpu.vector_store %arg6[%c0_23, %c0_24], %41 {strides = array<i32>} : memref<32x128xbf16, #tpu.memory_space<vmem>>, vector<32x128xbf16>,
    } else {
    }
    return
  }
  func.func @transform_0(%arg0: i32, %arg1: i32) -> (i32, i32) {
    %c0_i32 = arith.constant 0 : i32
    %c0_i32_0 = arith.constant 0 : i32
    return %c0_i32, %arg1 : i32, i32
  }
  func.func @transform_1(%arg0: i32, %arg1: i32) -> (i32, i32) {
    %c0_i32 = arith.constant 0 : i32
    return %arg1, %arg0 : i32, i32
  }
  func.func @transform_2(%arg0: i32, %arg1: i32) -> (i32, i32) {
    %c0_i32 = arith.constant 0 : i32
    %c0_i32_0 = arith.constant 0 : i32
    return %c0_i32, %arg0 : i32, i32
  }
  func.func @transform_3(%arg0: i32, %arg1: i32) -> (i32, i32) {
    %c0_i32 = arith.constant 0 : i32
    %c0_i32_0 = arith.constant 0 : i32
    return %c0_i32, %arg0 : i32, i32
  }
  func.func @transform_4(%arg0: i32, %arg1: i32) -> (i32, i32) {
    %c0_i32 = arith.constant 0 : i32
    %c0_i32_0 = arith.constant 0 : i32
    return %c0_i32, %arg0 : i32, i32
  }
}

module attributes {stable_mosaic.version = 11 : i64} {
  func.func @_mm_bn_leaky_kernel(%arg0: i32, %arg1: i32, %arg2: memref<32x2048xbf16, #tpu.memory_space<vmem>>, %arg3: memref<2048x256xbf16, #tpu.memory_space<vmem>>, %arg4: memref<1x256xf32, #tpu.memory_space<vmem>>, %arg5: memref<1x256xf32, #tpu.memory_space<vmem>>, %arg6: memref<32x256xbf16, #tpu.memory_space<vmem>>, %arg7: memref<32x256xf32, #tpu.memory_space<vmem>>) attributes {dimension_semantics = [#tpu.dimension_semantics<parallel>, #tpu.dimension_semantics<arbitrary>], iteration_bounds = array<i64: 2, 2>, scalar_prefetch = 0 : i64, scratch_operands = 1 : i64, tpu.core_type = #tpu.core_type<tc>, window_params = [{transform_indices = @transform_0, window_bounds = array<i64: 32, 2048>}, {transform_indices = @transform_1, window_bounds = array<i64: 2048, 256>}, {transform_indices = @transform_2, window_bounds = array<i64: 1, 256>}, {transform_indices = @transform_3, window_bounds = array<i64: 1, 256>}, {transform_indices = @transform_4, window_bounds = array<i64: 32, 256>}]} {
    %c0_i32 = arith.constant 0 : i32
    %0 = arith.cmpi eq, %arg1, %c0_i32 : i32
    %1 = arith.extui %0 : i1 to i32
    %c0_i32_0 = arith.constant 0 : i32
    %2 = arith.cmpi ne, %1, %c0_i32_0 : i32
    scf.if %2 {
      %cst_9 = arith.constant 0.000000e+00 : f32
      %12 = vector.broadcast %cst_9 : f32 to vector<32x256xf32>
      %c0_10 = arith.constant 0 : index
      %c0_11 = arith.constant 0 : index
      %13 = vector.load %arg7[%c0_10, %c0_11] : memref<32x256xf32, #tpu.memory_space<vmem>>, vector<32x256xf32>
      tpu.vector_store %arg7[%c0_10, %c0_11], %12 {strides = array<i32>} : memref<32x256xf32, #tpu.memory_space<vmem>>, vector<32x256xf32>,
    } else {
    }
    %c0 = arith.constant 0 : index
    %c0_1 = arith.constant 0 : index
    %3 = vector.load %arg7[%c0, %c0_1] : memref<32x256xf32, #tpu.memory_space<vmem>>, vector<32x256xf32>
    %c0_2 = arith.constant 0 : index
    %c0_3 = arith.constant 0 : index
    %4 = vector.load %arg2[%c0_2, %c0_3] : memref<32x2048xbf16, #tpu.memory_space<vmem>>, vector<32x2048xbf16>
    %c0_4 = arith.constant 0 : index
    %c0_5 = arith.constant 0 : index
    %5 = vector.load %arg3[%c0_4, %c0_5] : memref<2048x256xbf16, #tpu.memory_space<vmem>>, vector<2048x256xbf16>
    %cst = arith.constant dense<0.000000e+00> : vector<32x256xf32>
    %6 = tpu.matmul %4, %5, %cst {dimension_numbers = #tpu.dot_dimension_numbers<[1], [0], [0], [1], [0, 0, 1, 1], [], []>} : vector<32x2048xbf16>, vector<2048x256xbf16>, vector<32x256xf32> -> vector<32x256xf32>
    %7 = arith.addf %3, %6 : vector<32x256xf32>
    %c0_6 = arith.constant 0 : index
    %c0_7 = arith.constant 0 : index
    %8 = vector.load %arg7[%c0_6, %c0_7] : memref<32x256xf32, #tpu.memory_space<vmem>>, vector<32x256xf32>
    tpu.vector_store %arg7[%c0_6, %c0_7], %7 {strides = array<i32>} : memref<32x256xf32, #tpu.memory_space<vmem>>, vector<32x256xf32>,
    %c1_i32 = arith.constant 1 : i32
    %9 = arith.cmpi eq, %arg1, %c1_i32 : i32
    %10 = arith.extui %9 : i1 to i32
    %c0_i32_8 = arith.constant 0 : i32
    %11 = arith.cmpi ne, %10, %c0_i32_8 : i32
    scf.if %11 {
      %c0_9 = arith.constant 0 : index
      %c0_10 = arith.constant 0 : index
      %12 = vector.load %arg7[%c0_9, %c0_10] : memref<32x256xf32, #tpu.memory_space<vmem>>, vector<32x256xf32>
      %cst_11 = arith.constant dense<0.000000e+00> : vector<256xf32>
      %13 = vector.multi_reduction <add>, %12, %cst_11 [0] : vector<32x256xf32> to vector<256xf32>
      %14 = vector.shape_cast %13 : vector<256xf32> to vector<1x256xf32>
      %cst_12 = arith.constant 0.055555556 : f32
      %15 = vector.broadcast %cst_12 : f32 to vector<1x256xf32>
      %16 = arith.mulf %14, %15 : vector<1x256xf32>
      %17 = arith.mulf %12, %12 : vector<32x256xf32>
      %cst_13 = arith.constant dense<0.000000e+00> : vector<256xf32>
      %18 = vector.multi_reduction <add>, %17, %cst_13 [0] : vector<32x256xf32> to vector<256xf32>
      %19 = vector.shape_cast %18 : vector<256xf32> to vector<1x256xf32>
      %cst_14 = arith.constant 0.055555556 : f32
      %20 = vector.broadcast %cst_14 : f32 to vector<1x256xf32>
      %21 = arith.mulf %19, %20 : vector<1x256xf32>
      %22 = arith.mulf %16, %16 : vector<1x256xf32>
      %23 = arith.subf %21, %22 : vector<1x256xf32>
      %c0_15 = arith.constant 0 : index
      %c0_16 = arith.constant 0 : index
      %24 = vector.load %arg4[%c0_15, %c0_16] : memref<1x256xf32, #tpu.memory_space<vmem>>, vector<1x256xf32>
      %cst_17 = arith.constant 9.99999974E-6 : f32
      %25 = vector.broadcast %cst_17 : f32 to vector<1x256xf32>
      %26 = arith.addf %23, %25 : vector<1x256xf32>
      %27 = math.rsqrt %26 : vector<1x256xf32>
      %28 = arith.mulf %24, %27 : vector<1x256xf32>
      %c0_18 = arith.constant 0 : index
      %c0_19 = arith.constant 0 : index
      %29 = vector.load %arg5[%c0_18, %c0_19] : memref<1x256xf32, #tpu.memory_space<vmem>>, vector<1x256xf32>
      %30 = arith.mulf %16, %28 : vector<1x256xf32>
      %31 = arith.subf %29, %30 : vector<1x256xf32>
      %32 = vector.broadcast %28 : vector<1x256xf32> to vector<32x256xf32>
      %33 = arith.mulf %12, %32 : vector<32x256xf32>
      %34 = vector.broadcast %31 : vector<1x256xf32> to vector<32x256xf32>
      %35 = arith.addf %33, %34 : vector<32x256xf32>
      %cst_20 = arith.constant 0.000000e+00 : f32
      %36 = vector.broadcast %cst_20 : f32 to vector<32x256xf32>
      %37 = arith.cmpf oge, %35, %36 : vector<32x256xf32>
      %cst_21 = arith.constant 2.000000e-01 : f32
      %38 = vector.broadcast %cst_21 : f32 to vector<32x256xf32>
      %39 = arith.mulf %38, %35 : vector<32x256xf32>
      %40 = arith.select %37, %35, %39 : vector<32x256xi1>, vector<32x256xf32>
      %41 = arith.truncf %40 : vector<32x256xf32> to vector<32x256xbf16>
      %c0_22 = arith.constant 0 : index
      %c0_23 = arith.constant 0 : index
      %42 = vector.load %arg6[%c0_22, %c0_23] : memref<32x256xbf16, #tpu.memory_space<vmem>>, vector<32x256xbf16>
      tpu.vector_store %arg6[%c0_22, %c0_23], %41 {strides = array<i32>} : memref<32x256xbf16, #tpu.memory_space<vmem>>, vector<32x256xbf16>,
    } else {
    }
    return
  }
  func.func @transform_0(%arg0: i32, %arg1: i32) -> (i32, i32) {
    %c0_i32 = arith.constant 0 : i32
    %c0_i32_0 = arith.constant 0 : i32
    return %c0_i32, %arg1 : i32, i32
  }
  func.func @transform_1(%arg0: i32, %arg1: i32) -> (i32, i32) {
    %c0_i32 = arith.constant 0 : i32
    return %arg1, %arg0 : i32, i32
  }
  func.func @transform_2(%arg0: i32, %arg1: i32) -> (i32, i32) {
    %c0_i32 = arith.constant 0 : i32
    %c0_i32_0 = arith.constant 0 : i32
    return %c0_i32, %arg0 : i32, i32
  }
  func.func @transform_3(%arg0: i32, %arg1: i32) -> (i32, i32) {
    %c0_i32 = arith.constant 0 : i32
    %c0_i32_0 = arith.constant 0 : i32
    return %c0_i32, %arg0 : i32, i32
  }
  func.func @transform_4(%arg0: i32, %arg1: i32) -> (i32, i32) {
    %c0_i32 = arith.constant 0 : i32
    %c0_i32_0 = arith.constant 0 : i32
    return %c0_i32, %arg0 : i32, i32
  }
}

</mosaic_0001>

<llo_original>
// kernel: discriminator_forward.4
$region0: #{discriminator_forward.4}
  #allocation0 [shape = 'u32[]', space=smem, size = 0x4, offset = 0x4, fixed_abs, tag = 'smem constant byte address 0x4 - core index']
  #allocation1 [shape = 'u32[144,128]{1,0:T(1,128)}', space=vmem, size = 0x12000, scoped, tag = 'internal scratch']
  #allocation2 [shape = 'f32[256,128]{1,0:T(8,128)}', space=vmem, size = 0x20000, scoped, tag = 'scratch operand']
  %s0 = inlined_call_operand.vmem [shape: bf16[512,128], index: 0, kind: input, shape index: {}]
  %s1 = inlined_call_operand.vmem [shape: bf16[128,128], index: 1, kind: input, shape index: {}]
  %s2 = inlined_call_operand.vmem [shape: bf16[512,128], index: 2, kind: output, shape index: {}]
  %s3 = sld [smem:[#allocation0]]
  $region49: #{discriminator_forward.4} parent=0
    _
  %s5 = ssub.s32 1, %s3
  %s6 = scalar_select 0, %s5, %s3
  loop: start=0, step=1, limit=4
  $region2: #{discriminator_forward.4} parent=0 // loop_pre_header
    _
  $region3: #{discriminator_forward.4} parent=0 // loop_header
    %s8 = sphi 0, %s12
    %p9 = scmp.ge.s32.totalorder %s8, 4
    %s15 = sphi 0, %s34
    %s16 = sphi 0, %s30
    %s17 = sphi 0, %s26
    %s18 = sphi 0, %s15
    %s19 = sphi 0, %s16
    %s20 = sphi 0, %s17
    %s21 = sphi 0, %s18
    %s22 = sphi 0, %s19
    %s23 = sphi 0, %s20
    %s39 = sphi 0, %s41
    %s42 = sphi 0, %s39
    %s43 = sphi 0, %s42
    %s59 = sphi 0, %s43
    %s67 = sphi 0, %s69
    %s70 = sphi 0, %s67
    %s71 = sphi 0, %s70
    %s87 = sphi 0, %s71
    %s95 = sphi 0, %s97
    %s98 = sphi 0, %s95
    %s99 = sphi 0, %s98
    %s115 = sphi 0, %s99
  $region4: #{discriminator_forward.4} parent=0 // loop_header_branch
    %11 = sbr.rel (%p9) target = $region8
  $region5: #{discriminator_forward.4} parent=0 // loop_body
    %s13 = ssub.s32 %s8, 1
    %s14 = ssub.s32 %s8, 2
    %s24 = sadd.s32 1, %s17
    %p25 = scmp.ge.s32.totalorder %s24, 1
    %s26 = scalar_select %p25, 0, %s24
    %s27 = sadd.s32 1, %s16
    %s28 = scalar_select %p25, %s27, %s16
    %p29 = scmp.ge.s32.totalorder %s28, 1
    %s30 = scalar_select %p29, 0, %s28
    %s31 = sadd.s32 1, %s15
    %s32 = scalar_select %p29, %s31, %s15
    %p33 = scmp.ge.s32.totalorder %s32, 2
    %s34 = scalar_select %p33, 0, %s32
    %s35 = ssub.s32 %s15, %s34
    %s36 = ssub.s32 %s17, %s26
    %s37 = sor.u32 %s35, %s36
    %p38 = scmp.eq.s32.totalorder %s37, 0
    %s40 = sadd.s32 %s39, 1
    %s41 = scalar_select %p38, %s39, %s40
    %p44 = pneg %p38
    %p45 = scmp.eq.s32.totalorder %s8, 1
    %p46 = por %p44, %p45
    %p47 = scmp.ne.s32.totalorder %s39, %s42
    %p48 = scmp.eq.s32.totalorder %s8, 0
    %p49 = por %p47, %p48
    %p50 = scmp.ne.s32.totalorder %s39, %s42
    %p51 = scmp.eq.s32.totalorder %s13, 1
    %p52 = por %p50, %p51
    %p53 = scmp.ne.s32.totalorder %s42, %s43
    %p54 = scmp.eq.s32.totalorder %s13, 0
    %p55 = por %p53, %p54
    %p56 = scmp.ne.s32.totalorder %s42, %s43
    %p57 = scmp.eq.s32.totalorder %s14, 1
    %p58 = por %p56, %p57
    %p60 = scmp.ne.s32.totalorder %s43, %s59
    %p61 = scmp.eq.s32.totalorder %s14, 0
    %p62 = por %p60, %p61
    %s63 = ssub.s32 %s17, %s26
    %s64 = ssub.s32 %s16, %s30
    %s65 = sor.u32 %s63, %s64
    %p66 = scmp.eq.s32.totalorder %s65, 0
    %s68 = sadd.s32 %s67, 1
    %s69 = scalar_select %p66, %s67, %s68
    %p72 = pneg %p66
    %p73 = scmp.eq.s32.totalorder %s8, 1
    %p74 = por %p72, %p73
    %p75 = scmp.ne.s32.totalorder %s67, %s70
    %p76 = scmp.eq.s32.totalorder %s8, 0
    %p77 = por %p75, %p76
    %p78 = scmp.ne.s32.totalorder %s67, %s70
    %p79 = scmp.eq.s32.totalorder %s13, 1
    %p80 = por %p78, %p79
    %p81 = scmp.ne.s32.totalorder %s70, %s71
    %p82 = scmp.eq.s32.totalorder %s13, 0
    %p83 = por %p81, %p82
    %p84 = scmp.ne.s32.totalorder %s70, %s71
    %p85 = scmp.eq.s32.totalorder %s14, 1
    %p86 = por %p84, %p85
    %p88 = scmp.ne.s32.totalorder %s71, %s87
    %p89 = scmp.eq.s32.totalorder %s14, 0
    %p90 = por %p88, %p89
    %s91 = ssub.s32 %s15, %s34
    %s92 = ssub.s32 %s16, %s30
    %s93 = sor.u32 %s91, %s92
    %p94 = scmp.eq.s32.totalorder %s93, 0
    %s96 = sadd.s32 %s95, 1
    %s97 = scalar_select %p94, %s95, %s96
    %p100 = pneg %p94
    %p101 = scmp.eq.s32.totalorder %s8, 1
    %p102 = por %p100, %p101
    %p103 = scmp.ne.s32.totalorder %s95, %s98
    %p104 = scmp.eq.s32.totalorder %s8, 0
    %p105 = por %p103, %p104
    %p106 = scmp.ne.s32.totalorder %s95, %s98
    %p107 = scmp.eq.s32.totalorder %s13, 1
    %p108 = por %p106, %p107
    %p109 = scmp.ne.s32.totalorder %s98, %s99
    %p110 = scmp.eq.s32.totalorder %s13, 0
    %p111 = por %p109, %p110
    %p112 = scmp.ne.s32.totalorder %s98, %s99
    %p113 = scmp.eq.s32.totalorder %s14, 1
    %p114 = por %p112, %p113
    %p116 = scmp.ne.s32.totalorder %s99, %s115
    %p117 = scmp.eq.s32.totalorder %s14, 0
    %p118 = por %p116, %p117
    %p119 = scmp.le.s32.totalorder 1, %s8
    %p120 = scmp.lt.s32.totalorder %s8, 3
    %p121 = pnand %p119, %p120
    %p122 = pneg %p121
    // Predicated region
    $region9: #{discriminator_forward.4} parent=5 // pred_check
      _
    $region10: #{discriminator_forward.4} parent=5 // pred_check_branch
      %124 = sbr.rel (%p121) target = $region12
    $region11: #{discriminator_forward.4} parent=5 // pred_region
      %s125 = ssub.s32 %s8, 1
      // Predicated region
      $region13: #{discriminator_forward.4} parent=11 // pred_check
        %p126 = pneg %p83
      $region14: #{discriminator_forward.4} parent=11 // pred_check_branch
        %128 = sbr.rel (%p126) target = $region16
      $region15: #{discriminator_forward.4} parent=11 // pred_region
        %s129 = smul.u32 16, %s20
        %p130 = scmp.lt.s32.totalorder %s129, 15
        %s131 = scalar_select %p130, %s129, 15
        %p132 = scmp.lt.s32.totalorder %s19, 0
        %s133 = scalar_select %p132, %s19, 0
        %s134 = sadd.s32 %s133, %s131
        %s135 = smul.addr %s134, 4
        %s136 = scalar_lea.vmem %s1, %s135
        %s137 = smul.u32 16, %s20
      $region16: #{discriminator_forward.4} parent=11 // pred_fallthru
        _
    $region12: #{discriminator_forward.4} parent=5 // pred_fallthru
      _
    %p138 = scmp.lt.s32.totalorder %s8, 2
    // Predicated region
    $region17: #{discriminator_forward.4} parent=5 // pred_check
      %p139 = pneg %p138
    $region18: #{discriminator_forward.4} parent=5 // pred_check_branch
      %141 = sbr.rel (%p139) target = $region20
    $region19: #{discriminator_forward.4} parent=5 // pred_region
      // Predicated region
      $region21: #{discriminator_forward.4} parent=19 // pred_check
        %p142 = pneg %p49
      $region22: #{discriminator_forward.4} parent=19 // pred_check_branch
        %144 = sbr.rel (%p142) target = $region24
      $region23: #{discriminator_forward.4} parent=19 // pred_region
        %s145 = smul.u32 32, %s15
        %p146 = scmp.lt.s32.totalorder %s145, 63
        %s147 = scalar_select %p146, %s145, 63
        %p148 = scmp.lt.s32.totalorder %s17, 0
        %s149 = scalar_select %p148, %s17, 0
        %s150 = sadd.s32 %s149, %s147
        %s151 = smul.addr %s150, 4
        %s152 = scalar_lea.vmem %s0, %s151
        %s153 = smul.u32 32, %s15
      $region24: #{discriminator_forward.4} parent=19 // pred_fallthru
        _
    $region20: #{discriminator_forward.4} parent=5 // pred_fallthru
      _
    %p154 = scmp.le.s32.totalorder 1, %s8
    %p155 = scmp.lt.s32.totalorder %s8, 3
    %p156 = pnand %p154, %p155
    %p157 = pneg %p156
    // Predicated region
    $region25: #{discriminator_forward.4} parent=5 // pred_check
      _
    $region26: #{discriminator_forward.4} parent=5 // pred_check_branch
      %159 = sbr.rel (%p156) target = $region28
    $region27: #{discriminator_forward.4} parent=5 // pred_region
      %s160 = ssub.s32 %s8, 1
      %s161 = smul.u32 32, %s18
      %p162 = scmp.lt.s32.totalorder %s161, 63
      %s163 = scalar_select %p162, %s161, 63
      %p164 = scmp.lt.s32.totalorder %s20, 0
      %s165 = scalar_select %p164, %s20, 0
      %s166 = sadd.s32 %s165, %s163
      %s167 = smul.addr %s166, 4
      %s168 = scalar_lea.vmem %s0, %s167
      %p169 = pneg %p55
      %p170 = pneg %p52
      %s171 = smul.u32 16, %s20
      %p172 = scmp.lt.s32.totalorder %s171, 15
      %s173 = scalar_select %p172, %s171, 15
      %p174 = scmp.lt.s32.totalorder %s19, 0
      %s175 = scalar_select %p174, %s19, 0
      %s176 = sadd.s32 %s175, %s173
      %s177 = smul.addr %s176, 4
      %s178 = scalar_lea.vmem %s1, %s177
      %p179 = pneg %p83
      %p180 = pneg %p80
      %p181 = pneg %p111
      %p182 = pneg %p108
      %s183 = smul.u32 32, %s18
      %p184 = scmp.lt.s32.totalorder %s183, 63
      %s185 = scalar_select %p184, %s183, 63
      %p186 = scmp.lt.s32.totalorder %s19, 0
      %s187 = scalar_select %p186, %s19, 0
      %s188 = sadd.s32 %s187, %s185
      %s189 = smul.addr %s188, 4
      %s190 = scalar_lea.vmem %s2, %s189
      %s191 = smul.u32 32, %s18
      %p192 = scmp.lt.s32.totalorder %s191, 63
      %s193 = scalar_select %p192, %s191, 63
      %p194 = scmp.lt.s32.totalorder %s20, 0
      %s195 = scalar_select %p194, %s20, 0
      %s196 = sadd.s32 %s195, %s193
      %s197 = smul.addr %s196, 4
      %s198 = scalar_lea.vmem %s0, %s197
      %s199 = smul.u32 32, %s18
      %s200 = smul.u32 16, %s20
      %p201 = scmp.lt.s32.totalorder %s200, 15
      %s202 = scalar_select %p201, %s200, 15
      %p203 = scmp.lt.s32.totalorder %s19, 0
      %s204 = scalar_select %p203, %s19, 0
      %s205 = sadd.s32 %s204, %s202
      %s206 = smul.addr %s205, 4
      %s207 = scalar_lea.vmem %s1, %s206
      %s208 = smul.u32 16, %s20
      %s209 = smul.u32 32, %s18
      %p210 = scmp.lt.s32.totalorder %s209, 63
      %s211 = scalar_select %p210, %s209, 63
      %p212 = scmp.lt.s32.totalorder %s19, 0
      %s213 = scalar_select %p212, %s19, 0
      %s214 = sadd.s32 %s213, %s211
      %s215 = smul.addr %s214, 4
      %s216 = scalar_lea.vmem %s2, %s215
      %s217 = smul.u32 32, %s18
      %p219 = scmp.eq.s32.totalorder %s20, 0
      // Predicated region
      $region29: #{discriminator_forward.4} parent=27 // pred_check
        %p220 = pneg %p219
      $region30: #{discriminator_forward.4} parent=27 // pred_check_branch
        %222 = sbr.rel (%p220) target = $region32
      $region31: #{discriminator_forward.4} parent=27 // pred_region
        %223 = vst [vmem:[#allocation2] sm:$0xff] 0.0
        %224 = vst [vmem:[#allocation2 + $0x8] sm:$0xff] 0.0
        %225 = vst [vmem:[#allocation2 + $0x10] sm:$0xff] 0.0
        %226 = vst [vmem:[#allocation2 + $0x18] sm:$0xff] 0.0
        %227 = vst [vmem:[#allocation2 + $0x20] sm:$0xff] 0.0
        %228 = vst [vmem:[#allocation2 + $0x28] sm:$0xff] 0.0
        %229 = vst [vmem:[#allocation2 + $0x30] sm:$0xff] 0.0
        %230 = vst [vmem:[#allocation2 + $0x38] sm:$0xff] 0.0
        %231 = vst [vmem:[#allocation2 + $0x40] sm:$0xff] 0.0
        %232 = vst [vmem:[#allocation2 + $0x48] sm:$0xff] 0.0
        %233 = vst [vmem:[#allocation2 + $0x50] sm:$0xff] 0.0
        %234 = vst [vmem:[#allocation2 + $0x58] sm:$0xff] 0.0
        %235 = vst [vmem:[#allocation2 + $0x60] sm:$0xff] 0.0
        %236 = vst [vmem:[#allocation2 + $0x68] sm:$0xff] 0.0
        %237 = vst [vmem:[#allocation2 + $0x70] sm:$0xff] 0.0
        %238 = vst [vmem:[#allocation2 + $0x78] sm:$0xff] 0.0
        %239 = vst [vmem:[#allocation2 + $0x80] sm:$0xff] 0.0
        %240 = vst [vmem:[#allocation2 + $0x88] sm:$0xff] 0.0
        %241 = vst [vmem:[#allocation2 + $0x90] sm:$0xff] 0.0
        %242 = vst [vmem:[#allocation2 + $0x98] sm:$0xff] 0.0
        %243 = vst [vmem:[#allocation2 + $0xa0] sm:$0xff] 0.0
        %244 = vst [vmem:[#allocation2 + $0xa8] sm:$0xff] 0.0
        %245 = vst [vmem:[#allocation2 + $0xb0] sm:$0xff] 0.0
        %246 = vst [vmem:[#allocation2 + $0xb8] sm:$0xff] 0.0
        %247 = vst [vmem:[#allocation2 + $0xc0] sm:$0xff] 0.0
        %248 = vst [vmem:[#allocation2 + $0xc8] sm:$0xff] 0.0
        %249 = vst [vmem:[#allocation2 + $0xd0] sm:$0xff] 0.0
        %250 = vst [vmem:[#allocation2 + $0xd8] sm:$0xff] 0.0
        %251 = vst [vmem:[#allocation2 + $0xe0] sm:$0xff] 0.0
        %252 = vst [vmem:[#allocation2 + $0xe8] sm:$0xff] 0.0
        %253 = vst [vmem:[#allocation2 + $0xf0] sm:$0xff] 0.0
        %254 = vst [vmem:[#allocation2 + $0xf8] sm:$0xff] 0.0
      $region32: #{discriminator_forward.4} parent=27 // pred_fallthru
        _
      %v255 = vld [vmem:[#allocation2] sm:$0xff]
      %v256 = vld [vmem:[#allocation2 + $0x8] sm:$0xff]
      %v257 = vld [vmem:[#allocation2 + $0x10] sm:$0xff]
      %v258 = vld [vmem:[#allocation2 + $0x18] sm:$0xff]
      %v259 = vld [vmem:[#allocation2 + $0x20] sm:$0xff]
      %v260 = vld [vmem:[#allocation2 + $0x28] sm:$0xff]
      %v261 = vld [vmem:[#allocation2 + $0x30] sm:$0xff]
      %v262 = vld [vmem:[#allocation2 + $0x38] sm:$0xff]
      %v263 = vld [vmem:[#allocation2 + $0x40] sm:$0xff]
      %v264 = vld [vmem:[#allocation2 + $0x48] sm:$0xff]
      %v265 = vld [vmem:[#allocation2 + $0x50] sm:$0xff]
      %v266 = vld [vmem:[#allocation2 + $0x58] sm:$0xff]
      %v267 = vld [vmem:[#allocation2 + $0x60] sm:$0xff]
      %v268 = vld [vmem:[#allocation2 + $0x68] sm:$0xff]
      %v269 = vld [vmem:[#allocation2 + $0x70] sm:$0xff]
      %v270 = vld [vmem:[#allocation2 + $0x78] sm:$0xff]
      %v271 = vld [vmem:[#allocation2 + $0x80] sm:$0xff]
      %v272 = vld [vmem:[#allocation2 + $0x88] sm:$0xff]
      %v273 = vld [vmem:[#allocation2 + $0x90] sm:$0xff]
      %v274 = vld [vmem:[#allocation2 + $0x98] sm:$0xff]
      %v275 = vld [vmem:[#allocation2 + $0xa0] sm:$0xff]
      %v276 = vld [vmem:[#allocation2 + $0xa8] sm:$0xff]
      %v277 = vld [vmem:[#allocation2 + $0xb0] sm:$0xff]
      %v278 = vld [vmem:[#allocation2 + $0xb8] sm:$0xff]
      %v279 = vld [vmem:[#allocation2 + $0xc0] sm:$0xff]
      %v280 = vld [vmem:[#allocation2 + $0xc8] sm:$0xff]
      %v281 = vld [vmem:[#allocation2 + $0xd0] sm:$0xff]
      %v282 = vld [vmem:[#allocation2 + $0xd8] sm:$0xff]
      %v283 = vld [vmem:[#allocation2 + $0xe0] sm:$0xff]
      %v284 = vld [vmem:[#allocation2 + $0xe8] sm:$0xff]
      %v285 = vld [vmem:[#allocation2 + $0xf0] sm:$0xff]
      %v286 = vld [vmem:[#allocation2 + $0xf8] sm:$0xff]
      %v287 = vld [vmem:[%s198] sm:$0xf]
      %v288 = vld [vmem:[%s198 + $0x4] sm:$0xf]
      %v289 = vld [vmem:[%s198 + $0x8] sm:$0xf]
      %v290 = vld [vmem:[%s198 + $0xc] sm:$0xf]
      %v291 = vld [vmem:[%s198 + $0x10] sm:$0xf]
      %v292 = vld [vmem:[%s198 + $0x14] sm:$0xf]
      %v293 = vld [vmem:[%s198 + $0x18] sm:$0xf]
      %v294 = vld [vmem:[%s198 + $0x1c] sm:$0xf]
      %v295 = vld [vmem:[%s198 + $0x20] sm:$0xf]
      %v296 = vld [vmem:[%s198 + $0x24] sm:$0xf]
      %v297 = vld [vmem:[%s198 + $0x28] sm:$0xf]
      %v298 = vld [vmem:[%s198 + $0x2c] sm:$0xf]
      %v299 = vld [vmem:[%s198 + $0x30] sm:$0xf]
      %v300 = vld [vmem:[%s198 + $0x34] sm:$0xf]
      %v301 = vld [vmem:[%s198 + $0x38] sm:$0xf]
      %v302 = vld [vmem:[%s198 + $0x3c] sm:$0xf]
      %v303 = vld [vmem:[%s198 + $0x40] sm:$0xf]
      %v304 = vld [vmem:[%s198 + $0x44] sm:$0xf]
      %v305 = vld [vmem:[%s198 + $0x48] sm:$0xf]
      %v306 = vld [vmem:[%s198 + $0x4c] sm:$0xf]
      %v307 = vld [vmem:[%s198 + $0x50] sm:$0xf]
      %v308 = vld [vmem:[%s198 + $0x54] sm:$0xf]
      %v309 = vld [vmem:[%s198 + $0x58] sm:$0xf]
      %v310 = vld [vmem:[%s198 + $0x5c] sm:$0xf]
      %v311 = vld [vmem:[%s198 + $0x60] sm:$0xf]
      %v312 = vld [vmem:[%s198 + $0x64] sm:$0xf]
      %v313 = vld [vmem:[%s198 + $0x68] sm:$0xf]
      %v314 = vld [vmem:[%s198 + $0x6c] sm:$0xf]
      %v315 = vld [vmem:[%s198 + $0x70] sm:$0xf]
      %v316 = vld [vmem:[%s198 + $0x74] sm:$0xf]
      %v317 = vld [vmem:[%s198 + $0x78] sm:$0xf]
      %v318 = vld [vmem:[%s198 + $0x7c] sm:$0xf]
      %v319 = vld [vmem:[%s207] sm:$0xf]
      %v320 = vld [vmem:[%s207 + $0x4] sm:$0xf]
      %v321 = vld [vmem:[%s207 + $0x8] sm:$0xf]
      %v322 = vld [vmem:[%s207 + $0xc] sm:$0xf]
      %v323 = vld [vmem:[%s207 + $0x10] sm:$0xf]
      %v324 = vld [vmem:[%s207 + $0x14] sm:$0xf]
      %v325 = vld [vmem:[%s207 + $0x18] sm:$0xf]
      %v326 = vld [vmem:[%s207 + $0x1c] sm:$0xf]
      %v327 = vld [vmem:[%s207 + $0x20] sm:$0xf]
      %v328 = vld [vmem:[%s207 + $0x24] sm:$0xf]
      %v329 = vld [vmem:[%s207 + $0x28] sm:$0xf]
      %v330 = vld [vmem:[%s207 + $0x2c] sm:$0xf]
      %v331 = vld [vmem:[%s207 + $0x30] sm:$0xf]
      %v332 = vld [vmem:[%s207 + $0x34] sm:$0xf]
      %v333 = vld [vmem:[%s207 + $0x38] sm:$0xf]
      %v334 = vld [vmem:[%s207 + $0x3c] sm:$0xf]
      %v367 = vunpack.c.l.b16 %v287
      %v368 = vunpack.c.l.b16 %v288
      %v369 = vunpack.c.l.b16 %v289
      %v370 = vunpack.c.l.b16 %v290
      %v371 = vunpack.c.l.b16 %v291
      %v372 = vunpack.c.l.b16 %v292
      %v373 = vunpack.c.l.b16 %v293
      %v374 = vunpack.c.l.b16 %v294
      %v375 = vunpack.c.l.b16 %v295
      %v376 = vunpack.c.l.b16 %v296
      %v377 = vunpack.c.l.b16 %v297
      %v378 = vunpack.c.l.b16 %v298
      %v379 = vunpack.c.l.b16 %v299
      %v380 = vunpack.c.l.b16 %v300
      %v381 = vunpack.c.l.b16 %v301
      %v382 = vunpack.c.l.b16 %v302
      %v383 = vunpack.c.l.b16 %v303
      %v384 = vunpack.c.l.b16 %v304
      %v385 = vunpack.c.l.b16 %v305
      %v386 = vunpack.c.l.b16 %v306
      %v387 = vunpack.c.l.b16 %v307
      %v388 = vunpack.c.l.b16 %v308
      %v389 = vunpack.c.l.b16 %v309
      %v390 = vunpack.c.l.b16 %v310
      %v391 = vunpack.c.l.b16 %v311
      %v392 = vunpack.c.l.b16 %v312
      %v393 = vunpack.c.l.b16 %v313
      %v394 = vunpack.c.l.b16 %v314
      %v395 = vunpack.c.l.b16 %v315
      %v396 = vunpack.c.l.b16 %v316
      %v397 = vunpack.c.l.b16 %v317
      %v398 = vunpack.c.l.b16 %v318
      %v399 = vpack.c.b16 %v368, %v367
      %v400 = vpack.c.b16 %v370, %v369
      %v401 = vpack.c.b16 %v372, %v371
      %v402 = vpack.c.b16 %v374, %v373
      %v403 = vpack.c.b16 %v376, %v375
      %v404 = vpack.c.b16 %v378, %v377
      %v405 = vpack.c.b16 %v380, %v379
      %v406 = vpack.c.b16 %v382, %v381
      %v407 = vpack.c.b16 %v384, %v383
      %v408 = vpack.c.b16 %v386, %v385
      %v409 = vpack.c.b16 %v388, %v387
      %v410 = vpack.c.b16 %v390, %v389
      %v411 = vpack.c.b16 %v392, %v391
      %v412 = vpack.c.b16 %v394, %v393
      %v413 = vpack.c.b16 %v396, %v395
      %v414 = vpack.c.b16 %v398, %v397
      %v447 = vunpack.c.l.b16 %v319
      %v448 = vunpack.c.l.b16 %v320
      %v449 = vunpack.c.l.b16 %v321
      %v450 = vunpack.c.l.b16 %v322
      %v451 = vunpack.c.l.b16 %v323
      %v452 = vunpack.c.l.b16 %v324
      %v453 = vunpack.c.l.b16 %v325
      %v454 = vunpack.c.l.b16 %v326
      %v455 = vunpack.c.l.b16 %v327
      %v456 = vunpack.c.l.b16 %v328
      %v457 = vunpack.c.l.b16 %v329
      %v458 = vunpack.c.l.b16 %v330
      %v459 = vunpack.c.l.b16 %v331
      %v460 = vunpack.c.l.b16 %v332
      %v461 = vunpack.c.l.b16 %v333
      %v462 = vunpack.c.l.b16 %v334
      %v463 = vpack.c.b16 %v448, %v447
      %v464 = vpack.c.b16 %v450, %v449
      %v465 = vpack.c.b16 %v452, %v451
      %v466 = vpack.c.b16 %v454, %v453
      %v467 = vpack.c.b16 %v456, %v455
      %v468 = vpack.c.b16 %v458, %v457
      %v469 = vpack.c.b16 %v460, %v459
      %v470 = vpack.c.b16 %v462, %v461
      %479 = vmatprep.subr.bf16.mxu0 0
      %480 = vmatpush1.bf16.msra.mxu0 %v463
      %481 = vmatprep.subr.bf16.mxu0 0
      %482 = vmatpush1.bf16.msra.mxu0 %v464
      %483 = vmatprep.subr.bf16.mxu0 0
      %484 = vmatpush1.bf16.msra.mxu0 %v465
      %485 = vmatprep.subr.bf16.mxu0 0
      %486 = vmatpush1.bf16.msra.mxu0 %v466
      %487 = vmatprep.subr.bf16.mxu0 0
      %488 = vmatpush1.bf16.msra.mxu0 %v467
      %489 = vmatprep.subr.bf16.mxu0 0
      %490 = vmatpush1.bf16.msra.mxu0 %v468
      %491 = vmatprep.subr.bf16.mxu0 0
      %492 = vmatpush1.bf16.msra.mxu0 %v469
      %493 = vmatprep.subr.bf16.mxu0 0
      %494 = vmatpush1.bf16.msra.mxu0 %v470
      %495 = vmatprep.subr.bf16.mxu0 0
      %496 = vmatpush1.bf16.msra.mxu0 0
      %497 = vmatprep.subr.bf16.mxu0 0
      %498 = vmatpush1.bf16.msra.mxu0 0
      %499 = vmatprep.subr.bf16.mxu0 0
      %500 = vmatpush1.bf16.msra.mxu0 0
      %501 = vmatprep.subr.bf16.mxu0 0
      %502 = vmatpush1.bf16.msra.mxu0 0
      %503 = vmatprep.subr.bf16.mxu0 0
      %504 = vmatpush1.bf16.msra.mxu0 0
      %505 = vmatprep.subr.bf16.mxu0 0
      %506 = vmatpush1.bf16.msra.mxu0 0
      %507 = vmatprep.subr.bf16.mxu0 0
      %508 = vmatpush1.bf16.msra.mxu0 0
      %509 = vmatprep.subr.bf16.mxu0 0
      %510 = vmatpush1.bf16.msra.mxu0 0
      %511 = vmatprep.mubr.bf16.mxu0 0
      %512 = vmatmul.mubr.bf16.gmra.mrb[0].mxu0 %v399
      %v513 = vpop.f32.mrb[0].mxu0
      %v514 = vadd.f32 0.0, %v513
      %v515 = vpop.f32.mrb[0].mxu0
      %v516 = vpop.f32.mrb[0].mxu0
      %v517 = vadd.f32 0.0, %v516
      %v518 = vpop.f32.mrb[0].mxu0
      %519 = vmatprep.mubr.bf16.mxu0 0
      %520 = vmatmul.mubr.bf16.gmra.mrb[0].mxu0 %v400
      %v521 = vpop.f32.mrb[0].mxu0
      %v522 = vadd.f32 0.0, %v521
      %v523 = vpop.f32.mrb[0].mxu0
      %v524 = vpop.f32.mrb[0].mxu0
      %v525 = vadd.f32 0.0, %v524
      %v526 = vpop.f32.mrb[0].mxu0
      %527 = vmatprep.mubr.bf16.mxu0 0
      %528 = vmatmul.mubr.bf16.gmra.mrb[0].mxu0 %v401
      %v529 = vpop.f32.mrb[0].mxu0
      %v530 = vadd.f32 0.0, %v529
      %v531 = vpop.f32.mrb[0].mxu0
      %v532 = vpop.f32.mrb[0].mxu0
      %v533 = vadd.f32 0.0, %v532
      %v534 = vpop.f32.mrb[0].mxu0
      %535 = vmatprep.mubr.bf16.mxu0 0
      %536 = vmatmul.mubr.bf16.gmra.mrb[0].mxu0 %v402
      %v537 = vpop.f32.mrb[0].mxu0
      %v538 = vadd.f32 0.0, %v537
      %v539 = vpop.f32.mrb[0].mxu0
      %v540 = vpop.f32.mrb[0].mxu0
      %v541 = vadd.f32 0.0, %v540
      %v542 = vpop.f32.mrb[0].mxu0
      %543 = vmatprep.mubr.bf16.mxu0 0
      %544 = vmatmul.mubr.bf16.gmra.mrb[0].mxu0 %v403
      %v545 = vpop.f32.mrb[0].mxu0
      %v546 = vadd.f32 0.0, %v545
      %v547 = vpop.f32.mrb[0].mxu0
      %v548 = vpop.f32.mrb[0].mxu0
      %v549 = vadd.f32 0.0, %v548
      %v550 = vpop.f32.mrb[0].mxu0
      %551 = vmatprep.mubr.bf16.mxu0 0
      %552 = vmatmul.mubr.bf16.gmra.mrb[0].mxu0 %v404
      %v553 = vpop.f32.mrb[0].mxu0
      %v554 = vadd.f32 0.0, %v553
      %v555 = vpop.f32.mrb[0].mxu0
      %v556 = vpop.f32.mrb[0].mxu0
      %v557 = vadd.f32 0.0, %v556
      %v558 = vpop.f32.mrb[0].mxu0
      %559 = vmatprep.mubr.bf16.mxu0 0
      %560 = vmatmul.mubr.bf16.gmra.mrb[0].mxu0 %v405
      %v561 = vpop.f32.mrb[0].mxu0
      %v562 = vadd.f32 0.0, %v561
      %v563 = vpop.f32.mrb[0].mxu0
      %v564 = vpop.f32.mrb[0].mxu0
      %v565 = vadd.f32 0.0, %v564
      %v566 = vpop.f32.mrb[0].mxu0
      %567 = vmatprep.mubr.bf16.mxu0 0
      %568 = vmatmul.mubr.bf16.gmra.mrb[0].mxu0 %v406
      %v569 = vpop.f32.mrb[0].mxu0
      %v570 = vadd.f32 0.0, %v569
      %v571 = vpop.f32.mrb[0].mxu0
      %v572 = vpop.f32.mrb[0].mxu0
      %v573 = vadd.f32 0.0, %v572
      %v574 = vpop.f32.mrb[0].mxu0
      %575 = vmatprep.mubr.bf16.mxu0 0
      %576 = vmatmul.mubr.bf16.gmra.mrb[0].mxu0 %v407
      %v577 = vpop.f32.mrb[0].mxu0
      %v578 = vadd.f32 0.0, %v577
      %v579 = vpop.f32.mrb[0].mxu0
      %v580 = vpop.f32.mrb[0].mxu0
      %v581 = vadd.f32 0.0, %v580
      %v582 = vpop.f32.mrb[0].mxu0
      %583 = vmatprep.mubr.bf16.mxu0 0
      %584 = vmatmul.mubr.bf16.gmra.mrb[0].mxu0 %v408
      %v585 = vpop.f32.mrb[0].mxu0
      %v586 = vadd.f32 0.0, %v585
      %v587 = vpop.f32.mrb[0].mxu0
      %v588 = vpop.f32.mrb[0].mxu0
      %v589 = vadd.f32 0.0, %v588
      %v590 = vpop.f32.mrb[0].mxu0
      %591 = vmatprep.mubr.bf16.mxu0 0
      %592 = vmatmul.mubr.bf16.gmra.mrb[0].mxu0 %v409
      %v593 = vpop.f32.mrb[0].mxu0
      %v594 = vadd.f32 0.0, %v593
      %v595 = vpop.f32.mrb[0].mxu0
      %v596 = vpop.f32.mrb[0].mxu0
      %v597 = vadd.f32 0.0, %v596
      %v598 = vpop.f32.mrb[0].mxu0
      %599 = vmatprep.mubr.bf16.mxu0 0
      %600 = vmatmul.mubr.bf16.gmra.mrb[0].mxu0 %v410
      %v601 = vpop.f32.mrb[0].mxu0
      %v602 = vadd.f32 0.0, %v601
      %v603 = vpop.f32.mrb[0].mxu0
      %v604 = vpop.f32.mrb[0].mxu0
      %v605 = vadd.f32 0.0, %v604
      %v606 = vpop.f32.mrb[0].mxu0
      %607 = vmatprep.mubr.bf16.mxu0 0
      %608 = vmatmul.mubr.bf16.gmra.mrb[0].mxu0 %v411
      %v609 = vpop.f32.mrb[0].mxu0
      %v610 = vadd.f32 0.0, %v609
      %v611 = vpop.f32.mrb[0].mxu0
      %v612 = vpop.f32.mrb[0].mxu0
      %v613 = vadd.f32 0.0, %v612
      %v614 = vpop.f32.mrb[0].mxu0
      %615 = vmatprep.mubr.bf16.mxu0 0
      %616 = vmatmul.mubr.bf16.gmra.mrb[0].mxu0 %v412
      %v617 = vpop.f32.mrb[0].mxu0
      %v618 = vadd.f32 0.0, %v617
      %v619 = vpop.f32.mrb[0].mxu0
      %v620 = vpop.f32.mrb[0].mxu0
      %v621 = vadd.f32 0.0, %v620
      %v622 = vpop.f32.mrb[0].mxu0
      %623 = vmatprep.mubr.bf16.mxu0 0
      %624 = vmatmul.mubr.bf16.gmra.mrb[0].mxu0 %v413
      %v625 = vpop.f32.mrb[0].mxu0
      %v626 = vadd.f32 0.0, %v625
      %v627 = vpop.f32.mrb[0].mxu0
      %v628 = vpop.f32.mrb[0].mxu0
      %v629 = vadd.f32 0.0, %v628
      %v630 = vpop.f32.mrb[0].mxu0
      %631 = vmatprep.mubr.bf16.mxu0 0
      %632 = vmatmul.mubr.bf16.gmra.mrb[0].mxu0 %v414
      %v633 = vpop.f32.mrb[0].mxu0
      %v634 = vadd.f32 0.0, %v633
      %v635 = vpop.f32.mrb[0].mxu0
      %v636 = vpop.f32.mrb[0].mxu0
      %v637 = vadd.f32 0.0, %v636
      %v638 = vpop.f32.mrb[0].mxu0
      %639 = vdwg.mxu0
      %v640 = vadd.f32 %v255, %v514
      %v641 = vadd.f32 %v256, %v517
      %v642 = vadd.f32 %v257, %v522
      %v643 = vadd.f32 %v258, %v525
      %v644 = vadd.f32 %v259, %v530
      %v645 = vadd.f32 %v260, %v533
      %v646 = vadd.f32 %v261, %v538
      %v647 = vadd.f32 %v262, %v541
      %v648 = vadd.f32 %v263, %v546
      %v649 = vadd.f32 %v264, %v549
      %v650 = vadd.f32 %v265, %v554
      %v651 = vadd.f32 %v266, %v557
      %v652 = vadd.f32 %v267, %v562
      %v653 = vadd.f32 %v268, %v565
      %v654 = vadd.f32 %v269, %v570
      %v655 = vadd.f32 %v270, %v573
      %v656 = vadd.f32 %v271, %v578
      %v657 = vadd.f32 %v272, %v581
      %v658 = vadd.f32 %v273, %v586
      %v659 = vadd.f32 %v274, %v589
      %v660 = vadd.f32 %v275, %v594
      %v661 = vadd.f32 %v276, %v597
      %v662 = vadd.f32 %v277, %v602
      %v663 = vadd.f32 %v278, %v605
      %v664 = vadd.f32 %v279, %v610
      %v665 = vadd.f32 %v280, %v613
      %v666 = vadd.f32 %v281, %v618
      %v667 = vadd.f32 %v282, %v621
      %v668 = vadd.f32 %v283, %v626
      %v669 = vadd.f32 %v284, %v629
      %v670 = vadd.f32 %v285, %v634
      %v671 = vadd.f32 %v286, %v637
      %672 = vst [vmem:[#allocation2] sm:$0xff] %v640
      %673 = vst [vmem:[#allocation2 + $0x8] sm:$0xff] %v641
      %674 = vst [vmem:[#allocation2 + $0x10] sm:$0xff] %v642
      %675 = vst [vmem:[#allocation2 + $0x18] sm:$0xff] %v643
      %676 = vst [vmem:[#allocation2 + $0x20] sm:$0xff] %v644
      %677 = vst [vmem:[#allocation2 + $0x28] sm:$0xff] %v645
      %678 = vst [vmem:[#allocation2 + $0x30] sm:$0xff] %v646
      %679 = vst [vmem:[#allocation2 + $0x38] sm:$0xff] %v647
      %680 = vst [vmem:[#allocation2 + $0x40] sm:$0xff] %v648
      %681 = vst [vmem:[#allocation2 + $0x48] sm:$0xff] %v649
      %682 = vst [vmem:[#allocation2 + $0x50] sm:$0xff] %v650
      %683 = vst [vmem:[#allocation2 + $0x58] sm:$0xff] %v651
      %684 = vst [vmem:[#allocation2 + $0x60] sm:$0xff] %v652
      %685 = vst [vmem:[#allocation2 + $0x68] sm:$0xff] %v653
      %686 = vst [vmem:[#allocation2 + $0x70] sm:$0xff] %v654
      %687 = vst [vmem:[#allocation2 + $0x78] sm:$0xff] %v655
      %688 = vst [vmem:[#allocation2 + $0x80] sm:$0xff] %v656
      %689 = vst [vmem:[#allocation2 + $0x88] sm:$0xff] %v657
      %690 = vst [vmem:[#allocation2 + $0x90] sm:$0xff] %v658
      %691 = vst [vmem:[#allocation2 + $0x98] sm:$0xff] %v659
      %692 = vst [vmem:[#allocation2 + $0xa0] sm:$0xff] %v660
      %693 = vst [vmem:[#allocation2 + $0xa8] sm:$0xff] %v661
      %694 = vst [vmem:[#allocation2 + $0xb0] sm:$0xff] %v662
      %695 = vst [vmem:[#allocation2 + $0xb8] sm:$0xff] %v663
      %696 = vst [vmem:[#allocation2 + $0xc0] sm:$0xff] %v664
      %697 = vst [vmem:[#allocation2 + $0xc8] sm:$0xff] %v665
      %698 = vst [vmem:[#allocation2 + $0xd0] sm:$0xff] %v666
      %699 = vst [vmem:[#allocation2 + $0xd8] sm:$0xff] %v667
      %700 = vst [vmem:[#allocation2 + $0xe0] sm:$0xff] %v668
      %701 = vst [vmem:[#allocation2 + $0xe8] sm:$0xff] %v669
      %702 = vst [vmem:[#allocation2 + $0xf0] sm:$0xff] %v670
      %703 = vst [vmem:[#allocation2 + $0xf8] sm:$0xff] %v671
      // Predicated region
      $region33: #{discriminator_forward.4} parent=27 // pred_check
        %p704 = pneg %p219
      $region34: #{discriminator_forward.4} parent=27 // pred_check_branch
        %706 = sbr.rel (%p704) target = $region36
      $region35: #{discriminator_forward.4} parent=27 // pred_region
        %v707 = vld [vmem:[#allocation2] sm:$0xff]
        %v708 = vld [vmem:[#allocation2 + $0x8] sm:$0xff]
        %v709 = vld [vmem:[#allocation2 + $0x10] sm:$0xff]
        %v710 = vld [vmem:[#allocation2 + $0x18] sm:$0xff]
        %v711 = vld [vmem:[#allocation2 + $0x20] sm:$0xff]
        %v712 = vld [vmem:[#allocation2 + $0x28] sm:$0xff]
        %v713 = vld [vmem:[#allocation2 + $0x30] sm:$0xff]
        %v714 = vld [vmem:[#allocation2 + $0x38] sm:$0xff]
        %v715 = vld [vmem:[#allocation2 + $0x40] sm:$0xff]
        %v716 = vld [vmem:[#allocation2 + $0x48] sm:$0xff]
        %v717 = vld [vmem:[#allocation2 + $0x50] sm:$0xff]
        %v718 = vld [vmem:[#allocation2 + $0x58] sm:$0xff]
        %v719 = vld [vmem:[#allocation2 + $0x60] sm:$0xff]
        %v720 = vld [vmem:[#allocation2 + $0x68] sm:$0xff]
        %v721 = vld [vmem:[#allocation2 + $0x70] sm:$0xff]
        %v722 = vld [vmem:[#allocation2 + $0x78] sm:$0xff]
        %v723 = vld [vmem:[#allocation2 + $0x80] sm:$0xff]
        %v724 = vld [vmem:[#allocation2 + $0x88] sm:$0xff]
        %v725 = vld [vmem:[#allocation2 + $0x90] sm:$0xff]
        %v726 = vld [vmem:[#allocation2 + $0x98] sm:$0xff]
        %v727 = vld [vmem:[#allocation2 + $0xa0] sm:$0xff]
        %v728 = vld [vmem:[#allocation2 + $0xa8] sm:$0xff]
        %v729 = vld [vmem:[#allocation2 + $0xb0] sm:$0xff]
        %v730 = vld [vmem:[#allocation2 + $0xb8] sm:$0xff]
        %v731 = vld [vmem:[#allocation2 + $0xc0] sm:$0xff]
        %v732 = vld [vmem:[#allocation2 + $0xc8] sm:$0xff]
        %v733 = vld [vmem:[#allocation2 + $0xd0] sm:$0xff]
        %v734 = vld [vmem:[#allocation2 + $0xd8] sm:$0xff]
        %v735 = vld [vmem:[#allocation2 + $0xe0] sm:$0xff]
        %v736 = vld [vmem:[#allocation2 + $0xe8] sm:$0xff]
        %v737 = vld [vmem:[#allocation2 + $0xf0] sm:$0xff]
        %v738 = vld [vmem:[#allocation2 + $0xf8] sm:$0xff]
        %vm739 = vcmp.ge.f32.partialorder %v707, 0.0
        %vm740 = vcmp.ge.f32.partialorder %v708, 0.0
        %vm741 = vcmp.ge.f32.partialorder %v709, 0.0
        %vm742 = vcmp.ge.f32.partialorder %v710, 0.0
        %vm743 = vcmp.ge.f32.partialorder %v711, 0.0
        %vm744 = vcmp.ge.f32.partialorder %v712, 0.0
        %vm745 = vcmp.ge.f32.partialorder %v713, 0.0
        %vm746 = vcmp.ge.f32.partialorder %v714, 0.0
        %vm747 = vcmp.ge.f32.partialorder %v715, 0.0
        %vm748 = vcmp.ge.f32.partialorder %v716, 0.0
        %vm749 = vcmp.ge.f32.partialorder %v717, 0.0
        %vm750 = vcmp.ge.f32.partialorder %v718, 0.0
        %vm751 = vcmp.ge.f32.partialorder %v719, 0.0
        %vm752 = vcmp.ge.f32.partialorder %v720, 0.0
        %vm753 = vcmp.ge.f32.partialorder %v721, 0.0
        %vm754 = vcmp.ge.f32.partialorder %v722, 0.0
        %vm755 = vcmp.ge.f32.partialorder %v723, 0.0
        %vm756 = vcmp.ge.f32.partialorder %v724, 0.0
        %vm757 = vcmp.ge.f32.partialorder %v725, 0.0
        %vm758 = vcmp.ge.f32.partialorder %v726, 0.0
        %vm759 = vcmp.ge.f32.partialorder %v727, 0.0
        %vm760 = vcmp.ge.f32.partialorder %v728, 0.0
        %vm761 = vcmp.ge.f32.partialorder %v729, 0.0
        %vm762 = vcmp.ge.f32.partialorder %v730, 0.0
        %vm763 = vcmp.ge.f32.partialorder %v731, 0.0
        %vm764 = vcmp.ge.f32.partialorder %v732, 0.0
        %vm765 = vcmp.ge.f32.partialorder %v733, 0.0
        %vm766 = vcmp.ge.f32.partialorder %v734, 0.0
        %vm767 = vcmp.ge.f32.partialorder %v735, 0.0
        %vm768 = vcmp.ge.f32.partialorder %v736, 0.0
        %vm769 = vcmp.ge.f32.partialorder %v737, 0.0
        %vm770 = vcmp.ge.f32.partialorder %v738, 0.0
        %v771 = vmul.f32 %v707, 0.2
        %v772 = vmul.f32 %v708, 0.2
        %v773 = vmul.f32 %v709, 0.2
        %v774 = vmul.f32 %v710, 0.2
        %v775 = vmul.f32 %v711, 0.2
        %v776 = vmul.f32 %v712, 0.2
        %v777 = vmul.f32 %v713, 0.2
        %v778 = vmul.f32 %v714, 0.2
        %v779 = vmul.f32 %v715, 0.2
        %v780 = vmul.f32 %v716, 0.2
        %v781 = vmul.f32 %v717, 0.2
        %v782 = vmul.f32 %v718, 0.2
        %v783 = vmul.f32 %v719, 0.2
        %v784 = vmul.f32 %v720, 0.2
        %v785 = vmul.f32 %v721, 0.2
        %v786 = vmul.f32 %v722, 0.2
        %v787 = vmul.f32 %v723, 0.2
        %v788 = vmul.f32 %v724, 0.2
        %v789 = vmul.f32 %v725, 0.2
        %v790 = vmul.f32 %v726, 0.2
        %v791 = vmul.f32 %v727, 0.2
        %v792 = vmul.f32 %v728, 0.2
        %v793 = vmul.f32 %v729, 0.2
        %v794 = vmul.f32 %v730, 0.2
        %v795 = vmul.f32 %v731, 0.2
        %v796 = vmul.f32 %v732, 0.2
        %v797 = vmul.f32 %v733, 0.2
        %v798 = vmul.f32 %v734, 0.2
        %v799 = vmul.f32 %v735, 0.2
        %v800 = vmul.f32 %v736, 0.2
        %v801 = vmul.f32 %v737, 0.2
        %v802 = vmul.f32 %v738, 0.2
        %v803 = vsel %vm739, %v707, %v771
        %v804 = vsel %vm740, %v708, %v772
        %v805 = vsel %vm741, %v709, %v773
        %v806 = vsel %vm742, %v710, %v774
        %v807 = vsel %vm743, %v711, %v775
        %v808 = vsel %vm744, %v712, %v776
        %v809 = vsel %vm745, %v713, %v777
        %v810 = vsel %vm746, %v714, %v778
        %v811 = vsel %vm747, %v715, %v779
        %v812 = vsel %vm748, %v716, %v780
        %v813 = vsel %vm749, %v717, %v781
        %v814 = vsel %vm750, %v718, %v782
        %v815 = vsel %vm751, %v719, %v783
        %v816 = vsel %vm752, %v720, %v784
        %v817 = vsel %vm753, %v721, %v785
        %v818 = vsel %vm754, %v722, %v786
        %v819 = vsel %vm755, %v723, %v787
        %v820 = vsel %vm756, %v724, %v788
        %v821 = vsel %vm757, %v725, %v789
        %v822 = vsel %vm758, %v726, %v790
        %v823 = vsel %vm759, %v727, %v791
        %v824 = vsel %vm760, %v728, %v792
        %v825 = vsel %vm761, %v729, %v793
        %v826 = vsel %vm762, %v730, %v794
        %v827 = vsel %vm763, %v731, %v795
        %v828 = vsel %vm764, %v732, %v796
        %v829 = vsel %vm765, %v733, %v797
        %v830 = vsel %vm766, %v734, %v798
        %v831 = vsel %vm767, %v735, %v799
        %v832 = vsel %vm768, %v736, %v800
        %v833 = vsel %vm769, %v737, %v801
        %v834 = vsel %vm770, %v738, %v802
        %v835 = vpack.c.bf16 %v804, %v803
        %v836 = vpack.c.bf16 %v806, %v805
        %v837 = vpack.c.bf16 %v808, %v807
        %v838 = vpack.c.bf16 %v810, %v809
        %v839 = vpack.c.bf16 %v812, %v811
        %v840 = vpack.c.bf16 %v814, %v813
        %v841 = vpack.c.bf16 %v816, %v815
        %v842 = vpack.c.bf16 %v818, %v817
        %v843 = vpack.c.bf16 %v820, %v819
        %v844 = vpack.c.bf16 %v822, %v821
        %v845 = vpack.c.bf16 %v824, %v823
        %v846 = vpack.c.bf16 %v826, %v825
        %v847 = vpack.c.bf16 %v828, %v827
        %v848 = vpack.c.bf16 %v830, %v829
        %v849 = vpack.c.bf16 %v832, %v831
        %v850 = vpack.c.bf16 %v834, %v833
        %v867 = vunpack.c.l.b16 %v835
        %v868 = vunpack.c.h.b16 %v835
        %v869 = vunpack.c.l.b16 %v836
        %v870 = vunpack.c.h.b16 %v836
        %v871 = vunpack.c.l.b16 %v837
        %v872 = vunpack.c.h.b16 %v837
        %v873 = vunpack.c.l.b16 %v838
        %v874 = vunpack.c.h.b16 %v838
        %v875 = vunpack.c.l.b16 %v839
        %v876 = vunpack.c.h.b16 %v839
        %v877 = vunpack.c.l.b16 %v840
        %v878 = vunpack.c.h.b16 %v840
        %v879 = vunpack.c.l.b16 %v841
        %v880 = vunpack.c.h.b16 %v841
        %v881 = vunpack.c.l.b16 %v842
        %v882 = vunpack.c.h.b16 %v842
        %v883 = vunpack.c.l.b16 %v843
        %v884 = vunpack.c.h.b16 %v843
        %v885 = vunpack.c.l.b16 %v844
        %v886 = vunpack.c.h.b16 %v844
        %v887 = vunpack.c.l.b16 %v845
        %v888 = vunpack.c.h.b16 %v845
        %v889 = vunpack.c.l.b16 %v846
        %v890 = vunpack.c.h.b16 %v846
        %v891 = vunpack.c.l.b16 %v847
        %v892 = vunpack.c.h.b16 %v847
        %v893 = vunpack.c.l.b16 %v848
        %v894 = vunpack.c.h.b16 %v848
        %v895 = vunpack.c.l.b16 %v849
        %v896 = vunpack.c.h.b16 %v849
        %v897 = vunpack.c.l.b16 %v850
        %v898 = vunpack.c.h.b16 %v850
        %v899 = vpack.c.b16 %v867, %v867
        %v900 = vpack.c.b16 %v868, %v868
        %v901 = vpack.c.b16 %v869, %v869
        %v902 = vpack.c.b16 %v870, %v870
        %v903 = vpack.c.b16 %v871, %v871
        %v904 = vpack.c.b16 %v872, %v872
        %v905 = vpack.c.b16 %v873, %v873
        %v906 = vpack.c.b16 %v874, %v874
        %v907 = vpack.c.b16 %v875, %v875
        %v908 = vpack.c.b16 %v876, %v876
        %v909 = vpack.c.b16 %v877, %v877
        %v910 = vpack.c.b16 %v878, %v878
        %v911 = vpack.c.b16 %v879, %v879
        %v912 = vpack.c.b16 %v880, %v880
        %v913 = vpack.c.b16 %v881, %v881
        %v914 = vpack.c.b16 %v882, %v882
        %v915 = vpack.c.b16 %v883, %v883
        %v916 = vpack.c.b16 %v884, %v884
        %v917 = vpack.c.b16 %v885, %v885
        %v918 = vpack.c.b16 %v886, %v886
        %v919 = vpack.c.b16 %v887, %v887
        %v920 = vpack.c.b16 %v888, %v888
        %v921 = vpack.c.b16 %v889, %v889
        %v922 = vpack.c.b16 %v890, %v890
        %v923 = vpack.c.b16 %v891, %v891
        %v924 = vpack.c.b16 %v892, %v892
        %v925 = vpack.c.b16 %v893, %v893
        %v926 = vpack.c.b16 %v894, %v894
        %v927 = vpack.c.b16 %v895, %v895
        %v928 = vpack.c.b16 %v896, %v896
        %v929 = vpack.c.b16 %v897, %v897
        %v930 = vpack.c.b16 %v898, %v898
        %963 = vst [vmem:[%s216] sm:$0xf] %v899
        %964 = vst [vmem:[%s216 + $0x4] sm:$0xf] %v900
        %965 = vst [vmem:[%s216 + $0x8] sm:$0xf] %v901
        %966 = vst [vmem:[%s216 + $0xc] sm:$0xf] %v902
        %967 = vst [vmem:[%s216 + $0x10] sm:$0xf] %v903
        %968 = vst [vmem:[%s216 + $0x14] sm:$0xf] %v904
        %969 = vst [vmem:[%s216 + $0x18] sm:$0xf] %v905
        %970 = vst [vmem:[%s216 + $0x1c] sm:$0xf] %v906
        %971 = vst [vmem:[%s216 + $0x20] sm:$0xf] %v907
        %972 = vst [vmem:[%s216 + $0x24] sm:$0xf] %v908
        %973 = vst [vmem:[%s216 + $0x28] sm:$0xf] %v909
        %974 = vst [vmem:[%s216 + $0x2c] sm:$0xf] %v910
        %975 = vst [vmem:[%s216 + $0x30] sm:$0xf] %v911
        %976 = vst [vmem:[%s216 + $0x34] sm:$0xf] %v912
        %977 = vst [vmem:[%s216 + $0x38] sm:$0xf] %v913
        %978 = vst [vmem:[%s216 + $0x3c] sm:$0xf] %v914
        %979 = vst [vmem:[%s216 + $0x40] sm:$0xf] %v915
        %980 = vst [vmem:[%s216 + $0x44] sm:$0xf] %v916
        %981 = vst [vmem:[%s216 + $0x48] sm:$0xf] %v917
        %982 = vst [vmem:[%s216 + $0x4c] sm:$0xf] %v918
        %983 = vst [vmem:[%s216 + $0x50] sm:$0xf] %v919
        %984 = vst [vmem:[%s216 + $0x54] sm:$0xf] %v920
        %985 = vst [vmem:[%s216 + $0x58] sm:$0xf] %v921
        %986 = vst [vmem:[%s216 + $0x5c] sm:$0xf] %v922
        %987 = vst [vmem:[%s216 + $0x60] sm:$0xf] %v923
        %988 = vst [vmem:[%s216 + $0x64] sm:$0xf] %v924
        %989 = vst [vmem:[%s216 + $0x68] sm:$0xf] %v925
        %990 = vst [vmem:[%s216 + $0x6c] sm:$0xf] %v926
        %991 = vst [vmem:[%s216 + $0x70] sm:$0xf] %v927
        %992 = vst [vmem:[%s216 + $0x74] sm:$0xf] %v928
        %993 = vst [vmem:[%s216 + $0x78] sm:$0xf] %v929
        %994 = vst [vmem:[%s216 + $0x7c] sm:$0xf] %v930
      $region36: #{discriminator_forward.4} parent=27 // pred_fallthru
        _
      %s995 = smul.u32 32, %s18
      %p996 = scmp.lt.s32.totalorder %s995, 63
      %s997 = scalar_select %p996, %s995, 63
      %p998 = scmp.lt.s32.totalorder %s19, 0
      %s999 = scalar_select %p998, %s19, 0
      %s1000 = sadd.s32 %s999, %s997
      %s1001 = smul.addr %s1000, 4
      %s1002 = scalar_lea.vmem %s2, %s1001
      // Predicated region
      $region37: #{discriminator_forward.4} parent=27 // pred_check
        %p1003 = pneg %p108
      $region38: #{discriminator_forward.4} parent=27 // pred_check_branch
        %1005 = sbr.rel (%p1003) target = $region40
      $region39: #{discriminator_forward.4} parent=27 // pred_region
        %s1006 = smul.u32 32, %s18
      $region40: #{discriminator_forward.4} parent=27 // pred_fallthru
        _
    $region28: #{discriminator_forward.4} parent=5 // pred_fallthru
      _
    %p1007 = scmp.le.s32.totalorder 2, %s8
    // Predicated region
    $region41: #{discriminator_forward.4} parent=5 // pred_check
      %p1008 = pneg %p1007
    $region42: #{discriminator_forward.4} parent=5 // pred_check_branch
      %1010 = sbr.rel (%p1008) target = $region44
    $region43: #{discriminator_forward.4} parent=5 // pred_region
      %s1011 = ssub.s32 %s8, 2
      // Predicated region
      $region45: #{discriminator_forward.4} parent=43 // pred_check
        %p1012 = pneg %p114
      $region46: #{discriminator_forward.4} parent=43 // pred_check_branch
        %1014 = sbr.rel (%p1012) target = $region48
      $region47: #{discriminator_forward.4} parent=43 // pred_region
        %s1015 = smul.u32 32, %s21
        %p1016 = scmp.lt.s32.totalorder %s1015, 63
        %s1017 = scalar_select %p1016, %s1015, 63
        %p1018 = scmp.lt.s32.totalorder %s22, 0
        %s1019 = scalar_select %p1018, %s22, 0
        %s1020 = sadd.s32 %s1019, %s1017
        %s1021 = smul.addr %s1020, 4
        %s1022 = scalar_lea.vmem %s2, %s1021
      $region48: #{discriminator_forward.4} parent=43 // pred_fallthru
        _
    $region44: #{discriminator_forward.4} parent=5 // pred_fallthru
      _
  $region6: #{discriminator_forward.4} parent=0 // loop_footer
    %s12 = sadd.s32 1, %s8
  $region7: #{discriminator_forward.4} parent=0 // loop_footer_branch
    %7 = sbr.rel target = $region3
  $region8: #{discriminator_forward.4} parent=0 // loop_exit
    _

// kernel: discriminator_forward.5
$region0: #{discriminator_forward.5}
  #allocation0 [shape = 'u32[]', space=smem, size = 0x4, offset = 0x4, fixed_abs, tag = 'smem constant byte address 0x4 - core index']
  #allocation1 [shape = 'u32[144,128]{1,0:T(1,128)}', space=vmem, size = 0x12000, scoped, tag = 'internal scratch']
  #allocation2 [shape = 'f32[128,128]{1,0:T(8,128)}', space=vmem, size = 0x10000, scoped, tag = 'scratch operand']
  %s0 = inlined_call_operand.vmem [shape: bf16[128,1024], index: 0, kind: input, shape index: {}]
  %s1 = inlined_call_operand.vmem [shape: bf16[1024,128], index: 1, kind: input, shape index: {}]
  %s2 = inlined_call_operand.vmem [shape: f32[1,128], index: 2, kind: input, shape index: {}]
  %s3 = inlined_call_operand.vmem [shape: f32[1,128], index: 3, kind: input, shape index: {}]
  %s4 = inlined_call_operand.vmem [shape: bf16[128,128], index: 4, kind: output, shape index: {}]
  %s5 = sld [smem:[#allocation0]]
  $region34: #{discriminator_forward.5} parent=0
    _
  %s7 = ssub.s32 1, %s5
  %s8 = scalar_select 0, %s7, %s5
  // Predicated region
  $region2: #{discriminator_forward.5} parent=0 // pred_check
    _
  $region3: #{discriminator_forward.5} parent=0 // pred_check_branch
    %10 = sbr.rel (0) target = $region5
  $region4: #{discriminator_forward.5} parent=0 // pred_region
    _
  $region5: #{discriminator_forward.5} parent=0 // pred_fallthru
    _
  // Predicated region
  $region6: #{discriminator_forward.5} parent=0 // pred_check
    _
  $region7: #{discriminator_forward.5} parent=0 // pred_check_branch
    %12 = sbr.rel (0) target = $region9
  $region8: #{discriminator_forward.5} parent=0 // pred_region
    _
  $region9: #{discriminator_forward.5} parent=0 // pred_fallthru
    _
  // Predicated region
  $region10: #{discriminator_forward.5} parent=0 // pred_check
    _
  $region11: #{discriminator_forward.5} parent=0 // pred_check_branch
    %14 = sbr.rel (0) target = $region13
  $region12: #{discriminator_forward.5} parent=0 // pred_region
    _
  $region13: #{discriminator_forward.5} parent=0 // pred_fallthru
    _
  // Predicated region
  $region14: #{discriminator_forward.5} parent=0 // pred_check
    _
  $region15: #{discriminator_forward.5} parent=0 // pred_check_branch
    %16 = sbr.rel (0) target = $region17
  $region16: #{discriminator_forward.5} parent=0 // pred_region
    _
  $region17: #{discriminator_forward.5} parent=0 // pred_fallthru
    _
  %p18 = scmp.eq.s32.totalorder 0, 0
  // Predicated region
  $region18: #{discriminator_forward.5} parent=0 // pred_check
    %p19 = pneg %p18
  $region19: #{discriminator_forward.5} parent=0 // pred_check_branch
    %21 = sbr.rel (%p19) target = $region21
  $region20: #{discriminator_forward.5} parent=0 // pred_region
    %22 = vst [vmem:[#allocation2] sm:$0xff] 0.0
    %23 = vst [vmem:[#allocation2 + $0x8] sm:$0xff] 0.0
    %24 = vst [vmem:[#allocation2 + $0x10] sm:$0xff] 0.0
    %25 = vst [vmem:[#allocation2 + $0x18] sm:$0xff] 0.0
    %26 = vst [vmem:[#allocation2 + $0x20] sm:$0xff] 0.0
    %27 = vst [vmem:[#allocation2 + $0x28] sm:$0xff] 0.0
    %28 = vst [vmem:[#allocation2 + $0x30] sm:$0xff] 0.0
    %29 = vst [vmem:[#allocation2 + $0x38] sm:$0xff] 0.0
    %30 = vst [vmem:[#allocation2 + $0x40] sm:$0xff] 0.0
    %31 = vst [vmem:[#allocation2 + $0x48] sm:$0xff] 0.0
    %32 = vst [vmem:[#allocation2 + $0x50] sm:$0xff] 0.0
    %33 = vst [vmem:[#allocation2 + $0x58] sm:$0xff] 0.0
    %34 = vst [vmem:[#allocation2 + $0x60] sm:$0xff] 0.0
    %35 = vst [vmem:[#allocation2 + $0x68] sm:$0xff] 0.0
    %36 = vst [vmem:[#allocation2 + $0x70] sm:$0xff] 0.0
    %37 = vst [vmem:[#allocation2 + $0x78] sm:$0xff] 0.0
  $region21: #{discriminator_forward.5} parent=0 // pred_fallthru
    _
  %v38 = vld [vmem:[#allocation2] sm:$0xff]
  %v39 = vld [vmem:[#allocation2 + $0x8] sm:$0xff]
  %v40 = vld [vmem:[#allocation2 + $0x10] sm:$0xff]
  %v41 = vld [vmem:[#allocation2 + $0x18] sm:$0xff]
  %v42 = vld [vmem:[#allocation2 + $0x20] sm:$0xff]
  %v43 = vld [vmem:[#allocation2 + $0x28] sm:$0xff]
  %v44 = vld [vmem:[#allocation2 + $0x30] sm:$0xff]
  %v45 = vld [vmem:[#allocation2 + $0x38] sm:$0xff]
  %v46 = vld [vmem:[#allocation2 + $0x40] sm:$0xff]
  %v47 = vld [vmem:[#allocation2 + $0x48] sm:$0xff]
  %v48 = vld [vmem:[#allocation2 + $0x50] sm:$0xff]
  %v49 = vld [vmem:[#allocation2 + $0x58] sm:$0xff]
  %v50 = vld [vmem:[#allocation2 + $0x60] sm:$0xff]
  %v51 = vld [vmem:[#allocation2 + $0x68] sm:$0xff]
  %v52 = vld [vmem:[#allocation2 + $0x70] sm:$0xff]
  %v53 = vld [vmem:[#allocation2 + $0x78] sm:$0xff]
  %v54 = vld [vmem:[%s0] sm:$0xff]
  %v55 = vld [vmem:[%s0 + $0x8] sm:$0xff]
  %v56 = vld [vmem:[%s0 + $0x10] sm:$0xff]
  %v57 = vld [vmem:[%s0 + $0x18] sm:$0xff]
  %v58 = vld [vmem:[%s0 + $0x20] sm:$0xff]
  %v59 = vld [vmem:[%s0 + $0x28] sm:$0xff]
  %v60 = vld [vmem:[%s0 + $0x30] sm:$0xff]
  %v61 = vld [vmem:[%s0 + $0x38] sm:$0xff]
  %v62 = vld [vmem:[%s0 + $0x40] sm:$0xff]
  %v63 = vld [vmem:[%s0 + $0x48] sm:$0xff]
  %v64 = vld [vmem:[%s0 + $0x50] sm:$0xff]
  %v65 = vld [vmem:[%s0 + $0x58] sm:$0xff]
  %v66 = vld [vmem:[%s0 + $0x60] sm:$0xff]
  %v67 = vld [vmem:[%s0 + $0x68] sm:$0xff]
  %v68 = vld [vmem:[%s0 + $0x70] sm:$0xff]
  %v69 = vld [vmem:[%s0 + $0x78] sm:$0xff]
  %v70 = vld [vmem:[%s0 + $0x80] sm:$0xff]
  %v71 = vld [vmem:[%s0 + $0x88] sm:$0xff]
  %v72 = vld [vmem:[%s0 + $0x90] sm:$0xff]
  %v73 = vld [vmem:[%s0 + $0x98] sm:$0xff]
  %v74 = vld [vmem:[%s0 + $0xa0] sm:$0xff]
  %v75 = vld [vmem:[%s0 + $0xa8] sm:$0xff]
  %v76 = vld [vmem:[%s0 + $0xb0] sm:$0xff]
  %v77 = vld [vmem:[%s0 + $0xb8] sm:$0xff]
  %v78 = vld [vmem:[%s0 + $0xc0] sm:$0xff]
  %v79 = vld [vmem:[%s0 + $0xc8] sm:$0xff]
  %v80 = vld [vmem:[%s0 + $0xd0] sm:$0xff]
  %v81 = vld [vmem:[%s0 + $0xd8] sm:$0xff]
  %v82 = vld [vmem:[%s0 + $0xe0] sm:$0xff]
  %v83 = vld [vmem:[%s0 + $0xe8] sm:$0xff]
  %v84 = vld [vmem:[%s0 + $0xf0] sm:$0xff]
  %v85 = vld [vmem:[%s0 + $0xf8] sm:$0xff]
  %v86 = vld [vmem:[%s0 + $0x100] sm:$0xff]
  %v87 = vld [vmem:[%s0 + $0x108] sm:$0xff]
  %v88 = vld [vmem:[%s0 + $0x110] sm:$0xff]
  %v89 = vld [vmem:[%s0 + $0x118] sm:$0xff]
  %v90 = vld [vmem:[%s0 + $0x120] sm:$0xff]
  %v91 = vld [vmem:[%s0 + $0x128] sm:$0xff]
  %v92 = vld [vmem:[%s0 + $0x130] sm:$0xff]
  %v93 = vld [vmem:[%s0 + $0x138] sm:$0xff]
  %v94 = vld [vmem:[%s0 + $0x140] sm:$0xff]
  %v95 = vld [vmem:[%s0 + $0x148] sm:$0xff]
  %v96 = vld [vmem:[%s0 + $0x150] sm:$0xff]
  %v97 = vld [vmem:[%s0 + $0x158] sm:$0xff]
  %v98 = vld [vmem:[%s0 + $0x160] sm:$0xff]
  %v99 = vld [vmem:[%s0 + $0x168] sm:$0xff]
  %v100 = vld [vmem:[%s0 + $0x170] sm:$0xff]
  %v101 = vld [vmem:[%s0 + $0x178] sm:$0xff]
  %v102 = vld [vmem:[%s0 + $0x180] sm:$0xff]
  %v103 = vld [vmem:[%s0 + $0x188] sm:$0xff]
  %v104 = vld [vmem:[%s0 + $0x190] sm:$0xff]
  %v105 = vld [vmem:[%s0 + $0x198] sm:$0xff]
  %v106 = vld [vmem:[%s0 + $0x1a0] sm:$0xff]
  %v107 = vld [vmem:[%s0 + $0x1a8] sm:$0xff]
  %v108 = vld [vmem:[%s0 + $0x1b0] sm:$0xff]
  %v109 = vld [vmem:[%s0 + $0x1b8] sm:$0xff]
  %v110 = vld [vmem:[%s0 + $0x1c0] sm:$0xff]
  %v111 = vld [vmem:[%s0 + $0x1c8] sm:$0xff]
  %v112 = vld [vmem:[%s0 + $0x1d0] sm:$0xff]
  %v113 = vld [vmem:[%s0 + $0x1d8] sm:$0xff]
  %v114 = vld [vmem:[%s0 + $0x1e0] sm:$0xff]
  %v115 = vld [vmem:[%s0 + $0x1e8] sm:$0xff]
  %v116 = vld [vmem:[%s0 + $0x1f0] sm:$0xff]
  %v117 = vld [vmem:[%s0 + $0x1f8] sm:$0xff]
  %v118 = vld [vmem:[%s1] sm:$0xf]
  %v119 = vld [vmem:[%s1 + $0x4] sm:$0xf]
  %v120 = vld [vmem:[%s1 + $0x8] sm:$0xf]
  %v121 = vld [vmem:[%s1 + $0xc] sm:$0xf]
  %v122 = vld [vmem:[%s1 + $0x10] sm:$0xf]
  %v123 = vld [vmem:[%s1 + $0x14] sm:$0xf]
  %v124 = vld [vmem:[%s1 + $0x18] sm:$0xf]
  %v125 = vld [vmem:[%s1 + $0x1c] sm:$0xf]
  %v126 = vld [vmem:[%s1 + $0x20] sm:$0xf]
  %v127 = vld [vmem:[%s1 + $0x24] sm:$0xf]
  %v128 = vld [vmem:[%s1 + $0x28] sm:$0xf]
  %v129 = vld [vmem:[%s1 + $0x2c] sm:$0xf]
  %v130 = vld [vmem:[%s1 + $0x30] sm:$0xf]
  %v131 = vld [vmem:[%s1 + $0x34] sm:$0xf]
  %v132 = vld [vmem:[%s1 + $0x38] sm:$0xf]
  %v133 = vld [vmem:[%s1 + $0x3c] sm:$0xf]
  %v134 = vld [vmem:[%s1 + $0x40] sm:$0xf]
  %v135 = vld [vmem:[%s1 + $0x44] sm:$0xf]
  %v136 = vld [vmem:[%s1 + $0x48] sm:$0xf]
  %v137 = vld [vmem:[%s1 + $0x4c] sm:$0xf]
  %v138 = vld [vmem:[%s1 + $0x50] sm:$0xf]
  %v139 = vld [vmem:[%s1 + $0x54] sm:$0xf]
  %v140 = vld [vmem:[%s1 + $0x58] sm:$0xf]
  %v141 = vld [vmem:[%s1 + $0x5c] sm:$0xf]
  %v142 = vld [vmem:[%s1 + $0x60] sm:$0xf]
  %v143 = vld [vmem:[%s1 + $0x64] sm:$0xf]
  %v144 = vld [vmem:[%s1 + $0x68] sm:$0xf]
  %v145 = vld [vmem:[%s1 + $0x6c] sm:$0xf]
  %v146 = vld [vmem:[%s1 + $0x70] sm:$0xf]
  %v147 = vld [vmem:[%s1 + $0x74] sm:$0xf]
  %v148 = vld [vmem:[%s1 + $0x78] sm:$0xf]
  %v149 = vld [vmem:[%s1 + $0x7c] sm:$0xf]
  %v150 = vld [vmem:[%s1 + $0x80] sm:$0xf]
  %v151 = vld [vmem:[%s1 + $0x84] sm:$0xf]
  %v152 = vld [vmem:[%s1 + $0x88] sm:$0xf]
  %v153 = vld [vmem:[%s1 + $0x8c] sm:$0xf]
  %v154 = vld [vmem:[%s1 + $0x90] sm:$0xf]
  %v155 = vld [vmem:[%s1 + $0x94] sm:$0xf]
  %v156 = vld [vmem:[%s1 + $0x98] sm:$0xf]
  %v157 = vld [vmem:[%s1 + $0x9c] sm:$0xf]
  %v158 = vld [vmem:[%s1 + $0xa0] sm:$0xf]
  %v159 = vld [vmem:[%s1 + $0xa4] sm:$0xf]
  %v160 = vld [vmem:[%s1 + $0xa8] sm:$0xf]
  %v161 = vld [vmem:[%s1 + $0xac] sm:$0xf]
  %v162 = vld [vmem:[%s1 + $0xb0] sm:$0xf]
  %v163 = vld [vmem:[%s1 + $0xb4] sm:$0xf]
  %v164 = vld [vmem:[%s1 + $0xb8] sm:$0xf]
  %v165 = vld [vmem:[%s1 + $0xbc] sm:$0xf]
  %v166 = vld [vmem:[%s1 + $0xc0] sm:$0xf]
  %v167 = vld [vmem:[%s1 + $0xc4] sm:$0xf]
  %v168 = vld [vmem:[%s1 + $0xc8] sm:$0xf]
  %v169 = vld [vmem:[%s1 + $0xcc] sm:$0xf]
  %v170 = vld [vmem:[%s1 + $0xd0] sm:$0xf]
  %v171 = vld [vmem:[%s1 + $0xd4] sm:$0xf]
  %v172 = vld [vmem:[%s1 + $0xd8] sm:$0xf]
  %v173 = vld [vmem:[%s1 + $0xdc] sm:$0xf]
  %v174 = vld [vmem:[%s1 + $0xe0] sm:$0xf]
  %v175 = vld [vmem:[%s1 + $0xe4] sm:$0xf]
  %v176 = vld [vmem:[%s1 + $0xe8] sm:$0xf]
  %v177 = vld [vmem:[%s1 + $0xec] sm:$0xf]
  %v178 = vld [vmem:[%s1 + $0xf0] sm:$0xf]
  %v179 = vld [vmem:[%s1 + $0xf4] sm:$0xf]
  %v180 = vld [vmem:[%s1 + $0xf8] sm:$0xf]
  %v181 = vld [vmem:[%s1 + $0xfc] sm:$0xf]
  %v182 = vld [vmem:[%s1 + $0x100] sm:$0xf]
  %v183 = vld [vmem:[%s1 + $0x104] sm:$0xf]
  %v184 = vld [vmem:[%s1 + $0x108] sm:$0xf]
  %v185 = vld [vmem:[%s1 + $0x10c] sm:$0xf]
  %v186 = vld [vmem:[%s1 + $0x110] sm:$0xf]
  %v187 = vld [vmem:[%s1 + $0x114] sm:$0xf]
  %v188 = vld [vmem:[%s1 + $0x118] sm:$0xf]
  %v189 = vld [vmem:[%s1 + $0x11c] sm:$0xf]
  %v190 = vld [vmem:[%s1 + $0x120] sm:$0xf]
  %v191 = vld [vmem:[%s1 + $0x124] sm:$0xf]
  %v192 = vld [vmem:[%s1 + $0x128] sm:$0xf]
  %v193 = vld [vmem:[%s1 + $0x12c] sm:$0xf]
  %v194 = vld [vmem:[%s1 + $0x130] sm:$0xf]
  %v195 = vld [vmem:[%s1 + $0x134] sm:$0xf]
  %v196 = vld [vmem:[%s1 + $0x138] sm:$0xf]
  %v197 = vld [vmem:[%s1 + $0x13c] sm:$0xf]
  %v198 = vld [vmem:[%s1 + $0x140] sm:$0xf]
  %v199 = vld [vmem:[%s1 + $0x144] sm:$0xf]
  %v200 = vld [vmem:[%s1 + $0x148] sm:$0xf]
  %v201 = vld [vmem:[%s1 + $0x14c] sm:$0xf]
  %v202 = vld [vmem:[%s1 + $0x150] sm:$0xf]
  %v203 = vld [vmem:[%s1 + $0x154] sm:$0xf]
  %v204 = vld [vmem:[%s1 + $0x158] sm:$0xf]
  %v205 = vld [vmem:[%s1 + $0x15c] sm:$0xf]
  %v206 = vld [vmem:[%s1 + $0x160] sm:$0xf]
  %v207 = vld [vmem:[%s1 + $0x164] sm:$0xf]
  %v208 = vld [vmem:[%s1 + $0x168] sm:$0xf]
  %v209 = vld [vmem:[%s1 + $0x16c] sm:$0xf]
  %v210 = vld [vmem:[%s1 + $0x170] sm:$0xf]
  %v211 = vld [vmem:[%s1 + $0x174] sm:$0xf]
  %v212 = vld [vmem:[%s1 + $0x178] sm:$0xf]
  %v213 = vld [vmem:[%s1 + $0x17c] sm:$0xf]
  %v214 = vld [vmem:[%s1 + $0x180] sm:$0xf]
  %v215 = vld [vmem:[%s1 + $0x184] sm:$0xf]
  %v216 = vld [vmem:[%s1 + $0x188] sm:$0xf]
  %v217 = vld [vmem:[%s1 + $0x18c] sm:$0xf]
  %v218 = vld [vmem:[%s1 + $0x190] sm:$0xf]
  %v219 = vld [vmem:[%s1 + $0x194] sm:$0xf]
  %v220 = vld [vmem:[%s1 + $0x198] sm:$0xf]
  %v221 = vld [vmem:[%s1 + $0x19c] sm:$0xf]
  %v222 = vld [vmem:[%s1 + $0x1a0] sm:$0xf]
  %v223 = vld [vmem:[%s1 + $0x1a4] sm:$0xf]
  %v224 = vld [vmem:[%s1 + $0x1a8] sm:$0xf]
  %v225 = vld [vmem:[%s1 + $0x1ac] sm:$0xf]
  %v226 = vld [vmem:[%s1 + $0x1b0] sm:$0xf]
  %v227 = vld [vmem:[%s1 + $0x1b4] sm:$0xf]
  %v228 = vld [vmem:[%s1 + $0x1b8] sm:$0xf]
  %v229 = vld [vmem:[%s1 + $0x1bc] sm:$0xf]
  %v230 = vld [vmem:[%s1 + $0x1c0] sm:$0xf]
  %v231 = vld [vmem:[%s1 + $0x1c4] sm:$0xf]
  %v232 = vld [vmem:[%s1 + $0x1c8] sm:$0xf]
  %v233 = vld [vmem:[%s1 + $0x1cc] sm:$0xf]
  %v234 = vld [vmem:[%s1 + $0x1d0] sm:$0xf]
  %v235 = vld [vmem:[%s1 + $0x1d4] sm:$0xf]
  %v236 = vld [vmem:[%s1 + $0x1d8] sm:$0xf]
  %v237 = vld [vmem:[%s1 + $0x1dc] sm:$0xf]
  %v238 = vld [vmem:[%s1 + $0x1e0] sm:$0xf]
  %v239 = vld [vmem:[%s1 + $0x1e4] sm:$0xf]
  %v240 = vld [vmem:[%s1 + $0x1e8] sm:$0xf]
  %v241 = vld [vmem:[%s1 + $0x1ec] sm:$0xf]
  %v242 = vld [vmem:[%s1 + $0x1f0] sm:$0xf]
  %v243 = vld [vmem:[%s1 + $0x1f4] sm:$0xf]
  %v244 = vld [vmem:[%s1 + $0x1f8] sm:$0xf]
  %v245 = vld [vmem:[%s1 + $0x1fc] sm:$0xf]
  %v310 = vunpack.c.l.b16 %v54
  %v311 = vunpack.c.h.b16 %v54
  %v312 = vunpack.c.l.b16 %v55
  %v313 = vunpack.c.h.b16 %v55
  %v314 = vunpack.c.l.b16 %v56
  %v315 = vunpack.c.h.b16 %v56
  %v316 = vunpack.c.l.b16 %v57
  %v317 = vunpack.c.h.b16 %v57
  %v318 = vunpack.c.l.b16 %v58
  %v319 = vunpack.c.h.b16 %v58
  %v320 = vunpack.c.l.b16 %v59
  %v321 = vunpack.c.h.b16 %v59
  %v322 = vunpack.c.l.b16 %v60
  %v323 = vunpack.c.h.b16 %v60
  %v324 = vunpack.c.l.b16 %v61
  %v325 = vunpack.c.h.b16 %v61
  %v326 = vunpack.c.l.b16 %v62
  %v327 = vunpack.c.h.b16 %v62
  %v328 = vunpack.c.l.b16 %v63
  %v329 = vunpack.c.h.b16 %v63
  %v330 = vunpack.c.l.b16 %v64
  %v331 = vunpack.c.h.b16 %v64
  %v332 = vunpack.c.l.b16 %v65
  %v333 = vunpack.c.h.b16 %v65
  %v334 = vunpack.c.l.b16 %v66
  %v335 = vunpack.c.h.b16 %v66
  %v336 = vunpack.c.l.b16 %v67
  %v337 = vunpack.c.h.b16 %v67
  %v338 = vunpack.c.l.b16 %v68
  %v339 = vunpack.c.h.b16 %v68
  %v340 = vunpack.c.l.b16 %v69
  %v341 = vunpack.c.h.b16 %v69
  %v342 = vunpack.c.l.b16 %v70
  %v343 = vunpack.c.h.b16 %v70
  %v344 = vunpack.c.l.b16 %v71
  %v345 = vunpack.c.h.b16 %v71
  %v346 = vunpack.c.l.b16 %v72
  %v347 = vunpack.c.h.b16 %v72
  %v348 = vunpack.c.l.b16 %v73
  %v349 = vunpack.c.h.b16 %v73
  %v350 = vunpack.c.l.b16 %v74
  %v351 = vunpack.c.h.b16 %v74
  %v352 = vunpack.c.l.b16 %v75
  %v353 = vunpack.c.h.b16 %v75
  %v354 = vunpack.c.l.b16 %v76
  %v355 = vunpack.c.h.b16 %v76
  %v356 = vunpack.c.l.b16 %v77
  %v357 = vunpack.c.h.b16 %v77
  %v358 = vunpack.c.l.b16 %v78
  %v359 = vunpack.c.h.b16 %v78
  %v360 = vunpack.c.l.b16 %v79
  %v361 = vunpack.c.h.b16 %v79
  %v362 = vunpack.c.l.b16 %v80
  %v363 = vunpack.c.h.b16 %v80
  %v364 = vunpack.c.l.b16 %v81
  %v365 = vunpack.c.h.b16 %v81
  %v366 = vunpack.c.l.b16 %v82
  %v367 = vunpack.c.h.b16 %v82
  %v368 = vunpack.c.l.b16 %v83
  %v369 = vunpack.c.h.b16 %v83
  %v370 = vunpack.c.l.b16 %v84
  %v371 = vunpack.c.h.b16 %v84
  %v372 = vunpack.c.l.b16 %v85
  %v373 = vunpack.c.h.b16 %v85
  %v374 = vunpack.c.l.b16 %v86
  %v375 = vunpack.c.h.b16 %v86
  %v376 = vunpack.c.l.b16 %v87
  %v377 = vunpack.c.h.b16 %v87
  %v378 = vunpack.c.l.b16 %v88
  %v379 = vunpack.c.h.b16 %v88
  %v380 = vunpack.c.l.b16 %v89
  %v381 = vunpack.c.h.b16 %v89
  %v382 = vunpack.c.l.b16 %v90
  %v383 = vunpack.c.h.b16 %v90
  %v384 = vunpack.c.l.b16 %v91
  %v385 = vunpack.c.h.b16 %v91
  %v386 = vunpack.c.l.b16 %v92
  %v387 = vunpack.c.h.b16 %v92
  %v388 = vunpack.c.l.b16 %v93
  %v389 = vunpack.c.h.b16 %v93
  %v390 = vunpack.c.l.b16 %v94
  %v391 = vunpack.c.h.b16 %v94
  %v392 = vunpack.c.l.b16 %v95
  %v393 = vunpack.c.h.b16 %v95
  %v394 = vunpack.c.l.b16 %v96
  %v395 = vunpack.c.h.b16 %v96
  %v396 = vunpack.c.l.b16 %v97
  %v397 = vunpack.c.h.b16 %v97
  %v398 = vunpack.c.l.b16 %v98
  %v399 = vunpack.c.h.b16 %v98
  %v400 = vunpack.c.l.b16 %v99
  %v401 = vunpack.c.h.b16 %v99
  %v402 = vunpack.c.l.b16 %v100
  %v403 = vunpack.c.h.b16 %v100
  %v404 = vunpack.c.l.b16 %v101
  %v405 = vunpack.c.h.b16 %v101
  %v406 = vunpack.c.l.b16 %v102
  %v407 = vunpack.c.h.b16 %v102
  %v408 = vunpack.c.l.b16 %v103
  %v409 = vunpack.c.h.b16 %v103
  %v410 = vunpack.c.l.b16 %v104
  %v411 = vunpack.c.h.b16 %v104
  %v412 = vunpack.c.l.b16 %v105
  %v413 = vunpack.c.h.b16 %v105
  %v414 = vunpack.c.l.b16 %v106
  %v415 = vunpack.c.h.b16 %v106
  %v416 = vunpack.c.l.b16 %v107
  %v417 = vunpack.c.h.b16 %v107
  %v418 = vunpack.c.l.b16 %v108
  %v419 = vunpack.c.h.b16 %v108
  %v420 = vunpack.c.l.b16 %v109
  %v421 = vunpack.c.h.b16 %v109
  %v422 = vunpack.c.l.b16 %v110
  %v423 = vunpack.c.h.b16 %v110
  %v424 = vunpack.c.l.b16 %v111
  %v425 = vunpack.c.h.b16 %v111
  %v426 = vunpack.c.l.b16 %v112
  %v427 = vunpack.c.h.b16 %v112
  %v428 = vunpack.c.l.b16 %v113
  %v429 = vunpack.c.h.b16 %v113
  %v430 = vunpack.c.l.b16 %v114
  %v431 = vunpack.c.h.b16 %v114
  %v432 = vunpack.c.l.b16 %v115
  %v433 = vunpack.c.h.b16 %v115
  %v434 = vunpack.c.l.b16 %v116
  %v435 = vunpack.c.h.b16 %v116
  %v436 = vunpack.c.l.b16 %v117
  %v437 = vunpack.c.h.b16 %v117
  %v438 = vpack.c.b16 %v318, %v310
  %v439 = vpack.c.b16 %v319, %v311
  %v440 = vpack.c.b16 %v320, %v312
  %v441 = vpack.c.b16 %v321, %v313
  %v442 = vpack.c.b16 %v322, %v314
  %v443 = vpack.c.b16 %v323, %v315
  %v444 = vpack.c.b16 %v324, %v316
  %v445 = vpack.c.b16 %v325, %v317
  %v446 = vpack.c.b16 %v334, %v326
  %v447 = vpack.c.b16 %v335, %v327
  %v448 = vpack.c.b16 %v336, %v328
  %v449 = vpack.c.b16 %v337, %v329
  %v450 = vpack.c.b16 %v338, %v330
  %v451 = vpack.c.b16 %v339, %v331
  %v452 = vpack.c.b16 %v340, %v332
  %v453 = vpack.c.b16 %v341, %v333
  %v454 = vpack.c.b16 %v350, %v342
  %v455 = vpack.c.b16 %v351, %v343
  %v456 = vpack.c.b16 %v352, %v344
  %v457 = vpack.c.b16 %v353, %v345
  %v458 = vpack.c.b16 %v354, %v346
  %v459 = vpack.c.b16 %v355, %v347
  %v460 = vpack.c.b16 %v356, %v348
  %v461 = vpack.c.b16 %v357, %v349
  %v462 = vpack.c.b16 %v366, %v358
  %v463 = vpack.c.b16 %v367, %v359
  %v464 = vpack.c.b16 %v368, %v360
  %v465 = vpack.c.b16 %v369, %v361
  %v466 = vpack.c.b16 %v370, %v362
  %v467 = vpack.c.b16 %v371, %v363
  %v468 = vpack.c.b16 %v372, %v364
  %v469 = vpack.c.b16 %v373, %v365
  %v470 = vpack.c.b16 %v382, %v374
  %v471 = vpack.c.b16 %v383, %v375
  %v472 = vpack.c.b16 %v384, %v376
  %v473 = vpack.c.b16 %v385, %v377
  %v474 = vpack.c.b16 %v386, %v378
  %v475 = vpack.c.b16 %v387, %v379
  %v476 = vpack.c.b16 %v388, %v380
  %v477 = vpack.c.b16 %v389, %v381
  %v478 = vpack.c.b16 %v398, %v390
  %v479 = vpack.c.b16 %v399, %v391
  %v480 = vpack.c.b16 %v400, %v392
  %v481 = vpack.c.b16 %v401, %v393
  %v482 = vpack.c.b16 %v402, %v394
  %v483 = vpack.c.b16 %v403, %v395
  %v484 = vpack.c.b16 %v404, %v396
  %v485 = vpack.c.b16 %v405, %v397
  %v486 = vpack.c.b16 %v414, %v406
  %v487 = vpack.c.b16 %v415, %v407
  %v488 = vpack.c.b16 %v416, %v408
  %v489 = vpack.c.b16 %v417, %v409
  %v490 = vpack.c.b16 %v418, %v410
  %v491 = vpack.c.b16 %v419, %v411
  %v492 = vpack.c.b16 %v420, %v412
  %v493 = vpack.c.b16 %v421, %v413
  %v494 = vpack.c.b16 %v430, %v422
  %v495 = vpack.c.b16 %v431, %v423
  %v496 = vpack.c.b16 %v432, %v424
  %v497 = vpack.c.b16 %v433, %v425
  %v498 = vpack.c.b16 %v434, %v426
  %v499 = vpack.c.b16 %v435, %v427
  %v500 = vpack.c.b16 %v436, %v428
  %v501 = vpack.c.b16 %v437, %v429
  %v694 = vunpack.c.l.b16 %v118
  %v695 = vunpack.c.l.b16 %v119
  %v696 = vunpack.c.l.b16 %v120
  %v697 = vunpack.c.l.b16 %v121
  %v698 = vunpack.c.l.b16 %v122
  %v699 = vunpack.c.l.b16 %v123
  %v700 = vunpack.c.l.b16 %v124
  %v701 = vunpack.c.l.b16 %v125
  %v702 = vunpack.c.l.b16 %v126
  %v703 = vunpack.c.l.b16 %v127
  %v704 = vunpack.c.l.b16 %v128
  %v705 = vunpack.c.l.b16 %v129
  %v706 = vunpack.c.l.b16 %v130
  %v707 = vunpack.c.l.b16 %v131
  %v708 = vunpack.c.l.b16 %v132
  %v709 = vunpack.c.l.b16 %v133
  %v710 = vunpack.c.l.b16 %v134
  %v711 = vunpack.c.l.b16 %v135
  %v712 = vunpack.c.l.b16 %v136
  %v713 = vunpack.c.l.b16 %v137
  %v714 = vunpack.c.l.b16 %v138
  %v715 = vunpack.c.l.b16 %v139
  %v716 = vunpack.c.l.b16 %v140
  %v717 = vunpack.c.l.b16 %v141
  %v718 = vunpack.c.l.b16 %v142
  %v719 = vunpack.c.l.b16 %v143
  %v720 = vunpack.c.l.b16 %v144
  %v721 = vunpack.c.l.b16 %v145
  %v722 = vunpack.c.l.b16 %v146
  %v723 = vunpack.c.l.b16 %v147
  %v724 = vunpack.c.l.b16 %v148
  %v725 = vunpack.c.l.b16 %v149
  %v726 = vunpack.c.l.b16 %v150
  %v727 = vunpack.c.l.b16 %v151
  %v728 = vunpack.c.l.b16 %v152
  %v729 = vunpack.c.l.b16 %v153
  %v730 = vunpack.c.l.b16 %v154
  %v731 = vunpack.c.l.b16 %v155
  %v732 = vunpack.c.l.b16 %v156
  %v733 = vunpack.c.l.b16 %v157
  %v734 = vunpack.c.l.b16 %v158
  %v735 = vunpack.c.l.b16 %v159
  %v736 = vunpack.c.l.b16 %v160
  %v737 = vunpack.c.l.b16 %v161
  %v738 = vunpack.c.l.b16 %v162
  %v739 = vunpack.c.l.b16 %v163
  %v740 = vunpack.c.l.b16 %v164
  %v741 = vunpack.c.l.b16 %v165
  %v742 = vunpack.c.l.b16 %v166
  %v743 = vunpack.c.l.b16 %v167
  %v744 = vunpack.c.l.b16 %v168
  %v745 = vunpack.c.l.b16 %v169
  %v746 = vunpack.c.l.b16 %v170
  %v747 = vunpack.c.l.b16 %v171
  %v748 = vunpack.c.l.b16 %v172
  %v749 = vunpack.c.l.b16 %v173
  %v750 = vunpack.c.l.b16 %v174
  %v751 = vunpack.c.l.b16 %v175
  %v752 = vunpack.c.l.b16 %v176
  %v753 = vunpack.c.l.b16 %v177
  %v754 = vunpack.c.l.b16 %v178
  %v755 = vunpack.c.l.b16 %v179
  %v756 = vunpack.c.l.b16 %v180
  %v757 = vunpack.c.l.b16 %v181
  %v758 = vunpack.c.l.b16 %v182
  %v759 = vunpack.c.l.b16 %v183
  %v760 = vunpack.c.l.b16 %v184
  %v761 = vunpack.c.l.b16 %v185
  %v762 = vunpack.c.l.b16 %v186
  %v763 = vunpack.c.l.b16 %v187
  %v764 = vunpack.c.l.b16 %v188
  %v765 = vunpack.c.l.b16 %v189
  %v766 = vunpack.c.l.b16 %v190
  %v767 = vunpack.c.l.b16 %v191
  %v768 = vunpack.c.l.b16 %v192
  %v769 = vunpack.c.l.b16 %v193
  %v770 = vunpack.c.l.b16 %v194
  %v771 = vunpack.c.l.b16 %v195
  %v772 = vunpack.c.l.b16 %v196
  %v773 = vunpack.c.l.b16 %v197
  %v774 = vunpack.c.l.b16 %v198
  %v775 = vunpack.c.l.b16 %v199
  %v776 = vunpack.c.l.b16 %v200
  %v777 = vunpack.c.l.b16 %v201
  %v778 = vunpack.c.l.b16 %v202
  %v779 = vunpack.c.l.b16 %v203
  %v780 = vunpack.c.l.b16 %v204
  %v781 = vunpack.c.l.b16 %v205
  %v782 = vunpack.c.l.b16 %v206
  %v783 = vunpack.c.l.b16 %v207
  %v784 = vunpack.c.l.b16 %v208
  %v785 = vunpack.c.l.b16 %v209
  %v786 = vunpack.c.l.b16 %v210
  %v787 = vunpack.c.l.b16 %v211
  %v788 = vunpack.c.l.b16 %v212
  %v789 = vunpack.c.l.b16 %v213
  %v790 = vunpack.c.l.b16 %v214
  %v791 = vunpack.c.l.b16 %v215
  %v792 = vunpack.c.l.b16 %v216
  %v793 = vunpack.c.l.b16 %v217
  %v794 = vunpack.c.l.b16 %v218
  %v795 = vunpack.c.l.b16 %v219
  %v796 = vunpack.c.l.b16 %v220
  %v797 = vunpack.c.l.b16 %v221
  %v798 = vunpack.c.l.b16 %v222
  %v799 = vunpack.c.l.b16 %v223
  %v800 = vunpack.c.l.b16 %v224
  %v801 = vunpack.c.l.b16 %v225
  %v802 = vunpack.c.l.b16 %v226
  %v803 = vunpack.c.l.b16 %v227
  %v804 = vunpack.c.l.b16 %v228
  %v805 = vunpack.c.l.b16 %v229
  %v806 = vunpack.c.l.b16 %v230
  %v807 = vunpack.c.l.b16 %v231
  %v808 = vunpack.c.l.b16 %v232
  %v809 = vunpack.c.l.b16 %v233
  %v810 = vunpack.c.l.b16 %v234
  %v811 = vunpack.c.l.b16 %v235
  %v812 = vunpack.c.l.b16 %v236
  %v813 = vunpack.c.l.b16 %v237
  %v814 = vunpack.c.l.b16 %v238
  %v815 = vunpack.c.l.b16 %v239
  %v816 = vunpack.c.l.b16 %v240
  %v817 = vunpack.c.l.b16 %v241
  %v818 = vunpack.c.l.b16 %v242
  %v819 = vunpack.c.l.b16 %v243
  %v820 = vunpack.c.l.b16 %v244
  %v821 = vunpack.c.l.b16 %v245
  %v822 = vpack.c.b16 %v695, %v694
  %v823 = vpack.c.b16 %v697, %v696
  %v824 = vpack.c.b16 %v699, %v698
  %v825 = vpack.c.b16 %v701, %v700
  %v826 = vpack.c.b16 %v703, %v702
  %v827 = vpack.c.b16 %v705, %v704
  %v828 = vpack.c.b16 %v707, %v706
  %v829 = vpack.c.b16 %v709, %v708
  %v830 = vpack.c.b16 %v711, %v710
  %v831 = vpack.c.b16 %v713, %v712
  %v832 = vpack.c.b16 %v715, %v714
  %v833 = vpack.c.b16 %v717, %v716
  %v834 = vpack.c.b16 %v719, %v718
  %v835 = vpack.c.b16 %v721, %v720
  %v836 = vpack.c.b16 %v723, %v722
  %v837 = vpack.c.b16 %v725, %v724
  %v838 = vpack.c.b16 %v727, %v726
  %v839 = vpack.c.b16 %v729, %v728
  %v840 = vpack.c.b16 %v731, %v730
  %v841 = vpack.c.b16 %v733, %v732
  %v842 = vpack.c.b16 %v735, %v734
  %v843 = vpack.c.b16 %v737, %v736
  %v844 = vpack.c.b16 %v739, %v738
  %v845 = vpack.c.b16 %v741, %v740
  %v846 = vpack.c.b16 %v743, %v742
  %v847 = vpack.c.b16 %v745, %v744
  %v848 = vpack.c.b16 %v747, %v746
  %v849 = vpack.c.b16 %v749, %v748
  %v850 = vpack.c.b16 %v751, %v750
  %v851 = vpack.c.b16 %v753, %v752
  %v852 = vpack.c.b16 %v755, %v754
  %v853 = vpack.c.b16 %v757, %v756
  %v854 = vpack.c.b16 %v759, %v758
  %v855 = vpack.c.b16 %v761, %v760
  %v856 = vpack.c.b16 %v763, %v762
  %v857 = vpack.c.b16 %v765, %v764
  %v858 = vpack.c.b16 %v767, %v766
  %v859 = vpack.c.b16 %v769, %v768
  %v860 = vpack.c.b16 %v771, %v770
  %v861 = vpack.c.b16 %v773, %v772
  %v862 = vpack.c.b16 %v775, %v774
  %v863 = vpack.c.b16 %v777, %v776
  %v864 = vpack.c.b16 %v779, %v778
  %v865 = vpack.c.b16 %v781, %v780
  %v866 = vpack.c.b16 %v783, %v782
  %v867 = vpack.c.b16 %v785, %v784
  %v868 = vpack.c.b16 %v787, %v786
  %v869 = vpack.c.b16 %v789, %v788
  %v870 = vpack.c.b16 %v791, %v790
  %v871 = vpack.c.b16 %v793, %v792
  %v872 = vpack.c.b16 %v795, %v794
  %v873 = vpack.c.b16 %v797, %v796
  %v874 = vpack.c.b16 %v799, %v798
  %v875 = vpack.c.b16 %v801, %v800
  %v876 = vpack.c.b16 %v803, %v802
  %v877 = vpack.c.b16 %v805, %v804
  %v878 = vpack.c.b16 %v807, %v806
  %v879 = vpack.c.b16 %v809, %v808
  %v880 = vpack.c.b16 %v811, %v810
  %v881 = vpack.c.b16 %v813, %v812
  %v882 = vpack.c.b16 %v815, %v814
  %v883 = vpack.c.b16 %v817, %v816
  %v884 = vpack.c.b16 %v819, %v818
  %v885 = vpack.c.b16 %v821, %v820
  %950 = vmatprep.subr.bf16.mxu0 0
  %951 = vmatpush1.bf16.msra.mxu0 %v822
  %952 = vmatprep.subr.bf16.mxu0 0
  %953 = vmatpush1.bf16.msra.mxu0 %v823
  %954 = vmatprep.subr.bf16.mxu0 0
  %955 = vmatpush1.bf16.msra.mxu0 %v824
  %956 = vmatprep.subr.bf16.mxu0 0
  %957 = vmatpush1.bf16.msra.mxu0 %v825
  %958 = vmatprep.subr.bf16.mxu0 0
  %959 = vmatpush1.bf16.msra.mxu0 %v826
  %960 = vmatprep.subr.bf16.mxu0 0
  %961 = vmatpush1.bf16.msra.mxu0 %v827
  %962 = vmatprep.subr.bf16.mxu0 0
  %963 = vmatpush1.bf16.msra.mxu0 %v828
  %964 = vmatprep.subr.bf16.mxu0 0
  %965 = vmatpush1.bf16.msra.mxu0 %v829
  %966 = vmatprep.subr.bf16.mxu0 0
  %967 = vmatpush1.bf16.msra.mxu0 %v830
  %968 = vmatprep.subr.bf16.mxu0 0
  %969 = vmatpush1.bf16.msra.mxu0 %v831
  %970 = vmatprep.subr.bf16.mxu0 0
  %971 = vmatpush1.bf16.msra.mxu0 %v832
  %972 = vmatprep.subr.bf16.mxu0 0
  %973 = vmatpush1.bf16.msra.mxu0 %v833
  %974 = vmatprep.subr.bf16.mxu0 0
  %975 = vmatpush1.bf16.msra.mxu0 %v834
  %976 = vmatprep.subr.bf16.mxu0 0
  %977 = vmatpush1.bf16.msra.mxu0 %v835
  %978 = vmatprep.subr.bf16.mxu0 0
  %979 = vmatpush1.bf16.msra.mxu0 %v836
  %980 = vmatprep.subr.bf16.mxu0 0
  %981 = vmatpush1.bf16.msra.mxu0 %v837
  %982 = vmatprep.mubr.bf16.mxu0 %v439
  %983 = vmatmul.mubr.bf16.gmra.mrb[0].mxu0 %v438
  %v984 = vpop.f32.mrb[0].mxu0
  %v985 = vadd.f32 0.0, %v984
  %v986 = vpop.f32.mrb[0].mxu0
  %v987 = vpop.f32.mrb[0].mxu0
  %v988 = vadd.f32 0.0, %v987
  %v989 = vpop.f32.mrb[0].mxu0
  %990 = vmatprep.mubr.bf16.mxu0 %v447
  %991 = vmatmul.mubr.bf16.gmra.mrb[0].mxu0 %v446
  %v992 = vpop.f32.mrb[0].mxu0
  %v993 = vadd.f32 0.0, %v992
  %v994 = vpop.f32.mrb[0].mxu0
  %v995 = vpop.f32.mrb[0].mxu0
  %v996 = vadd.f32 0.0, %v995
  %v997 = vpop.f32.mrb[0].mxu0
  %998 = vmatprep.mubr.bf16.mxu0 %v455
  %999 = vmatmul.mubr.bf16.gmra.mrb[0].mxu0 %v454
  %v1000 = vpop.f32.mrb[0].mxu0
  %v1001 = vadd.f32 0.0, %v1000
  %v1002 = vpop.f32.mrb[0].mxu0
  %v1003 = vpop.f32.mrb[0].mxu0
  %v1004 = vadd.f32 0.0, %v1003
  %v1005 = vpop.f32.mrb[0].mxu0
  %1006 = vmatprep.mubr.bf16.mxu0 %v463
  %1007 = vmatmul.mubr.bf16.gmra.mrb[0].mxu0 %v462
  %v1008 = vpop.f32.mrb[0].mxu0
  %v1009 = vadd.f32 0.0, %v1008
  %v1010 = vpop.f32.mrb[0].mxu0
  %v1011 = vpop.f32.mrb[0].mxu0
  %v1012 = vadd.f32 0.0, %v1011
  %v1013 = vpop.f32.mrb[0].mxu0
  %1014 = vmatprep.mubr.bf16.mxu0 %v471
  %1015 = vmatmul.mubr.bf16.gmra.mrb[0].mxu0 %v470
  %v1016 = vpop.f32.mrb[0].mxu0
  %v1017 = vadd.f32 0.0, %v1016
  %v1018 = vpop.f32.mrb[0].mxu0
  %v1019 = vpop.f32.mrb[0].mxu0
  %v1020 = vadd.f32 0.0, %v1019
  %v1021 = vpop.f32.mrb[0].mxu0
  %1022 = vmatprep.mubr.bf16.mxu0 %v479
  %1023 = vmatmul.mubr.bf16.gmra.mrb[0].mxu0 %v478
  %v1024 = vpop.f32.mrb[0].mxu0
  %v1025 = vadd.f32 0.0, %v1024
  %v1026 = vpop.f32.mrb[0].mxu0
  %v1027 = vpop.f32.mrb[0].mxu0
  %v1028 = vadd.f32 0.0, %v1027
  %v1029 = vpop.f32.mrb[0].mxu0
  %1030 = vmatprep.mubr.bf16.mxu0 %v487
  %1031 = vmatmul.mubr.bf16.gmra.mrb[0].mxu0 %v486
  %v1032 = vpop.f32.mrb[0].mxu0
  %v1033 = vadd.f32 0.0, %v1032
  %v1034 = vpop.f32.mrb[0].mxu0
  %v1035 = vpop.f32.mrb[0].mxu0
  %v1036 = vadd.f32 0.0, %v1035
  %v1037 = vpop.f32.mrb[0].mxu0
  %1038 = vmatprep.mubr.bf16.mxu0 %v495
  %1039 = vmatmul.mubr.bf16.gmra.mrb[0].mxu0 %v494
  %v1040 = vpop.f32.mrb[0].mxu0
  %v1041 = vadd.f32 0.0, %v1040
  %v1042 = vpop.f32.mrb[0].mxu0
  %v1043 = vpop.f32.mrb[0].mxu0
  %v1044 = vadd.f32 0.0, %v1043
  %v1045 = vpop.f32.mrb[0].mxu0
  %1046 = vdwg.mxu0
  %1047 = vmatprep.subr.bf16.mxu0 0
  %1048 = vmatpush1.bf16.msra.mxu0 %v838
  %1049 = vmatprep.subr.bf16.mxu0 0
  %1050 = vmatpush1.bf16.msra.mxu0 %v839
  %1051 = vmatprep.subr.bf16.mxu0 0
  %1052 = vmatpush1.bf16.msra.mxu0 %v840
  %1053 = vmatprep.subr.bf16.mxu0 0
  %1054 = vmatpush1.bf16.msra.mxu0 %v841
  %1055 = vmatprep.subr.bf16.mxu0 0
  %1056 = vmatpush1.bf16.msra.mxu0 %v842
  %1057 = vmatprep.subr.bf16.mxu0 0
  %1058 = vmatpush1.bf16.msra.mxu0 %v843
  %1059 = vmatprep.subr.bf16.mxu0 0
  %1060 = vmatpush1.bf16.msra.mxu0 %v844
  %1061 = vmatprep.subr.bf16.mxu0 0
  %1062 = vmatpush1.bf16.msra.mxu0 %v845
  %1063 = vmatprep.subr.bf16.mxu0 0
  %1064 = vmatpush1.bf16.msra.mxu0 %v846
  %1065 = vmatprep.subr.bf16.mxu0 0
  %1066 = vmatpush1.bf16.msra.mxu0 %v847
  %1067 = vmatprep.subr.bf16.mxu0 0
  %1068 = vmatpush1.bf16.msra.mxu0 %v848
  %1069 = vmatprep.subr.bf16.mxu0 0
  %1070 = vmatpush1.bf16.msra.mxu0 %v849
  %1071 = vmatprep.subr.bf16.mxu0 0
  %1072 = vmatpush1.bf16.msra.mxu0 %v850
  %1073 = vmatprep.subr.bf16.mxu0 0
  %1074 = vmatpush1.bf16.msra.mxu0 %v851
  %1075 = vmatprep.subr.bf16.mxu0 0
  %1076 = vmatpush1.bf16.msra.mxu0 %v852
  %1077 = vmatprep.subr.bf16.mxu0 0
  %1078 = vmatpush1.bf16.msra.mxu0 %v853
  %1079 = vmatprep.mubr.bf16.mxu0 %v441
  %1080 = vmatmul.mubr.bf16.gmra.mrb[0].mxu0 %v440
  %v1081 = vpop.f32.mrb[0].mxu0
  %v1082 = vadd.f32 %v985, %v1081
  %v1083 = vpop.f32.mrb[0].mxu0
  %v1084 = vpop.f32.mrb[0].mxu0
  %v1085 = vadd.f32 %v988, %v1084
  %v1086 = vpop.f32.mrb[0].mxu0
  %1087 = vmatprep.mubr.bf16.mxu0 %v449
  %1088 = vmatmul.mubr.bf16.gmra.mrb[0].mxu0 %v448
  %v1089 = vpop.f32.mrb[0].mxu0
  %v1090 = vadd.f32 %v993, %v1089
  %v1091 = vpop.f32.mrb[0].mxu0
  %v1092 = vpop.f32.mrb[0].mxu0
  %v1093 = vadd.f32 %v996, %v1092
  %v1094 = vpop.f32.mrb[0].mxu0
  %1095 = vmatprep.mubr.bf16.mxu0 %v457
  %1096 = vmatmul.mubr.bf16.gmra.mrb[0].mxu0 %v456
  %v1097 = vpop.f32.mrb[0].mxu0
  %v1098 = vadd.f32 %v1001, %v1097
  %v1099 = vpop.f32.mrb[0].mxu0
  %v1100 = vpop.f32.mrb[0].mxu0
  %v1101 = vadd.f32 %v1004, %v1100
  %v1102 = vpop.f32.mrb[0].mxu0
  %1103 = vmatprep.mubr.bf16.mxu0 %v465
  %1104 = vmatmul.mubr.bf16.gmra.mrb[0].mxu0 %v464
  %v1105 = vpop.f32.mrb[0].mxu0
  %v1106 = vadd.f32 %v1009, %v1105
  %v1107 = vpop.f32.mrb[0].mxu0
  %v1108 = vpop.f32.mrb[0].mxu0
  %v1109 = vadd.f32 %v1012, %v1108
  %v1110 = vpop.f32.mrb[0].mxu0
  %1111 = vmatprep.mubr.bf16.mxu0 %v473
  %1112 = vmatmul.mubr.bf16.gmra.mrb[0].mxu0 %v472
  %v1113 = vpop.f32.mrb[0].mxu0
  %v1114 = vadd.f32 %v1017, %v1113
  %v1115 = vpop.f32.mrb[0].mxu0
  %v1116 = vpop.f32.mrb[0].mxu0
  %v1117 = vadd.f32 %v1020, %v1116
  %v1118 = vpop.f32.mrb[0].mxu0
  %1119 = vmatprep.mubr.bf16.mxu0 %v481
  %1120 = vmatmul.mubr.bf16.gmra.mrb[0].mxu0 %v480
  %v1121 = vpop.f32.mrb[0].mxu0
  %v1122 = vadd.f32 %v1025, %v1121
  %v1123 = vpop.f32.mrb[0].mxu0
  %v1124 = vpop.f32.mrb[0].mxu0
  %v1125 = vadd.f32 %v1028, %v1124
  %v1126 = vpop.f32.mrb[0].mxu0
  %1127 = vmatprep.mubr.bf16.mxu0 %v489
  %1128 = vmatmul.mubr.bf16.gmra.mrb[0].mxu0 %v488
  %v1129 = vpop.f32.mrb[0].mxu0
  %v1130 = vadd.f32 %v1033, %v1129
  %v1131 = vpop.f32.mrb[0].mxu0
  %v1132 = vpop.f32.mrb[0].mxu0
  %v1133 = vadd.f32 %v1036, %v1132
  %v1134 = vpop.f32.mrb[0].mxu0
  %1135 = vmatprep.mubr.bf16.mxu0 %v497
  %1136 = vmatmul.mubr.bf16.gmra.mrb[0].mxu0 %v496
  %v1137 = vpop.f32.mrb[0].mxu0
  %v1138 = vadd.f32 %v1041, %v1137
  %v1139 = vpop.f32.mrb[0].mxu0
  %v1140 = vpop.f32.mrb[0].mxu0
  %v1141 = vadd.f32 %v1044, %v1140
  %v1142 = vpop.f32.mrb[0].mxu0
  %1143 = vdwg.mxu0
  %1144 = vmatprep.subr.bf16.mxu0 0
  %1145 = vmatpush1.bf16.msra.mxu0 %v854
  %1146 = vmatprep.subr.bf16.mxu0 0
  %1147 = vmatpush1.bf16.msra.mxu0 %v855
  %1148 = vmatprep.subr.bf16.mxu0 0
  %1149 = vmatpush1.bf16.msra.mxu0 %v856
  %1150 = vmatprep.subr.bf16.mxu0 0
  %1151 = vmatpush1.bf16.msra.mxu0 %v857
  %1152 = vmatprep.subr.bf16.mxu0 0
  %1153 = vmatpush1.bf16.msra.mxu0 %v858
  %1154 = vmatprep.subr.bf16.mxu0 0
  %1155 = vmatpush1.bf16.msra.mxu0 %v859
  %1156 = vmatprep.subr.bf16.mxu0 0
  %1157 = vmatpush1.bf16.msra.mxu0 %v860
  %1158 = vmatprep.subr.bf16.mxu0 0
  %1159 = vmatpush1.bf16.msra.mxu0 %v861
  %1160 = vmatprep.subr.bf16.mxu0 0
  %1161 = vmatpush1.bf16.msra.mxu0 %v862
  %1162 = vmatprep.subr.bf16.mxu0 0
  %1163 = vmatpush1.bf16.msra.mxu0 %v863
  %1164 = vmatprep.subr.bf16.mxu0 0
  %1165 = vmatpush1.bf16.msra.mxu0 %v864
  %1166 = vmatprep.subr.bf16.mxu0 0
  %1167 = vmatpush1.bf16.msra.mxu0 %v865
  %1168 = vmatprep.subr.bf16.mxu0 0
  %1169 = vmatpush1.bf16.msra.mxu0 %v866
  %1170 = vmatprep.subr.bf16.mxu0 0
  %1171 = vmatpush1.bf16.msra.mxu0 %v867
  %1172 = vmatprep.subr.bf16.mxu0 0
  %1173 = vmatpush1.bf16.msra.mxu0 %v868
  %1174 = vmatprep.subr.bf16.mxu0 0
  %1175 = vmatpush1.bf16.msra.mxu0 %v869
  %1176 = vmatprep.mubr.bf16.mxu0 %v443
  %1177 = vmatmul.mubr.bf16.gmra.mrb[0].mxu0 %v442
  %v1178 = vpop.f32.mrb[0].mxu0
  %v1179 = vadd.f32 %v1082, %v1178
  %v1180 = vpop.f32.mrb[0].mxu0
  %v1181 = vpop.f32.mrb[0].mxu0
  %v1182 = vadd.f32 %v1085, %v1181
  %v1183 = vpop.f32.mrb[0].mxu0
  %1184 = vmatprep.mubr.bf16.mxu0 %v451
  %1185 = vmatmul.mubr.bf16.gmra.mrb[0].mxu0 %v450
  %v1186 = vpop.f32.mrb[0].mxu0
  %v1187 = vadd.f32 %v1090, %v1186
  %v1188 = vpop.f32.mrb[0].mxu0
  %v1189 = vpop.f32.mrb[0].mxu0
  %v1190 = vadd.f32 %v1093, %v1189
  %v1191 = vpop.f32.mrb[0].mxu0
  %1192 = vmatprep.mubr.bf16.mxu0 %v459
  %1193 = vmatmul.mubr.bf16.gmra.mrb[0].mxu0 %v458
  %v1194 = vpop.f32.mrb[0].mxu0
  %v1195 = vadd.f32 %v1098, %v1194
  %v1196 = vpop.f32.mrb[0].mxu0
  %v1197 = vpop.f32.mrb[0].mxu0
  %v1198 = vadd.f32 %v1101, %v1197
  %v1199 = vpop.f32.mrb[0].mxu0
  %1200 = vmatprep.mubr.bf16.mxu0 %v467
  %1201 = vmatmul.mubr.bf16.gmra.mrb[0].mxu0 %v466
  %v1202 = vpop.f32.mrb[0].mxu0
  %v1203 = vadd.f32 %v1106, %v1202
  %v1204 = vpop.f32.mrb[0].mxu0
  %v1205 = vpop.f32.mrb[0].mxu0
  %v1206 = vadd.f32 %v1109, %v1205
  %v1207 = vpop.f32.mrb[0].mxu0
  %1208 = vmatprep.mubr.bf16.mxu0 %v475
  %1209 = vmatmul.mubr.bf16.gmra.mrb[0].mxu0 %v474
  %v1210 = vpop.f32.mrb[0].mxu0
  %v1211 = vadd.f32 %v1114, %v1210
  %v1212 = vpop.f32.mrb[0].mxu0
  %v1213 = vpop.f32.mrb[0].mxu0
  %v1214 = vadd.f32 %v1117, %v1213
  %v1215 = vpop.f32.mrb[0].mxu0
  %1216 = vmatprep.mubr.bf16.mxu0 %v483
  %1217 = vmatmul.mubr.bf16.gmra.mrb[0].mxu0 %v482
  %v1218 = vpop.f32.mrb[0].mxu0
  %v1219 = vadd.f32 %v1122, %v1218
  %v1220 = vpop.f32.mrb[0].mxu0
  %v1221 = vpop.f32.mrb[0].mxu0
  %v1222 = vadd.f32 %v1125, %v1221
  %v1223 = vpop.f32.mrb[0].mxu0
  %1224 = vmatprep.mubr.bf16.mxu0 %v491
  %1225 = vmatmul.mubr.bf16.gmra.mrb[0].mxu0 %v490
  %v1226 = vpop.f32.mrb[0].mxu0
  %v1227 = vadd.f32 %v1130, %v1226
  %v1228 = vpop.f32.mrb[0].mxu0
  %v1229 = vpop.f32.mrb[0].mxu0
  %v1230 = vadd.f32 %v1133, %v1229
  %v1231 = vpop.f32.mrb[0].mxu0
  %1232 = vmatprep.mubr.bf16.mxu0 %v499
  %1233 = vmatmul.mubr.bf16.gmra.mrb[0].mxu0 %v498
  %v1234 = vpop.f32.mrb[0].mxu0
  %v1235 = vadd.f32 %v1138, %v1234
  %v1236 = vpop.f32.mrb[0].mxu0
  %v1237 = vpop.f32.mrb[0].mxu0
  %v1238 = vadd.f32 %v1141, %v1237
  %v1239 = vpop.f32.mrb[0].mxu0
  %1240 = vdwg.mxu0
  %1241 = vmatprep.subr.bf16.mxu0 0
  %1242 = vmatpush1.bf16.msra.mxu0 %v870
  %1243 = vmatprep.subr.bf16.mxu0 0
  %1244 = vmatpush1.bf16.msra.mxu0 %v871
  %1245 = vmatprep.subr.bf16.mxu0 0
  %1246 = vmatpush1.bf16.msra.mxu0 %v872
  %1247 = vmatprep.subr.bf16.mxu0 0
  %1248 = vmatpush1.bf16.msra.mxu0 %v873
  %1249 = vmatprep.subr.bf16.mxu0 0
  %1250 = vmatpush1.bf16.msra.mxu0 %v874
  %1251 = vmatprep.subr.bf16.mxu0 0
  %1252 = vmatpush1.bf16.msra.mxu0 %v875
  %1253 = vmatprep.subr.bf16.mxu0 0
  %1254 = vmatpush1.bf16.msra.mxu0 %v876
  %1255 = vmatprep.subr.bf16.mxu0 0
  %1256 = vmatpush1.bf16.msra.mxu0 %v877
  %1257 = vmatprep.subr.bf16.mxu0 0
  %1258 = vmatpush1.bf16.msra.mxu0 %v878
  %1259 = vmatprep.subr.bf16.mxu0 0
  %1260 = vmatpush1.bf16.msra.mxu0 %v879
  %1261 = vmatprep.subr.bf16.mxu0 0
  %1262 = vmatpush1.bf16.msra.mxu0 %v880
  %1263 = vmatprep.subr.bf16.mxu0 0
  %1264 = vmatpush1.bf16.msra.mxu0 %v881
  %1265 = vmatprep.subr.bf16.mxu0 0
  %1266 = vmatpush1.bf16.msra.mxu0 %v882
  %1267 = vmatprep.subr.bf16.mxu0 0
  %1268 = vmatpush1.bf16.msra.mxu0 %v883
  %1269 = vmatprep.subr.bf16.mxu0 0
  %1270 = vmatpush1.bf16.msra.mxu0 %v884
  %1271 = vmatprep.subr.bf16.mxu0 0
  %1272 = vmatpush1.bf16.msra.mxu0 %v885
  %1273 = vmatprep.mubr.bf16.mxu0 %v445
  %1274 = vmatmul.mubr.bf16.gmra.mrb[0].mxu0 %v444
  %v1275 = vpop.f32.mrb[0].mxu0
  %v1276 = vadd.f32 %v1179, %v1275
  %v1277 = vpop.f32.mrb[0].mxu0
  %v1278 = vpop.f32.mrb[0].mxu0
  %v1279 = vadd.f32 %v1182, %v1278
  %v1280 = vpop.f32.mrb[0].mxu0
  %1281 = vmatprep.mubr.bf16.mxu0 %v453
  %1282 = vmatmul.mubr.bf16.gmra.mrb[0].mxu0 %v452
  %v1283 = vpop.f32.mrb[0].mxu0
  %v1284 = vadd.f32 %v1187, %v1283
  %v1285 = vpop.f32.mrb[0].mxu0
  %v1286 = vpop.f32.mrb[0].mxu0
  %v1287 = vadd.f32 %v1190, %v1286
  %v1288 = vpop.f32.mrb[0].mxu0
  %1289 = vmatprep.mubr.bf16.mxu0 %v461
  %1290 = vmatmul.mubr.bf16.gmra.mrb[0].mxu0 %v460
  %v1291 = vpop.f32.mrb[0].mxu0
  %v1292 = vadd.f32 %v1195, %v1291
  %v1293 = vpop.f32.mrb[0].mxu0
  %v1294 = vpop.f32.mrb[0].mxu0
  %v1295 = vadd.f32 %v1198, %v1294
  %v1296 = vpop.f32.mrb[0].mxu0
  %1297 = vmatprep.mubr.bf16.mxu0 %v469
  %1298 = vmatmul.mubr.bf16.gmra.mrb[0].mxu0 %v468
  %v1299 = vpop.f32.mrb[0].mxu0
  %v1300 = vadd.f32 %v1203, %v1299
  %v1301 = vpop.f32.mrb[0].mxu0
  %v1302 = vpop.f32.mrb[0].mxu0
  %v1303 = vadd.f32 %v1206, %v1302
  %v1304 = vpop.f32.mrb[0].mxu0
  %1305 = vmatprep.mubr.bf16.mxu0 %v477
  %1306 = vmatmul.mubr.bf16.gmra.mrb[0].mxu0 %v476
  %v1307 = vpop.f32.mrb[0].mxu0
  %v1308 = vadd.f32 %v1211, %v1307
  %v1309 = vpop.f32.mrb[0].mxu0
  %v1310 = vpop.f32.mrb[0].mxu0
  %v1311 = vadd.f32 %v1214, %v1310
  %v1312 = vpop.f32.mrb[0].mxu0
  %1313 = vmatprep.mubr.bf16.mxu0 %v485
  %1314 = vmatmul.mubr.bf16.gmra.mrb[0].mxu0 %v484
  %v1315 = vpop.f32.mrb[0].mxu0
  %v1316 = vadd.f32 %v1219, %v1315
  %v1317 = vpop.f32.mrb[0].mxu0
  %v1318 = vpop.f32.mrb[0].mxu0
  %v1319 = vadd.f32 %v1222, %v1318
  %v1320 = vpop.f32.mrb[0].mxu0
  %1321 = vmatprep.mubr.bf16.mxu0 %v493
  %1322 = vmatmul.mubr.bf16.gmra.mrb[0].mxu0 %v492
  %v1323 = vpop.f32.mrb[0].mxu0
  %v1324 = vadd.f32 %v1227, %v1323
  %v1325 = vpop.f32.mrb[0].mxu0
  %v1326 = vpop.f32.mrb[0].mxu0
  %v1327 = vadd.f32 %v1230, %v1326
  %v1328 = vpop.f32.mrb[0].mxu0
  %1329 = vmatprep.mubr.bf16.mxu0 %v501
  %1330 = vmatmul.mubr.bf16.gmra.mrb[0].mxu0 %v500
  %v1331 = vpop.f32.mrb[0].mxu0
  %v1332 = vadd.f32 %v1235, %v1331
  %v1333 = vpop.f32.mrb[0].mxu0
  %v1334 = vpop.f32.mrb[0].mxu0
  %v1335 = vadd.f32 %v1238, %v1334
  %v1336 = vpop.f32.mrb[0].mxu0
  %1337 = vdwg.mxu0
  %v1338 = vadd.f32 %v38, %v1276
  %v1339 = vadd.f32 %v39, %v1279
  %v1340 = vadd.f32 %v40, %v1284
  %v1341 = vadd.f32 %v41, %v1287
  %v1342 = vadd.f32 %v42, %v1292
  %v1343 = vadd.f32 %v43, %v1295
  %v1344 = vadd.f32 %v44, %v1300
  %v1345 = vadd.f32 %v45, %v1303
  %v1346 = vadd.f32 %v46, %v1308
  %v1347 = vadd.f32 %v47, %v1311
  %v1348 = vadd.f32 %v48, %v1316
  %v1349 = vadd.f32 %v49, %v1319
  %v1350 = vadd.f32 %v50, %v1324
  %v1351 = vadd.f32 %v51, %v1327
  %v1352 = vadd.f32 %v52, %v1332
  %v1353 = vadd.f32 %v53, %v1335
  %1354 = vst [vmem:[#allocation2] sm:$0xff] %v1338
  %1355 = vst [vmem:[#allocation2 + $0x8] sm:$0xff] %v1339
  %1356 = vst [vmem:[#allocation2 + $0x10] sm:$0xff] %v1340
  %1357 = vst [vmem:[#allocation2 + $0x18] sm:$0xff] %v1341
  %1358 = vst [vmem:[#allocation2 + $0x20] sm:$0xff] %v1342
  %1359 = vst [vmem:[#allocation2 + $0x28] sm:$0xff] %v1343
  %1360 = vst [vmem:[#allocation2 + $0x30] sm:$0xff] %v1344
  %1361 = vst [vmem:[#allocation2 + $0x38] sm:$0xff] %v1345
  %1362 = vst [vmem:[#allocation2 + $0x40] sm:$0xff] %v1346
  %1363 = vst [vmem:[#allocation2 + $0x48] sm:$0xff] %v1347
  %1364 = vst [vmem:[#allocation2 + $0x50] sm:$0xff] %v1348
  %1365 = vst [vmem:[#allocation2 + $0x58] sm:$0xff] %v1349
  %1366 = vst [vmem:[#allocation2 + $0x60] sm:$0xff] %v1350
  %1367 = vst [vmem:[#allocation2 + $0x68] sm:$0xff] %v1351
  %1368 = vst [vmem:[#allocation2 + $0x70] sm:$0xff] %v1352
  %1369 = vst [vmem:[#allocation2 + $0x78] sm:$0xff] %v1353
  // Predicated region
  $region22: #{discriminator_forward.5} parent=0 // pred_check
    %p1370 = pneg %p18
  $region23: #{discriminator_forward.5} parent=0 // pred_check_branch
    %1372 = sbr.rel (%p1370) target = $region25
  $region24: #{discriminator_forward.5} parent=0 // pred_region
    %v1373 = vld [vmem:[#allocation2] sm:$0xff]
    %v1374 = vld [vmem:[#allocation2 + $0x8] sm:$0xff]
    %v1375 = vld [vmem:[#allocation2 + $0x10] sm:$0xff]
    %v1376 = vld [vmem:[#allocation2 + $0x18] sm:$0xff]
    %v1377 = vld [vmem:[#allocation2 + $0x20] sm:$0xff]
    %v1378 = vld [vmem:[#allocation2 + $0x28] sm:$0xff]
    %v1379 = vld [vmem:[#allocation2 + $0x30] sm:$0xff]
    %v1380 = vld [vmem:[#allocation2 + $0x38] sm:$0xff]
    %v1381 = vld [vmem:[#allocation2 + $0x40] sm:$0xff]
    %v1382 = vld [vmem:[#allocation2 + $0x48] sm:$0xff]
    %v1383 = vld [vmem:[#allocation2 + $0x50] sm:$0xff]
    %v1384 = vld [vmem:[#allocation2 + $0x58] sm:$0xff]
    %v1385 = vld [vmem:[#allocation2 + $0x60] sm:$0xff]
    %v1386 = vld [vmem:[#allocation2 + $0x68] sm:$0xff]
    %v1387 = vld [vmem:[#allocation2 + $0x70] sm:$0xff]
    %v1388 = vld [vmem:[#allocation2 + $0x78] sm:$0xff]
    %v1389 = vadd.f32 %v1373, %v1374
    %v1390 = vadd.f32 %v1389, %v1375
    %v1391 = vadd.f32 %v1390, %v1376
    %v1392 = vadd.f32 %v1391, %v1377
    %v1393 = vadd.f32 %v1392, %v1378
    %v1394 = vadd.f32 %v1393, %v1379
    %v1395 = vadd.f32 %v1394, %v1380
    %v1396 = vadd.f32 %v1395, %v1381
    %v1397 = vadd.f32 %v1396, %v1382
    %v1398 = vadd.f32 %v1397, %v1383
    %v1399 = vadd.f32 %v1398, %v1384
    %v1400 = vadd.f32 %v1399, %v1385
    %v1401 = vadd.f32 %v1400, %v1386
    %v1402 = vadd.f32 %v1401, %v1387
    %v1403 = vadd.f32 %v1402, %v1388
    %v1404 = vrot.slane %v1403, 4
    %v1405 = vadd.f32 %v1403, %v1404
    %v1406 = vrot.slane %v1405, 2
    %v1407 = vadd.f32 %v1405, %v1406
    %v1408 = vrot.slane %v1407, 1
    %v1409 = vadd.f32 %v1407, %v1408
    %v1410 = vmul.f32 %v1409, 0.0078125
    %v1411 = vmul.f32 %v1373, %v1373
    %v1412 = vmul.f32 %v1374, %v1374
    %v1413 = vmul.f32 %v1375, %v1375
    %v1414 = vmul.f32 %v1376, %v1376
    %v1415 = vmul.f32 %v1377, %v1377
    %v1416 = vmul.f32 %v1378, %v1378
    %v1417 = vmul.f32 %v1379, %v1379
    %v1418 = vmul.f32 %v1380, %v1380
    %v1419 = vmul.f32 %v1381, %v1381
    %v1420 = vmul.f32 %v1382, %v1382
    %v1421 = vmul.f32 %v1383, %v1383
    %v1422 = vmul.f32 %v1384, %v1384
    %v1423 = vmul.f32 %v1385, %v1385
    %v1424 = vmul.f32 %v1386, %v1386
    %v1425 = vmul.f32 %v1387, %v1387
    %v1426 = vmul.f32 %v1388, %v1388
    %v1427 = vadd.f32 %v1411, %v1412
    %v1428 = vadd.f32 %v1427, %v1413
    %v1429 = vadd.f32 %v1428, %v1414
    %v1430 = vadd.f32 %v1429, %v1415
    %v1431 = vadd.f32 %v1430, %v1416
    %v1432 = vadd.f32 %v1431, %v1417
    %v1433 = vadd.f32 %v1432, %v1418
    %v1434 = vadd.f32 %v1433, %v1419
    %v1435 = vadd.f32 %v1434, %v1420
    %v1436 = vadd.f32 %v1435, %v1421
    %v1437 = vadd.f32 %v1436, %v1422
    %v1438 = vadd.f32 %v1437, %v1423
    %v1439 = vadd.f32 %v1438, %v1424
    %v1440 = vadd.f32 %v1439, %v1425
    %v1441 = vadd.f32 %v1440, %v1426
    %v1442 = vrot.slane %v1441, 4
    %v1443 = vadd.f32 %v1441, %v1442
    %v1444 = vrot.slane %v1443, 2
    %v1445 = vadd.f32 %v1443, %v1444
    %v1446 = vrot.slane %v1445, 1
    %v1447 = vadd.f32 %v1445, %v1446
    %v1448 = vmul.f32 %v1447, 0.0078125
    %v1449 = vmul.f32 %v1410, %v1410
    %v1450 = vsub.f32 %v1448, %v1449
    %v1451 = vld [vmem:[%s2] sm:$0x1]
    %v1452 = vadd.f32 %v1450, 1e-05
    %v1453 = vrsqrt.pop %v1452
    %v1454 = vmul.f32 %v1451, %v1453
    %v1455 = vld [vmem:[%s3] sm:$0x1]
    %v1456 = vmul.f32 %v1410, %v1454
    %v1457 = vsub.f32 %v1455, %v1456
    %v1459 = vlaneseq
    %v1460 = vshrl.u32 %v1459, 7
    %v1461 = vsub.s32 0, %v1460
    %v1462 = vrot.slane %v1454, %v1461
    %v1464 = vmul.f32 %v1373, %v1462
    %v1465 = vmul.f32 %v1374, %v1462
    %v1466 = vmul.f32 %v1375, %v1462
    %v1467 = vmul.f32 %v1376, %v1462
    %v1468 = vmul.f32 %v1377, %v1462
    %v1469 = vmul.f32 %v1378, %v1462
    %v1470 = vmul.f32 %v1379, %v1462
    %v1471 = vmul.f32 %v1380, %v1462
    %v1472 = vmul.f32 %v1381, %v1462
    %v1473 = vmul.f32 %v1382, %v1462
    %v1474 = vmul.f32 %v1383, %v1462
    %v1475 = vmul.f32 %v1384, %v1462
    %v1476 = vmul.f32 %v1385, %v1462
    %v1477 = vmul.f32 %v1386, %v1462
    %v1478 = vmul.f32 %v1387, %v1462
    %v1479 = vmul.f32 %v1388, %v1462
    %v1481 = vlaneseq
    %v1482 = vshrl.u32 %v1481, 7
    %v1483 = vsub.s32 0, %v1482
    %v1484 = vrot.slane %v1457, %v1483
    %v1486 = vadd.f32 %v1464, %v1484
    %v1487 = vadd.f32 %v1465, %v1484
    %v1488 = vadd.f32 %v1466, %v1484
    %v1489 = vadd.f32 %v1467, %v1484
    %v1490 = vadd.f32 %v1468, %v1484
    %v1491 = vadd.f32 %v1469, %v1484
    %v1492 = vadd.f32 %v1470, %v1484
    %v1493 = vadd.f32 %v1471, %v1484
    %v1494 = vadd.f32 %v1472, %v1484
    %v1495 = vadd.f32 %v1473, %v1484
    %v1496 = vadd.f32 %v1474, %v1484
    %v1497 = vadd.f32 %v1475, %v1484
    %v1498 = vadd.f32 %v1476, %v1484
    %v1499 = vadd.f32 %v1477, %v1484
    %v1500 = vadd.f32 %v1478, %v1484
    %v1501 = vadd.f32 %v1479, %v1484
    %vm1502 = vcmp.ge.f32.partialorder %v1486, 0.0
    %vm1503 = vcmp.ge.f32.partialorder %v1487, 0.0
    %vm1504 = vcmp.ge.f32.partialorder %v1488, 0.0
    %vm1505 = vcmp.ge.f32.partialorder %v1489, 0.0
    %vm1506 = vcmp.ge.f32.partialorder %v1490, 0.0
    %vm1507 = vcmp.ge.f32.partialorder %v1491, 0.0
    %vm1508 = vcmp.ge.f32.partialorder %v1492, 0.0
    %vm1509 = vcmp.ge.f32.partialorder %v1493, 0.0
    %vm1510 = vcmp.ge.f32.partialorder %v1494, 0.0
    %vm1511 = vcmp.ge.f32.partialorder %v1495, 0.0
    %vm1512 = vcmp.ge.f32.partialorder %v1496, 0.0
    %vm1513 = vcmp.ge.f32.partialorder %v1497, 0.0
    %vm1514 = vcmp.ge.f32.partialorder %v1498, 0.0
    %vm1515 = vcmp.ge.f32.partialorder %v1499, 0.0
    %vm1516 = vcmp.ge.f32.partialorder %v1500, 0.0
    %vm1517 = vcmp.ge.f32.partialorder %v1501, 0.0
    %v1518 = vmul.f32 %v1486, 0.2
    %v1519 = vmul.f32 %v1487, 0.2
    %v1520 = vmul.f32 %v1488, 0.2
    %v1521 = vmul.f32 %v1489, 0.2
    %v1522 = vmul.f32 %v1490, 0.2
    %v1523 = vmul.f32 %v1491, 0.2
    %v1524 = vmul.f32 %v1492, 0.2
    %v1525 = vmul.f32 %v1493, 0.2
    %v1526 = vmul.f32 %v1494, 0.2
    %v1527 = vmul.f32 %v1495, 0.2
    %v1528 = vmul.f32 %v1496, 0.2
    %v1529 = vmul.f32 %v1497, 0.2
    %v1530 = vmul.f32 %v1498, 0.2
    %v1531 = vmul.f32 %v1499, 0.2
    %v1532 = vmul.f32 %v1500, 0.2
    %v1533 = vmul.f32 %v1501, 0.2
    %v1534 = vsel %vm1502, %v1486, %v1518
    %v1535 = vsel %vm1503, %v1487, %v1519
    %v1536 = vsel %vm1504, %v1488, %v1520
    %v1537 = vsel %vm1505, %v1489, %v1521
    %v1538 = vsel %vm1506, %v1490, %v1522
    %v1539 = vsel %vm1507, %v1491, %v1523
    %v1540 = vsel %vm1508, %v1492, %v1524
    %v1541 = vsel %vm1509, %v1493, %v1525
    %v1542 = vsel %vm1510, %v1494, %v1526
    %v1543 = vsel %vm1511, %v1495, %v1527
    %v1544 = vsel %vm1512, %v1496, %v1528
    %v1545 = vsel %vm1513, %v1497, %v1529
    %v1546 = vsel %vm1514, %v1498, %v1530
    %v1547 = vsel %vm1515, %v1499, %v1531
    %v1548 = vsel %vm1516, %v1500, %v1532
    %v1549 = vsel %vm1517, %v1501, %v1533
    %v1550 = vpack.c.bf16 %v1535, %v1534
    %v1551 = vpack.c.bf16 %v1537, %v1536
    %v1552 = vpack.c.bf16 %v1539, %v1538
    %v1553 = vpack.c.bf16 %v1541, %v1540
    %v1554 = vpack.c.bf16 %v1543, %v1542
    %v1555 = vpack.c.bf16 %v1545, %v1544
    %v1556 = vpack.c.bf16 %v1547, %v1546
    %v1557 = vpack.c.bf16 %v1549, %v1548
    %v1566 = vunpack.c.l.b16 %v1550
    %v1567 = vunpack.c.h.b16 %v1550
    %v1568 = vunpack.c.l.b16 %v1551
    %v1569 = vunpack.c.h.b16 %v1551
    %v1570 = vunpack.c.l.b16 %v1552
    %v1571 = vunpack.c.h.b16 %v1552
    %v1572 = vunpack.c.l.b16 %v1553
    %v1573 = vunpack.c.h.b16 %v1553
    %v1574 = vunpack.c.l.b16 %v1554
    %v1575 = vunpack.c.h.b16 %v1554
    %v1576 = vunpack.c.l.b16 %v1555
    %v1577 = vunpack.c.h.b16 %v1555
    %v1578 = vunpack.c.l.b16 %v1556
    %v1579 = vunpack.c.h.b16 %v1556
    %v1580 = vunpack.c.l.b16 %v1557
    %v1581 = vunpack.c.h.b16 %v1557
    %v1582 = vpack.c.b16 %v1566, %v1566
    %v1583 = vpack.c.b16 %v1567, %v1567
    %v1584 = vpack.c.b16 %v1568, %v1568
    %v1585 = vpack.c.b16 %v1569, %v1569
    %v1586 = vpack.c.b16 %v1570, %v1570
    %v1587 = vpack.c.b16 %v1571, %v1571
    %v1588 = vpack.c.b16 %v1572, %v1572
    %v1589 = vpack.c.b16 %v1573, %v1573
    %v1590 = vpack.c.b16 %v1574, %v1574
    %v1591 = vpack.c.b16 %v1575, %v1575
    %v1592 = vpack.c.b16 %v1576, %v1576
    %v1593 = vpack.c.b16 %v1577, %v1577
    %v1594 = vpack.c.b16 %v1578, %v1578
    %v1595 = vpack.c.b16 %v1579, %v1579
    %v1596 = vpack.c.b16 %v1580, %v1580
    %v1597 = vpack.c.b16 %v1581, %v1581
    %1614 = vst [vmem:[%s4] sm:$0xf] %v1582
    %1615 = vst [vmem:[%s4 + $0x4] sm:$0xf] %v1583
    %1616 = vst [vmem:[%s4 + $0x8] sm:$0xf] %v1584
    %1617 = vst [vmem:[%s4 + $0xc] sm:$0xf] %v1585
    %1618 = vst [vmem:[%s4 + $0x10] sm:$0xf] %v1586
    %1619 = vst [vmem:[%s4 + $0x14] sm:$0xf] %v1587
    %1620 = vst [vmem:[%s4 + $0x18] sm:$0xf] %v1588
    %1621 = vst [vmem:[%s4 + $0x1c] sm:$0xf] %v1589
    %1622 = vst [vmem:[%s4 + $0x20] sm:$0xf] %v1590
    %1623 = vst [vmem:[%s4 + $0x24] sm:$0xf] %v1591
    %1624 = vst [vmem:[%s4 + $0x28] sm:$0xf] %v1592
    %1625 = vst [vmem:[%s4 + $0x2c] sm:$0xf] %v1593
    %1626 = vst [vmem:[%s4 + $0x30] sm:$0xf] %v1594
    %1627 = vst [vmem:[%s4 + $0x34] sm:$0xf] %v1595
    %1628 = vst [vmem:[%s4 + $0x38] sm:$0xf] %v1596
    %1629 = vst [vmem:[%s4 + $0x3c] sm:$0xf] %v1597
  $region25: #{discriminator_forward.5} parent=0 // pred_fallthru
    _
  // Predicated region
  $region26: #{discriminator_forward.5} parent=0 // pred_check
    _
  $region27: #{discriminator_forward.5} parent=0 // pred_check_branch
    %1631 = sbr.rel (0) target = $region29
  $region28: #{discriminator_forward.5} parent=0 // pred_region
    _
  $region29: #{discriminator_forward.5} parent=0 // pred_fallthru
    _
  // Predicated region
  $region30: #{discriminator_forward.5} parent=0 // pred_check
    _
  $region31: #{discriminator_forward.5} parent=0 // pred_check_branch
    %1633 = sbr.rel (0) target = $region33
  $region32: #{discriminator_forward.5} parent=0 // pred_region
    _
  $region33: #{discriminator_forward.5} parent=0 // pred_fallthru
    _

// kernel: discriminator_forward.6
$region0: #{discriminator_forward.6}
  #allocation0 [shape = 'u32[]', space=smem, size = 0x4, offset = 0x4, fixed_abs, tag = 'smem constant byte address 0x4 - core index']
  #allocation1 [shape = 'u32[144,128]{1,0:T(1,128)}', space=vmem, size = 0x12000, scoped, tag = 'internal scratch']
  #allocation2 [shape = 'f32[32,128]{1,0:T(8,128)}', space=vmem, size = 0x4000, scoped, tag = 'scratch operand']
  %s0 = inlined_call_operand.vmem [shape: bf16[32,2048], index: 0, kind: input, shape index: {}]
  %s1 = inlined_call_operand.vmem [shape: bf16[2048,256], index: 1, kind: input, shape index: {}]
  %s2 = inlined_call_operand.vmem [shape: f32[1,256], index: 2, kind: input, shape index: {}]
  %s3 = inlined_call_operand.vmem [shape: f32[1,256], index: 3, kind: input, shape index: {}]
  %s4 = inlined_call_operand.vmem [shape: bf16[32,256], index: 4, kind: output, shape index: {}]
  %s5 = sld [smem:[#allocation0]]
  $region135: #{discriminator_forward.6} parent=0
    _
  %s7 = ssub.s32 1, %s5
  %s8 = scalar_select 0, %s7, %s5
  $region1: #{discriminator_forward.6} parent=0
    #allocation3 [shape = 'u8[1048576]{0}', space=vmem, size = 0x100000, scoped, tag = 'input window, operand 1']
    #allocation4 [shape = 'u8[16384]{0}', space=vmem, size = 0x4000, scoped, tag = 'output window, operand 0']
    loop: start=0, step=1, limit=4
    $region2: #{discriminator_forward.6} parent=1 // loop_pre_header
      _
    $region3: #{discriminator_forward.6} parent=1 // loop_header
      %s10 = sphi 0, %s14
      %p11 = scmp.ge.s32.totalorder %s10, 4
      %s17 = sphi 0, %s29
      %s18 = sphi 0, %s25
      %s19 = sphi 0, %s17
      %s20 = sphi 0, %s18
      %s21 = sphi 0, %s19
      %s22 = sphi 0, %s20
      %s32 = sphi 0, %s34
      %s35 = sphi 0, %s32
      %s36 = sphi 0, %s35
      %s52 = sphi 0, %s36
      %s60 = sphi 0, %s62
      %s63 = sphi 0, %s60
      %s64 = sphi 0, %s63
      %s80 = sphi 0, %s64
      %s86 = sphi 0, %s88
      %s89 = sphi 0, %s86
      %s90 = sphi 0, %s89
      %s106 = sphi 0, %s90
      %s112 = sphi 0, %s114
      %s115 = sphi 0, %s112
      %s116 = sphi 0, %s115
      %s132 = sphi 0, %s116
      %s138 = sphi 0, %s140
      %s141 = sphi 0, %s138
      %s142 = sphi 0, %s141
      %s158 = sphi 0, %s142
    $region4: #{discriminator_forward.6} parent=1 // loop_header_branch
      %13 = sbr.rel (%p11) target = $region8
    $region5: #{discriminator_forward.6} parent=1 // loop_body
      %s15 = ssub.s32 %s10, 1
      %s16 = ssub.s32 %s10, 2
      %s23 = sadd.s32 1, %s18
      %p24 = scmp.ge.s32.totalorder %s23, 1
      %s25 = scalar_select %p24, 0, %s23
      %s26 = sadd.s32 1, %s17
      %s27 = scalar_select %p24, %s26, %s17
      %p28 = scmp.ge.s32.totalorder %s27, 2
      %s29 = scalar_select %p28, 0, %s27
      %s30 = ssub.s32 %s18, %s25
      %p31 = scmp.eq.s32.totalorder %s30, 0
      %s33 = sadd.s32 %s32, 1
      %s34 = scalar_select %p31, %s32, %s33
      %p37 = pneg %p31
      %p38 = scmp.eq.s32.totalorder %s10, 1
      %p39 = por %p37, %p38
      %p40 = scmp.ne.s32.totalorder %s32, %s35
      %p41 = scmp.eq.s32.totalorder %s10, 0
      %p42 = por %p40, %p41
      %p43 = scmp.ne.s32.totalorder %s32, %s35
      %p44 = scmp.eq.s32.totalorder %s15, 1
      %p45 = por %p43, %p44
      %p46 = scmp.ne.s32.totalorder %s35, %s36
      %p47 = scmp.eq.s32.totalorder %s15, 0
      %p48 = por %p46, %p47
      %p49 = scmp.ne.s32.totalorder %s35, %s36
      %p50 = scmp.eq.s32.totalorder %s16, 1
      %p51 = por %p49, %p50
      %p53 = scmp.ne.s32.totalorder %s36, %s52
      %p54 = scmp.eq.s32.totalorder %s16, 0
      %p55 = por %p53, %p54
      %s56 = ssub.s32 %s18, %s25
      %s57 = ssub.s32 %s17, %s29
      %s58 = sor.u32 %s56, %s57
      %p59 = scmp.eq.s32.totalorder %s58, 0
      %s61 = sadd.s32 %s60, 1
      %s62 = scalar_select %p59, %s60, %s61
      %p65 = pneg %p59
      %p66 = scmp.eq.s32.totalorder %s10, 1
      %p67 = por %p65, %p66
      %p68 = scmp.ne.s32.totalorder %s60, %s63
      %p69 = scmp.eq.s32.totalorder %s10, 0
      %p70 = por %p68, %p69
      %p71 = scmp.ne.s32.totalorder %s60, %s63
      %p72 = scmp.eq.s32.totalorder %s15, 1
      %p73 = por %p71, %p72
      %p74 = scmp.ne.s32.totalorder %s63, %s64
      %p75 = scmp.eq.s32.totalorder %s15, 0
      %p76 = por %p74, %p75
      %p77 = scmp.ne.s32.totalorder %s63, %s64
      %p78 = scmp.eq.s32.totalorder %s16, 1
      %p79 = por %p77, %p78
      %p81 = scmp.ne.s32.totalorder %s64, %s80
      %p82 = scmp.eq.s32.totalorder %s16, 0
      %p83 = por %p81, %p82
      %s84 = ssub.s32 %s17, %s29
      %p85 = scmp.eq.s32.totalorder %s84, 0
      %s87 = sadd.s32 %s86, 1
      %s88 = scalar_select %p85, %s86, %s87
      %p91 = pneg %p85
      %p92 = scmp.eq.s32.totalorder %s10, 1
      %p93 = por %p91, %p92
      %p94 = scmp.ne.s32.totalorder %s86, %s89
      %p95 = scmp.eq.s32.totalorder %s10, 0
      %p96 = por %p94, %p95
      %p97 = scmp.ne.s32.totalorder %s86, %s89
      %p98 = scmp.eq.s32.totalorder %s15, 1
      %p99 = por %p97, %p98
      %p100 = scmp.ne.s32.totalorder %s89, %s90
      %p101 = scmp.eq.s32.totalorder %s15, 0
      %p102 = por %p100, %p101
      %p103 = scmp.ne.s32.totalorder %s89, %s90
      %p104 = scmp.eq.s32.totalorder %s16, 1
      %p105 = por %p103, %p104
      %p107 = scmp.ne.s32.totalorder %s90, %s106
      %p108 = scmp.eq.s32.totalorder %s16, 0
      %p109 = por %p107, %p108
      %s110 = ssub.s32 %s17, %s29
      %p111 = scmp.eq.s32.totalorder %s110, 0
      %s113 = sadd.s32 %s112, 1
      %s114 = scalar_select %p111, %s112, %s113
      %p117 = pneg %p111
      %p118 = scmp.eq.s32.totalorder %s10, 1
      %p119 = por %p117, %p118
      %p120 = scmp.ne.s32.totalorder %s112, %s115
      %p121 = scmp.eq.s32.totalorder %s10, 0
      %p122 = por %p120, %p121
      %p123 = scmp.ne.s32.totalorder %s112, %s115
      %p124 = scmp.eq.s32.totalorder %s15, 1
      %p125 = por %p123, %p124
      %p126 = scmp.ne.s32.totalorder %s115, %s116
      %p127 = scmp.eq.s32.totalorder %s15, 0
      %p128 = por %p126, %p127
      %p129 = scmp.ne.s32.totalorder %s115, %s116
      %p130 = scmp.eq.s32.totalorder %s16, 1
      %p131 = por %p129, %p130
      %p133 = scmp.ne.s32.totalorder %s116, %s132
      %p134 = scmp.eq.s32.totalorder %s16, 0
      %p135 = por %p133, %p134
      %s136 = ssub.s32 %s17, %s29
      %p137 = scmp.eq.s32.totalorder %s136, 0
      %s139 = sadd.s32 %s138, 1
      %s140 = scalar_select %p137, %s138, %s139
      %p143 = pneg %p137
      %p144 = scmp.eq.s32.totalorder %s10, 1
      %p145 = por %p143, %p144
      %p146 = scmp.ne.s32.totalorder %s138, %s141
      %p147 = scmp.eq.s32.totalorder %s10, 0
      %p148 = por %p146, %p147
      %p149 = scmp.ne.s32.totalorder %s138, %s141
      %p150 = scmp.eq.s32.totalorder %s15, 1
      %p151 = por %p149, %p150
      %p152 = scmp.ne.s32.totalorder %s141, %s142
      %p153 = scmp.eq.s32.totalorder %s15, 0
      %p154 = por %p152, %p153
      %p155 = scmp.ne.s32.totalorder %s141, %s142
      %p156 = scmp.eq.s32.totalorder %s16, 1
      %p157 = por %p155, %p156
      %p159 = scmp.ne.s32.totalorder %s142, %s158
      %p160 = scmp.eq.s32.totalorder %s16, 0
      %p161 = por %p159, %p160
      %p162 = scmp.le.s32.totalorder 1, %s10
      %p163 = scmp.lt.s32.totalorder %s10, 3
      %p164 = pnand %p162, %p163
      %p165 = pneg %p164
      // Predicated region
      $region9: #{discriminator_forward.6} parent=5 // pred_check
        _
      $region10: #{discriminator_forward.6} parent=5 // pred_check_branch
        %167 = sbr.rel (%p164) target = $region12
      $region11: #{discriminator_forward.6} parent=5 // pred_region
        %s168 = ssub.s32 %s10, 1
        // Predicated region
        $region13: #{discriminator_forward.6} parent=11 // pred_check
          %p169 = pneg %p48
        $region14: #{discriminator_forward.6} parent=11 // pred_check_branch
          %171 = sbr.rel (%p169) target = $region16
        $region15: #{discriminator_forward.6} parent=11 // pred_region
          %s172 = smul.u32 16, %s20
          %p173 = scmp.lt.s32.totalorder %s172, 15
          %s174 = scalar_select %p173, %s172, 15
          %s175 = smul.addr %s174, 4
          %s176 = scalar_lea.vmem %s0, %s175
          %s177 = smul.u32 16, %s20
        $region16: #{discriminator_forward.6} parent=11 // pred_fallthru
          _
      $region12: #{discriminator_forward.6} parent=5 // pred_fallthru
        _
      %p178 = scmp.lt.s32.totalorder %s10, 2
      // Predicated region
      $region17: #{discriminator_forward.6} parent=5 // pred_check
        %p179 = pneg %p178
      $region18: #{discriminator_forward.6} parent=5 // pred_check_branch
        %181 = sbr.rel (%p179) target = $region20
      $region19: #{discriminator_forward.6} parent=5 // pred_region
        // Predicated region
        $region21: #{discriminator_forward.6} parent=19 // pred_check
          %p182 = pneg %p70
        $region22: #{discriminator_forward.6} parent=19 // pred_check_branch
          %184 = sbr.rel (%p182) target = $region24
        $region23: #{discriminator_forward.6} parent=19 // pred_region
          %s185 = sand.u32 %s60, 1
          %s186 = sand.u32 %s60, 1
          %s187 = smul.addr %s186, 1024
          %s188 = scalar_lea.vmem [#allocation3], %s187
          %s189 = smul.u32 256, %s18
          %s190 = smul.addr %s189, 2
          %s191 = sadd.s32 %s17, %s190
          %s192 = smul.addr %s191, 4
          %s193 = scalar_lea.vmem %s1, %s192
          // Predicated region
          $region25: #{discriminator_forward.6} parent=23 // pred_check
            _
          $region26: #{discriminator_forward.6} parent=23 // pred_check_branch
            %195 = sbr.rel (0) target = $region28
          $region27: #{discriminator_forward.6} parent=23 // pred_region
            // Predicated region
            $region29: #{discriminator_forward.6} parent=27 // pred_check
              _
            $region30: #{discriminator_forward.6} parent=27 // pred_check_branch
              %197 = sbr.rel target = $region32
            $region31: #{discriminator_forward.6} parent=27 // pred_region
              // Predicated region
              $region44: #{discriminator_forward.6} parent=31 // pred_check
                _
              $region45: #{discriminator_forward.6} parent=31 // pred_check_branch
                %722 = sbr.rel (0) target = $region47
              $region46: #{discriminator_forward.6} parent=31 // pred_region
                loop: start=0, step=1, limit=1
                $region48: #{discriminator_forward.6} parent=46 // loop_pre_header
                  _
                $region49: #{discriminator_forward.6} parent=46 // loop_header
                  %s724 = sphi 0, %s728
                  %p725 = scmp.ge.s32.totalorder %s724, 1
                  %s729 = sphi %s193, %s193
                  %s730 = sphi %s188, %s188
                $region50: #{discriminator_forward.6} parent=46 // loop_header_branch
                  %727 = sbr.rel (%p725) target = $region54
                $region51: #{discriminator_forward.6} parent=46 // loop_body
                  _
                $region52: #{discriminator_forward.6} parent=46 // loop_footer
                  %s728 = sadd.s32 1, %s724
                $region53: #{discriminator_forward.6} parent=46 // loop_footer_branch
                  %723 = sbr.rel target = $region49
                $region54: #{discriminator_forward.6} parent=46 // loop_exit
                  _
                loop: start=0, step=1, limit=1
                $region55: #{discriminator_forward.6} parent=46 // loop_pre_header
                  _
                $region56: #{discriminator_forward.6} parent=46 // loop_header
                  %s733 = sphi 0, %s737
                  %p734 = scmp.ge.s32.totalorder %s733, 1
                  %s738 = sphi %s193, %s193
                  %s739 = sphi %s188, %s188
                $region57: #{discriminator_forward.6} parent=46 // loop_header_branch
                  %736 = sbr.rel (%p734) target = $region61
                $region58: #{discriminator_forward.6} parent=46 // loop_body
                  %v740 = vld [vmem:[%s738] sm:$0xf]
                  %741 = vst [vmem:[%s739] sm:$0xf] %v740
                  %v742 = vld [vmem:[%s738 + $0x8] sm:$0xf]
                  %743 = vst [vmem:[%s739 + $0x4] sm:$0xf] %v742
                  %v744 = vld [vmem:[%s738 + $0x10] sm:$0xf]
                  %745 = vst [vmem:[%s739 + $0x8] sm:$0xf] %v744
                  %v746 = vld [vmem:[%s738 + $0x18] sm:$0xf]
                  %747 = vst [vmem:[%s739 + $0xc] sm:$0xf] %v746
                  %v748 = vld [vmem:[%s738 + $0x20] sm:$0xf]
                  %749 = vst [vmem:[%s739 + $0x10] sm:$0xf] %v748
                  %v750 = vld [vmem:[%s738 + $0x28] sm:$0xf]
                  %751 = vst [vmem:[%s739 + $0x14] sm:$0xf] %v750
                  %v752 = vld [vmem:[%s738 + $0x30] sm:$0xf]
                  %753 = vst [vmem:[%s739 + $0x18] sm:$0xf] %v752
                  %v754 = vld [vmem:[%s738 + $0x38] sm:$0xf]
                  %755 = vst [vmem:[%s739 + $0x1c] sm:$0xf] %v754
                  %v756 = vld [vmem:[%s738 + $0x40] sm:$0xf]
                  %757 = vst [vmem:[%s739 + $0x20] sm:$0xf] %v756
                  %v758 = vld [vmem:[%s738 + $0x48] sm:$0xf]
                  %759 = vst [vmem:[%s739 + $0x24] sm:$0xf] %v758
                  %v760 = vld [vmem:[%s738 + $0x50] sm:$0xf]
                  %761 = vst [vmem:[%s739 + $0x28] sm:$0xf] %v760
                  %v762 = vld [vmem:[%s738 + $0x58] sm:$0xf]
                  %763 = vst [vmem:[%s739 + $0x2c] sm:$0xf] %v762
                  %v764 = vld [vmem:[%s738 + $0x60] sm:$0xf]
                  %765 = vst [vmem:[%s739 + $0x30] sm:$0xf] %v764
                  %v766 = vld [vmem:[%s738 + $0x68] sm:$0xf]
                  %767 = vst [vmem:[%s739 + $0x34] sm:$0xf] %v766
                  %v768 = vld [vmem:[%s738 + $0x70] sm:$0xf]
                  %769 = vst [vmem:[%s739 + $0x38] sm:$0xf] %v768
                  %v770 = vld [vmem:[%s738 + $0x78] sm:$0xf]
                  %771 = vst [vmem:[%s739 + $0x3c] sm:$0xf] %v770
                  %v772 = vld [vmem:[%s738 + $0x80] sm:$0xf]
                  %773 = vst [vmem:[%s739 + $0x40] sm:$0xf] %v772
                  %v774 = vld [vmem:[%s738 + $0x88] sm:$0xf]
                  %775 = vst [vmem:[%s739 + $0x44] sm:$0xf] %v774
                  %v776 = vld [vmem:[%s738 + $0x90] sm:$0xf]
                  %777 = vst [vmem:[%s739 + $0x48] sm:$0xf] %v776
                  %v778 = vld [vmem:[%s738 + $0x98] sm:$0xf]
                  %779 = vst [vmem:[%s739 + $0x4c] sm:$0xf] %v778
                  %v780 = vld [vmem:[%s738 + $0xa0] sm:$0xf]
                  %781 = vst [vmem:[%s739 + $0x50] sm:$0xf] %v780
                  %v782 = vld [vmem:[%s738 + $0xa8] sm:$0xf]
                  %783 = vst [vmem:[%s739 + $0x54] sm:$0xf] %v782
                  %v784 = vld [vmem:[%s738 + $0xb0] sm:$0xf]
                  %785 = vst [vmem:[%s739 + $0x58] sm:$0xf] %v784
                  %v786 = vld [vmem:[%s738 + $0xb8] sm:$0xf]
                  %787 = vst [vmem:[%s739 + $0x5c] sm:$0xf] %v786
                  %v788 = vld [vmem:[%s738 + $0xc0] sm:$0xf]
                  %789 = vst [vmem:[%s739 + $0x60] sm:$0xf] %v788
                  %v790 = vld [vmem:[%s738 + $0xc8] sm:$0xf]
                  %791 = vst [vmem:[%s739 + $0x64] sm:$0xf] %v790
                  %v792 = vld [vmem:[%s738 + $0xd0] sm:$0xf]
                  %793 = vst [vmem:[%s739 + $0x68] sm:$0xf] %v792
                  %v794 = vld [vmem:[%s738 + $0xd8] sm:$0xf]
                  %795 = vst [vmem:[%s739 + $0x6c] sm:$0xf] %v794
                  %v796 = vld [vmem:[%s738 + $0xe0] sm:$0xf]
                  %797 = vst [vmem:[%s739 + $0x70] sm:$0xf] %v796
                  %v798 = vld [vmem:[%s738 + $0xe8] sm:$0xf]
                  %799 = vst [vmem:[%s739 + $0x74] sm:$0xf] %v798
                  %v800 = vld [vmem:[%s738 + $0xf0] sm:$0xf]
                  %801 = vst [vmem:[%s739 + $0x78] sm:$0xf] %v800
                  %v802 = vld [vmem:[%s738 + $0xf8] sm:$0xf]
                  %803 = vst [vmem:[%s739 + $0x7c] sm:$0xf] %v802
                  %v804 = vld [vmem:[%s738 + $0x100] sm:$0xf]
                  %805 = vst [vmem:[%s739 + $0x80] sm:$0xf] %v804
                  %v806 = vld [vmem:[%s738 + $0x108] sm:$0xf]
                  %807 = vst [vmem:[%s739 + $0x84] sm:$0xf] %v806
                  %v808 = vld [vmem:[%s738 + $0x110] sm:$0xf]
                  %809 = vst [vmem:[%s739 + $0x88] sm:$0xf] %v808
                  %v810 = vld [vmem:[%s738 + $0x118] sm:$0xf]
                  %811 = vst [vmem:[%s739 + $0x8c] sm:$0xf] %v810
                  %v812 = vld [vmem:[%s738 + $0x120] sm:$0xf]
                  %813 = vst [vmem:[%s739 + $0x90] sm:$0xf] %v812
                  %v814 = vld [vmem:[%s738 + $0x128] sm:$0xf]
                  %815 = vst [vmem:[%s739 + $0x94] sm:$0xf] %v814
                  %v816 = vld [vmem:[%s738 + $0x130] sm:$0xf]
                  %817 = vst [vmem:[%s739 + $0x98] sm:$0xf] %v816
                  %v818 = vld [vmem:[%s738 + $0x138] sm:$0xf]
                  %819 = vst [vmem:[%s739 + $0x9c] sm:$0xf] %v818
                  %v820 = vld [vmem:[%s738 + $0x140] sm:$0xf]
                  %821 = vst [vmem:[%s739 + $0xa0] sm:$0xf] %v820
                  %v822 = vld [vmem:[%s738 + $0x148] sm:$0xf]
                  %823 = vst [vmem:[%s739 + $0xa4] sm:$0xf] %v822
                  %v824 = vld [vmem:[%s738 + $0x150] sm:$0xf]
                  %825 = vst [vmem:[%s739 + $0xa8] sm:$0xf] %v824
                  %v826 = vld [vmem:[%s738 + $0x158] sm:$0xf]
                  %827 = vst [vmem:[%s739 + $0xac] sm:$0xf] %v826
                  %v828 = vld [vmem:[%s738 + $0x160] sm:$0xf]
                  %829 = vst [vmem:[%s739 + $0xb0] sm:$0xf] %v828
                  %v830 = vld [vmem:[%s738 + $0x168] sm:$0xf]
                  %831 = vst [vmem:[%s739 + $0xb4] sm:$0xf] %v830
                  %v832 = vld [vmem:[%s738 + $0x170] sm:$0xf]
                  %833 = vst [vmem:[%s739 + $0xb8] sm:$0xf] %v832
                  %v834 = vld [vmem:[%s738 + $0x178] sm:$0xf]
                  %835 = vst [vmem:[%s739 + $0xbc] sm:$0xf] %v834
                  %v836 = vld [vmem:[%s738 + $0x180] sm:$0xf]
                  %837 = vst [vmem:[%s739 + $0xc0] sm:$0xf] %v836
                  %v838 = vld [vmem:[%s738 + $0x188] sm:$0xf]
                  %839 = vst [vmem:[%s739 + $0xc4] sm:$0xf] %v838
                  %v840 = vld [vmem:[%s738 + $0x190] sm:$0xf]
                  %841 = vst [vmem:[%s739 + $0xc8] sm:$0xf] %v840
                  %v842 = vld [vmem:[%s738 + $0x198] sm:$0xf]
                  %843 = vst [vmem:[%s739 + $0xcc] sm:$0xf] %v842
                  %v844 = vld [vmem:[%s738 + $0x1a0] sm:$0xf]
                  %845 = vst [vmem:[%s739 + $0xd0] sm:$0xf] %v844
                  %v846 = vld [vmem:[%s738 + $0x1a8] sm:$0xf]
                  %847 = vst [vmem:[%s739 + $0xd4] sm:$0xf] %v846
                  %v848 = vld [vmem:[%s738 + $0x1b0] sm:$0xf]
                  %849 = vst [vmem:[%s739 + $0xd8] sm:$0xf] %v848
                  %v850 = vld [vmem:[%s738 + $0x1b8] sm:$0xf]
                  %851 = vst [vmem:[%s739 + $0xdc] sm:$0xf] %v850
                  %v852 = vld [vmem:[%s738 + $0x1c0] sm:$0xf]
                  %853 = vst [vmem:[%s739 + $0xe0] sm:$0xf] %v852
                  %v854 = vld [vmem:[%s738 + $0x1c8] sm:$0xf]
                  %855 = vst [vmem:[%s739 + $0xe4] sm:$0xf] %v854
                  %v856 = vld [vmem:[%s738 + $0x1d0] sm:$0xf]
                  %857 = vst [vmem:[%s739 + $0xe8] sm:$0xf] %v856
                  %v858 = vld [vmem:[%s738 + $0x1d8] sm:$0xf]
                  %859 = vst [vmem:[%s739 + $0xec] sm:$0xf] %v858
                  %v860 = vld [vmem:[%s738 + $0x1e0] sm:$0xf]
                  %861 = vst [vmem:[%s739 + $0xf0] sm:$0xf] %v860
                  %v862 = vld [vmem:[%s738 + $0x1e8] sm:$0xf]
                  %863 = vst [vmem:[%s739 + $0xf4] sm:$0xf] %v862
                  %v864 = vld [vmem:[%s738 + $0x1f0] sm:$0xf]
                  %865 = vst [vmem:[%s739 + $0xf8] sm:$0xf] %v864
                  %v866 = vld [vmem:[%s738 + $0x1f8] sm:$0xf]
                  %867 = vst [vmem:[%s739 + $0xfc] sm:$0xf] %v866
                  %v868 = vld [vmem:[%s738 + $0x200] sm:$0xf]
                  %869 = vst [vmem:[%s739 + $0x100] sm:$0xf] %v868
                  %v870 = vld [vmem:[%s738 + $0x208] sm:$0xf]
                  %871 = vst [vmem:[%s739 + $0x104] sm:$0xf] %v870
                  %v872 = vld [vmem:[%s738 + $0x210] sm:$0xf]
                  %873 = vst [vmem:[%s739 + $0x108] sm:$0xf] %v872
                  %v874 = vld [vmem:[%s738 + $0x218] sm:$0xf]
                  %875 = vst [vmem:[%s739 + $0x10c] sm:$0xf] %v874
                  %v876 = vld [vmem:[%s738 + $0x220] sm:$0xf]
                  %877 = vst [vmem:[%s739 + $0x110] sm:$0xf] %v876
                  %v878 = vld [vmem:[%s738 + $0x228] sm:$0xf]
                  %879 = vst [vmem:[%s739 + $0x114] sm:$0xf] %v878
                  %v880 = vld [vmem:[%s738 + $0x230] sm:$0xf]
                  %881 = vst [vmem:[%s739 + $0x118] sm:$0xf] %v880
                  %v882 = vld [vmem:[%s738 + $0x238] sm:$0xf]
                  %883 = vst [vmem:[%s739 + $0x11c] sm:$0xf] %v882
                  %v884 = vld [vmem:[%s738 + $0x240] sm:$0xf]
                  %885 = vst [vmem:[%s739 + $0x120] sm:$0xf] %v884
                  %v886 = vld [vmem:[%s738 + $0x248] sm:$0xf]
                  %887 = vst [vmem:[%s739 + $0x124] sm:$0xf] %v886
                  %v888 = vld [vmem:[%s738 + $0x250] sm:$0xf]
                  %889 = vst [vmem:[%s739 + $0x128] sm:$0xf] %v888
                  %v890 = vld [vmem:[%s738 + $0x258] sm:$0xf]
                  %891 = vst [vmem:[%s739 + $0x12c] sm:$0xf] %v890
                  %v892 = vld [vmem:[%s738 + $0x260] sm:$0xf]
                  %893 = vst [vmem:[%s739 + $0x130] sm:$0xf] %v892
                  %v894 = vld [vmem:[%s738 + $0x268] sm:$0xf]
                  %895 = vst [vmem:[%s739 + $0x134] sm:$0xf] %v894
                  %v896 = vld [vmem:[%s738 + $0x270] sm:$0xf]
                  %897 = vst [vmem:[%s739 + $0x138] sm:$0xf] %v896
                  %v898 = vld [vmem:[%s738 + $0x278] sm:$0xf]
                  %899 = vst [vmem:[%s739 + $0x13c] sm:$0xf] %v898
                  %v900 = vld [vmem:[%s738 + $0x280] sm:$0xf]
                  %901 = vst [vmem:[%s739 + $0x140] sm:$0xf] %v900
                  %v902 = vld [vmem:[%s738 + $0x288] sm:$0xf]
                  %903 = vst [vmem:[%s739 + $0x144] sm:$0xf] %v902
                  %v904 = vld [vmem:[%s738 + $0x290] sm:$0xf]
                  %905 = vst [vmem:[%s739 + $0x148] sm:$0xf] %v904
                  %v906 = vld [vmem:[%s738 + $0x298] sm:$0xf]
                  %907 = vst [vmem:[%s739 + $0x14c] sm:$0xf] %v906
                  %v908 = vld [vmem:[%s738 + $0x2a0] sm:$0xf]
                  %909 = vst [vmem:[%s739 + $0x150] sm:$0xf] %v908
                  %v910 = vld [vmem:[%s738 + $0x2a8] sm:$0xf]
                  %911 = vst [vmem:[%s739 + $0x154] sm:$0xf] %v910
                  %v912 = vld [vmem:[%s738 + $0x2b0] sm:$0xf]
                  %913 = vst [vmem:[%s739 + $0x158] sm:$0xf] %v912
                  %v914 = vld [vmem:[%s738 + $0x2b8] sm:$0xf]
                  %915 = vst [vmem:[%s739 + $0x15c] sm:$0xf] %v914
                  %v916 = vld [vmem:[%s738 + $0x2c0] sm:$0xf]
                  %917 = vst [vmem:[%s739 + $0x160] sm:$0xf] %v916
                  %v918 = vld [vmem:[%s738 + $0x2c8] sm:$0xf]
                  %919 = vst [vmem:[%s739 + $0x164] sm:$0xf] %v918
                  %v920 = vld [vmem:[%s738 + $0x2d0] sm:$0xf]
                  %921 = vst [vmem:[%s739 + $0x168] sm:$0xf] %v920
                  %v922 = vld [vmem:[%s738 + $0x2d8] sm:$0xf]
                  %923 = vst [vmem:[%s739 + $0x16c] sm:$0xf] %v922
                  %v924 = vld [vmem:[%s738 + $0x2e0] sm:$0xf]
                  %925 = vst [vmem:[%s739 + $0x170] sm:$0xf] %v924
                  %v926 = vld [vmem:[%s738 + $0x2e8] sm:$0xf]
                  %927 = vst [vmem:[%s739 + $0x174] sm:$0xf] %v926
                  %v928 = vld [vmem:[%s738 + $0x2f0] sm:$0xf]
                  %929 = vst [vmem:[%s739 + $0x178] sm:$0xf] %v928
                  %v930 = vld [vmem:[%s738 + $0x2f8] sm:$0xf]
                  %931 = vst [vmem:[%s739 + $0x17c] sm:$0xf] %v930
                  %v932 = vld [vmem:[%s738 + $0x300] sm:$0xf]
                  %933 = vst [vmem:[%s739 + $0x180] sm:$0xf] %v932
                  %v934 = vld [vmem:[%s738 + $0x308] sm:$0xf]
                  %935 = vst [vmem:[%s739 + $0x184] sm:$0xf] %v934
                  %v936 = vld [vmem:[%s738 + $0x310] sm:$0xf]
                  %937 = vst [vmem:[%s739 + $0x188] sm:$0xf] %v936
                  %v938 = vld [vmem:[%s738 + $0x318] sm:$0xf]
                  %939 = vst [vmem:[%s739 + $0x18c] sm:$0xf] %v938
                  %v940 = vld [vmem:[%s738 + $0x320] sm:$0xf]
                  %941 = vst [vmem:[%s739 + $0x190] sm:$0xf] %v940
                  %v942 = vld [vmem:[%s738 + $0x328] sm:$0xf]
                  %943 = vst [vmem:[%s739 + $0x194] sm:$0xf] %v942
                  %v944 = vld [vmem:[%s738 + $0x330] sm:$0xf]
                  %945 = vst [vmem:[%s739 + $0x198] sm:$0xf] %v944
                  %v946 = vld [vmem:[%s738 + $0x338] sm:$0xf]
                  %947 = vst [vmem:[%s739 + $0x19c] sm:$0xf] %v946
                  %v948 = vld [vmem:[%s738 + $0x340] sm:$0xf]
                  %949 = vst [vmem:[%s739 + $0x1a0] sm:$0xf] %v948
                  %v950 = vld [vmem:[%s738 + $0x348] sm:$0xf]
                  %951 = vst [vmem:[%s739 + $0x1a4] sm:$0xf] %v950
                  %v952 = vld [vmem:[%s738 + $0x350] sm:$0xf]
                  %953 = vst [vmem:[%s739 + $0x1a8] sm:$0xf] %v952
                  %v954 = vld [vmem:[%s738 + $0x358] sm:$0xf]
                  %955 = vst [vmem:[%s739 + $0x1ac] sm:$0xf] %v954
                  %v956 = vld [vmem:[%s738 + $0x360] sm:$0xf]
                  %957 = vst [vmem:[%s739 + $0x1b0] sm:$0xf] %v956
                  %v958 = vld [vmem:[%s738 + $0x368] sm:$0xf]
                  %959 = vst [vmem:[%s739 + $0x1b4] sm:$0xf] %v958
                  %v960 = vld [vmem:[%s738 + $0x370] sm:$0xf]
                  %961 = vst [vmem:[%s739 + $0x1b8] sm:$0xf] %v960
                  %v962 = vld [vmem:[%s738 + $0x378] sm:$0xf]
                  %963 = vst [vmem:[%s739 + $0x1bc] sm:$0xf] %v962
                  %v964 = vld [vmem:[%s738 + $0x380] sm:$0xf]
                  %965 = vst [vmem:[%s739 + $0x1c0] sm:$0xf] %v964
                  %v966 = vld [vmem:[%s738 + $0x388] sm:$0xf]
                  %967 = vst [vmem:[%s739 + $0x1c4] sm:$0xf] %v966
                  %v968 = vld [vmem:[%s738 + $0x390] sm:$0xf]
                  %969 = vst [vmem:[%s739 + $0x1c8] sm:$0xf] %v968
                  %v970 = vld [vmem:[%s738 + $0x398] sm:$0xf]
                  %971 = vst [vmem:[%s739 + $0x1cc] sm:$0xf] %v970
                  %v972 = vld [vmem:[%s738 + $0x3a0] sm:$0xf]
                  %973 = vst [vmem:[%s739 + $0x1d0] sm:$0xf] %v972
                  %v974 = vld [vmem:[%s738 + $0x3a8] sm:$0xf]
                  %975 = vst [vmem:[%s739 + $0x1d4] sm:$0xf] %v974
                  %v976 = vld [vmem:[%s738 + $0x3b0] sm:$0xf]
                  %977 = vst [vmem:[%s739 + $0x1d8] sm:$0xf] %v976
                  %v978 = vld [vmem:[%s738 + $0x3b8] sm:$0xf]
                  %979 = vst [vmem:[%s739 + $0x1dc] sm:$0xf] %v978
                  %v980 = vld [vmem:[%s738 + $0x3c0] sm:$0xf]
                  %981 = vst [vmem:[%s739 + $0x1e0] sm:$0xf] %v980
                  %v982 = vld [vmem:[%s738 + $0x3c8] sm:$0xf]
                  %983 = vst [vmem:[%s739 + $0x1e4] sm:$0xf] %v982
                  %v984 = vld [vmem:[%s738 + $0x3d0] sm:$0xf]
                  %985 = vst [vmem:[%s739 + $0x1e8] sm:$0xf] %v984
                  %v986 = vld [vmem:[%s738 + $0x3d8] sm:$0xf]
                  %987 = vst [vmem:[%s739 + $0x1ec] sm:$0xf] %v986
                  %v988 = vld [vmem:[%s738 + $0x3e0] sm:$0xf]
                  %989 = vst [vmem:[%s739 + $0x1f0] sm:$0xf] %v988
                  %v990 = vld [vmem:[%s738 + $0x3e8] sm:$0xf]
                  %991 = vst [vmem:[%s739 + $0x1f4] sm:$0xf] %v990
                  %v992 = vld [vmem:[%s738 + $0x3f0] sm:$0xf]
                  %993 = vst [vmem:[%s739 + $0x1f8] sm:$0xf] %v992
                  %v994 = vld [vmem:[%s738 + $0x3f8] sm:$0xf]
                  %995 = vst [vmem:[%s739 + $0x1fc] sm:$0xf] %v994
                  %v996 = vld [vmem:[%s738 + $0x400] sm:$0xf]
                  %997 = vst [vmem:[%s739 + $0x200] sm:$0xf] %v996
                  %v998 = vld [vmem:[%s738 + $0x408] sm:$0xf]
                  %999 = vst [vmem:[%s739 + $0x204] sm:$0xf] %v998
                  %v1000 = vld [vmem:[%s738 + $0x410] sm:$0xf]
                  %1001 = vst [vmem:[%s739 + $0x208] sm:$0xf] %v1000
                  %v1002 = vld [vmem:[%s738 + $0x418] sm:$0xf]
                  %1003 = vst [vmem:[%s739 + $0x20c] sm:$0xf] %v1002
                  %v1004 = vld [vmem:[%s738 + $0x420] sm:$0xf]
                  %1005 = vst [vmem:[%s739 + $0x210] sm:$0xf] %v1004
                  %v1006 = vld [vmem:[%s738 + $0x428] sm:$0xf]
                  %1007 = vst [vmem:[%s739 + $0x214] sm:$0xf] %v1006
                  %v1008 = vld [vmem:[%s738 + $0x430] sm:$0xf]
                  %1009 = vst [vmem:[%s739 + $0x218] sm:$0xf] %v1008
                  %v1010 = vld [vmem:[%s738 + $0x438] sm:$0xf]
                  %1011 = vst [vmem:[%s739 + $0x21c] sm:$0xf] %v1010
                  %v1012 = vld [vmem:[%s738 + $0x440] sm:$0xf]
                  %1013 = vst [vmem:[%s739 + $0x220] sm:$0xf] %v1012
                  %v1014 = vld [vmem:[%s738 + $0x448] sm:$0xf]
                  %1015 = vst [vmem:[%s739 + $0x224] sm:$0xf] %v1014
                  %v1016 = vld [vmem:[%s738 + $0x450] sm:$0xf]
                  %1017 = vst [vmem:[%s739 + $0x228] sm:$0xf] %v1016
                  %v1018 = vld [vmem:[%s738 + $0x458] sm:$0xf]
                  %1019 = vst [vmem:[%s739 + $0x22c] sm:$0xf] %v1018
                  %v1020 = vld [vmem:[%s738 + $0x460] sm:$0xf]
                  %1021 = vst [vmem:[%s739 + $0x230] sm:$0xf] %v1020
                  %v1022 = vld [vmem:[%s738 + $0x468] sm:$0xf]
                  %1023 = vst [vmem:[%s739 + $0x234] sm:$0xf] %v1022
                  %v1024 = vld [vmem:[%s738 + $0x470] sm:$0xf]
                  %1025 = vst [vmem:[%s739 + $0x238] sm:$0xf] %v1024
                  %v1026 = vld [vmem:[%s738 + $0x478] sm:$0xf]
                  %1027 = vst [vmem:[%s739 + $0x23c] sm:$0xf] %v1026
                  %v1028 = vld [vmem:[%s738 + $0x480] sm:$0xf]
                  %1029 = vst [vmem:[%s739 + $0x240] sm:$0xf] %v1028
                  %v1030 = vld [vmem:[%s738 + $0x488] sm:$0xf]
                  %1031 = vst [vmem:[%s739 + $0x244] sm:$0xf] %v1030
                  %v1032 = vld [vmem:[%s738 + $0x490] sm:$0xf]
                  %1033 = vst [vmem:[%s739 + $0x248] sm:$0xf] %v1032
                  %v1034 = vld [vmem:[%s738 + $0x498] sm:$0xf]
                  %1035 = vst [vmem:[%s739 + $0x24c] sm:$0xf] %v1034
                  %v1036 = vld [vmem:[%s738 + $0x4a0] sm:$0xf]
                  %1037 = vst [vmem:[%s739 + $0x250] sm:$0xf] %v1036
                  %v1038 = vld [vmem:[%s738 + $0x4a8] sm:$0xf]
                  %1039 = vst [vmem:[%s739 + $0x254] sm:$0xf] %v1038
                  %v1040 = vld [vmem:[%s738 + $0x4b0] sm:$0xf]
                  %1041 = vst [vmem:[%s739 + $0x258] sm:$0xf] %v1040
                  %v1042 = vld [vmem:[%s738 + $0x4b8] sm:$0xf]
                  %1043 = vst [vmem:[%s739 + $0x25c] sm:$0xf] %v1042
                  %v1044 = vld [vmem:[%s738 + $0x4c0] sm:$0xf]
                  %1045 = vst [vmem:[%s739 + $0x260] sm:$0xf] %v1044
                  %v1046 = vld [vmem:[%s738 + $0x4c8] sm:$0xf]
                  %1047 = vst [vmem:[%s739 + $0x264] sm:$0xf] %v1046
                  %v1048 = vld [vmem:[%s738 + $0x4d0] sm:$0xf]
                  %1049 = vst [vmem:[%s739 + $0x268] sm:$0xf] %v1048
                  %v1050 = vld [vmem:[%s738 + $0x4d8] sm:$0xf]
                  %1051 = vst [vmem:[%s739 + $0x26c] sm:$0xf] %v1050
                  %v1052 = vld [vmem:[%s738 + $0x4e0] sm:$0xf]
                  %1053 = vst [vmem:[%s739 + $0x270] sm:$0xf] %v1052
                  %v1054 = vld [vmem:[%s738 + $0x4e8] sm:$0xf]
                  %1055 = vst [vmem:[%s739 + $0x274] sm:$0xf] %v1054
                  %v1056 = vld [vmem:[%s738 + $0x4f0] sm:$0xf]
                  %1057 = vst [vmem:[%s739 + $0x278] sm:$0xf] %v1056
                  %v1058 = vld [vmem:[%s738 + $0x4f8] sm:$0xf]
                  %1059 = vst [vmem:[%s739 + $0x27c] sm:$0xf] %v1058
                  %v1060 = vld [vmem:[%s738 + $0x500] sm:$0xf]
                  %1061 = vst [vmem:[%s739 + $0x280] sm:$0xf] %v1060
                  %v1062 = vld [vmem:[%s738 + $0x508] sm:$0xf]
                  %1063 = vst [vmem:[%s739 + $0x284] sm:$0xf] %v1062
                  %v1064 = vld [vmem:[%s738 + $0x510] sm:$0xf]
                  %1065 = vst [vmem:[%s739 + $0x288] sm:$0xf] %v1064
                  %v1066 = vld [vmem:[%s738 + $0x518] sm:$0xf]
                  %1067 = vst [vmem:[%s739 + $0x28c] sm:$0xf] %v1066
                  %v1068 = vld [vmem:[%s738 + $0x520] sm:$0xf]
                  %1069 = vst [vmem:[%s739 + $0x290] sm:$0xf] %v1068
                  %v1070 = vld [vmem:[%s738 + $0x528] sm:$0xf]
                  %1071 = vst [vmem:[%s739 + $0x294] sm:$0xf] %v1070
                  %v1072 = vld [vmem:[%s738 + $0x530] sm:$0xf]
                  %1073 = vst [vmem:[%s739 + $0x298] sm:$0xf] %v1072
                  %v1074 = vld [vmem:[%s738 + $0x538] sm:$0xf]
                  %1075 = vst [vmem:[%s739 + $0x29c] sm:$0xf] %v1074
                  %v1076 = vld [vmem:[%s738 + $0x540] sm:$0xf]
                  %1077 = vst [vmem:[%s739 + $0x2a0] sm:$0xf] %v1076
                  %v1078 = vld [vmem:[%s738 + $0x548] sm:$0xf]
                  %1079 = vst [vmem:[%s739 + $0x2a4] sm:$0xf] %v1078
                  %v1080 = vld [vmem:[%s738 + $0x550] sm:$0xf]
                  %1081 = vst [vmem:[%s739 + $0x2a8] sm:$0xf] %v1080
                  %v1082 = vld [vmem:[%s738 + $0x558] sm:$0xf]
                  %1083 = vst [vmem:[%s739 + $0x2ac] sm:$0xf] %v1082
                  %v1084 = vld [vmem:[%s738 + $0x560] sm:$0xf]
                  %1085 = vst [vmem:[%s739 + $0x2b0] sm:$0xf] %v1084
                  %v1086 = vld [vmem:[%s738 + $0x568] sm:$0xf]
                  %1087 = vst [vmem:[%s739 + $0x2b4] sm:$0xf] %v1086
                  %v1088 = vld [vmem:[%s738 + $0x570] sm:$0xf]
                  %1089 = vst [vmem:[%s739 + $0x2b8] sm:$0xf] %v1088
                  %v1090 = vld [vmem:[%s738 + $0x578] sm:$0xf]
                  %1091 = vst [vmem:[%s739 + $0x2bc] sm:$0xf] %v1090
                  %v1092 = vld [vmem:[%s738 + $0x580] sm:$0xf]
                  %1093 = vst [vmem:[%s739 + $0x2c0] sm:$0xf] %v1092
                  %v1094 = vld [vmem:[%s738 + $0x588] sm:$0xf]
                  %1095 = vst [vmem:[%s739 + $0x2c4] sm:$0xf] %v1094
                  %v1096 = vld [vmem:[%s738 + $0x590] sm:$0xf]
                  %1097 = vst [vmem:[%s739 + $0x2c8] sm:$0xf] %v1096
                  %v1098 = vld [vmem:[%s738 + $0x598] sm:$0xf]
                  %1099 = vst [vmem:[%s739 + $0x2cc] sm:$0xf] %v1098
                  %v1100 = vld [vmem:[%s738 + $0x5a0] sm:$0xf]
                  %1101 = vst [vmem:[%s739 + $0x2d0] sm:$0xf] %v1100
                  %v1102 = vld [vmem:[%s738 + $0x5a8] sm:$0xf]
                  %1103 = vst [vmem:[%s739 + $0x2d4] sm:$0xf] %v1102
                  %v1104 = vld [vmem:[%s738 + $0x5b0] sm:$0xf]
                  %1105 = vst [vmem:[%s739 + $0x2d8] sm:$0xf] %v1104
                  %v1106 = vld [vmem:[%s738 + $0x5b8] sm:$0xf]
                  %1107 = vst [vmem:[%s739 + $0x2dc] sm:$0xf] %v1106
                  %v1108 = vld [vmem:[%s738 + $0x5c0] sm:$0xf]
                  %1109 = vst [vmem:[%s739 + $0x2e0] sm:$0xf] %v1108
                  %v1110 = vld [vmem:[%s738 + $0x5c8] sm:$0xf]
                  %1111 = vst [vmem:[%s739 + $0x2e4] sm:$0xf] %v1110
                  %v1112 = vld [vmem:[%s738 + $0x5d0] sm:$0xf]
                  %1113 = vst [vmem:[%s739 + $0x2e8] sm:$0xf] %v1112
                  %v1114 = vld [vmem:[%s738 + $0x5d8] sm:$0xf]
                  %1115 = vst [vmem:[%s739 + $0x2ec] sm:$0xf] %v1114
                  %v1116 = vld [vmem:[%s738 + $0x5e0] sm:$0xf]
                  %1117 = vst [vmem:[%s739 + $0x2f0] sm:$0xf] %v1116
                  %v1118 = vld [vmem:[%s738 + $0x5e8] sm:$0xf]
                  %1119 = vst [vmem:[%s739 + $0x2f4] sm:$0xf] %v1118
                  %v1120 = vld [vmem:[%s738 + $0x5f0] sm:$0xf]
                  %1121 = vst [vmem:[%s739 + $0x2f8] sm:$0xf] %v1120
                  %v1122 = vld [vmem:[%s738 + $0x5f8] sm:$0xf]
                  %1123 = vst [vmem:[%s739 + $0x2fc] sm:$0xf] %v1122
                  %v1124 = vld [vmem:[%s738 + $0x600] sm:$0xf]
                  %1125 = vst [vmem:[%s739 + $0x300] sm:$0xf] %v1124
                  %v1126 = vld [vmem:[%s738 + $0x608] sm:$0xf]
                  %1127 = vst [vmem:[%s739 + $0x304] sm:$0xf] %v1126
                  %v1128 = vld [vmem:[%s738 + $0x610] sm:$0xf]
                  %1129 = vst [vmem:[%s739 + $0x308] sm:$0xf] %v1128
                  %v1130 = vld [vmem:[%s738 + $0x618] sm:$0xf]
                  %1131 = vst [vmem:[%s739 + $0x30c] sm:$0xf] %v1130
                  %v1132 = vld [vmem:[%s738 + $0x620] sm:$0xf]
                  %1133 = vst [vmem:[%s739 + $0x310] sm:$0xf] %v1132
                  %v1134 = vld [vmem:[%s738 + $0x628] sm:$0xf]
                  %1135 = vst [vmem:[%s739 + $0x314] sm:$0xf] %v1134
                  %v1136 = vld [vmem:[%s738 + $0x630] sm:$0xf]
                  %1137 = vst [vmem:[%s739 + $0x318] sm:$0xf] %v1136
                  %v1138 = vld [vmem:[%s738 + $0x638] sm:$0xf]
                  %1139 = vst [vmem:[%s739 + $0x31c] sm:$0xf] %v1138
                  %v1140 = vld [vmem:[%s738 + $0x640] sm:$0xf]
                  %1141 = vst [vmem:[%s739 + $0x320] sm:$0xf] %v1140
                  %v1142 = vld [vmem:[%s738 + $0x648] sm:$0xf]
                  %1143 = vst [vmem:[%s739 + $0x324] sm:$0xf] %v1142
                  %v1144 = vld [vmem:[%s738 + $0x650] sm:$0xf]
                  %1145 = vst [vmem:[%s739 + $0x328] sm:$0xf] %v1144
                  %v1146 = vld [vmem:[%s738 + $0x658] sm:$0xf]
                  %1147 = vst [vmem:[%s739 + $0x32c] sm:$0xf] %v1146
                  %v1148 = vld [vmem:[%s738 + $0x660] sm:$0xf]
                  %1149 = vst [vmem:[%s739 + $0x330] sm:$0xf] %v1148
                  %v1150 = vld [vmem:[%s738 + $0x668] sm:$0xf]
                  %1151 = vst [vmem:[%s739 + $0x334] sm:$0xf] %v1150
                  %v1152 = vld [vmem:[%s738 + $0x670] sm:$0xf]
                  %1153 = vst [vmem:[%s739 + $0x338] sm:$0xf] %v1152
                  %v1154 = vld [vmem:[%s738 + $0x678] sm:$0xf]
                  %1155 = vst [vmem:[%s739 + $0x33c] sm:$0xf] %v1154
                  %v1156 = vld [vmem:[%s738 + $0x680] sm:$0xf]
                  %1157 = vst [vmem:[%s739 + $0x340] sm:$0xf] %v1156
                  %v1158 = vld [vmem:[%s738 + $0x688] sm:$0xf]
                  %1159 = vst [vmem:[%s739 + $0x344] sm:$0xf] %v1158
                  %v1160 = vld [vmem:[%s738 + $0x690] sm:$0xf]
                  %1161 = vst [vmem:[%s739 + $0x348] sm:$0xf] %v1160
                  %v1162 = vld [vmem:[%s738 + $0x698] sm:$0xf]
                  %1163 = vst [vmem:[%s739 + $0x34c] sm:$0xf] %v1162
                  %v1164 = vld [vmem:[%s738 + $0x6a0] sm:$0xf]
                  %1165 = vst [vmem:[%s739 + $0x350] sm:$0xf] %v1164
                  %v1166 = vld [vmem:[%s738 + $0x6a8] sm:$0xf]
                  %1167 = vst [vmem:[%s739 + $0x354] sm:$0xf] %v1166
                  %v1168 = vld [vmem:[%s738 + $0x6b0] sm:$0xf]
                  %1169 = vst [vmem:[%s739 + $0x358] sm:$0xf] %v1168
                  %v1170 = vld [vmem:[%s738 + $0x6b8] sm:$0xf]
                  %1171 = vst [vmem:[%s739 + $0x35c] sm:$0xf] %v1170
                  %v1172 = vld [vmem:[%s738 + $0x6c0] sm:$0xf]
                  %1173 = vst [vmem:[%s739 + $0x360] sm:$0xf] %v1172
                  %v1174 = vld [vmem:[%s738 + $0x6c8] sm:$0xf]
                  %1175 = vst [vmem:[%s739 + $0x364] sm:$0xf] %v1174
                  %v1176 = vld [vmem:[%s738 + $0x6d0] sm:$0xf]
                  %1177 = vst [vmem:[%s739 + $0x368] sm:$0xf] %v1176
                  %v1178 = vld [vmem:[%s738 + $0x6d8] sm:$0xf]
                  %1179 = vst [vmem:[%s739 + $0x36c] sm:$0xf] %v1178
                  %v1180 = vld [vmem:[%s738 + $0x6e0] sm:$0xf]
                  %1181 = vst [vmem:[%s739 + $0x370] sm:$0xf] %v1180
                  %v1182 = vld [vmem:[%s738 + $0x6e8] sm:$0xf]
                  %1183 = vst [vmem:[%s739 + $0x374] sm:$0xf] %v1182
                  %v1184 = vld [vmem:[%s738 + $0x6f0] sm:$0xf]
                  %1185 = vst [vmem:[%s739 + $0x378] sm:$0xf] %v1184
                  %v1186 = vld [vmem:[%s738 + $0x6f8] sm:$0xf]
                  %1187 = vst [vmem:[%s739 + $0x37c] sm:$0xf] %v1186
                  %v1188 = vld [vmem:[%s738 + $0x700] sm:$0xf]
                  %1189 = vst [vmem:[%s739 + $0x380] sm:$0xf] %v1188
                  %v1190 = vld [vmem:[%s738 + $0x708] sm:$0xf]
                  %1191 = vst [vmem:[%s739 + $0x384] sm:$0xf] %v1190
                  %v1192 = vld [vmem:[%s738 + $0x710] sm:$0xf]
                  %1193 = vst [vmem:[%s739 + $0x388] sm:$0xf] %v1192
                  %v1194 = vld [vmem:[%s738 + $0x718] sm:$0xf]
                  %1195 = vst [vmem:[%s739 + $0x38c] sm:$0xf] %v1194
                  %v1196 = vld [vmem:[%s738 + $0x720] sm:$0xf]
                  %1197 = vst [vmem:[%s739 + $0x390] sm:$0xf] %v1196
                  %v1198 = vld [vmem:[%s738 + $0x728] sm:$0xf]
                  %1199 = vst [vmem:[%s739 + $0x394] sm:$0xf] %v1198
                  %v1200 = vld [vmem:[%s738 + $0x730] sm:$0xf]
                  %1201 = vst [vmem:[%s739 + $0x398] sm:$0xf] %v1200
                  %v1202 = vld [vmem:[%s738 + $0x738] sm:$0xf]
                  %1203 = vst [vmem:[%s739 + $0x39c] sm:$0xf] %v1202
                  %v1204 = vld [vmem:[%s738 + $0x740] sm:$0xf]
                  %1205 = vst [vmem:[%s739 + $0x3a0] sm:$0xf] %v1204
                  %v1206 = vld [vmem:[%s738 + $0x748] sm:$0xf]
                  %1207 = vst [vmem:[%s739 + $0x3a4] sm:$0xf] %v1206
                  %v1208 = vld [vmem:[%s738 + $0x750] sm:$0xf]
                  %1209 = vst [vmem:[%s739 + $0x3a8] sm:$0xf] %v1208
                  %v1210 = vld [vmem:[%s738 + $0x758] sm:$0xf]
                  %1211 = vst [vmem:[%s739 + $0x3ac] sm:$0xf] %v1210
                  %v1212 = vld [vmem:[%s738 + $0x760] sm:$0xf]
                  %1213 = vst [vmem:[%s739 + $0x3b0] sm:$0xf] %v1212
                  %v1214 = vld [vmem:[%s738 + $0x768] sm:$0xf]
                  %1215 = vst [vmem:[%s739 + $0x3b4] sm:$0xf] %v1214
                  %v1216 = vld [vmem:[%s738 + $0x770] sm:$0xf]
                  %1217 = vst [vmem:[%s739 + $0x3b8] sm:$0xf] %v1216
                  %v1218 = vld [vmem:[%s738 + $0x778] sm:$0xf]
                  %1219 = vst [vmem:[%s739 + $0x3bc] sm:$0xf] %v1218
                  %v1220 = vld [vmem:[%s738 + $0x780] sm:$0xf]
                  %1221 = vst [vmem:[%s739 + $0x3c0] sm:$0xf] %v1220
                  %v1222 = vld [vmem:[%s738 + $0x788] sm:$0xf]
                  %1223 = vst [vmem:[%s739 + $0x3c4] sm:$0xf] %v1222
                  %v1224 = vld [vmem:[%s738 + $0x790] sm:$0xf]
                  %1225 = vst [vmem:[%s739 + $0x3c8] sm:$0xf] %v1224
                  %v1226 = vld [vmem:[%s738 + $0x798] sm:$0xf]
                  %1227 = vst [vmem:[%s739 + $0x3cc] sm:$0xf] %v1226
                  %v1228 = vld [vmem:[%s738 + $0x7a0] sm:$0xf]
                  %1229 = vst [vmem:[%s739 + $0x3d0] sm:$0xf] %v1228
                  %v1230 = vld [vmem:[%s738 + $0x7a8] sm:$0xf]
                  %1231 = vst [vmem:[%s739 + $0x3d4] sm:$0xf] %v1230
                  %v1232 = vld [vmem:[%s738 + $0x7b0] sm:$0xf]
                  %1233 = vst [vmem:[%s739 + $0x3d8] sm:$0xf] %v1232
                  %v1234 = vld [vmem:[%s738 + $0x7b8] sm:$0xf]
                  %1235 = vst [vmem:[%s739 + $0x3dc] sm:$0xf] %v1234
                  %v1236 = vld [vmem:[%s738 + $0x7c0] sm:$0xf]
                  %1237 = vst [vmem:[%s739 + $0x3e0] sm:$0xf] %v1236
                  %v1238 = vld [vmem:[%s738 + $0x7c8] sm:$0xf]
                  %1239 = vst [vmem:[%s739 + $0x3e4] sm:$0xf] %v1238
                  %v1240 = vld [vmem:[%s738 + $0x7d0] sm:$0xf]
                  %1241 = vst [vmem:[%s739 + $0x3e8] sm:$0xf] %v1240
                  %v1242 = vld [vmem:[%s738 + $0x7d8] sm:$0xf]
                  %1243 = vst [vmem:[%s739 + $0x3ec] sm:$0xf] %v1242
                  %v1244 = vld [vmem:[%s738 + $0x7e0] sm:$0xf]
                  %1245 = vst [vmem:[%s739 + $0x3f0] sm:$0xf] %v1244
                  %v1246 = vld [vmem:[%s738 + $0x7e8] sm:$0xf]
                  %1247 = vst [vmem:[%s739 + $0x3f4] sm:$0xf] %v1246
                  %v1248 = vld [vmem:[%s738 + $0x7f0] sm:$0xf]
                  %1249 = vst [vmem:[%s739 + $0x3f8] sm:$0xf] %v1248
                  %v1250 = vld [vmem:[%s738 + $0x7f8] sm:$0xf]
                  %1251 = vst [vmem:[%s739 + $0x3fc] sm:$0xf] %v1250
                $region59: #{discriminator_forward.6} parent=46 // loop_footer
                  %s737 = sadd.s32 1, %s733
                $region60: #{discriminator_forward.6} parent=46 // loop_footer_branch
                  %732 = sbr.rel target = $region56
                $region61: #{discriminator_forward.6} parent=46 // loop_exit
                  _
              $region47: #{discriminator_forward.6} parent=31 // pred_fallthru
                _
            $region32: #{discriminator_forward.6} parent=27 // pred_fallthru
              _
            // Predicated region
            $region33: #{discriminator_forward.6} parent=27 // pred_check
              _
            $region34: #{discriminator_forward.6} parent=27 // pred_check_branch
              %199 = sbr.rel (0) target = $region36
            $region35: #{discriminator_forward.6} parent=27 // pred_region
              loop: start=0, step=1, limit=1
              $region37: #{discriminator_forward.6} parent=35 // loop_pre_header
                _
              $region38: #{discriminator_forward.6} parent=35 // loop_header
                %s202 = sphi 0, %s206
                %p203 = scmp.ge.s32.totalorder %s202, 1
                %s207 = sphi %s193, %s193
                %s208 = sphi %s188, %s188
              $region39: #{discriminator_forward.6} parent=35 // loop_header_branch
                %205 = sbr.rel (%p203) target = $region43
              $region40: #{discriminator_forward.6} parent=35 // loop_body
                %v209 = vld [vmem:[%s207] sm:$0xf]
                %210 = vst [vmem:[%s208] sm:$0xf] %v209
                %v211 = vld [vmem:[%s207 + $0x8] sm:$0xf]
                %212 = vst [vmem:[%s208 + $0x4] sm:$0xf] %v211
                %v213 = vld [vmem:[%s207 + $0x10] sm:$0xf]
                %214 = vst [vmem:[%s208 + $0x8] sm:$0xf] %v213
                %v215 = vld [vmem:[%s207 + $0x18] sm:$0xf]
                %216 = vst [vmem:[%s208 + $0xc] sm:$0xf] %v215
                %v217 = vld [vmem:[%s207 + $0x20] sm:$0xf]
                %218 = vst [vmem:[%s208 + $0x10] sm:$0xf] %v217
                %v219 = vld [vmem:[%s207 + $0x28] sm:$0xf]
                %220 = vst [vmem:[%s208 + $0x14] sm:$0xf] %v219
                %v221 = vld [vmem:[%s207 + $0x30] sm:$0xf]
                %222 = vst [vmem:[%s208 + $0x18] sm:$0xf] %v221
                %v223 = vld [vmem:[%s207 + $0x38] sm:$0xf]
                %224 = vst [vmem:[%s208 + $0x1c] sm:$0xf] %v223
                %v225 = vld [vmem:[%s207 + $0x40] sm:$0xf]
                %226 = vst [vmem:[%s208 + $0x20] sm:$0xf] %v225
                %v227 = vld [vmem:[%s207 + $0x48] sm:$0xf]
                %228 = vst [vmem:[%s208 + $0x24] sm:$0xf] %v227
                %v229 = vld [vmem:[%s207 + $0x50] sm:$0xf]
                %230 = vst [vmem:[%s208 + $0x28] sm:$0xf] %v229
                %v231 = vld [vmem:[%s207 + $0x58] sm:$0xf]
                %232 = vst [vmem:[%s208 + $0x2c] sm:$0xf] %v231
                %v233 = vld [vmem:[%s207 + $0x60] sm:$0xf]
                %234 = vst [vmem:[%s208 + $0x30] sm:$0xf] %v233
                %v235 = vld [vmem:[%s207 + $0x68] sm:$0xf]
                %236 = vst [vmem:[%s208 + $0x34] sm:$0xf] %v235
                %v237 = vld [vmem:[%s207 + $0x70] sm:$0xf]
                %238 = vst [vmem:[%s208 + $0x38] sm:$0xf] %v237
                %v239 = vld [vmem:[%s207 + $0x78] sm:$0xf]
                %240 = vst [vmem:[%s208 + $0x3c] sm:$0xf] %v239
                %v241 = vld [vmem:[%s207 + $0x80] sm:$0xf]
                %242 = vst [vmem:[%s208 + $0x40] sm:$0xf] %v241
                %v243 = vld [vmem:[%s207 + $0x88] sm:$0xf]
                %244 = vst [vmem:[%s208 + $0x44] sm:$0xf] %v243
                %v245 = vld [vmem:[%s207 + $0x90] sm:$0xf]
                %246 = vst [vmem:[%s208 + $0x48] sm:$0xf] %v245
                %v247 = vld [vmem:[%s207 + $0x98] sm:$0xf]
                %248 = vst [vmem:[%s208 + $0x4c] sm:$0xf] %v247
                %v249 = vld [vmem:[%s207 + $0xa0] sm:$0xf]
                %250 = vst [vmem:[%s208 + $0x50] sm:$0xf] %v249
                %v251 = vld [vmem:[%s207 + $0xa8] sm:$0xf]
                %252 = vst [vmem:[%s208 + $0x54] sm:$0xf] %v251
                %v253 = vld [vmem:[%s207 + $0xb0] sm:$0xf]
                %254 = vst [vmem:[%s208 + $0x58] sm:$0xf] %v253
                %v255 = vld [vmem:[%s207 + $0xb8] sm:$0xf]
                %256 = vst [vmem:[%s208 + $0x5c] sm:$0xf] %v255
                %v257 = vld [vmem:[%s207 + $0xc0] sm:$0xf]
                %258 = vst [vmem:[%s208 + $0x60] sm:$0xf] %v257
                %v259 = vld [vmem:[%s207 + $0xc8] sm:$0xf]
                %260 = vst [vmem:[%s208 + $0x64] sm:$0xf] %v259
                %v261 = vld [vmem:[%s207 + $0xd0] sm:$0xf]
                %262 = vst [vmem:[%s208 + $0x68] sm:$0xf] %v261
                %v263 = vld [vmem:[%s207 + $0xd8] sm:$0xf]
                %264 = vst [vmem:[%s208 + $0x6c] sm:$0xf] %v263
                %v265 = vld [vmem:[%s207 + $0xe0] sm:$0xf]
                %266 = vst [vmem:[%s208 + $0x70] sm:$0xf] %v265
                %v267 = vld [vmem:[%s207 + $0xe8] sm:$0xf]
                %268 = vst [vmem:[%s208 + $0x74] sm:$0xf] %v267
                %v269 = vld [vmem:[%s207 + $0xf0] sm:$0xf]
                %270 = vst [vmem:[%s208 + $0x78] sm:$0xf] %v269
                %v271 = vld [vmem:[%s207 + $0xf8] sm:$0xf]
                %272 = vst [vmem:[%s208 + $0x7c] sm:$0xf] %v271
                %v273 = vld [vmem:[%s207 + $0x100] sm:$0xf]
                %274 = vst [vmem:[%s208 + $0x80] sm:$0xf] %v273
                %v275 = vld [vmem:[%s207 + $0x108] sm:$0xf]
                %276 = vst [vmem:[%s208 + $0x84] sm:$0xf] %v275
                %v277 = vld [vmem:[%s207 + $0x110] sm:$0xf]
                %278 = vst [vmem:[%s208 + $0x88] sm:$0xf] %v277
                %v279 = vld [vmem:[%s207 + $0x118] sm:$0xf]
                %280 = vst [vmem:[%s208 + $0x8c] sm:$0xf] %v279
                %v281 = vld [vmem:[%s207 + $0x120] sm:$0xf]
                %282 = vst [vmem:[%s208 + $0x90] sm:$0xf] %v281
                %v283 = vld [vmem:[%s207 + $0x128] sm:$0xf]
                %284 = vst [vmem:[%s208 + $0x94] sm:$0xf] %v283
                %v285 = vld [vmem:[%s207 + $0x130] sm:$0xf]
                %286 = vst [vmem:[%s208 + $0x98] sm:$0xf] %v285
                %v287 = vld [vmem:[%s207 + $0x138] sm:$0xf]
                %288 = vst [vmem:[%s208 + $0x9c] sm:$0xf] %v287
                %v289 = vld [vmem:[%s207 + $0x140] sm:$0xf]
                %290 = vst [vmem:[%s208 + $0xa0] sm:$0xf] %v289
                %v291 = vld [vmem:[%s207 + $0x148] sm:$0xf]
                %292 = vst [vmem:[%s208 + $0xa4] sm:$0xf] %v291
                %v293 = vld [vmem:[%s207 + $0x150] sm:$0xf]
                %294 = vst [vmem:[%s208 + $0xa8] sm:$0xf] %v293
                %v295 = vld [vmem:[%s207 + $0x158] sm:$0xf]
                %296 = vst [vmem:[%s208 + $0xac] sm:$0xf] %v295
                %v297 = vld [vmem:[%s207 + $0x160] sm:$0xf]
                %298 = vst [vmem:[%s208 + $0xb0] sm:$0xf] %v297
                %v299 = vld [vmem:[%s207 + $0x168] sm:$0xf]
                %300 = vst [vmem:[%s208 + $0xb4] sm:$0xf] %v299
                %v301 = vld [vmem:[%s207 + $0x170] sm:$0xf]
                %302 = vst [vmem:[%s208 + $0xb8] sm:$0xf] %v301
                %v303 = vld [vmem:[%s207 + $0x178] sm:$0xf]
                %304 = vst [vmem:[%s208 + $0xbc] sm:$0xf] %v303
                %v305 = vld [vmem:[%s207 + $0x180] sm:$0xf]
                %306 = vst [vmem:[%s208 + $0xc0] sm:$0xf] %v305
                %v307 = vld [vmem:[%s207 + $0x188] sm:$0xf]
                %308 = vst [vmem:[%s208 + $0xc4] sm:$0xf] %v307
                %v309 = vld [vmem:[%s207 + $0x190] sm:$0xf]
                %310 = vst [vmem:[%s208 + $0xc8] sm:$0xf] %v309
                %v311 = vld [vmem:[%s207 + $0x198] sm:$0xf]
                %312 = vst [vmem:[%s208 + $0xcc] sm:$0xf] %v311
                %v313 = vld [vmem:[%s207 + $0x1a0] sm:$0xf]
                %314 = vst [vmem:[%s208 + $0xd0] sm:$0xf] %v313
                %v315 = vld [vmem:[%s207 + $0x1a8] sm:$0xf]
                %316 = vst [vmem:[%s208 + $0xd4] sm:$0xf] %v315
                %v317 = vld [vmem:[%s207 + $0x1b0] sm:$0xf]
                %318 = vst [vmem:[%s208 + $0xd8] sm:$0xf] %v317
                %v319 = vld [vmem:[%s207 + $0x1b8] sm:$0xf]
                %320 = vst [vmem:[%s208 + $0xdc] sm:$0xf] %v319
                %v321 = vld [vmem:[%s207 + $0x1c0] sm:$0xf]
                %322 = vst [vmem:[%s208 + $0xe0] sm:$0xf] %v321
                %v323 = vld [vmem:[%s207 + $0x1c8] sm:$0xf]
                %324 = vst [vmem:[%s208 + $0xe4] sm:$0xf] %v323
                %v325 = vld [vmem:[%s207 + $0x1d0] sm:$0xf]
                %326 = vst [vmem:[%s208 + $0xe8] sm:$0xf] %v325
                %v327 = vld [vmem:[%s207 + $0x1d8] sm:$0xf]
                %328 = vst [vmem:[%s208 + $0xec] sm:$0xf] %v327
                %v329 = vld [vmem:[%s207 + $0x1e0] sm:$0xf]
                %330 = vst [vmem:[%s208 + $0xf0] sm:$0xf] %v329
                %v331 = vld [vmem:[%s207 + $0x1e8] sm:$0xf]
                %332 = vst [vmem:[%s208 + $0xf4] sm:$0xf] %v331
                %v333 = vld [vmem:[%s207 + $0x1f0] sm:$0xf]
                %334 = vst [vmem:[%s208 + $0xf8] sm:$0xf] %v333
                %v335 = vld [vmem:[%s207 + $0x1f8] sm:$0xf]
                %336 = vst [vmem:[%s208 + $0xfc] sm:$0xf] %v335
                %v337 = vld [vmem:[%s207 + $0x200] sm:$0xf]
                %338 = vst [vmem:[%s208 + $0x100] sm:$0xf] %v337
                %v339 = vld [vmem:[%s207 + $0x208] sm:$0xf]
                %340 = vst [vmem:[%s208 + $0x104] sm:$0xf] %v339
                %v341 = vld [vmem:[%s207 + $0x210] sm:$0xf]
                %342 = vst [vmem:[%s208 + $0x108] sm:$0xf] %v341
                %v343 = vld [vmem:[%s207 + $0x218] sm:$0xf]
                %344 = vst [vmem:[%s208 + $0x10c] sm:$0xf] %v343
                %v345 = vld [vmem:[%s207 + $0x220] sm:$0xf]
                %346 = vst [vmem:[%s208 + $0x110] sm:$0xf] %v345
                %v347 = vld [vmem:[%s207 + $0x228] sm:$0xf]
                %348 = vst [vmem:[%s208 + $0x114] sm:$0xf] %v347
                %v349 = vld [vmem:[%s207 + $0x230] sm:$0xf]
                %350 = vst [vmem:[%s208 + $0x118] sm:$0xf] %v349
                %v351 = vld [vmem:[%s207 + $0x238] sm:$0xf]
                %352 = vst [vmem:[%s208 + $0x11c] sm:$0xf] %v351
                %v353 = vld [vmem:[%s207 + $0x240] sm:$0xf]
                %354 = vst [vmem:[%s208 + $0x120] sm:$0xf] %v353
                %v355 = vld [vmem:[%s207 + $0x248] sm:$0xf]
                %356 = vst [vmem:[%s208 + $0x124] sm:$0xf] %v355
                %v357 = vld [vmem:[%s207 + $0x250] sm:$0xf]
                %358 = vst [vmem:[%s208 + $0x128] sm:$0xf] %v357
                %v359 = vld [vmem:[%s207 + $0x258] sm:$0xf]
                %360 = vst [vmem:[%s208 + $0x12c] sm:$0xf] %v359
                %v361 = vld [vmem:[%s207 + $0x260] sm:$0xf]
                %362 = vst [vmem:[%s208 + $0x130] sm:$0xf] %v361
                %v363 = vld [vmem:[%s207 + $0x268] sm:$0xf]
                %364 = vst [vmem:[%s208 + $0x134] sm:$0xf] %v363
                %v365 = vld [vmem:[%s207 + $0x270] sm:$0xf]
                %366 = vst [vmem:[%s208 + $0x138] sm:$0xf] %v365
                %v367 = vld [vmem:[%s207 + $0x278] sm:$0xf]
                %368 = vst [vmem:[%s208 + $0x13c] sm:$0xf] %v367
                %v369 = vld [vmem:[%s207 + $0x280] sm:$0xf]
                %370 = vst [vmem:[%s208 + $0x140] sm:$0xf] %v369
                %v371 = vld [vmem:[%s207 + $0x288] sm:$0xf]
                %372 = vst [vmem:[%s208 + $0x144] sm:$0xf] %v371
                %v373 = vld [vmem:[%s207 + $0x290] sm:$0xf]
                %374 = vst [vmem:[%s208 + $0x148] sm:$0xf] %v373
                %v375 = vld [vmem:[%s207 + $0x298] sm:$0xf]
                %376 = vst [vmem:[%s208 + $0x14c] sm:$0xf] %v375
                %v377 = vld [vmem:[%s207 + $0x2a0] sm:$0xf]
                %378 = vst [vmem:[%s208 + $0x150] sm:$0xf] %v377
                %v379 = vld [vmem:[%s207 + $0x2a8] sm:$0xf]
                %380 = vst [vmem:[%s208 + $0x154] sm:$0xf] %v379
                %v381 = vld [vmem:[%s207 + $0x2b0] sm:$0xf]
                %382 = vst [vmem:[%s208 + $0x158] sm:$0xf] %v381
                %v383 = vld [vmem:[%s207 + $0x2b8] sm:$0xf]
                %384 = vst [vmem:[%s208 + $0x15c] sm:$0xf] %v383
                %v385 = vld [vmem:[%s207 + $0x2c0] sm:$0xf]
                %386 = vst [vmem:[%s208 + $0x160] sm:$0xf] %v385
                %v387 = vld [vmem:[%s207 + $0x2c8] sm:$0xf]
                %388 = vst [vmem:[%s208 + $0x164] sm:$0xf] %v387
                %v389 = vld [vmem:[%s207 + $0x2d0] sm:$0xf]
                %390 = vst [vmem:[%s208 + $0x168] sm:$0xf] %v389
                %v391 = vld [vmem:[%s207 + $0x2d8] sm:$0xf]
                %392 = vst [vmem:[%s208 + $0x16c] sm:$0xf] %v391
                %v393 = vld [vmem:[%s207 + $0x2e0] sm:$0xf]
                %394 = vst [vmem:[%s208 + $0x170] sm:$0xf] %v393
                %v395 = vld [vmem:[%s207 + $0x2e8] sm:$0xf]
                %396 = vst [vmem:[%s208 + $0x174] sm:$0xf] %v395
                %v397 = vld [vmem:[%s207 + $0x2f0] sm:$0xf]
                %398 = vst [vmem:[%s208 + $0x178] sm:$0xf] %v397
                %v399 = vld [vmem:[%s207 + $0x2f8] sm:$0xf]
                %400 = vst [vmem:[%s208 + $0x17c] sm:$0xf] %v399
                %v401 = vld [vmem:[%s207 + $0x300] sm:$0xf]
                %402 = vst [vmem:[%s208 + $0x180] sm:$0xf] %v401
                %v403 = vld [vmem:[%s207 + $0x308] sm:$0xf]
                %404 = vst [vmem:[%s208 + $0x184] sm:$0xf] %v403
                %v405 = vld [vmem:[%s207 + $0x310] sm:$0xf]
                %406 = vst [vmem:[%s208 + $0x188] sm:$0xf] %v405
                %v407 = vld [vmem:[%s207 + $0x318] sm:$0xf]
                %408 = vst [vmem:[%s208 + $0x18c] sm:$0xf] %v407
                %v409 = vld [vmem:[%s207 + $0x320] sm:$0xf]
                %410 = vst [vmem:[%s208 + $0x190] sm:$0xf] %v409
                %v411 = vld [vmem:[%s207 + $0x328] sm:$0xf]
                %412 = vst [vmem:[%s208 + $0x194] sm:$0xf] %v411
                %v413 = vld [vmem:[%s207 + $0x330] sm:$0xf]
                %414 = vst [vmem:[%s208 + $0x198] sm:$0xf] %v413
                %v415 = vld [vmem:[%s207 + $0x338] sm:$0xf]
                %416 = vst [vmem:[%s208 + $0x19c] sm:$0xf] %v415
                %v417 = vld [vmem:[%s207 + $0x340] sm:$0xf]
                %418 = vst [vmem:[%s208 + $0x1a0] sm:$0xf] %v417
                %v419 = vld [vmem:[%s207 + $0x348] sm:$0xf]
                %420 = vst [vmem:[%s208 + $0x1a4] sm:$0xf] %v419
                %v421 = vld [vmem:[%s207 + $0x350] sm:$0xf]
                %422 = vst [vmem:[%s208 + $0x1a8] sm:$0xf] %v421
                %v423 = vld [vmem:[%s207 + $0x358] sm:$0xf]
                %424 = vst [vmem:[%s208 + $0x1ac] sm:$0xf] %v423
                %v425 = vld [vmem:[%s207 + $0x360] sm:$0xf]
                %426 = vst [vmem:[%s208 + $0x1b0] sm:$0xf] %v425
                %v427 = vld [vmem:[%s207 + $0x368] sm:$0xf]
                %428 = vst [vmem:[%s208 + $0x1b4] sm:$0xf] %v427
                %v429 = vld [vmem:[%s207 + $0x370] sm:$0xf]
                %430 = vst [vmem:[%s208 + $0x1b8] sm:$0xf] %v429
                %v431 = vld [vmem:[%s207 + $0x378] sm:$0xf]
                %432 = vst [vmem:[%s208 + $0x1bc] sm:$0xf] %v431
                %v433 = vld [vmem:[%s207 + $0x380] sm:$0xf]
                %434 = vst [vmem:[%s208 + $0x1c0] sm:$0xf] %v433
                %v435 = vld [vmem:[%s207 + $0x388] sm:$0xf]
                %436 = vst [vmem:[%s208 + $0x1c4] sm:$0xf] %v435
                %v437 = vld [vmem:[%s207 + $0x390] sm:$0xf]
                %438 = vst [vmem:[%s208 + $0x1c8] sm:$0xf] %v437
                %v439 = vld [vmem:[%s207 + $0x398] sm:$0xf]
                %440 = vst [vmem:[%s208 + $0x1cc] sm:$0xf] %v439
                %v441 = vld [vmem:[%s207 + $0x3a0] sm:$0xf]
                %442 = vst [vmem:[%s208 + $0x1d0] sm:$0xf] %v441
                %v443 = vld [vmem:[%s207 + $0x3a8] sm:$0xf]
                %444 = vst [vmem:[%s208 + $0x1d4] sm:$0xf] %v443
                %v445 = vld [vmem:[%s207 + $0x3b0] sm:$0xf]
                %446 = vst [vmem:[%s208 + $0x1d8] sm:$0xf] %v445
                %v447 = vld [vmem:[%s207 + $0x3b8] sm:$0xf]
                %448 = vst [vmem:[%s208 + $0x1dc] sm:$0xf] %v447
                %v449 = vld [vmem:[%s207 + $0x3c0] sm:$0xf]
                %450 = vst [vmem:[%s208 + $0x1e0] sm:$0xf] %v449
                %v451 = vld [vmem:[%s207 + $0x3c8] sm:$0xf]
                %452 = vst [vmem:[%s208 + $0x1e4] sm:$0xf] %v451
                %v453 = vld [vmem:[%s207 + $0x3d0] sm:$0xf]
                %454 = vst [vmem:[%s208 + $0x1e8] sm:$0xf] %v453
                %v455 = vld [vmem:[%s207 + $0x3d8] sm:$0xf]
                %456 = vst [vmem:[%s208 + $0x1ec] sm:$0xf] %v455
                %v457 = vld [vmem:[%s207 + $0x3e0] sm:$0xf]
                %458 = vst [vmem:[%s208 + $0x1f0] sm:$0xf] %v457
                %v459 = vld [vmem:[%s207 + $0x3e8] sm:$0xf]
                %460 = vst [vmem:[%s208 + $0x1f4] sm:$0xf] %v459
                %v461 = vld [vmem:[%s207 + $0x3f0] sm:$0xf]
                %462 = vst [vmem:[%s208 + $0x1f8] sm:$0xf] %v461
                %v463 = vld [vmem:[%s207 + $0x3f8] sm:$0xf]
                %464 = vst [vmem:[%s208 + $0x1fc] sm:$0xf] %v463
                %v465 = vld [vmem:[%s207 + $0x400] sm:$0xf]
                %466 = vst [vmem:[%s208 + $0x200] sm:$0xf] %v465
                %v467 = vld [vmem:[%s207 + $0x408] sm:$0xf]
                %468 = vst [vmem:[%s208 + $0x204] sm:$0xf] %v467
                %v469 = vld [vmem:[%s207 + $0x410] sm:$0xf]
                %470 = vst [vmem:[%s208 + $0x208] sm:$0xf] %v469
                %v471 = vld [vmem:[%s207 + $0x418] sm:$0xf]
                %472 = vst [vmem:[%s208 + $0x20c] sm:$0xf] %v471
                %v473 = vld [vmem:[%s207 + $0x420] sm:$0xf]
                %474 = vst [vmem:[%s208 + $0x210] sm:$0xf] %v473
                %v475 = vld [vmem:[%s207 + $0x428] sm:$0xf]
                %476 = vst [vmem:[%s208 + $0x214] sm:$0xf] %v475
                %v477 = vld [vmem:[%s207 + $0x430] sm:$0xf]
                %478 = vst [vmem:[%s208 + $0x218] sm:$0xf] %v477
                %v479 = vld [vmem:[%s207 + $0x438] sm:$0xf]
                %480 = vst [vmem:[%s208 + $0x21c] sm:$0xf] %v479
                %v481 = vld [vmem:[%s207 + $0x440] sm:$0xf]
                %482 = vst [vmem:[%s208 + $0x220] sm:$0xf] %v481
                %v483 = vld [vmem:[%s207 + $0x448] sm:$0xf]
                %484 = vst [vmem:[%s208 + $0x224] sm:$0xf] %v483
                %v485 = vld [vmem:[%s207 + $0x450] sm:$0xf]
                %486 = vst [vmem:[%s208 + $0x228] sm:$0xf] %v485
                %v487 = vld [vmem:[%s207 + $0x458] sm:$0xf]
                %488 = vst [vmem:[%s208 + $0x22c] sm:$0xf] %v487
                %v489 = vld [vmem:[%s207 + $0x460] sm:$0xf]
                %490 = vst [vmem:[%s208 + $0x230] sm:$0xf] %v489
                %v491 = vld [vmem:[%s207 + $0x468] sm:$0xf]
                %492 = vst [vmem:[%s208 + $0x234] sm:$0xf] %v491
                %v493 = vld [vmem:[%s207 + $0x470] sm:$0xf]
                %494 = vst [vmem:[%s208 + $0x238] sm:$0xf] %v493
                %v495 = vld [vmem:[%s207 + $0x478] sm:$0xf]
                %496 = vst [vmem:[%s208 + $0x23c] sm:$0xf] %v495
                %v497 = vld [vmem:[%s207 + $0x480] sm:$0xf]
                %498 = vst [vmem:[%s208 + $0x240] sm:$0xf] %v497
                %v499 = vld [vmem:[%s207 + $0x488] sm:$0xf]
                %500 = vst [vmem:[%s208 + $0x244] sm:$0xf] %v499
                %v501 = vld [vmem:[%s207 + $0x490] sm:$0xf]
                %502 = vst [vmem:[%s208 + $0x248] sm:$0xf] %v501
                %v503 = vld [vmem:[%s207 + $0x498] sm:$0xf]
                %504 = vst [vmem:[%s208 + $0x24c] sm:$0xf] %v503
                %v505 = vld [vmem:[%s207 + $0x4a0] sm:$0xf]
                %506 = vst [vmem:[%s208 + $0x250] sm:$0xf] %v505
                %v507 = vld [vmem:[%s207 + $0x4a8] sm:$0xf]
                %508 = vst [vmem:[%s208 + $0x254] sm:$0xf] %v507
                %v509 = vld [vmem:[%s207 + $0x4b0] sm:$0xf]
                %510 = vst [vmem:[%s208 + $0x258] sm:$0xf] %v509
                %v511 = vld [vmem:[%s207 + $0x4b8] sm:$0xf]
                %512 = vst [vmem:[%s208 + $0x25c] sm:$0xf] %v511
                %v513 = vld [vmem:[%s207 + $0x4c0] sm:$0xf]
                %514 = vst [vmem:[%s208 + $0x260] sm:$0xf] %v513
                %v515 = vld [vmem:[%s207 + $0x4c8] sm:$0xf]
                %516 = vst [vmem:[%s208 + $0x264] sm:$0xf] %v515
                %v517 = vld [vmem:[%s207 + $0x4d0] sm:$0xf]
                %518 = vst [vmem:[%s208 + $0x268] sm:$0xf] %v517
                %v519 = vld [vmem:[%s207 + $0x4d8] sm:$0xf]
                %520 = vst [vmem:[%s208 + $0x26c] sm:$0xf] %v519
                %v521 = vld [vmem:[%s207 + $0x4e0] sm:$0xf]
                %522 = vst [vmem:[%s208 + $0x270] sm:$0xf] %v521
                %v523 = vld [vmem:[%s207 + $0x4e8] sm:$0xf]
                %524 = vst [vmem:[%s208 + $0x274] sm:$0xf] %v523
                %v525 = vld [vmem:[%s207 + $0x4f0] sm:$0xf]
                %526 = vst [vmem:[%s208 + $0x278] sm:$0xf] %v525
                %v527 = vld [vmem:[%s207 + $0x4f8] sm:$0xf]
                %528 = vst [vmem:[%s208 + $0x27c] sm:$0xf] %v527
                %v529 = vld [vmem:[%s207 + $0x500] sm:$0xf]
                %530 = vst [vmem:[%s208 + $0x280] sm:$0xf] %v529
                %v531 = vld [vmem:[%s207 + $0x508] sm:$0xf]
                %532 = vst [vmem:[%s208 + $0x284] sm:$0xf] %v531
                %v533 = vld [vmem:[%s207 + $0x510] sm:$0xf]
                %534 = vst [vmem:[%s208 + $0x288] sm:$0xf] %v533
                %v535 = vld [vmem:[%s207 + $0x518] sm:$0xf]
                %536 = vst [vmem:[%s208 + $0x28c] sm:$0xf] %v535
                %v537 = vld [vmem:[%s207 + $0x520] sm:$0xf]
                %538 = vst [vmem:[%s208 + $0x290] sm:$0xf] %v537
                %v539 = vld [vmem:[%s207 + $0x528] sm:$0xf]
                %540 = vst [vmem:[%s208 + $0x294] sm:$0xf] %v539
                %v541 = vld [vmem:[%s207 + $0x530] sm:$0xf]
                %542 = vst [vmem:[%s208 + $0x298] sm:$0xf] %v541
                %v543 = vld [vmem:[%s207 + $0x538] sm:$0xf]
                %544 = vst [vmem:[%s208 + $0x29c] sm:$0xf] %v543
                %v545 = vld [vmem:[%s207 + $0x540] sm:$0xf]
                %546 = vst [vmem:[%s208 + $0x2a0] sm:$0xf] %v545
                %v547 = vld [vmem:[%s207 + $0x548] sm:$0xf]
                %548 = vst [vmem:[%s208 + $0x2a4] sm:$0xf] %v547
                %v549 = vld [vmem:[%s207 + $0x550] sm:$0xf]
                %550 = vst [vmem:[%s208 + $0x2a8] sm:$0xf] %v549
                %v551 = vld [vmem:[%s207 + $0x558] sm:$0xf]
                %552 = vst [vmem:[%s208 + $0x2ac] sm:$0xf] %v551
                %v553 = vld [vmem:[%s207 + $0x560] sm:$0xf]
                %554 = vst [vmem:[%s208 + $0x2b0] sm:$0xf] %v553
                %v555 = vld [vmem:[%s207 + $0x568] sm:$0xf]
                %556 = vst [vmem:[%s208 + $0x2b4] sm:$0xf] %v555
                %v557 = vld [vmem:[%s207 + $0x570] sm:$0xf]
                %558 = vst [vmem:[%s208 + $0x2b8] sm:$0xf] %v557
                %v559 = vld [vmem:[%s207 + $0x578] sm:$0xf]
                %560 = vst [vmem:[%s208 + $0x2bc] sm:$0xf] %v559
                %v561 = vld [vmem:[%s207 + $0x580] sm:$0xf]
                %562 = vst [vmem:[%s208 + $0x2c0] sm:$0xf] %v561
                %v563 = vld [vmem:[%s207 + $0x588] sm:$0xf]
                %564 = vst [vmem:[%s208 + $0x2c4] sm:$0xf] %v563
                %v565 = vld [vmem:[%s207 + $0x590] sm:$0xf]
                %566 = vst [vmem:[%s208 + $0x2c8] sm:$0xf] %v565
                %v567 = vld [vmem:[%s207 + $0x598] sm:$0xf]
                %568 = vst [vmem:[%s208 + $0x2cc] sm:$0xf] %v567
                %v569 = vld [vmem:[%s207 + $0x5a0] sm:$0xf]
                %570 = vst [vmem:[%s208 + $0x2d0] sm:$0xf] %v569
                %v571 = vld [vmem:[%s207 + $0x5a8] sm:$0xf]
                %572 = vst [vmem:[%s208 + $0x2d4] sm:$0xf] %v571
                %v573 = vld [vmem:[%s207 + $0x5b0] sm:$0xf]
                %574 = vst [vmem:[%s208 + $0x2d8] sm:$0xf] %v573
                %v575 = vld [vmem:[%s207 + $0x5b8] sm:$0xf]
                %576 = vst [vmem:[%s208 + $0x2dc] sm:$0xf] %v575
                %v577 = vld [vmem:[%s207 + $0x5c0] sm:$0xf]
                %578 = vst [vmem:[%s208 + $0x2e0] sm:$0xf] %v577
                %v579 = vld [vmem:[%s207 + $0x5c8] sm:$0xf]
                %580 = vst [vmem:[%s208 + $0x2e4] sm:$0xf] %v579
                %v581 = vld [vmem:[%s207 + $0x5d0] sm:$0xf]
                %582 = vst [vmem:[%s208 + $0x2e8] sm:$0xf] %v581
                %v583 = vld [vmem:[%s207 + $0x5d8] sm:$0xf]
                %584 = vst [vmem:[%s208 + $0x2ec] sm:$0xf] %v583
                %v585 = vld [vmem:[%s207 + $0x5e0] sm:$0xf]
                %586 = vst [vmem:[%s208 + $0x2f0] sm:$0xf] %v585
                %v587 = vld [vmem:[%s207 + $0x5e8] sm:$0xf]
                %588 = vst [vmem:[%s208 + $0x2f4] sm:$0xf] %v587
                %v589 = vld [vmem:[%s207 + $0x5f0] sm:$0xf]
                %590 = vst [vmem:[%s208 + $0x2f8] sm:$0xf] %v589
                %v591 = vld [vmem:[%s207 + $0x5f8] sm:$0xf]
                %592 = vst [vmem:[%s208 + $0x2fc] sm:$0xf] %v591
                %v593 = vld [vmem:[%s207 + $0x600] sm:$0xf]
                %594 = vst [vmem:[%s208 + $0x300] sm:$0xf] %v593
                %v595 = vld [vmem:[%s207 + $0x608] sm:$0xf]
                %596 = vst [vmem:[%s208 + $0x304] sm:$0xf] %v595
                %v597 = vld [vmem:[%s207 + $0x610] sm:$0xf]
                %598 = vst [vmem:[%s208 + $0x308] sm:$0xf] %v597
                %v599 = vld [vmem:[%s207 + $0x618] sm:$0xf]
                %600 = vst [vmem:[%s208 + $0x30c] sm:$0xf] %v599
                %v601 = vld [vmem:[%s207 + $0x620] sm:$0xf]
                %602 = vst [vmem:[%s208 + $0x310] sm:$0xf] %v601
                %v603 = vld [vmem:[%s207 + $0x628] sm:$0xf]
                %604 = vst [vmem:[%s208 + $0x314] sm:$0xf] %v603
                %v605 = vld [vmem:[%s207 + $0x630] sm:$0xf]
                %606 = vst [vmem:[%s208 + $0x318] sm:$0xf] %v605
                %v607 = vld [vmem:[%s207 + $0x638] sm:$0xf]
                %608 = vst [vmem:[%s208 + $0x31c] sm:$0xf] %v607
                %v609 = vld [vmem:[%s207 + $0x640] sm:$0xf]
                %610 = vst [vmem:[%s208 + $0x320] sm:$0xf] %v609
                %v611 = vld [vmem:[%s207 + $0x648] sm:$0xf]
                %612 = vst [vmem:[%s208 + $0x324] sm:$0xf] %v611
                %v613 = vld [vmem:[%s207 + $0x650] sm:$0xf]
                %614 = vst [vmem:[%s208 + $0x328] sm:$0xf] %v613
                %v615 = vld [vmem:[%s207 + $0x658] sm:$0xf]
                %616 = vst [vmem:[%s208 + $0x32c] sm:$0xf] %v615
                %v617 = vld [vmem:[%s207 + $0x660] sm:$0xf]
                %618 = vst [vmem:[%s208 + $0x330] sm:$0xf] %v617
                %v619 = vld [vmem:[%s207 + $0x668] sm:$0xf]
                %620 = vst [vmem:[%s208 + $0x334] sm:$0xf] %v619
                %v621 = vld [vmem:[%s207 + $0x670] sm:$0xf]
                %622 = vst [vmem:[%s208 + $0x338] sm:$0xf] %v621
                %v623 = vld [vmem:[%s207 + $0x678] sm:$0xf]
                %624 = vst [vmem:[%s208 + $0x33c] sm:$0xf] %v623
                %v625 = vld [vmem:[%s207 + $0x680] sm:$0xf]
                %626 = vst [vmem:[%s208 + $0x340] sm:$0xf] %v625
                %v627 = vld [vmem:[%s207 + $0x688] sm:$0xf]
                %628 = vst [vmem:[%s208 + $0x344] sm:$0xf] %v627
                %v629 = vld [vmem:[%s207 + $0x690] sm:$0xf]
                %630 = vst [vmem:[%s208 + $0x348] sm:$0xf] %v629
                %v631 = vld [vmem:[%s207 + $0x698] sm:$0xf]
                %632 = vst [vmem:[%s208 + $0x34c] sm:$0xf] %v631
                %v633 = vld [vmem:[%s207 + $0x6a0] sm:$0xf]
                %634 = vst [vmem:[%s208 + $0x350] sm:$0xf] %v633
                %v635 = vld [vmem:[%s207 + $0x6a8] sm:$0xf]
                %636 = vst [vmem:[%s208 + $0x354] sm:$0xf] %v635
                %v637 = vld [vmem:[%s207 + $0x6b0] sm:$0xf]
                %638 = vst [vmem:[%s208 + $0x358] sm:$0xf] %v637
                %v639 = vld [vmem:[%s207 + $0x6b8] sm:$0xf]
                %640 = vst [vmem:[%s208 + $0x35c] sm:$0xf] %v639
                %v641 = vld [vmem:[%s207 + $0x6c0] sm:$0xf]
                %642 = vst [vmem:[%s208 + $0x360] sm:$0xf] %v641
                %v643 = vld [vmem:[%s207 + $0x6c8] sm:$0xf]
                %644 = vst [vmem:[%s208 + $0x364] sm:$0xf] %v643
                %v645 = vld [vmem:[%s207 + $0x6d0] sm:$0xf]
                %646 = vst [vmem:[%s208 + $0x368] sm:$0xf] %v645
                %v647 = vld [vmem:[%s207 + $0x6d8] sm:$0xf]
                %648 = vst [vmem:[%s208 + $0x36c] sm:$0xf] %v647
                %v649 = vld [vmem:[%s207 + $0x6e0] sm:$0xf]
                %650 = vst [vmem:[%s208 + $0x370] sm:$0xf] %v649
                %v651 = vld [vmem:[%s207 + $0x6e8] sm:$0xf]
                %652 = vst [vmem:[%s208 + $0x374] sm:$0xf] %v651
                %v653 = vld [vmem:[%s207 + $0x6f0] sm:$0xf]
                %654 = vst [vmem:[%s208 + $0x378] sm:$0xf] %v653
                %v655 = vld [vmem:[%s207 + $0x6f8] sm:$0xf]
                %656 = vst [vmem:[%s208 + $0x37c] sm:$0xf] %v655
                %v657 = vld [vmem:[%s207 + $0x700] sm:$0xf]
                %658 = vst [vmem:[%s208 + $0x380] sm:$0xf] %v657
                %v659 = vld [vmem:[%s207 + $0x708] sm:$0xf]
                %660 = vst [vmem:[%s208 + $0x384] sm:$0xf] %v659
                %v661 = vld [vmem:[%s207 + $0x710] sm:$0xf]
                %662 = vst [vmem:[%s208 + $0x388] sm:$0xf] %v661
                %v663 = vld [vmem:[%s207 + $0x718] sm:$0xf]
                %664 = vst [vmem:[%s208 + $0x38c] sm:$0xf] %v663
                %v665 = vld [vmem:[%s207 + $0x720] sm:$0xf]
                %666 = vst [vmem:[%s208 + $0x390] sm:$0xf] %v665
                %v667 = vld [vmem:[%s207 + $0x728] sm:$0xf]
                %668 = vst [vmem:[%s208 + $0x394] sm:$0xf] %v667
                %v669 = vld [vmem:[%s207 + $0x730] sm:$0xf]
                %670 = vst [vmem:[%s208 + $0x398] sm:$0xf] %v669
                %v671 = vld [vmem:[%s207 + $0x738] sm:$0xf]
                %672 = vst [vmem:[%s208 + $0x39c] sm:$0xf] %v671
                %v673 = vld [vmem:[%s207 + $0x740] sm:$0xf]
                %674 = vst [vmem:[%s208 + $0x3a0] sm:$0xf] %v673
                %v675 = vld [vmem:[%s207 + $0x748] sm:$0xf]
                %676 = vst [vmem:[%s208 + $0x3a4] sm:$0xf] %v675
                %v677 = vld [vmem:[%s207 + $0x750] sm:$0xf]
                %678 = vst [vmem:[%s208 + $0x3a8] sm:$0xf] %v677
                %v679 = vld [vmem:[%s207 + $0x758] sm:$0xf]
                %680 = vst [vmem:[%s208 + $0x3ac] sm:$0xf] %v679
                %v681 = vld [vmem:[%s207 + $0x760] sm:$0xf]
                %682 = vst [vmem:[%s208 + $0x3b0] sm:$0xf] %v681
                %v683 = vld [vmem:[%s207 + $0x768] sm:$0xf]
                %684 = vst [vmem:[%s208 + $0x3b4] sm:$0xf] %v683
                %v685 = vld [vmem:[%s207 + $0x770] sm:$0xf]
                %686 = vst [vmem:[%s208 + $0x3b8] sm:$0xf] %v685
                %v687 = vld [vmem:[%s207 + $0x778] sm:$0xf]
                %688 = vst [vmem:[%s208 + $0x3bc] sm:$0xf] %v687
                %v689 = vld [vmem:[%s207 + $0x780] sm:$0xf]
                %690 = vst [vmem:[%s208 + $0x3c0] sm:$0xf] %v689
                %v691 = vld [vmem:[%s207 + $0x788] sm:$0xf]
                %692 = vst [vmem:[%s208 + $0x3c4] sm:$0xf] %v691
                %v693 = vld [vmem:[%s207 + $0x790] sm:$0xf]
                %694 = vst [vmem:[%s208 + $0x3c8] sm:$0xf] %v693
                %v695 = vld [vmem:[%s207 + $0x798] sm:$0xf]
                %696 = vst [vmem:[%s208 + $0x3cc] sm:$0xf] %v695
                %v697 = vld [vmem:[%s207 + $0x7a0] sm:$0xf]
                %698 = vst [vmem:[%s208 + $0x3d0] sm:$0xf] %v697
                %v699 = vld [vmem:[%s207 + $0x7a8] sm:$0xf]
                %700 = vst [vmem:[%s208 + $0x3d4] sm:$0xf] %v699
                %v701 = vld [vmem:[%s207 + $0x7b0] sm:$0xf]
                %702 = vst [vmem:[%s208 + $0x3d8] sm:$0xf] %v701
                %v703 = vld [vmem:[%s207 + $0x7b8] sm:$0xf]
                %704 = vst [vmem:[%s208 + $0x3dc] sm:$0xf] %v703
                %v705 = vld [vmem:[%s207 + $0x7c0] sm:$0xf]
                %706 = vst [vmem:[%s208 + $0x3e0] sm:$0xf] %v705
                %v707 = vld [vmem:[%s207 + $0x7c8] sm:$0xf]
                %708 = vst [vmem:[%s208 + $0x3e4] sm:$0xf] %v707
                %v709 = vld [vmem:[%s207 + $0x7d0] sm:$0xf]
                %710 = vst [vmem:[%s208 + $0x3e8] sm:$0xf] %v709
                %v711 = vld [vmem:[%s207 + $0x7d8] sm:$0xf]
                %712 = vst [vmem:[%s208 + $0x3ec] sm:$0xf] %v711
                %v713 = vld [vmem:[%s207 + $0x7e0] sm:$0xf]
                %714 = vst [vmem:[%s208 + $0x3f0] sm:$0xf] %v713
                %v715 = vld [vmem:[%s207 + $0x7e8] sm:$0xf]
                %716 = vst [vmem:[%s208 + $0x3f4] sm:$0xf] %v715
                %v717 = vld [vmem:[%s207 + $0x7f0] sm:$0xf]
                %718 = vst [vmem:[%s208 + $0x3f8] sm:$0xf] %v717
                %v719 = vld [vmem:[%s207 + $0x7f8] sm:$0xf]
                %720 = vst [vmem:[%s208 + $0x3fc] sm:$0xf] %v719
              $region41: #{discriminator_forward.6} parent=35 // loop_footer
                %s206 = sadd.s32 1, %s202
              $region42: #{discriminator_forward.6} parent=35 // loop_footer_branch
                %201 = sbr.rel target = $region38
              $region43: #{discriminator_forward.6} parent=35 // loop_exit
                _
            $region36: #{discriminator_forward.6} parent=27 // pred_fallthru
              _
          $region28: #{discriminator_forward.6} parent=23 // pred_fallthru
            _
          %1252 = vnop
        $region24: #{discriminator_forward.6} parent=19 // pred_fallthru
          _
        // Predicated region
        $region62: #{discriminator_forward.6} parent=19 // pred_check
          %p1253 = pneg %p96
        $region63: #{discriminator_forward.6} parent=19 // pred_check_branch
          %1255 = sbr.rel (%p1253) target = $region65
        $region64: #{discriminator_forward.6} parent=19 // pred_region
          %p1256 = scmp.lt.s32.totalorder %s17, 1
          %s1257 = scalar_select %p1256, %s17, 1
          %s1258 = scalar_lea.vmem %s2, %s1257
        $region65: #{discriminator_forward.6} parent=19 // pred_fallthru
          _
        // Predicated region
        $region66: #{discriminator_forward.6} parent=19 // pred_check
          %p1259 = pneg %p122
        $region67: #{discriminator_forward.6} parent=19 // pred_check_branch
          %1261 = sbr.rel (%p1259) target = $region69
        $region68: #{discriminator_forward.6} parent=19 // pred_region
          %p1262 = scmp.lt.s32.totalorder %s17, 1
          %s1263 = scalar_select %p1262, %s17, 1
          %s1264 = scalar_lea.vmem %s3, %s1263
        $region69: #{discriminator_forward.6} parent=19 // pred_fallthru
          _
      $region20: #{discriminator_forward.6} parent=5 // pred_fallthru
        _
      %p1265 = scmp.le.s32.totalorder 1, %s10
      %p1266 = scmp.lt.s32.totalorder %s10, 3
      %p1267 = pnand %p1265, %p1266
      %p1268 = pneg %p1267
      // Predicated region
      $region70: #{discriminator_forward.6} parent=5 // pred_check
        _
      $region71: #{discriminator_forward.6} parent=5 // pred_check_branch
        %1270 = sbr.rel (%p1267) target = $region73
      $region72: #{discriminator_forward.6} parent=5 // pred_region
        %s1271 = ssub.s32 %s10, 1
        %s1272 = sand.u32 %s63, 1
        %s1273 = sand.u32 %s63, 1
        %s1274 = smul.addr %s1273, 1024
        %s1275 = scalar_lea.vmem [#allocation3], %s1274
        // Predicated region
        $region74: #{discriminator_forward.6} parent=72 // pred_check
          %p1276 = pneg %p76
        $region75: #{discriminator_forward.6} parent=72 // pred_check_branch
          %1278 = sbr.rel (%p1276) target = $region77
        $region76: #{discriminator_forward.6} parent=72 // pred_region
          _
        $region77: #{discriminator_forward.6} parent=72 // pred_fallthru
          _
        %s1279 = smul.u32 16, %s20
        %p1280 = scmp.lt.s32.totalorder %s1279, 15
        %s1281 = scalar_select %p1280, %s1279, 15
        %s1282 = smul.addr %s1281, 4
        %s1283 = scalar_lea.vmem %s0, %s1282
        %p1284 = pneg %p48
        %p1285 = pneg %p45
        %s1286 = sand.u32 %s63, 1
        %s1287 = sand.u32 %s63, 1
        %s1288 = smul.addr %s1287, 1024
        %s1289 = scalar_lea.vmem [#allocation3], %s1288
        %p1290 = pneg %p76
        %p1291 = pneg %p73
        %p1292 = scmp.lt.s32.totalorder %s19, 1
        %s1293 = scalar_select %p1292, %s19, 1
        %s1294 = scalar_lea.vmem %s2, %s1293
        %p1295 = pneg %p102
        %p1296 = pneg %p99
        %p1297 = scmp.lt.s32.totalorder %s19, 1
        %s1298 = scalar_select %p1297, %s19, 1
        %s1299 = scalar_lea.vmem %s3, %s1298
        %p1300 = pneg %p128
        %p1301 = pneg %p125
        %p1302 = pneg %p154
        %p1303 = pneg %p151
        %s1304 = sand.u32 %s141, 1
        %s1305 = sand.u32 %s141, 1
        %s1306 = smul.addr %s1305, 16
        %s1307 = scalar_lea.vmem [#allocation4], %s1306
        %s1308 = smul.u32 16, %s20
        %p1309 = scmp.lt.s32.totalorder %s1308, 15
        %s1310 = scalar_select %p1309, %s1308, 15
        %s1311 = smul.addr %s1310, 4
        %s1312 = scalar_lea.vmem %s0, %s1311
        %s1313 = smul.u32 16, %s20
        %s1314 = smul.u32 256, %s20
        %p1315 = scmp.lt.s32.totalorder %s19, 1
        %s1316 = scalar_select %p1315, %s19, 1
        %s1317 = scalar_lea.vmem %s2, %s1316
        %p1318 = scmp.lt.s32.totalorder %s19, 1
        %s1319 = scalar_select %p1318, %s19, 1
        %s1320 = scalar_lea.vmem %s3, %s1319
        %p1322 = scmp.eq.s32.totalorder %s20, 0
        // Predicated region
        $region78: #{discriminator_forward.6} parent=72 // pred_check
          %p1323 = pneg %p1322
        $region79: #{discriminator_forward.6} parent=72 // pred_check_branch
          %1325 = sbr.rel (%p1323) target = $region81
        $region80: #{discriminator_forward.6} parent=72 // pred_region
          %1326 = vst [vmem:[#allocation2] sm:$0xff] 0.0
          %1327 = vst [vmem:[#allocation2 + $0x8] sm:$0xff] 0.0
          %1328 = vst [vmem:[#allocation2 + $0x10] sm:$0xff] 0.0
          %1329 = vst [vmem:[#allocation2 + $0x18] sm:$0xff] 0.0
        $region81: #{discriminator_forward.6} parent=72 // pred_fallthru
          _
        %v1330 = vld [vmem:[#allocation2] sm:$0xff]
        %v1331 = vld [vmem:[#allocation2 + $0x8] sm:$0xff]
        %v1332 = vld [vmem:[#allocation2 + $0x10] sm:$0xff]
        %v1333 = vld [vmem:[#allocation2 + $0x18] sm:$0xff]
        %v1334 = vld [vmem:[%s1312] sm:$0xff]
        %v1335 = vld [vmem:[%s1312 + $0x8] sm:$0xff]
        %v1336 = vld [vmem:[%s1312 + $0x10] sm:$0xff]
        %v1337 = vld [vmem:[%s1312 + $0x18] sm:$0xff]
        %v1338 = vld [vmem:[%s1312 + $0x20] sm:$0xff]
        %v1339 = vld [vmem:[%s1312 + $0x28] sm:$0xff]
        %v1340 = vld [vmem:[%s1312 + $0x30] sm:$0xff]
        %v1341 = vld [vmem:[%s1312 + $0x38] sm:$0xff]
        %v1342 = vld [vmem:[%s1312 + $0x40] sm:$0xff]
        %v1343 = vld [vmem:[%s1312 + $0x48] sm:$0xff]
        %v1344 = vld [vmem:[%s1312 + $0x50] sm:$0xff]
        %v1345 = vld [vmem:[%s1312 + $0x58] sm:$0xff]
        %v1346 = vld [vmem:[%s1312 + $0x60] sm:$0xff]
        %v1347 = vld [vmem:[%s1312 + $0x68] sm:$0xff]
        %v1348 = vld [vmem:[%s1312 + $0x70] sm:$0xff]
        %v1349 = vld [vmem:[%s1312 + $0x78] sm:$0xff]
        %v1350 = vld [vmem:[%s1312 + $0x80] sm:$0xff]
        %v1351 = vld [vmem:[%s1312 + $0x88] sm:$0xff]
        %v1352 = vld [vmem:[%s1312 + $0x90] sm:$0xff]
        %v1353 = vld [vmem:[%s1312 + $0x98] sm:$0xff]
        %v1354 = vld [vmem:[%s1312 + $0xa0] sm:$0xff]
        %v1355 = vld [vmem:[%s1312 + $0xa8] sm:$0xff]
        %v1356 = vld [vmem:[%s1312 + $0xb0] sm:$0xff]
        %v1357 = vld [vmem:[%s1312 + $0xb8] sm:$0xff]
        %v1358 = vld [vmem:[%s1312 + $0xc0] sm:$0xff]
        %v1359 = vld [vmem:[%s1312 + $0xc8] sm:$0xff]
        %v1360 = vld [vmem:[%s1312 + $0xd0] sm:$0xff]
        %v1361 = vld [vmem:[%s1312 + $0xd8] sm:$0xff]
        %v1362 = vld [vmem:[%s1312 + $0xe0] sm:$0xff]
        %v1363 = vld [vmem:[%s1312 + $0xe8] sm:$0xff]
        %v1364 = vld [vmem:[%s1312 + $0xf0] sm:$0xff]
        %v1365 = vld [vmem:[%s1312 + $0xf8] sm:$0xff]
        %v1366 = vld [vmem:[%s1275] sm:$0xf]
        %v1367 = vld [vmem:[%s1275 + $0x4] sm:$0xf]
        %v1368 = vld [vmem:[%s1275 + $0x8] sm:$0xf]
        %v1369 = vld [vmem:[%s1275 + $0xc] sm:$0xf]
        %v1370 = vld [vmem:[%s1275 + $0x10] sm:$0xf]
        %v1371 = vld [vmem:[%s1275 + $0x14] sm:$0xf]
        %v1372 = vld [vmem:[%s1275 + $0x18] sm:$0xf]
        %v1373 = vld [vmem:[%s1275 + $0x1c] sm:$0xf]
        %v1374 = vld [vmem:[%s1275 + $0x20] sm:$0xf]
        %v1375 = vld [vmem:[%s1275 + $0x24] sm:$0xf]
        %v1376 = vld [vmem:[%s1275 + $0x28] sm:$0xf]
        %v1377 = vld [vmem:[%s1275 + $0x2c] sm:$0xf]
        %v1378 = vld [vmem:[%s1275 + $0x30] sm:$0xf]
        %v1379 = vld [vmem:[%s1275 + $0x34] sm:$0xf]
        %v1380 = vld [vmem:[%s1275 + $0x38] sm:$0xf]
        %v1381 = vld [vmem:[%s1275 + $0x3c] sm:$0xf]
        %v1382 = vld [vmem:[%s1275 + $0x40] sm:$0xf]
        %v1383 = vld [vmem:[%s1275 + $0x44] sm:$0xf]
        %v1384 = vld [vmem:[%s1275 + $0x48] sm:$0xf]
        %v1385 = vld [vmem:[%s1275 + $0x4c] sm:$0xf]
        %v1386 = vld [vmem:[%s1275 + $0x50] sm:$0xf]
        %v1387 = vld [vmem:[%s1275 + $0x54] sm:$0xf]
        %v1388 = vld [vmem:[%s1275 + $0x58] sm:$0xf]
        %v1389 = vld [vmem:[%s1275 + $0x5c] sm:$0xf]
        %v1390 = vld [vmem:[%s1275 + $0x60] sm:$0xf]
        %v1391 = vld [vmem:[%s1275 + $0x64] sm:$0xf]
        %v1392 = vld [vmem:[%s1275 + $0x68] sm:$0xf]
        %v1393 = vld [vmem:[%s1275 + $0x6c] sm:$0xf]
        %v1394 = vld [vmem:[%s1275 + $0x70] sm:$0xf]
        %v1395 = vld [vmem:[%s1275 + $0x74] sm:$0xf]
        %v1396 = vld [vmem:[%s1275 + $0x78] sm:$0xf]
        %v1397 = vld [vmem:[%s1275 + $0x7c] sm:$0xf]
        %v1398 = vld [vmem:[%s1275 + $0x80] sm:$0xf]
        %v1399 = vld [vmem:[%s1275 + $0x84] sm:$0xf]
        %v1400 = vld [vmem:[%s1275 + $0x88] sm:$0xf]
        %v1401 = vld [vmem:[%s1275 + $0x8c] sm:$0xf]
        %v1402 = vld [vmem:[%s1275 + $0x90] sm:$0xf]
        %v1403 = vld [vmem:[%s1275 + $0x94] sm:$0xf]
        %v1404 = vld [vmem:[%s1275 + $0x98] sm:$0xf]
        %v1405 = vld [vmem:[%s1275 + $0x9c] sm:$0xf]
        %v1406 = vld [vmem:[%s1275 + $0xa0] sm:$0xf]
        %v1407 = vld [vmem:[%s1275 + $0xa4] sm:$0xf]
        %v1408 = vld [vmem:[%s1275 + $0xa8] sm:$0xf]
        %v1409 = vld [vmem:[%s1275 + $0xac] sm:$0xf]
        %v1410 = vld [vmem:[%s1275 + $0xb0] sm:$0xf]
        %v1411 = vld [vmem:[%s1275 + $0xb4] sm:$0xf]
        %v1412 = vld [vmem:[%s1275 + $0xb8] sm:$0xf]
        %v1413 = vld [vmem:[%s1275 + $0xbc] sm:$0xf]
        %v1414 = vld [vmem:[%s1275 + $0xc0] sm:$0xf]
        %v1415 = vld [vmem:[%s1275 + $0xc4] sm:$0xf]
        %v1416 = vld [vmem:[%s1275 + $0xc8] sm:$0xf]
        %v1417 = vld [vmem:[%s1275 + $0xcc] sm:$0xf]
        %v1418 = vld [vmem:[%s1275 + $0xd0] sm:$0xf]
        %v1419 = vld [vmem:[%s1275 + $0xd4] sm:$0xf]
        %v1420 = vld [vmem:[%s1275 + $0xd8] sm:$0xf]
        %v1421 = vld [vmem:[%s1275 + $0xdc] sm:$0xf]
        %v1422 = vld [vmem:[%s1275 + $0xe0] sm:$0xf]
        %v1423 = vld [vmem:[%s1275 + $0xe4] sm:$0xf]
        %v1424 = vld [vmem:[%s1275 + $0xe8] sm:$0xf]
        %v1425 = vld [vmem:[%s1275 + $0xec] sm:$0xf]
        %v1426 = vld [vmem:[%s1275 + $0xf0] sm:$0xf]
        %v1427 = vld [vmem:[%s1275 + $0xf4] sm:$0xf]
        %v1428 = vld [vmem:[%s1275 + $0xf8] sm:$0xf]
        %v1429 = vld [vmem:[%s1275 + $0xfc] sm:$0xf]
        %v1430 = vld [vmem:[%s1275 + $0x100] sm:$0xf]
        %v1431 = vld [vmem:[%s1275 + $0x104] sm:$0xf]
        %v1432 = vld [vmem:[%s1275 + $0x108] sm:$0xf]
        %v1433 = vld [vmem:[%s1275 + $0x10c] sm:$0xf]
        %v1434 = vld [vmem:[%s1275 + $0x110] sm:$0xf]
        %v1435 = vld [vmem:[%s1275 + $0x114] sm:$0xf]
        %v1436 = vld [vmem:[%s1275 + $0x118] sm:$0xf]
        %v1437 = vld [vmem:[%s1275 + $0x11c] sm:$0xf]
        %v1438 = vld [vmem:[%s1275 + $0x120] sm:$0xf]
        %v1439 = vld [vmem:[%s1275 + $0x124] sm:$0xf]
        %v1440 = vld [vmem:[%s1275 + $0x128] sm:$0xf]
        %v1441 = vld [vmem:[%s1275 + $0x12c] sm:$0xf]
        %v1442 = vld [vmem:[%s1275 + $0x130] sm:$0xf]
        %v1443 = vld [vmem:[%s1275 + $0x134] sm:$0xf]
        %v1444 = vld [vmem:[%s1275 + $0x138] sm:$0xf]
        %v1445 = vld [vmem:[%s1275 + $0x13c] sm:$0xf]
        %v1446 = vld [vmem:[%s1275 + $0x140] sm:$0xf]
        %v1447 = vld [vmem:[%s1275 + $0x144] sm:$0xf]
        %v1448 = vld [vmem:[%s1275 + $0x148] sm:$0xf]
        %v1449 = vld [vmem:[%s1275 + $0x14c] sm:$0xf]
        %v1450 = vld [vmem:[%s1275 + $0x150] sm:$0xf]
        %v1451 = vld [vmem:[%s1275 + $0x154] sm:$0xf]
        %v1452 = vld [vmem:[%s1275 + $0x158] sm:$0xf]
        %v1453 = vld [vmem:[%s1275 + $0x15c] sm:$0xf]
        %v1454 = vld [vmem:[%s1275 + $0x160] sm:$0xf]
        %v1455 = vld [vmem:[%s1275 + $0x164] sm:$0xf]
        %v1456 = vld [vmem:[%s1275 + $0x168] sm:$0xf]
        %v1457 = vld [vmem:[%s1275 + $0x16c] sm:$0xf]
        %v1458 = vld [vmem:[%s1275 + $0x170] sm:$0xf]
        %v1459 = vld [vmem:[%s1275 + $0x174] sm:$0xf]
        %v1460 = vld [vmem:[%s1275 + $0x178] sm:$0xf]
        %v1461 = vld [vmem:[%s1275 + $0x17c] sm:$0xf]
        %v1462 = vld [vmem:[%s1275 + $0x180] sm:$0xf]
        %v1463 = vld [vmem:[%s1275 + $0x184] sm:$0xf]
        %v1464 = vld [vmem:[%s1275 + $0x188] sm:$0xf]
        %v1465 = vld [vmem:[%s1275 + $0x18c] sm:$0xf]
        %v1466 = vld [vmem:[%s1275 + $0x190] sm:$0xf]
        %v1467 = vld [vmem:[%s1275 + $0x194] sm:$0xf]
        %v1468 = vld [vmem:[%s1275 + $0x198] sm:$0xf]
        %v1469 = vld [vmem:[%s1275 + $0x19c] sm:$0xf]
        %v1470 = vld [vmem:[%s1275 + $0x1a0] sm:$0xf]
        %v1471 = vld [vmem:[%s1275 + $0x1a4] sm:$0xf]
        %v1472 = vld [vmem:[%s1275 + $0x1a8] sm:$0xf]
        %v1473 = vld [vmem:[%s1275 + $0x1ac] sm:$0xf]
        %v1474 = vld [vmem:[%s1275 + $0x1b0] sm:$0xf]
        %v1475 = vld [vmem:[%s1275 + $0x1b4] sm:$0xf]
        %v1476 = vld [vmem:[%s1275 + $0x1b8] sm:$0xf]
        %v1477 = vld [vmem:[%s1275 + $0x1bc] sm:$0xf]
        %v1478 = vld [vmem:[%s1275 + $0x1c0] sm:$0xf]
        %v1479 = vld [vmem:[%s1275 + $0x1c4] sm:$0xf]
        %v1480 = vld [vmem:[%s1275 + $0x1c8] sm:$0xf]
        %v1481 = vld [vmem:[%s1275 + $0x1cc] sm:$0xf]
        %v1482 = vld [vmem:[%s1275 + $0x1d0] sm:$0xf]
        %v1483 = vld [vmem:[%s1275 + $0x1d4] sm:$0xf]
        %v1484 = vld [vmem:[%s1275 + $0x1d8] sm:$0xf]
        %v1485 = vld [vmem:[%s1275 + $0x1dc] sm:$0xf]
        %v1486 = vld [vmem:[%s1275 + $0x1e0] sm:$0xf]
        %v1487 = vld [vmem:[%s1275 + $0x1e4] sm:$0xf]
        %v1488 = vld [vmem:[%s1275 + $0x1e8] sm:$0xf]
        %v1489 = vld [vmem:[%s1275 + $0x1ec] sm:$0xf]
        %v1490 = vld [vmem:[%s1275 + $0x1f0] sm:$0xf]
        %v1491 = vld [vmem:[%s1275 + $0x1f4] sm:$0xf]
        %v1492 = vld [vmem:[%s1275 + $0x1f8] sm:$0xf]
        %v1493 = vld [vmem:[%s1275 + $0x1fc] sm:$0xf]
        %v1494 = vld [vmem:[%s1275 + $0x200] sm:$0xf]
        %v1495 = vld [vmem:[%s1275 + $0x204] sm:$0xf]
        %v1496 = vld [vmem:[%s1275 + $0x208] sm:$0xf]
        %v1497 = vld [vmem:[%s1275 + $0x20c] sm:$0xf]
        %v1498 = vld [vmem:[%s1275 + $0x210] sm:$0xf]
        %v1499 = vld [vmem:[%s1275 + $0x214] sm:$0xf]
        %v1500 = vld [vmem:[%s1275 + $0x218] sm:$0xf]
        %v1501 = vld [vmem:[%s1275 + $0x21c] sm:$0xf]
        %v1502 = vld [vmem:[%s1275 + $0x220] sm:$0xf]
        %v1503 = vld [vmem:[%s1275 + $0x224] sm:$0xf]
        %v1504 = vld [vmem:[%s1275 + $0x228] sm:$0xf]
        %v1505 = vld [vmem:[%s1275 + $0x22c] sm:$0xf]
        %v1506 = vld [vmem:[%s1275 + $0x230] sm:$0xf]
        %v1507 = vld [vmem:[%s1275 + $0x234] sm:$0xf]
        %v1508 = vld [vmem:[%s1275 + $0x238] sm:$0xf]
        %v1509 = vld [vmem:[%s1275 + $0x23c] sm:$0xf]
        %v1510 = vld [vmem:[%s1275 + $0x240] sm:$0xf]
        %v1511 = vld [vmem:[%s1275 + $0x244] sm:$0xf]
        %v1512 = vld [vmem:[%s1275 + $0x248] sm:$0xf]
        %v1513 = vld [vmem:[%s1275 + $0x24c] sm:$0xf]
        %v1514 = vld [vmem:[%s1275 + $0x250] sm:$0xf]
        %v1515 = vld [vmem:[%s1275 + $0x254] sm:$0xf]
        %v1516 = vld [vmem:[%s1275 + $0x258] sm:$0xf]
        %v1517 = vld [vmem:[%s1275 + $0x25c] sm:$0xf]
        %v1518 = vld [vmem:[%s1275 + $0x260] sm:$0xf]
        %v1519 = vld [vmem:[%s1275 + $0x264] sm:$0xf]
        %v1520 = vld [vmem:[%s1275 + $0x268] sm:$0xf]
        %v1521 = vld [vmem:[%s1275 + $0x26c] sm:$0xf]
        %v1522 = vld [vmem:[%s1275 + $0x270] sm:$0xf]
        %v1523 = vld [vmem:[%s1275 + $0x274] sm:$0xf]
        %v1524 = vld [vmem:[%s1275 + $0x278] sm:$0xf]
        %v1525 = vld [vmem:[%s1275 + $0x27c] sm:$0xf]
        %v1526 = vld [vmem:[%s1275 + $0x280] sm:$0xf]
        %v1527 = vld [vmem:[%s1275 + $0x284] sm:$0xf]
        %v1528 = vld [vmem:[%s1275 + $0x288] sm:$0xf]
        %v1529 = vld [vmem:[%s1275 + $0x28c] sm:$0xf]
        %v1530 = vld [vmem:[%s1275 + $0x290] sm:$0xf]
        %v1531 = vld [vmem:[%s1275 + $0x294] sm:$0xf]
        %v1532 = vld [vmem:[%s1275 + $0x298] sm:$0xf]
        %v1533 = vld [vmem:[%s1275 + $0x29c] sm:$0xf]
        %v1534 = vld [vmem:[%s1275 + $0x2a0] sm:$0xf]
        %v1535 = vld [vmem:[%s1275 + $0x2a4] sm:$0xf]
        %v1536 = vld [vmem:[%s1275 + $0x2a8] sm:$0xf]
        %v1537 = vld [vmem:[%s1275 + $0x2ac] sm:$0xf]
        %v1538 = vld [vmem:[%s1275 + $0x2b0] sm:$0xf]
        %v1539 = vld [vmem:[%s1275 + $0x2b4] sm:$0xf]
        %v1540 = vld [vmem:[%s1275 + $0x2b8] sm:$0xf]
        %v1541 = vld [vmem:[%s1275 + $0x2bc] sm:$0xf]
        %v1542 = vld [vmem:[%s1275 + $0x2c0] sm:$0xf]
        %v1543 = vld [vmem:[%s1275 + $0x2c4] sm:$0xf]
        %v1544 = vld [vmem:[%s1275 + $0x2c8] sm:$0xf]
        %v1545 = vld [vmem:[%s1275 + $0x2cc] sm:$0xf]
        %v1546 = vld [vmem:[%s1275 + $0x2d0] sm:$0xf]
        %v1547 = vld [vmem:[%s1275 + $0x2d4] sm:$0xf]
        %v1548 = vld [vmem:[%s1275 + $0x2d8] sm:$0xf]
        %v1549 = vld [vmem:[%s1275 + $0x2dc] sm:$0xf]
        %v1550 = vld [vmem:[%s1275 + $0x2e0] sm:$0xf]
        %v1551 = vld [vmem:[%s1275 + $0x2e4] sm:$0xf]
        %v1552 = vld [vmem:[%s1275 + $0x2e8] sm:$0xf]
        %v1553 = vld [vmem:[%s1275 + $0x2ec] sm:$0xf]
        %v1554 = vld [vmem:[%s1275 + $0x2f0] sm:$0xf]
        %v1555 = vld [vmem:[%s1275 + $0x2f4] sm:$0xf]
        %v1556 = vld [vmem:[%s1275 + $0x2f8] sm:$0xf]
        %v1557 = vld [vmem:[%s1275 + $0x2fc] sm:$0xf]
        %v1558 = vld [vmem:[%s1275 + $0x300] sm:$0xf]
        %v1559 = vld [vmem:[%s1275 + $0x304] sm:$0xf]
        %v1560 = vld [vmem:[%s1275 + $0x308] sm:$0xf]
        %v1561 = vld [vmem:[%s1275 + $0x30c] sm:$0xf]
        %v1562 = vld [vmem:[%s1275 + $0x310] sm:$0xf]
        %v1563 = vld [vmem:[%s1275 + $0x314] sm:$0xf]
        %v1564 = vld [vmem:[%s1275 + $0x318] sm:$0xf]
        %v1565 = vld [vmem:[%s1275 + $0x31c] sm:$0xf]
        %v1566 = vld [vmem:[%s1275 + $0x320] sm:$0xf]
        %v1567 = vld [vmem:[%s1275 + $0x324] sm:$0xf]
        %v1568 = vld [vmem:[%s1275 + $0x328] sm:$0xf]
        %v1569 = vld [vmem:[%s1275 + $0x32c] sm:$0xf]
        %v1570 = vld [vmem:[%s1275 + $0x330] sm:$0xf]
        %v1571 = vld [vmem:[%s1275 + $0x334] sm:$0xf]
        %v1572 = vld [vmem:[%s1275 + $0x338] sm:$0xf]
        %v1573 = vld [vmem:[%s1275 + $0x33c] sm:$0xf]
        %v1574 = vld [vmem:[%s1275 + $0x340] sm:$0xf]
        %v1575 = vld [vmem:[%s1275 + $0x344] sm:$0xf]
        %v1576 = vld [vmem:[%s1275 + $0x348] sm:$0xf]
        %v1577 = vld [vmem:[%s1275 + $0x34c] sm:$0xf]
        %v1578 = vld [vmem:[%s1275 + $0x350] sm:$0xf]
        %v1579 = vld [vmem:[%s1275 + $0x354] sm:$0xf]
        %v1580 = vld [vmem:[%s1275 + $0x358] sm:$0xf]
        %v1581 = vld [vmem:[%s1275 + $0x35c] sm:$0xf]
        %v1582 = vld [vmem:[%s1275 + $0x360] sm:$0xf]
        %v1583 = vld [vmem:[%s1275 + $0x364] sm:$0xf]
        %v1584 = vld [vmem:[%s1275 + $0x368] sm:$0xf]
        %v1585 = vld [vmem:[%s1275 + $0x36c] sm:$0xf]
        %v1586 = vld [vmem:[%s1275 + $0x370] sm:$0xf]
        %v1587 = vld [vmem:[%s1275 + $0x374] sm:$0xf]
        %v1588 = vld [vmem:[%s1275 + $0x378] sm:$0xf]
        %v1589 = vld [vmem:[%s1275 + $0x37c] sm:$0xf]
        %v1590 = vld [vmem:[%s1275 + $0x380] sm:$0xf]
        %v1591 = vld [vmem:[%s1275 + $0x384] sm:$0xf]
        %v1592 = vld [vmem:[%s1275 + $0x388] sm:$0xf]
        %v1593 = vld [vmem:[%s1275 + $0x38c] sm:$0xf]
        %v1594 = vld [vmem:[%s1275 + $0x390] sm:$0xf]
        %v1595 = vld [vmem:[%s1275 + $0x394] sm:$0xf]
        %v1596 = vld [vmem:[%s1275 + $0x398] sm:$0xf]
        %v1597 = vld [vmem:[%s1275 + $0x39c] sm:$0xf]
        %v1598 = vld [vmem:[%s1275 + $0x3a0] sm:$0xf]
        %v1599 = vld [vmem:[%s1275 + $0x3a4] sm:$0xf]
        %v1600 = vld [vmem:[%s1275 + $0x3a8] sm:$0xf]
        %v1601 = vld [vmem:[%s1275 + $0x3ac] sm:$0xf]
        %v1602 = vld [vmem:[%s1275 + $0x3b0] sm:$0xf]
        %v1603 = vld [vmem:[%s1275 + $0x3b4] sm:$0xf]
        %v1604 = vld [vmem:[%s1275 + $0x3b8] sm:$0xf]
        %v1605 = vld [vmem:[%s1275 + $0x3bc] sm:$0xf]
        %v1606 = vld [vmem:[%s1275 + $0x3c0] sm:$0xf]
        %v1607 = vld [vmem:[%s1275 + $0x3c4] sm:$0xf]
        %v1608 = vld [vmem:[%s1275 + $0x3c8] sm:$0xf]
        %v1609 = vld [vmem:[%s1275 + $0x3cc] sm:$0xf]
        %v1610 = vld [vmem:[%s1275 + $0x3d0] sm:$0xf]
        %v1611 = vld [vmem:[%s1275 + $0x3d4] sm:$0xf]
        %v1612 = vld [vmem:[%s1275 + $0x3d8] sm:$0xf]
        %v1613 = vld [vmem:[%s1275 + $0x3dc] sm:$0xf]
        %v1614 = vld [vmem:[%s1275 + $0x3e0] sm:$0xf]
        %v1615 = vld [vmem:[%s1275 + $0x3e4] sm:$0xf]
        %v1616 = vld [vmem:[%s1275 + $0x3e8] sm:$0xf]
        %v1617 = vld [vmem:[%s1275 + $0x3ec] sm:$0xf]
        %v1618 = vld [vmem:[%s1275 + $0x3f0] sm:$0xf]
        %v1619 = vld [vmem:[%s1275 + $0x3f4] sm:$0xf]
        %v1620 = vld [vmem:[%s1275 + $0x3f8] sm:$0xf]
        %v1621 = vld [vmem:[%s1275 + $0x3fc] sm:$0xf]
        %v1654 = vunpack.c.l.b16 %v1334
        %v1655 = vunpack.c.h.b16 %v1334
        %v1656 = vunpack.c.l.b16 %v1335
        %v1657 = vunpack.c.h.b16 %v1335
        %v1658 = vunpack.c.l.b16 %v1336
        %v1659 = vunpack.c.h.b16 %v1336
        %v1660 = vunpack.c.l.b16 %v1337
        %v1661 = vunpack.c.h.b16 %v1337
        %v1662 = vunpack.c.l.b16 %v1338
        %v1663 = vunpack.c.h.b16 %v1338
        %v1664 = vunpack.c.l.b16 %v1339
        %v1665 = vunpack.c.h.b16 %v1339
        %v1666 = vunpack.c.l.b16 %v1340
        %v1667 = vunpack.c.h.b16 %v1340
        %v1668 = vunpack.c.l.b16 %v1341
        %v1669 = vunpack.c.h.b16 %v1341
        %v1670 = vunpack.c.l.b16 %v1342
        %v1671 = vunpack.c.h.b16 %v1342
        %v1672 = vunpack.c.l.b16 %v1343
        %v1673 = vunpack.c.h.b16 %v1343
        %v1674 = vunpack.c.l.b16 %v1344
        %v1675 = vunpack.c.h.b16 %v1344
        %v1676 = vunpack.c.l.b16 %v1345
        %v1677 = vunpack.c.h.b16 %v1345
        %v1678 = vunpack.c.l.b16 %v1346
        %v1679 = vunpack.c.h.b16 %v1346
        %v1680 = vunpack.c.l.b16 %v1347
        %v1681 = vunpack.c.h.b16 %v1347
        %v1682 = vunpack.c.l.b16 %v1348
        %v1683 = vunpack.c.h.b16 %v1348
        %v1684 = vunpack.c.l.b16 %v1349
        %v1685 = vunpack.c.h.b16 %v1349
        %v1686 = vunpack.c.l.b16 %v1350
        %v1687 = vunpack.c.h.b16 %v1350
        %v1688 = vunpack.c.l.b16 %v1351
        %v1689 = vunpack.c.h.b16 %v1351
        %v1690 = vunpack.c.l.b16 %v1352
        %v1691 = vunpack.c.h.b16 %v1352
        %v1692 = vunpack.c.l.b16 %v1353
        %v1693 = vunpack.c.h.b16 %v1353
        %v1694 = vunpack.c.l.b16 %v1354
        %v1695 = vunpack.c.h.b16 %v1354
        %v1696 = vunpack.c.l.b16 %v1355
        %v1697 = vunpack.c.h.b16 %v1355
        %v1698 = vunpack.c.l.b16 %v1356
        %v1699 = vunpack.c.h.b16 %v1356
        %v1700 = vunpack.c.l.b16 %v1357
        %v1701 = vunpack.c.h.b16 %v1357
        %v1702 = vunpack.c.l.b16 %v1358
        %v1703 = vunpack.c.h.b16 %v1358
        %v1704 = vunpack.c.l.b16 %v1359
        %v1705 = vunpack.c.h.b16 %v1359
        %v1706 = vunpack.c.l.b16 %v1360
        %v1707 = vunpack.c.h.b16 %v1360
        %v1708 = vunpack.c.l.b16 %v1361
        %v1709 = vunpack.c.h.b16 %v1361
        %v1710 = vunpack.c.l.b16 %v1362
        %v1711 = vunpack.c.h.b16 %v1362
        %v1712 = vunpack.c.l.b16 %v1363
        %v1713 = vunpack.c.h.b16 %v1363
        %v1714 = vunpack.c.l.b16 %v1364
        %v1715 = vunpack.c.h.b16 %v1364
        %v1716 = vunpack.c.l.b16 %v1365
        %v1717 = vunpack.c.h.b16 %v1365
        %v1718 = vpack.c.b16 %v1670, %v1654
        %v1719 = vpack.c.b16 %v1671, %v1655
        %v1720 = vpack.c.b16 %v1672, %v1656
        %v1721 = vpack.c.b16 %v1673, %v1657
        %v1722 = vpack.c.b16 %v1674, %v1658
        %v1723 = vpack.c.b16 %v1675, %v1659
        %v1724 = vpack.c.b16 %v1676, %v1660
        %v1725 = vpack.c.b16 %v1677, %v1661
        %v1726 = vpack.c.b16 %v1678, %v1662
        %v1727 = vpack.c.b16 %v1679, %v1663
        %v1728 = vpack.c.b16 %v1680, %v1664
        %v1729 = vpack.c.b16 %v1681, %v1665
        %v1730 = vpack.c.b16 %v1682, %v1666
        %v1731 = vpack.c.b16 %v1683, %v1667
        %v1732 = vpack.c.b16 %v1684, %v1668
        %v1733 = vpack.c.b16 %v1685, %v1669
        %v1734 = vpack.c.b16 %v1702, %v1686
        %v1735 = vpack.c.b16 %v1703, %v1687
        %v1736 = vpack.c.b16 %v1704, %v1688
        %v1737 = vpack.c.b16 %v1705, %v1689
        %v1738 = vpack.c.b16 %v1706, %v1690
        %v1739 = vpack.c.b16 %v1707, %v1691
        %v1740 = vpack.c.b16 %v1708, %v1692
        %v1741 = vpack.c.b16 %v1709, %v1693
        %v1742 = vpack.c.b16 %v1710, %v1694
        %v1743 = vpack.c.b16 %v1711, %v1695
        %v1744 = vpack.c.b16 %v1712, %v1696
        %v1745 = vpack.c.b16 %v1713, %v1697
        %v1746 = vpack.c.b16 %v1714, %v1698
        %v1747 = vpack.c.b16 %v1715, %v1699
        %v1748 = vpack.c.b16 %v1716, %v1700
        %v1749 = vpack.c.b16 %v1717, %v1701
        %v2038 = vunpack.c.l.b16 %v1366
        %v2039 = vunpack.c.l.b16 %v1367
        %v2040 = vunpack.c.l.b16 %v1368
        %v2041 = vunpack.c.l.b16 %v1369
        %v2042 = vunpack.c.l.b16 %v1370
        %v2043 = vunpack.c.l.b16 %v1371
        %v2044 = vunpack.c.l.b16 %v1372
        %v2045 = vunpack.c.l.b16 %v1373
        %v2046 = vunpack.c.l.b16 %v1374
        %v2047 = vunpack.c.l.b16 %v1375
        %v2048 = vunpack.c.l.b16 %v1376
        %v2049 = vunpack.c.l.b16 %v1377
        %v2050 = vunpack.c.l.b16 %v1378
        %v2051 = vunpack.c.l.b16 %v1379
        %v2052 = vunpack.c.l.b16 %v1380
        %v2053 = vunpack.c.l.b16 %v1381
        %v2054 = vunpack.c.l.b16 %v1382
        %v2055 = vunpack.c.l.b16 %v1383
        %v2056 = vunpack.c.l.b16 %v1384
        %v2057 = vunpack.c.l.b16 %v1385
        %v2058 = vunpack.c.l.b16 %v1386
        %v2059 = vunpack.c.l.b16 %v1387
        %v2060 = vunpack.c.l.b16 %v1388
        %v2061 = vunpack.c.l.b16 %v1389
        %v2062 = vunpack.c.l.b16 %v1390
        %v2063 = vunpack.c.l.b16 %v1391
        %v2064 = vunpack.c.l.b16 %v1392
        %v2065 = vunpack.c.l.b16 %v1393
        %v2066 = vunpack.c.l.b16 %v1394
        %v2067 = vunpack.c.l.b16 %v1395
        %v2068 = vunpack.c.l.b16 %v1396
        %v2069 = vunpack.c.l.b16 %v1397
        %v2070 = vunpack.c.l.b16 %v1398
        %v2071 = vunpack.c.l.b16 %v1399
        %v2072 = vunpack.c.l.b16 %v1400
        %v2073 = vunpack.c.l.b16 %v1401
        %v2074 = vunpack.c.l.b16 %v1402
        %v2075 = vunpack.c.l.b16 %v1403
        %v2076 = vunpack.c.l.b16 %v1404
        %v2077 = vunpack.c.l.b16 %v1405
        %v2078 = vunpack.c.l.b16 %v1406
        %v2079 = vunpack.c.l.b16 %v1407
        %v2080 = vunpack.c.l.b16 %v1408
        %v2081 = vunpack.c.l.b16 %v1409
        %v2082 = vunpack.c.l.b16 %v1410
        %v2083 = vunpack.c.l.b16 %v1411
        %v2084 = vunpack.c.l.b16 %v1412
        %v2085 = vunpack.c.l.b16 %v1413
        %v2086 = vunpack.c.l.b16 %v1414
        %v2087 = vunpack.c.l.b16 %v1415
        %v2088 = vunpack.c.l.b16 %v1416
        %v2089 = vunpack.c.l.b16 %v1417
        %v2090 = vunpack.c.l.b16 %v1418
        %v2091 = vunpack.c.l.b16 %v1419
        %v2092 = vunpack.c.l.b16 %v1420
        %v2093 = vunpack.c.l.b16 %v1421
        %v2094 = vunpack.c.l.b16 %v1422
        %v2095 = vunpack.c.l.b16 %v1423
        %v2096 = vunpack.c.l.b16 %v1424
        %v2097 = vunpack.c.l.b16 %v1425
        %v2098 = vunpack.c.l.b16 %v1426
        %v2099 = vunpack.c.l.b16 %v1427
        %v2100 = vunpack.c.l.b16 %v1428
        %v2101 = vunpack.c.l.b16 %v1429
        %v2102 = vunpack.c.l.b16 %v1430
        %v2103 = vunpack.c.l.b16 %v1431
        %v2104 = vunpack.c.l.b16 %v1432
        %v2105 = vunpack.c.l.b16 %v1433
        %v2106 = vunpack.c.l.b16 %v1434
        %v2107 = vunpack.c.l.b16 %v1435
        %v2108 = vunpack.c.l.b16 %v1436
        %v2109 = vunpack.c.l.b16 %v1437
        %v2110 = vunpack.c.l.b16 %v1438
        %v2111 = vunpack.c.l.b16 %v1439
        %v2112 = vunpack.c.l.b16 %v1440
        %v2113 = vunpack.c.l.b16 %v1441
        %v2114 = vunpack.c.l.b16 %v1442
        %v2115 = vunpack.c.l.b16 %v1443
        %v2116 = vunpack.c.l.b16 %v1444
        %v2117 = vunpack.c.l.b16 %v1445
        %v2118 = vunpack.c.l.b16 %v1446
        %v2119 = vunpack.c.l.b16 %v1447
        %v2120 = vunpack.c.l.b16 %v1448
        %v2121 = vunpack.c.l.b16 %v1449
        %v2122 = vunpack.c.l.b16 %v1450
        %v2123 = vunpack.c.l.b16 %v1451
        %v2124 = vunpack.c.l.b16 %v1452
        %v2125 = vunpack.c.l.b16 %v1453
        %v2126 = vunpack.c.l.b16 %v1454
        %v2127 = vunpack.c.l.b16 %v1455
        %v2128 = vunpack.c.l.b16 %v1456
        %v2129 = vunpack.c.l.b16 %v1457
        %v2130 = vunpack.c.l.b16 %v1458
        %v2131 = vunpack.c.l.b16 %v1459
        %v2132 = vunpack.c.l.b16 %v1460
        %v2133 = vunpack.c.l.b16 %v1461
        %v2134 = vunpack.c.l.b16 %v1462
        %v2135 = vunpack.c.l.b16 %v1463
        %v2136 = vunpack.c.l.b16 %v1464
        %v2137 = vunpack.c.l.b16 %v1465
        %v2138 = vunpack.c.l.b16 %v1466
        %v2139 = vunpack.c.l.b16 %v1467
        %v2140 = vunpack.c.l.b16 %v1468
        %v2141 = vunpack.c.l.b16 %v1469
        %v2142 = vunpack.c.l.b16 %v1470
        %v2143 = vunpack.c.l.b16 %v1471
        %v2144 = vunpack.c.l.b16 %v1472
        %v2145 = vunpack.c.l.b16 %v1473
        %v2146 = vunpack.c.l.b16 %v1474
        %v2147 = vunpack.c.l.b16 %v1475
        %v2148 = vunpack.c.l.b16 %v1476
        %v2149 = vunpack.c.l.b16 %v1477
        %v2150 = vunpack.c.l.b16 %v1478
        %v2151 = vunpack.c.l.b16 %v1479
        %v2152 = vunpack.c.l.b16 %v1480
        %v2153 = vunpack.c.l.b16 %v1481
        %v2154 = vunpack.c.l.b16 %v1482
        %v2155 = vunpack.c.l.b16 %v1483
        %v2156 = vunpack.c.l.b16 %v1484
        %v2157 = vunpack.c.l.b16 %v1485
        %v2158 = vunpack.c.l.b16 %v1486
        %v2159 = vunpack.c.l.b16 %v1487
        %v2160 = vunpack.c.l.b16 %v1488
        %v2161 = vunpack.c.l.b16 %v1489
        %v2162 = vunpack.c.l.b16 %v1490
        %v2163 = vunpack.c.l.b16 %v1491
        %v2164 = vunpack.c.l.b16 %v1492
        %v2165 = vunpack.c.l.b16 %v1493
        %v2166 = vunpack.c.l.b16 %v1494
        %v2167 = vunpack.c.l.b16 %v1495
        %v2168 = vunpack.c.l.b16 %v1496
        %v2169 = vunpack.c.l.b16 %v1497
        %v2170 = vunpack.c.l.b16 %v1498
        %v2171 = vunpack.c.l.b16 %v1499
        %v2172 = vunpack.c.l.b16 %v1500
        %v2173 = vunpack.c.l.b16 %v1501
        %v2174 = vunpack.c.l.b16 %v1502
        %v2175 = vunpack.c.l.b16 %v1503
        %v2176 = vunpack.c.l.b16 %v1504
        %v2177 = vunpack.c.l.b16 %v1505
        %v2178 = vunpack.c.l.b16 %v1506
        %v2179 = vunpack.c.l.b16 %v1507
        %v2180 = vunpack.c.l.b16 %v1508
        %v2181 = vunpack.c.l.b16 %v1509
        %v2182 = vunpack.c.l.b16 %v1510
        %v2183 = vunpack.c.l.b16 %v1511
        %v2184 = vunpack.c.l.b16 %v1512
        %v2185 = vunpack.c.l.b16 %v1513
        %v2186 = vunpack.c.l.b16 %v1514
        %v2187 = vunpack.c.l.b16 %v1515
        %v2188 = vunpack.c.l.b16 %v1516
        %v2189 = vunpack.c.l.b16 %v1517
        %v2190 = vunpack.c.l.b16 %v1518
        %v2191 = vunpack.c.l.b16 %v1519
        %v2192 = vunpack.c.l.b16 %v1520
        %v2193 = vunpack.c.l.b16 %v1521
        %v2194 = vunpack.c.l.b16 %v1522
        %v2195 = vunpack.c.l.b16 %v1523
        %v2196 = vunpack.c.l.b16 %v1524
        %v2197 = vunpack.c.l.b16 %v1525
        %v2198 = vunpack.c.l.b16 %v1526
        %v2199 = vunpack.c.l.b16 %v1527
        %v2200 = vunpack.c.l.b16 %v1528
        %v2201 = vunpack.c.l.b16 %v1529
        %v2202 = vunpack.c.l.b16 %v1530
        %v2203 = vunpack.c.l.b16 %v1531
        %v2204 = vunpack.c.l.b16 %v1532
        %v2205 = vunpack.c.l.b16 %v1533
        %v2206 = vunpack.c.l.b16 %v1534
        %v2207 = vunpack.c.l.b16 %v1535
        %v2208 = vunpack.c.l.b16 %v1536
        %v2209 = vunpack.c.l.b16 %v1537
        %v2210 = vunpack.c.l.b16 %v1538
        %v2211 = vunpack.c.l.b16 %v1539
        %v2212 = vunpack.c.l.b16 %v1540
        %v2213 = vunpack.c.l.b16 %v1541
        %v2214 = vunpack.c.l.b16 %v1542
        %v2215 = vunpack.c.l.b16 %v1543
        %v2216 = vunpack.c.l.b16 %v1544
        %v2217 = vunpack.c.l.b16 %v1545
        %v2218 = vunpack.c.l.b16 %v1546
        %v2219 = vunpack.c.l.b16 %v1547
        %v2220 = vunpack.c.l.b16 %v1548
        %v2221 = vunpack.c.l.b16 %v1549
        %v2222 = vunpack.c.l.b16 %v1550
        %v2223 = vunpack.c.l.b16 %v1551
        %v2224 = vunpack.c.l.b16 %v1552
        %v2225 = vunpack.c.l.b16 %v1553
        %v2226 = vunpack.c.l.b16 %v1554
        %v2227 = vunpack.c.l.b16 %v1555
        %v2228 = vunpack.c.l.b16 %v1556
        %v2229 = vunpack.c.l.b16 %v1557
        %v2230 = vunpack.c.l.b16 %v1558
        %v2231 = vunpack.c.l.b16 %v1559
        %v2232 = vunpack.c.l.b16 %v1560
        %v2233 = vunpack.c.l.b16 %v1561
        %v2234 = vunpack.c.l.b16 %v1562
        %v2235 = vunpack.c.l.b16 %v1563
        %v2236 = vunpack.c.l.b16 %v1564
        %v2237 = vunpack.c.l.b16 %v1565
        %v2238 = vunpack.c.l.b16 %v1566
        %v2239 = vunpack.c.l.b16 %v1567
        %v2240 = vunpack.c.l.b16 %v1568
        %v2241 = vunpack.c.l.b16 %v1569
        %v2242 = vunpack.c.l.b16 %v1570
        %v2243 = vunpack.c.l.b16 %v1571
        %v2244 = vunpack.c.l.b16 %v1572
        %v2245 = vunpack.c.l.b16 %v1573
        %v2246 = vunpack.c.l.b16 %v1574
        %v2247 = vunpack.c.l.b16 %v1575
        %v2248 = vunpack.c.l.b16 %v1576
        %v2249 = vunpack.c.l.b16 %v1577
        %v2250 = vunpack.c.l.b16 %v1578
        %v2251 = vunpack.c.l.b16 %v1579
        %v2252 = vunpack.c.l.b16 %v1580
        %v2253 = vunpack.c.l.b16 %v1581
        %v2254 = vunpack.c.l.b16 %v1582
        %v2255 = vunpack.c.l.b16 %v1583
        %v2256 = vunpack.c.l.b16 %v1584
        %v2257 = vunpack.c.l.b16 %v1585
        %v2258 = vunpack.c.l.b16 %v1586
        %v2259 = vunpack.c.l.b16 %v1587
        %v2260 = vunpack.c.l.b16 %v1588
        %v2261 = vunpack.c.l.b16 %v1589
        %v2262 = vunpack.c.l.b16 %v1590
        %v2263 = vunpack.c.l.b16 %v1591
        %v2264 = vunpack.c.l.b16 %v1592
        %v2265 = vunpack.c.l.b16 %v1593
        %v2266 = vunpack.c.l.b16 %v1594
        %v2267 = vunpack.c.l.b16 %v1595
        %v2268 = vunpack.c.l.b16 %v1596
        %v2269 = vunpack.c.l.b16 %v1597
        %v2270 = vunpack.c.l.b16 %v1598
        %v2271 = vunpack.c.l.b16 %v1599
        %v2272 = vunpack.c.l.b16 %v1600
        %v2273 = vunpack.c.l.b16 %v1601
        %v2274 = vunpack.c.l.b16 %v1602
        %v2275 = vunpack.c.l.b16 %v1603
        %v2276 = vunpack.c.l.b16 %v1604
        %v2277 = vunpack.c.l.b16 %v1605
        %v2278 = vunpack.c.l.b16 %v1606
        %v2279 = vunpack.c.l.b16 %v1607
        %v2280 = vunpack.c.l.b16 %v1608
        %v2281 = vunpack.c.l.b16 %v1609
        %v2282 = vunpack.c.l.b16 %v1610
        %v2283 = vunpack.c.l.b16 %v1611
        %v2284 = vunpack.c.l.b16 %v1612
        %v2285 = vunpack.c.l.b16 %v1613
        %v2286 = vunpack.c.l.b16 %v1614
        %v2287 = vunpack.c.l.b16 %v1615
        %v2288 = vunpack.c.l.b16 %v1616
        %v2289 = vunpack.c.l.b16 %v1617
        %v2290 = vunpack.c.l.b16 %v1618
        %v2291 = vunpack.c.l.b16 %v1619
        %v2292 = vunpack.c.l.b16 %v1620
        %v2293 = vunpack.c.l.b16 %v1621
        %v2294 = vpack.c.b16 %v2039, %v2038
        %v2295 = vpack.c.b16 %v2041, %v2040
        %v2296 = vpack.c.b16 %v2043, %v2042
        %v2297 = vpack.c.b16 %v2045, %v2044
        %v2298 = vpack.c.b16 %v2047, %v2046
        %v2299 = vpack.c.b16 %v2049, %v2048
        %v2300 = vpack.c.b16 %v2051, %v2050
        %v2301 = vpack.c.b16 %v2053, %v2052
        %v2302 = vpack.c.b16 %v2055, %v2054
        %v2303 = vpack.c.b16 %v2057, %v2056
        %v2304 = vpack.c.b16 %v2059, %v2058
        %v2305 = vpack.c.b16 %v2061, %v2060
        %v2306 = vpack.c.b16 %v2063, %v2062
        %v2307 = vpack.c.b16 %v2065, %v2064
        %v2308 = vpack.c.b16 %v2067, %v2066
        %v2309 = vpack.c.b16 %v2069, %v2068
        %v2310 = vpack.c.b16 %v2071, %v2070
        %v2311 = vpack.c.b16 %v2073, %v2072
        %v2312 = vpack.c.b16 %v2075, %v2074
        %v2313 = vpack.c.b16 %v2077, %v2076
        %v2314 = vpack.c.b16 %v2079, %v2078
        %v2315 = vpack.c.b16 %v2081, %v2080
        %v2316 = vpack.c.b16 %v2083, %v2082
        %v2317 = vpack.c.b16 %v2085, %v2084
        %v2318 = vpack.c.b16 %v2087, %v2086
        %v2319 = vpack.c.b16 %v2089, %v2088
        %v2320 = vpack.c.b16 %v2091, %v2090
        %v2321 = vpack.c.b16 %v2093, %v2092
        %v2322 = vpack.c.b16 %v2095, %v2094
        %v2323 = vpack.c.b16 %v2097, %v2096
        %v2324 = vpack.c.b16 %v2099, %v2098
        %v2325 = vpack.c.b16 %v2101, %v2100
        %v2326 = vpack.c.b16 %v2103, %v2102
        %v2327 = vpack.c.b16 %v2105, %v2104
        %v2328 = vpack.c.b16 %v2107, %v2106
        %v2329 = vpack.c.b16 %v2109, %v2108
        %v2330 = vpack.c.b16 %v2111, %v2110
        %v2331 = vpack.c.b16 %v2113, %v2112
        %v2332 = vpack.c.b16 %v2115, %v2114
        %v2333 = vpack.c.b16 %v2117, %v2116
        %v2334 = vpack.c.b16 %v2119, %v2118
        %v2335 = vpack.c.b16 %v2121, %v2120
        %v2336 = vpack.c.b16 %v2123, %v2122
        %v2337 = vpack.c.b16 %v2125, %v2124
        %v2338 = vpack.c.b16 %v2127, %v2126
        %v2339 = vpack.c.b16 %v2129, %v2128
        %v2340 = vpack.c.b16 %v2131, %v2130
        %v2341 = vpack.c.b16 %v2133, %v2132
        %v2342 = vpack.c.b16 %v2135, %v2134
        %v2343 = vpack.c.b16 %v2137, %v2136
        %v2344 = vpack.c.b16 %v2139, %v2138
        %v2345 = vpack.c.b16 %v2141, %v2140
        %v2346 = vpack.c.b16 %v2143, %v2142
        %v2347 = vpack.c.b16 %v2145, %v2144
        %v2348 = vpack.c.b16 %v2147, %v2146
        %v2349 = vpack.c.b16 %v2149, %v2148
        %v2350 = vpack.c.b16 %v2151, %v2150
        %v2351 = vpack.c.b16 %v2153, %v2152
        %v2352 = vpack.c.b16 %v2155, %v2154
        %v2353 = vpack.c.b16 %v2157, %v2156
        %v2354 = vpack.c.b16 %v2159, %v2158
        %v2355 = vpack.c.b16 %v2161, %v2160
        %v2356 = vpack.c.b16 %v2163, %v2162
        %v2357 = vpack.c.b16 %v2165, %v2164
        %v2358 = vpack.c.b16 %v2167, %v2166
        %v2359 = vpack.c.b16 %v2169, %v2168
        %v2360 = vpack.c.b16 %v2171, %v2170
        %v2361 = vpack.c.b16 %v2173, %v2172
        %v2362 = vpack.c.b16 %v2175, %v2174
        %v2363 = vpack.c.b16 %v2177, %v2176
        %v2364 = vpack.c.b16 %v2179, %v2178
        %v2365 = vpack.c.b16 %v2181, %v2180
        %v2366 = vpack.c.b16 %v2183, %v2182
        %v2367 = vpack.c.b16 %v2185, %v2184
        %v2368 = vpack.c.b16 %v2187, %v2186
        %v2369 = vpack.c.b16 %v2189, %v2188
        %v2370 = vpack.c.b16 %v2191, %v2190
        %v2371 = vpack.c.b16 %v2193, %v2192
        %v2372 = vpack.c.b16 %v2195, %v2194
        %v2373 = vpack.c.b16 %v2197, %v2196
        %v2374 = vpack.c.b16 %v2199, %v2198
        %v2375 = vpack.c.b16 %v2201, %v2200
        %v2376 = vpack.c.b16 %v2203, %v2202
        %v2377 = vpack.c.b16 %v2205, %v2204
        %v2378 = vpack.c.b16 %v2207, %v2206
        %v2379 = vpack.c.b16 %v2209, %v2208
        %v2380 = vpack.c.b16 %v2211, %v2210
        %v2381 = vpack.c.b16 %v2213, %v2212
        %v2382 = vpack.c.b16 %v2215, %v2214
        %v2383 = vpack.c.b16 %v2217, %v2216
        %v2384 = vpack.c.b16 %v2219, %v2218
        %v2385 = vpack.c.b16 %v2221, %v2220
        %v2386 = vpack.c.b16 %v2223, %v2222
        %v2387 = vpack.c.b16 %v2225, %v2224
        %v2388 = vpack.c.b16 %v2227, %v2226
        %v2389 = vpack.c.b16 %v2229, %v2228
        %v2390 = vpack.c.b16 %v2231, %v2230
        %v2391 = vpack.c.b16 %v2233, %v2232
        %v2392 = vpack.c.b16 %v2235, %v2234
        %v2393 = vpack.c.b16 %v2237, %v2236
        %v2394 = vpack.c.b16 %v2239, %v2238
        %v2395 = vpack.c.b16 %v2241, %v2240
        %v2396 = vpack.c.b16 %v2243, %v2242
        %v2397 = vpack.c.b16 %v2245, %v2244
        %v2398 = vpack.c.b16 %v2247, %v2246
        %v2399 = vpack.c.b16 %v2249, %v2248
        %v2400 = vpack.c.b16 %v2251, %v2250
        %v2401 = vpack.c.b16 %v2253, %v2252
        %v2402 = vpack.c.b16 %v2255, %v2254
        %v2403 = vpack.c.b16 %v2257, %v2256
        %v2404 = vpack.c.b16 %v2259, %v2258
        %v2405 = vpack.c.b16 %v2261, %v2260
        %v2406 = vpack.c.b16 %v2263, %v2262
        %v2407 = vpack.c.b16 %v2265, %v2264
        %v2408 = vpack.c.b16 %v2267, %v2266
        %v2409 = vpack.c.b16 %v2269, %v2268
        %v2410 = vpack.c.b16 %v2271, %v2270
        %v2411 = vpack.c.b16 %v2273, %v2272
        %v2412 = vpack.c.b16 %v2275, %v2274
        %v2413 = vpack.c.b16 %v2277, %v2276
        %v2414 = vpack.c.b16 %v2279, %v2278
        %v2415 = vpack.c.b16 %v2281, %v2280
        %v2416 = vpack.c.b16 %v2283, %v2282
        %v2417 = vpack.c.b16 %v2285, %v2284
        %v2418 = vpack.c.b16 %v2287, %v2286
        %v2419 = vpack.c.b16 %v2289, %v2288
        %v2420 = vpack.c.b16 %v2291, %v2290
        %v2421 = vpack.c.b16 %v2293, %v2292
        %2550 = vmatprep.subr.bf16.mxu0 0
        %2551 = vmatpush1.bf16.msra.mxu0 %v2294
        %2552 = vmatprep.subr.bf16.mxu0 0
        %2553 = vmatpush1.bf16.msra.mxu0 %v2295
        %2554 = vmatprep.subr.bf16.mxu0 0
        %2555 = vmatpush1.bf16.msra.mxu0 %v2296
        %2556 = vmatprep.subr.bf16.mxu0 0
        %2557 = vmatpush1.bf16.msra.mxu0 %v2297
        %2558 = vmatprep.subr.bf16.mxu0 0
        %2559 = vmatpush1.bf16.msra.mxu0 %v2298
        %2560 = vmatprep.subr.bf16.mxu0 0
        %2561 = vmatpush1.bf16.msra.mxu0 %v2299
        %2562 = vmatprep.subr.bf16.mxu0 0
        %2563 = vmatpush1.bf16.msra.mxu0 %v2300
        %2564 = vmatprep.subr.bf16.mxu0 0
        %2565 = vmatpush1.bf16.msra.mxu0 %v2301
        %2566 = vmatprep.subr.bf16.mxu0 0
        %2567 = vmatpush1.bf16.msra.mxu0 %v2302
        %2568 = vmatprep.subr.bf16.mxu0 0
        %2569 = vmatpush1.bf16.msra.mxu0 %v2303
        %2570 = vmatprep.subr.bf16.mxu0 0
        %2571 = vmatpush1.bf16.msra.mxu0 %v2304
        %2572 = vmatprep.subr.bf16.mxu0 0
        %2573 = vmatpush1.bf16.msra.mxu0 %v2305
        %2574 = vmatprep.subr.bf16.mxu0 0
        %2575 = vmatpush1.bf16.msra.mxu0 %v2306
        %2576 = vmatprep.subr.bf16.mxu0 0
        %2577 = vmatpush1.bf16.msra.mxu0 %v2307
        %2578 = vmatprep.subr.bf16.mxu0 0
        %2579 = vmatpush1.bf16.msra.mxu0 %v2308
        %2580 = vmatprep.subr.bf16.mxu0 0
        %2581 = vmatpush1.bf16.msra.mxu0 %v2309
        %2582 = vmatprep.mubr.bf16.mxu0 %v1719
        %2583 = vmatmul.mubr.bf16.gmra.mrb[0].mxu0 %v1718
        %v2584 = vpop.f32.mrb[0].mxu0
        %v2585 = vadd.f32 0.0, %v2584
        %v2586 = vpop.f32.mrb[0].mxu0
        %v2587 = vpop.f32.mrb[0].mxu0
        %v2588 = vadd.f32 0.0, %v2587
        %v2589 = vpop.f32.mrb[0].mxu0
        %2590 = vmatprep.mubr.bf16.mxu0 %v1735
        %2591 = vmatmul.mubr.bf16.gmra.mrb[0].mxu0 %v1734
        %v2592 = vpop.f32.mrb[0].mxu0
        %v2593 = vadd.f32 0.0, %v2592
        %v2594 = vpop.f32.mrb[0].mxu0
        %v2595 = vpop.f32.mrb[0].mxu0
        %v2596 = vadd.f32 0.0, %v2595
        %v2597 = vpop.f32.mrb[0].mxu0
        %2598 = vdwg.mxu0
        %2599 = vmatprep.subr.bf16.mxu0 0
        %2600 = vmatpush1.bf16.msra.mxu0 %v2310
        %2601 = vmatprep.subr.bf16.mxu0 0
        %2602 = vmatpush1.bf16.msra.mxu0 %v2311
        %2603 = vmatprep.subr.bf16.mxu0 0
        %2604 = vmatpush1.bf16.msra.mxu0 %v2312
        %2605 = vmatprep.subr.bf16.mxu0 0
        %2606 = vmatpush1.bf16.msra.mxu0 %v2313
        %2607 = vmatprep.subr.bf16.mxu0 0
        %2608 = vmatpush1.bf16.msra.mxu0 %v2314
        %2609 = vmatprep.subr.bf16.mxu0 0
        %2610 = vmatpush1.bf16.msra.mxu0 %v2315
        %2611 = vmatprep.subr.bf16.mxu0 0
        %2612 = vmatpush1.bf16.msra.mxu0 %v2316
        %2613 = vmatprep.subr.bf16.mxu0 0
        %2614 = vmatpush1.bf16.msra.mxu0 %v2317
        %2615 = vmatprep.subr.bf16.mxu0 0
        %2616 = vmatpush1.bf16.msra.mxu0 %v2318
        %2617 = vmatprep.subr.bf16.mxu0 0
        %2618 = vmatpush1.bf16.msra.mxu0 %v2319
        %2619 = vmatprep.subr.bf16.mxu0 0
        %2620 = vmatpush1.bf16.msra.mxu0 %v2320
        %2621 = vmatprep.subr.bf16.mxu0 0
        %2622 = vmatpush1.bf16.msra.mxu0 %v2321
        %2623 = vmatprep.subr.bf16.mxu0 0
        %2624 = vmatpush1.bf16.msra.mxu0 %v2322
        %2625 = vmatprep.subr.bf16.mxu0 0
        %2626 = vmatpush1.bf16.msra.mxu0 %v2323
        %2627 = vmatprep.subr.bf16.mxu0 0
        %2628 = vmatpush1.bf16.msra.mxu0 %v2324
        %2629 = vmatprep.subr.bf16.mxu0 0
        %2630 = vmatpush1.bf16.msra.mxu0 %v2325
        %2631 = vmatprep.mubr.bf16.mxu0 %v1721
        %2632 = vmatmul.mubr.bf16.gmra.mrb[0].mxu0 %v1720
        %v2633 = vpop.f32.mrb[0].mxu0
        %v2634 = vadd.f32 %v2585, %v2633
        %v2635 = vpop.f32.mrb[0].mxu0
        %v2636 = vpop.f32.mrb[0].mxu0
        %v2637 = vadd.f32 %v2588, %v2636
        %v2638 = vpop.f32.mrb[0].mxu0
        %2639 = vmatprep.mubr.bf16.mxu0 %v1737
        %2640 = vmatmul.mubr.bf16.gmra.mrb[0].mxu0 %v1736
        %v2641 = vpop.f32.mrb[0].mxu0
        %v2642 = vadd.f32 %v2593, %v2641
        %v2643 = vpop.f32.mrb[0].mxu0
        %v2644 = vpop.f32.mrb[0].mxu0
        %v2645 = vadd.f32 %v2596, %v2644
        %v2646 = vpop.f32.mrb[0].mxu0
        %2647 = vdwg.mxu0
        %2648 = vmatprep.subr.bf16.mxu0 0
        %2649 = vmatpush1.bf16.msra.mxu0 %v2326
        %2650 = vmatprep.subr.bf16.mxu0 0
        %2651 = vmatpush1.bf16.msra.mxu0 %v2327
        %2652 = vmatprep.subr.bf16.mxu0 0
        %2653 = vmatpush1.bf16.msra.mxu0 %v2328
        %2654 = vmatprep.subr.bf16.mxu0 0
        %2655 = vmatpush1.bf16.msra.mxu0 %v2329
        %2656 = vmatprep.subr.bf16.mxu0 0
        %2657 = vmatpush1.bf16.msra.mxu0 %v2330
        %2658 = vmatprep.subr.bf16.mxu0 0
        %2659 = vmatpush1.bf16.msra.mxu0 %v2331
        %2660 = vmatprep.subr.bf16.mxu0 0
        %2661 = vmatpush1.bf16.msra.mxu0 %v2332
        %2662 = vmatprep.subr.bf16.mxu0 0
        %2663 = vmatpush1.bf16.msra.mxu0 %v2333
        %2664 = vmatprep.subr.bf16.mxu0 0
        %2665 = vmatpush1.bf16.msra.mxu0 %v2334
        %2666 = vmatprep.subr.bf16.mxu0 0
        %2667 = vmatpush1.bf16.msra.mxu0 %v2335
        %2668 = vmatprep.subr.bf16.mxu0 0
        %2669 = vmatpush1.bf16.msra.mxu0 %v2336
        %2670 = vmatprep.subr.bf16.mxu0 0
        %2671 = vmatpush1.bf16.msra.mxu0 %v2337
        %2672 = vmatprep.subr.bf16.mxu0 0
        %2673 = vmatpush1.bf16.msra.mxu0 %v2338
        %2674 = vmatprep.subr.bf16.mxu0 0
        %2675 = vmatpush1.bf16.msra.mxu0 %v2339
        %2676 = vmatprep.subr.bf16.mxu0 0
        %2677 = vmatpush1.bf16.msra.mxu0 %v2340
        %2678 = vmatprep.subr.bf16.mxu0 0
        %2679 = vmatpush1.bf16.msra.mxu0 %v2341
        %2680 = vmatprep.mubr.bf16.mxu0 %v1723
        %2681 = vmatmul.mubr.bf16.gmra.mrb[0].mxu0 %v1722
        %v2682 = vpop.f32.mrb[0].mxu0
        %v2683 = vadd.f32 %v2634, %v2682
        %v2684 = vpop.f32.mrb[0].mxu0
        %v2685 = vpop.f32.mrb[0].mxu0
        %v2686 = vadd.f32 %v2637, %v2685
        %v2687 = vpop.f32.mrb[0].mxu0
        %2688 = vmatprep.mubr.bf16.mxu0 %v1739
        %2689 = vmatmul.mubr.bf16.gmra.mrb[0].mxu0 %v1738
        %v2690 = vpop.f32.mrb[0].mxu0
        %v2691 = vadd.f32 %v2642, %v2690
        %v2692 = vpop.f32.mrb[0].mxu0
        %v2693 = vpop.f32.mrb[0].mxu0
        %v2694 = vadd.f32 %v2645, %v2693
        %v2695 = vpop.f32.mrb[0].mxu0
        %2696 = vdwg.mxu0
        %2697 = vmatprep.subr.bf16.mxu0 0
        %2698 = vmatpush1.bf16.msra.mxu0 %v2342
        %2699 = vmatprep.subr.bf16.mxu0 0
        %2700 = vmatpush1.bf16.msra.mxu0 %v2343
        %2701 = vmatprep.subr.bf16.mxu0 0
        %2702 = vmatpush1.bf16.msra.mxu0 %v2344
        %2703 = vmatprep.subr.bf16.mxu0 0
        %2704 = vmatpush1.bf16.msra.mxu0 %v2345
        %2705 = vmatprep.subr.bf16.mxu0 0
        %2706 = vmatpush1.bf16.msra.mxu0 %v2346
        %2707 = vmatprep.subr.bf16.mxu0 0
        %2708 = vmatpush1.bf16.msra.mxu0 %v2347
        %2709 = vmatprep.subr.bf16.mxu0 0
        %2710 = vmatpush1.bf16.msra.mxu0 %v2348
        %2711 = vmatprep.subr.bf16.mxu0 0
        %2712 = vmatpush1.bf16.msra.mxu0 %v2349
        %2713 = vmatprep.subr.bf16.mxu0 0
        %2714 = vmatpush1.bf16.msra.mxu0 %v2350
        %2715 = vmatprep.subr.bf16.mxu0 0
        %2716 = vmatpush1.bf16.msra.mxu0 %v2351
        %2717 = vmatprep.subr.bf16.mxu0 0
        %2718 = vmatpush1.bf16.msra.mxu0 %v2352
        %2719 = vmatprep.subr.bf16.mxu0 0
        %2720 = vmatpush1.bf16.msra.mxu0 %v2353
        %2721 = vmatprep.subr.bf16.mxu0 0
        %2722 = vmatpush1.bf16.msra.mxu0 %v2354
        %2723 = vmatprep.subr.bf16.mxu0 0
        %2724 = vmatpush1.bf16.msra.mxu0 %v2355
        %2725 = vmatprep.subr.bf16.mxu0 0
        %2726 = vmatpush1.bf16.msra.mxu0 %v2356
        %2727 = vmatprep.subr.bf16.mxu0 0
        %2728 = vmatpush1.bf16.msra.mxu0 %v2357
        %2729 = vmatprep.mubr.bf16.mxu0 %v1725
        %2730 = vmatmul.mubr.bf16.gmra.mrb[0].mxu0 %v1724
        %v2731 = vpop.f32.mrb[0].mxu0
        %v2732 = vadd.f32 %v2683, %v2731
        %v2733 = vpop.f32.mrb[0].mxu0
        %v2734 = vpop.f32.mrb[0].mxu0
        %v2735 = vadd.f32 %v2686, %v2734
        %v2736 = vpop.f32.mrb[0].mxu0
        %2737 = vmatprep.mubr.bf16.mxu0 %v1741
        %2738 = vmatmul.mubr.bf16.gmra.mrb[0].mxu0 %v1740
        %v2739 = vpop.f32.mrb[0].mxu0
        %v2740 = vadd.f32 %v2691, %v2739
        %v2741 = vpop.f32.mrb[0].mxu0
        %v2742 = vpop.f32.mrb[0].mxu0
        %v2743 = vadd.f32 %v2694, %v2742
        %v2744 = vpop.f32.mrb[0].mxu0
        %2745 = vdwg.mxu0
        %2746 = vmatprep.subr.bf16.mxu0 0
        %2747 = vmatpush1.bf16.msra.mxu0 %v2358
        %2748 = vmatprep.subr.bf16.mxu0 0
        %2749 = vmatpush1.bf16.msra.mxu0 %v2359
        %2750 = vmatprep.subr.bf16.mxu0 0
        %2751 = vmatpush1.bf16.msra.mxu0 %v2360
        %2752 = vmatprep.subr.bf16.mxu0 0
        %2753 = vmatpush1.bf16.msra.mxu0 %v2361
        %2754 = vmatprep.subr.bf16.mxu0 0
        %2755 = vmatpush1.bf16.msra.mxu0 %v2362
        %2756 = vmatprep.subr.bf16.mxu0 0
        %2757 = vmatpush1.bf16.msra.mxu0 %v2363
        %2758 = vmatprep.subr.bf16.mxu0 0
        %2759 = vmatpush1.bf16.msra.mxu0 %v2364
        %2760 = vmatprep.subr.bf16.mxu0 0
        %2761 = vmatpush1.bf16.msra.mxu0 %v2365
        %2762 = vmatprep.subr.bf16.mxu0 0
        %2763 = vmatpush1.bf16.msra.mxu0 %v2366
        %2764 = vmatprep.subr.bf16.mxu0 0
        %2765 = vmatpush1.bf16.msra.mxu0 %v2367
        %2766 = vmatprep.subr.bf16.mxu0 0
        %2767 = vmatpush1.bf16.msra.mxu0 %v2368
        %2768 = vmatprep.subr.bf16.mxu0 0
        %2769 = vmatpush1.bf16.msra.mxu0 %v2369
        %2770 = vmatprep.subr.bf16.mxu0 0
        %2771 = vmatpush1.bf16.msra.mxu0 %v2370
        %2772 = vmatprep.subr.bf16.mxu0 0
        %2773 = vmatpush1.bf16.msra.mxu0 %v2371
        %2774 = vmatprep.subr.bf16.mxu0 0
        %2775 = vmatpush1.bf16.msra.mxu0 %v2372
        %2776 = vmatprep.subr.bf16.mxu0 0
        %2777 = vmatpush1.bf16.msra.mxu0 %v2373
        %2778 = vmatprep.mubr.bf16.mxu0 %v1727
        %2779 = vmatmul.mubr.bf16.gmra.mrb[0].mxu0 %v1726
        %v2780 = vpop.f32.mrb[0].mxu0
        %v2781 = vadd.f32 %v2732, %v2780
        %v2782 = vpop.f32.mrb[0].mxu0
        %v2783 = vpop.f32.mrb[0].mxu0
        %v2784 = vadd.f32 %v2735, %v2783
        %v2785 = vpop.f32.mrb[0].mxu0
        %2786 = vmatprep.mubr.bf16.mxu0 %v1743
        %2787 = vmatmul.mubr.bf16.gmra.mrb[0].mxu0 %v1742
        %v2788 = vpop.f32.mrb[0].mxu0
        %v2789 = vadd.f32 %v2740, %v2788
        %v2790 = vpop.f32.mrb[0].mxu0
        %v2791 = vpop.f32.mrb[0].mxu0
        %v2792 = vadd.f32 %v2743, %v2791
        %v2793 = vpop.f32.mrb[0].mxu0
        %2794 = vdwg.mxu0
        %2795 = vmatprep.subr.bf16.mxu0 0
        %2796 = vmatpush1.bf16.msra.mxu0 %v2374
        %2797 = vmatprep.subr.bf16.mxu0 0
        %2798 = vmatpush1.bf16.msra.mxu0 %v2375
        %2799 = vmatprep.subr.bf16.mxu0 0
        %2800 = vmatpush1.bf16.msra.mxu0 %v2376
        %2801 = vmatprep.subr.bf16.mxu0 0
        %2802 = vmatpush1.bf16.msra.mxu0 %v2377
        %2803 = vmatprep.subr.bf16.mxu0 0
        %2804 = vmatpush1.bf16.msra.mxu0 %v2378
        %2805 = vmatprep.subr.bf16.mxu0 0
        %2806 = vmatpush1.bf16.msra.mxu0 %v2379
        %2807 = vmatprep.subr.bf16.mxu0 0
        %2808 = vmatpush1.bf16.msra.mxu0 %v2380
        %2809 = vmatprep.subr.bf16.mxu0 0
        %2810 = vmatpush1.bf16.msra.mxu0 %v2381
        %2811 = vmatprep.subr.bf16.mxu0 0
        %2812 = vmatpush1.bf16.msra.mxu0 %v2382
        %2813 = vmatprep.subr.bf16.mxu0 0
        %2814 = vmatpush1.bf16.msra.mxu0 %v2383
        %2815 = vmatprep.subr.bf16.mxu0 0
        %2816 = vmatpush1.bf16.msra.mxu0 %v2384
        %2817 = vmatprep.subr.bf16.mxu0 0
        %2818 = vmatpush1.bf16.msra.mxu0 %v2385
        %2819 = vmatprep.subr.bf16.mxu0 0
        %2820 = vmatpush1.bf16.msra.mxu0 %v2386
        %2821 = vmatprep.subr.bf16.mxu0 0
        %2822 = vmatpush1.bf16.msra.mxu0 %v2387
        %2823 = vmatprep.subr.bf16.mxu0 0
        %2824 = vmatpush1.bf16.msra.mxu0 %v2388
        %2825 = vmatprep.subr.bf16.mxu0 0
        %2826 = vmatpush1.bf16.msra.mxu0 %v2389
        %2827 = vmatprep.mubr.bf16.mxu0 %v1729
        %2828 = vmatmul.mubr.bf16.gmra.mrb[0].mxu0 %v1728
        %v2829 = vpop.f32.mrb[0].mxu0
        %v2830 = vadd.f32 %v2781, %v2829
        %v2831 = vpop.f32.mrb[0].mxu0
        %v2832 = vpop.f32.mrb[0].mxu0
        %v2833 = vadd.f32 %v2784, %v2832
        %v2834 = vpop.f32.mrb[0].mxu0
        %2835 = vmatprep.mubr.bf16.mxu0 %v1745
        %2836 = vmatmul.mubr.bf16.gmra.mrb[0].mxu0 %v1744
        %v2837 = vpop.f32.mrb[0].mxu0
        %v2838 = vadd.f32 %v2789, %v2837
        %v2839 = vpop.f32.mrb[0].mxu0
        %v2840 = vpop.f32.mrb[0].mxu0
        %v2841 = vadd.f32 %v2792, %v2840
        %v2842 = vpop.f32.mrb[0].mxu0
        %2843 = vdwg.mxu0
        %2844 = vmatprep.subr.bf16.mxu0 0
        %2845 = vmatpush1.bf16.msra.mxu0 %v2390
        %2846 = vmatprep.subr.bf16.mxu0 0
        %2847 = vmatpush1.bf16.msra.mxu0 %v2391
        %2848 = vmatprep.subr.bf16.mxu0 0
        %2849 = vmatpush1.bf16.msra.mxu0 %v2392
        %2850 = vmatprep.subr.bf16.mxu0 0
        %2851 = vmatpush1.bf16.msra.mxu0 %v2393
        %2852 = vmatprep.subr.bf16.mxu0 0
        %2853 = vmatpush1.bf16.msra.mxu0 %v2394
        %2854 = vmatprep.subr.bf16.mxu0 0
        %2855 = vmatpush1.bf16.msra.mxu0 %v2395
        %2856 = vmatprep.subr.bf16.mxu0 0
        %2857 = vmatpush1.bf16.msra.mxu0 %v2396
        %2858 = vmatprep.subr.bf16.mxu0 0
        %2859 = vmatpush1.bf16.msra.mxu0 %v2397
        %2860 = vmatprep.subr.bf16.mxu0 0
        %2861 = vmatpush1.bf16.msra.mxu0 %v2398
        %2862 = vmatprep.subr.bf16.mxu0 0
        %2863 = vmatpush1.bf16.msra.mxu0 %v2399
        %2864 = vmatprep.subr.bf16.mxu0 0
        %2865 = vmatpush1.bf16.msra.mxu0 %v2400
        %2866 = vmatprep.subr.bf16.mxu0 0
        %2867 = vmatpush1.bf16.msra.mxu0 %v2401
        %2868 = vmatprep.subr.bf16.mxu0 0
        %2869 = vmatpush1.bf16.msra.mxu0 %v2402
        %2870 = vmatprep.subr.bf16.mxu0 0
        %2871 = vmatpush1.bf16.msra.mxu0 %v2403
        %2872 = vmatprep.subr.bf16.mxu0 0
        %2873 = vmatpush1.bf16.msra.mxu0 %v2404
        %2874 = vmatprep.subr.bf16.mxu0 0
        %2875 = vmatpush1.bf16.msra.mxu0 %v2405
        %2876 = vmatprep.mubr.bf16.mxu0 %v1731
        %2877 = vmatmul.mubr.bf16.gmra.mrb[0].mxu0 %v1730
        %v2878 = vpop.f32.mrb[0].mxu0
        %v2879 = vadd.f32 %v2830, %v2878
        %v2880 = vpop.f32.mrb[0].mxu0
        %v2881 = vpop.f32.mrb[0].mxu0
        %v2882 = vadd.f32 %v2833, %v2881
        %v2883 = vpop.f32.mrb[0].mxu0
        %2884 = vmatprep.mubr.bf16.mxu0 %v1747
        %2885 = vmatmul.mubr.bf16.gmra.mrb[0].mxu0 %v1746
        %v2886 = vpop.f32.mrb[0].mxu0
        %v2887 = vadd.f32 %v2838, %v2886
        %v2888 = vpop.f32.mrb[0].mxu0
        %v2889 = vpop.f32.mrb[0].mxu0
        %v2890 = vadd.f32 %v2841, %v2889
        %v2891 = vpop.f32.mrb[0].mxu0
        %2892 = vdwg.mxu0
        %2893 = vmatprep.subr.bf16.mxu0 0
        %2894 = vmatpush1.bf16.msra.mxu0 %v2406
        %2895 = vmatprep.subr.bf16.mxu0 0
        %2896 = vmatpush1.bf16.msra.mxu0 %v2407
        %2897 = vmatprep.subr.bf16.mxu0 0
        %2898 = vmatpush1.bf16.msra.mxu0 %v2408
        %2899 = vmatprep.subr.bf16.mxu0 0
        %2900 = vmatpush1.bf16.msra.mxu0 %v2409
        %2901 = vmatprep.subr.bf16.mxu0 0
        %2902 = vmatpush1.bf16.msra.mxu0 %v2410
        %2903 = vmatprep.subr.bf16.mxu0 0
        %2904 = vmatpush1.bf16.msra.mxu0 %v2411
        %2905 = vmatprep.subr.bf16.mxu0 0
        %2906 = vmatpush1.bf16.msra.mxu0 %v2412
        %2907 = vmatprep.subr.bf16.mxu0 0
        %2908 = vmatpush1.bf16.msra.mxu0 %v2413
        %2909 = vmatprep.subr.bf16.mxu0 0
        %2910 = vmatpush1.bf16.msra.mxu0 %v2414
        %2911 = vmatprep.subr.bf16.mxu0 0
        %2912 = vmatpush1.bf16.msra.mxu0 %v2415
        %2913 = vmatprep.subr.bf16.mxu0 0
        %2914 = vmatpush1.bf16.msra.mxu0 %v2416
        %2915 = vmatprep.subr.bf16.mxu0 0
        %2916 = vmatpush1.bf16.msra.mxu0 %v2417
        %2917 = vmatprep.subr.bf16.mxu0 0
        %2918 = vmatpush1.bf16.msra.mxu0 %v2418
        %2919 = vmatprep.subr.bf16.mxu0 0
        %2920 = vmatpush1.bf16.msra.mxu0 %v2419
        %2921 = vmatprep.subr.bf16.mxu0 0
        %2922 = vmatpush1.bf16.msra.mxu0 %v2420
        %2923 = vmatprep.subr.bf16.mxu0 0
        %2924 = vmatpush1.bf16.msra.mxu0 %v2421
        %2925 = vmatprep.mubr.bf16.mxu0 %v1733
        %2926 = vmatmul.mubr.bf16.gmra.mrb[0].mxu0 %v1732
        %v2927 = vpop.f32.mrb[0].mxu0
        %v2928 = vadd.f32 %v2879, %v2927
        %v2929 = vpop.f32.mrb[0].mxu0
        %v2930 = vpop.f32.mrb[0].mxu0
        %v2931 = vadd.f32 %v2882, %v2930
        %v2932 = vpop.f32.mrb[0].mxu0
        %2933 = vmatprep.mubr.bf16.mxu0 %v1749
        %2934 = vmatmul.mubr.bf16.gmra.mrb[0].mxu0 %v1748
        %v2935 = vpop.f32.mrb[0].mxu0
        %v2936 = vadd.f32 %v2887, %v2935
        %v2937 = vpop.f32.mrb[0].mxu0
        %v2938 = vpop.f32.mrb[0].mxu0
        %v2939 = vadd.f32 %v2890, %v2938
        %v2940 = vpop.f32.mrb[0].mxu0
        %2941 = vdwg.mxu0
        %v2942 = vadd.f32 %v1330, %v2928
        %v2943 = vadd.f32 %v1331, %v2931
        %v2944 = vadd.f32 %v1332, %v2936
        %v2945 = vadd.f32 %v1333, %v2939
        %2946 = vst [vmem:[#allocation2] sm:$0xff] %v2942
        %2947 = vst [vmem:[#allocation2 + $0x8] sm:$0xff] %v2943
        %2948 = vst [vmem:[#allocation2 + $0x10] sm:$0xff] %v2944
        %2949 = vst [vmem:[#allocation2 + $0x18] sm:$0xff] %v2945
        // Predicated region
        $region82: #{discriminator_forward.6} parent=72 // pred_check
          %p2950 = pneg %p1322
        $region83: #{discriminator_forward.6} parent=72 // pred_check_branch
          %2952 = sbr.rel (%p2950) target = $region85
        $region84: #{discriminator_forward.6} parent=72 // pred_region
          %v2953 = vld [vmem:[#allocation2] sm:$0xff]
          %v2954 = vld [vmem:[#allocation2 + $0x8] sm:$0xff]
          %v2955 = vld [vmem:[#allocation2 + $0x10] sm:$0xff]
          %v2956 = vld [vmem:[#allocation2 + $0x18] sm:$0xff]
          %v2957 = vadd.f32 %v2953, %v2954
          %v2958 = vadd.f32 %v2957, %v2955
          %v2959 = vadd.f32 %v2958, %v2956
          %v2960 = vrot.slane %v2959, 4
          %v2961 = vadd.f32 %v2959, %v2960
          %v2962 = vrot.slane %v2961, 2
          %v2963 = vadd.f32 %v2961, %v2962
          %v2964 = vrot.slane %v2963, 1
          %v2965 = vadd.f32 %v2963, %v2964
          %v2966 = vmul.f32 %v2965, 0.03125
          %v2967 = vmul.f32 %v2953, %v2953
          %v2968 = vmul.f32 %v2954, %v2954
          %v2969 = vmul.f32 %v2955, %v2955
          %v2970 = vmul.f32 %v2956, %v2956
          %v2971 = vadd.f32 %v2967, %v2968
          %v2972 = vadd.f32 %v2971, %v2969
          %v2973 = vadd.f32 %v2972, %v2970
          %v2974 = vrot.slane %v2973, 4
          %v2975 = vadd.f32 %v2973, %v2974
          %v2976 = vrot.slane %v2975, 2
          %v2977 = vadd.f32 %v2975, %v2976
          %v2978 = vrot.slane %v2977, 1
          %v2979 = vadd.f32 %v2977, %v2978
          %v2980 = vmul.f32 %v2979, 0.03125
          %v2981 = vmul.f32 %v2966, %v2966
          %v2982 = vsub.f32 %v2980, %v2981
          %v2983 = vld [vmem:[%s1317] sm:$0x1]
          %v2984 = vadd.f32 %v2982, 1e-05
          %v2985 = vrsqrt.pop %v2984
          %v2986 = vmul.f32 %v2983, %v2985
          %v2987 = vld [vmem:[%s1320] sm:$0x1]
          %v2988 = vmul.f32 %v2966, %v2986
          %v2989 = vsub.f32 %v2987, %v2988
          %v2991 = vlaneseq
          %v2992 = vshrl.u32 %v2991, 7
          %v2993 = vsub.s32 0, %v2992
          %v2994 = vrot.slane %v2986, %v2993
          %v2996 = vmul.f32 %v2953, %v2994
          %v2997 = vmul.f32 %v2954, %v2994
          %v2998 = vmul.f32 %v2955, %v2994
          %v2999 = vmul.f32 %v2956, %v2994
          %v3001 = vlaneseq
          %v3002 = vshrl.u32 %v3001, 7
          %v3003 = vsub.s32 0, %v3002
          %v3004 = vrot.slane %v2989, %v3003
          %v3006 = vadd.f32 %v2996, %v3004
          %v3007 = vadd.f32 %v2997, %v3004
          %v3008 = vadd.f32 %v2998, %v3004
          %v3009 = vadd.f32 %v2999, %v3004
          %vm3010 = vcmp.ge.f32.partialorder %v3006, 0.0
          %vm3011 = vcmp.ge.f32.partialorder %v3007, 0.0
          %vm3012 = vcmp.ge.f32.partialorder %v3008, 0.0
          %vm3013 = vcmp.ge.f32.partialorder %v3009, 0.0
          %v3014 = vmul.f32 %v3006, 0.2
          %v3015 = vmul.f32 %v3007, 0.2
          %v3016 = vmul.f32 %v3008, 0.2
          %v3017 = vmul.f32 %v3009, 0.2
          %v3018 = vsel %vm3010, %v3006, %v3014
          %v3019 = vsel %vm3011, %v3007, %v3015
          %v3020 = vsel %vm3012, %v3008, %v3016
          %v3021 = vsel %vm3013, %v3009, %v3017
          %v3022 = vpack.c.bf16 %v3019, %v3018
          %v3023 = vpack.c.bf16 %v3021, %v3020
          %v3026 = vunpack.c.l.b16 %v3022
          %v3027 = vunpack.c.h.b16 %v3022
          %v3028 = vunpack.c.l.b16 %v3023
          %v3029 = vunpack.c.h.b16 %v3023
          %v3030 = vpack.c.b16 %v3026, %v3026
          %v3031 = vpack.c.b16 %v3027, %v3027
          %v3032 = vpack.c.b16 %v3028, %v3028
          %v3033 = vpack.c.b16 %v3029, %v3029
          %3038 = vst [vmem:[%s1307] sm:$0xf] %v3030
          %3039 = vst [vmem:[%s1307 + $0x4] sm:$0xf] %v3031
          %3040 = vst [vmem:[%s1307 + $0x8] sm:$0xf] %v3032
          %3041 = vst [vmem:[%s1307 + $0xc] sm:$0xf] %v3033
        $region85: #{discriminator_forward.6} parent=72 // pred_fallthru
          _
        %s3042 = sand.u32 %s141, 1
        %s3043 = sand.u32 %s141, 1
        %s3044 = smul.addr %s3043, 16
        %s3045 = scalar_lea.vmem [#allocation4], %s3044
        // Predicated region
        $region86: #{discriminator_forward.6} parent=72 // pred_check
          %p3046 = pneg %p151
        $region87: #{discriminator_forward.6} parent=72 // pred_check_branch
          %3048 = sbr.rel (%p3046) target = $region89
        $region88: #{discriminator_forward.6} parent=72 // pred_region
          %s3049 = smul.addr %s19, 4
          %s3050 = scalar_lea.vmem %s4, %s3049
          // Predicated region
          $region90: #{discriminator_forward.6} parent=88 // pred_check
            _
          $region91: #{discriminator_forward.6} parent=88 // pred_check_branch
            %3052 = sbr.rel (0) target = $region93
          $region92: #{discriminator_forward.6} parent=88 // pred_region
            // Predicated region
            $region94: #{discriminator_forward.6} parent=92 // pred_check
              _
            $region95: #{discriminator_forward.6} parent=92 // pred_check_branch
              %3054 = sbr.rel target = $region97
            $region96: #{discriminator_forward.6} parent=92 // pred_region
              // Predicated region
              $region109: #{discriminator_forward.6} parent=96 // pred_check
                _
              $region110: #{discriminator_forward.6} parent=96 // pred_check_branch
                %3075 = sbr.rel (0) target = $region112
              $region111: #{discriminator_forward.6} parent=96 // pred_region
                loop: start=0, step=1, limit=1
                $region113: #{discriminator_forward.6} parent=111 // loop_pre_header
                  _
                $region114: #{discriminator_forward.6} parent=111 // loop_header
                  %s3077 = sphi 0, %s3081
                  %p3078 = scmp.ge.s32.totalorder %s3077, 1
                  %s3082 = sphi %s3045, %s3045
                  %s3083 = sphi %s3050, %s3050
                $region115: #{discriminator_forward.6} parent=111 // loop_header_branch
                  %3080 = sbr.rel (%p3078) target = $region119
                $region116: #{discriminator_forward.6} parent=111 // loop_body
                  _
                $region117: #{discriminator_forward.6} parent=111 // loop_footer
                  %s3081 = sadd.s32 1, %s3077
                $region118: #{discriminator_forward.6} parent=111 // loop_footer_branch
                  %3076 = sbr.rel target = $region114
                $region119: #{discriminator_forward.6} parent=111 // loop_exit
                  _
                loop: start=0, step=1, limit=1
                $region120: #{discriminator_forward.6} parent=111 // loop_pre_header
                  _
                $region121: #{discriminator_forward.6} parent=111 // loop_header
                  %s3086 = sphi 0, %s3090
                  %p3087 = scmp.ge.s32.totalorder %s3086, 1
                  %s3091 = sphi %s3045, %s3045
                  %s3092 = sphi %s3050, %s3050
                $region122: #{discriminator_forward.6} parent=111 // loop_header_branch
                  %3089 = sbr.rel (%p3087) target = $region126
                $region123: #{discriminator_forward.6} parent=111 // loop_body
                  %v3093 = vld [vmem:[%s3091] sm:$0xf]
                  %3094 = vst [vmem:[%s3092] sm:$0xf] %v3093
                  %v3095 = vld [vmem:[%s3091 + $0x4] sm:$0xf]
                  %3096 = vst [vmem:[%s3092 + $0x8] sm:$0xf] %v3095
                  %v3097 = vld [vmem:[%s3091 + $0x8] sm:$0xf]
                  %3098 = vst [vmem:[%s3092 + $0x10] sm:$0xf] %v3097
                  %v3099 = vld [vmem:[%s3091 + $0xc] sm:$0xf]
                  %3100 = vst [vmem:[%s3092 + $0x18] sm:$0xf] %v3099
                $region124: #{discriminator_forward.6} parent=111 // loop_footer
                  %s3090 = sadd.s32 1, %s3086
                $region125: #{discriminator_forward.6} parent=111 // loop_footer_branch
                  %3085 = sbr.rel target = $region121
                $region126: #{discriminator_forward.6} parent=111 // loop_exit
                  _
              $region112: #{discriminator_forward.6} parent=96 // pred_fallthru
                _
            $region97: #{discriminator_forward.6} parent=92 // pred_fallthru
              _
            // Predicated region
            $region98: #{discriminator_forward.6} parent=92 // pred_check
              _
            $region99: #{discriminator_forward.6} parent=92 // pred_check_branch
              %3056 = sbr.rel (0) target = $region101
            $region100: #{discriminator_forward.6} parent=92 // pred_region
              loop: start=0, step=1, limit=1
              $region102: #{discriminator_forward.6} parent=100 // loop_pre_header
                _
              $region103: #{discriminator_forward.6} parent=100 // loop_header
                %s3059 = sphi 0, %s3063
                %p3060 = scmp.ge.s32.totalorder %s3059, 1
                %s3064 = sphi %s3045, %s3045
                %s3065 = sphi %s3050, %s3050
              $region104: #{discriminator_forward.6} parent=100 // loop_header_branch
                %3062 = sbr.rel (%p3060) target = $region108
              $region105: #{discriminator_forward.6} parent=100 // loop_body
                %v3066 = vld [vmem:[%s3064] sm:$0xf]
                %3067 = vst [vmem:[%s3065] sm:$0xf] %v3066
                %v3068 = vld [vmem:[%s3064 + $0x4] sm:$0xf]
                %3069 = vst [vmem:[%s3065 + $0x8] sm:$0xf] %v3068
                %v3070 = vld [vmem:[%s3064 + $0x8] sm:$0xf]
                %3071 = vst [vmem:[%s3065 + $0x10] sm:$0xf] %v3070
                %v3072 = vld [vmem:[%s3064 + $0xc] sm:$0xf]
                %3073 = vst [vmem:[%s3065 + $0x18] sm:$0xf] %v3072
              $region106: #{discriminator_forward.6} parent=100 // loop_footer
                %s3063 = sadd.s32 1, %s3059
              $region107: #{discriminator_forward.6} parent=100 // loop_footer_branch
                %3058 = sbr.rel target = $region103
              $region108: #{discriminator_forward.6} parent=100 // loop_exit
                _
            $region101: #{discriminator_forward.6} parent=92 // pred_fallthru
              _
          $region93: #{discriminator_forward.6} parent=88 // pred_fallthru
            _
          %3101 = vnop
        $region89: #{discriminator_forward.6} parent=72 // pred_fallthru
          _
      $region73: #{discriminator_forward.6} parent=5 // pred_fallthru
        _
      %p3102 = scmp.le.s32.totalorder 2, %s10
      // Predicated region
      $region127: #{discriminator_forward.6} parent=5 // pred_check
        %p3103 = pneg %p3102
      $region128: #{discriminator_forward.6} parent=5 // pred_check_branch
        %3105 = sbr.rel (%p3103) target = $region130
      $region129: #{discriminator_forward.6} parent=5 // pred_region
        %s3106 = ssub.s32 %s10, 2
        // Predicated region
        $region131: #{discriminator_forward.6} parent=129 // pred_check
          %p3107 = pneg %p157
        $region132: #{discriminator_forward.6} parent=129 // pred_check_branch
          %3109 = sbr.rel (%p3107) target = $region134
        $region133: #{discriminator_forward.6} parent=129 // pred_region
          %s3110 = sand.u32 %s142, 1
          %s3111 = sand.u32 %s142, 1
          %s3112 = smul.addr %s3111, 16
          %s3113 = scalar_lea.vmem [#allocation4], %s3112
        $region134: #{discriminator_forward.6} parent=129 // pred_fallthru
          _
      $region130: #{discriminator_forward.6} parent=5 // pred_fallthru
        _
    $region6: #{discriminator_forward.6} parent=1 // loop_footer
      %s14 = sadd.s32 1, %s10
    $region7: #{discriminator_forward.6} parent=1 // loop_footer_branch
      %9 = sbr.rel target = $region3
    $region8: #{discriminator_forward.6} parent=1 // loop_exit
      _

// kernel: discriminator_forward.7
$region0: #{discriminator_forward.7}
  #allocation0 [shape = 'u32[]', space=smem, size = 0x4, offset = 0x4, fixed_abs, tag = 'smem constant byte address 0x4 - core index']
  #allocation1 [shape = 'u32[144,128]{1,0:T(1,128)}', space=vmem, size = 0x12000, scoped, tag = 'internal scratch']
  #allocation2 [shape = 'f32[32,256]{1,0:T(8,128)}', space=vmem, size = 0x8000, scoped, tag = 'scratch operand']
  %s0 = inlined_call_operand.vmem [shape: bf16[32,4096], index: 0, kind: input, shape index: {}]
  %s1 = inlined_call_operand.vmem [shape: bf16[4096,512], index: 1, kind: input, shape index: {}]
  %s2 = inlined_call_operand.vmem [shape: f32[1,512], index: 2, kind: input, shape index: {}]
  %s3 = inlined_call_operand.vmem [shape: f32[1,512], index: 3, kind: input, shape index: {}]
  %s4 = inlined_call_operand.vmem [shape: bf16[32,512], index: 4, kind: output, shape index: {}]
  %s5 = sld [smem:[#allocation0]]
  $region152: #{discriminator_forward.7} parent=0
    _
  %s7 = ssub.s32 1, %s5
  %s8 = scalar_select 0, %s7, %s5
  $region1: #{discriminator_forward.7} parent=0
    #allocation3 [shape = 'u8[262144]{0}', space=vmem, size = 0x40000, scoped, tag = 'input window, operand 0']
    #allocation4 [shape = 'u8[2097152]{0}', space=vmem, size = 0x200000, scoped, tag = 'input window, operand 1']
    #allocation5 [shape = 'u8[32768]{0}', space=vmem, size = 0x8000, scoped, tag = 'output window, operand 0']
    loop: start=0, step=1, limit=6
    $region2: #{discriminator_forward.7} parent=1 // loop_pre_header
      _
    $region3: #{discriminator_forward.7} parent=1 // loop_header
      %s10 = sphi 0, %s14
      %p11 = scmp.ge.s32.totalorder %s10, 6
      %s17 = sphi 0, %s29
      %s18 = sphi 0, %s25
      %s19 = sphi 0, %s17
      %s20 = sphi 0, %s18
      %s21 = sphi 0, %s19
      %s22 = sphi 0, %s20
      %s32 = sphi 0, %s34
      %s35 = sphi 0, %s32
      %s36 = sphi 0, %s35
      %s52 = sphi 0, %s36
      %s60 = sphi 0, %s62
      %s63 = sphi 0, %s60
      %s64 = sphi 0, %s63
      %s80 = sphi 0, %s64
      %s86 = sphi 0, %s88
      %s89 = sphi 0, %s86
      %s90 = sphi 0, %s89
      %s106 = sphi 0, %s90
      %s112 = sphi 0, %s114
      %s115 = sphi 0, %s112
      %s116 = sphi 0, %s115
      %s132 = sphi 0, %s116
      %s138 = sphi 0, %s140
      %s141 = sphi 0, %s138
      %s142 = sphi 0, %s141
      %s158 = sphi 0, %s142
    $region4: #{discriminator_forward.7} parent=1 // loop_header_branch
      %13 = sbr.rel (%p11) target = $region8
    $region5: #{discriminator_forward.7} parent=1 // loop_body
      %s15 = ssub.s32 %s10, 1
      %s16 = ssub.s32 %s10, 2
      %s23 = sadd.s32 1, %s18
      %p24 = scmp.ge.s32.totalorder %s23, 2
      %s25 = scalar_select %p24, 0, %s23
      %s26 = sadd.s32 1, %s17
      %s27 = scalar_select %p24, %s26, %s17
      %p28 = scmp.ge.s32.totalorder %s27, 2
      %s29 = scalar_select %p28, 0, %s27
      %s30 = ssub.s32 %s18, %s25
      %p31 = scmp.eq.s32.totalorder %s30, 0
      %s33 = sadd.s32 %s32, 1
      %s34 = scalar_select %p31, %s32, %s33
      %p37 = pneg %p31
      %p38 = scmp.eq.s32.totalorder %s10, 3
      %p39 = por %p37, %p38
      %p40 = scmp.ne.s32.totalorder %s32, %s35
      %p41 = scmp.eq.s32.totalorder %s10, 0
      %p42 = por %p40, %p41
      %p43 = scmp.ne.s32.totalorder %s32, %s35
      %p44 = scmp.eq.s32.totalorder %s15, 3
      %p45 = por %p43, %p44
      %p46 = scmp.ne.s32.totalorder %s35, %s36
      %p47 = scmp.eq.s32.totalorder %s15, 0
      %p48 = por %p46, %p47
      %p49 = scmp.ne.s32.totalorder %s35, %s36
      %p50 = scmp.eq.s32.totalorder %s16, 3
      %p51 = por %p49, %p50
      %p53 = scmp.ne.s32.totalorder %s36, %s52
      %p54 = scmp.eq.s32.totalorder %s16, 0
      %p55 = por %p53, %p54
      %s56 = ssub.s32 %s18, %s25
      %s57 = ssub.s32 %s17, %s29
      %s58 = sor.u32 %s56, %s57
      %p59 = scmp.eq.s32.totalorder %s58, 0
      %s61 = sadd.s32 %s60, 1
      %s62 = scalar_select %p59, %s60, %s61
      %p65 = pneg %p59
      %p66 = scmp.eq.s32.totalorder %s10, 3
      %p67 = por %p65, %p66
      %p68 = scmp.ne.s32.totalorder %s60, %s63
      %p69 = scmp.eq.s32.totalorder %s10, 0
      %p70 = por %p68, %p69
      %p71 = scmp.ne.s32.totalorder %s60, %s63
      %p72 = scmp.eq.s32.totalorder %s15, 3
      %p73 = por %p71, %p72
      %p74 = scmp.ne.s32.totalorder %s63, %s64
      %p75 = scmp.eq.s32.totalorder %s15, 0
      %p76 = por %p74, %p75
      %p77 = scmp.ne.s32.totalorder %s63, %s64
      %p78 = scmp.eq.s32.totalorder %s16, 3
      %p79 = por %p77, %p78
      %p81 = scmp.ne.s32.totalorder %s64, %s80
      %p82 = scmp.eq.s32.totalorder %s16, 0
      %p83 = por %p81, %p82
      %s84 = ssub.s32 %s17, %s29
      %p85 = scmp.eq.s32.totalorder %s84, 0
      %s87 = sadd.s32 %s86, 1
      %s88 = scalar_select %p85, %s86, %s87
      %p91 = pneg %p85
      %p92 = scmp.eq.s32.totalorder %s10, 3
      %p93 = por %p91, %p92
      %p94 = scmp.ne.s32.totalorder %s86, %s89
      %p95 = scmp.eq.s32.totalorder %s10, 0
      %p96 = por %p94, %p95
      %p97 = scmp.ne.s32.totalorder %s86, %s89
      %p98 = scmp.eq.s32.totalorder %s15, 3
      %p99 = por %p97, %p98
      %p100 = scmp.ne.s32.totalorder %s89, %s90
      %p101 = scmp.eq.s32.totalorder %s15, 0
      %p102 = por %p100, %p101
      %p103 = scmp.ne.s32.totalorder %s89, %s90
      %p104 = scmp.eq.s32.totalorder %s16, 3
      %p105 = por %p103, %p104
      %p107 = scmp.ne.s32.totalorder %s90, %s106
      %p108 = scmp.eq.s32.totalorder %s16, 0
      %p109 = por %p107, %p108
      %s110 = ssub.s32 %s17, %s29
      %p111 = scmp.eq.s32.totalorder %s110, 0
      %s113 = sadd.s32 %s112, 1
      %s114 = scalar_select %p111, %s112, %s113
      %p117 = pneg %p111
      %p118 = scmp.eq.s32.totalorder %s10, 3
      %p119 = por %p117, %p118
      %p120 = scmp.ne.s32.totalorder %s112, %s115
      %p121 = scmp.eq.s32.totalorder %s10, 0
      %p122 = por %p120, %p121
      %p123 = scmp.ne.s32.totalorder %s112, %s115
      %p124 = scmp.eq.s32.totalorder %s15, 3
      %p125 = por %p123, %p124
      %p126 = scmp.ne.s32.totalorder %s115, %s116
      %p127 = scmp.eq.s32.totalorder %s15, 0
      %p128 = por %p126, %p127
      %p129 = scmp.ne.s32.totalorder %s115, %s116
      %p130 = scmp.eq.s32.totalorder %s16, 3
      %p131 = por %p129, %p130
      %p133 = scmp.ne.s32.totalorder %s116, %s132
      %p134 = scmp.eq.s32.totalorder %s16, 0
      %p135 = por %p133, %p134
      %s136 = ssub.s32 %s17, %s29
      %p137 = scmp.eq.s32.totalorder %s136, 0
      %s139 = sadd.s32 %s138, 1
      %s140 = scalar_select %p137, %s138, %s139
      %p143 = pneg %p137
      %p144 = scmp.eq.s32.totalorder %s10, 3
      %p145 = por %p143, %p144
      %p146 = scmp.ne.s32.totalorder %s138, %s141
      %p147 = scmp.eq.s32.totalorder %s10, 0
      %p148 = por %p146, %p147
      %p149 = scmp.ne.s32.totalorder %s138, %s141
      %p150 = scmp.eq.s32.totalorder %s15, 3
      %p151 = por %p149, %p150
      %p152 = scmp.ne.s32.totalorder %s141, %s142
      %p153 = scmp.eq.s32.totalorder %s15, 0
      %p154 = por %p152, %p153
      %p155 = scmp.ne.s32.totalorder %s141, %s142
      %p156 = scmp.eq.s32.totalorder %s16, 3
      %p157 = por %p155, %p156
      %p159 = scmp.ne.s32.totalorder %s142, %s158
      %p160 = scmp.eq.s32.totalorder %s16, 0
      %p161 = por %p159, %p160
      %p162 = scmp.le.s32.totalorder 1, %s10
      %p163 = scmp.lt.s32.totalorder %s10, 5
      %p164 = pnand %p162, %p163
      %p165 = pneg %p164
      // Predicated region
      $region9: #{discriminator_forward.7} parent=5 // pred_check
        _
      $region10: #{discriminator_forward.7} parent=5 // pred_check_branch
        %167 = sbr.rel (%p164) target = $region12
      $region11: #{discriminator_forward.7} parent=5 // pred_region
        %s168 = ssub.s32 %s10, 1
      $region12: #{discriminator_forward.7} parent=5 // pred_fallthru
        _
      %p169 = scmp.lt.s32.totalorder %s10, 4
      // Predicated region
      $region13: #{discriminator_forward.7} parent=5 // pred_check
        %p170 = pneg %p169
      $region14: #{discriminator_forward.7} parent=5 // pred_check_branch
        %172 = sbr.rel (%p170) target = $region16
      $region15: #{discriminator_forward.7} parent=5 // pred_region
        // Predicated region
        $region17: #{discriminator_forward.7} parent=15 // pred_check
          %p173 = pneg %p42
        $region18: #{discriminator_forward.7} parent=15 // pred_check_branch
          %175 = sbr.rel (%p173) target = $region20
        $region19: #{discriminator_forward.7} parent=15 // pred_region
          %s176 = sand.u32 %s32, 1
          %s177 = sand.u32 %s32, 1
          %s178 = smul.addr %s177, 256
          %s179 = scalar_lea.vmem [#allocation3], %s178
          %s180 = smul.u32 16, %s18
          %s181 = smul.addr %s180, 4
          %s182 = scalar_lea.vmem %s0, %s181
          // Predicated region
          $region21: #{discriminator_forward.7} parent=19 // pred_check
            _
          $region22: #{discriminator_forward.7} parent=19 // pred_check_branch
            %184 = sbr.rel (0) target = $region24
          $region23: #{discriminator_forward.7} parent=19 // pred_region
            // Predicated region
            $region25: #{discriminator_forward.7} parent=23 // pred_check
              _
            $region26: #{discriminator_forward.7} parent=23 // pred_check_branch
              %186 = sbr.rel (0) target = $region28
            $region27: #{discriminator_forward.7} parent=23 // pred_region
              loop: start=0, step=1, limit=1
              $region29: #{discriminator_forward.7} parent=27 // loop_pre_header
                _
              $region30: #{discriminator_forward.7} parent=27 // loop_header
                %s188 = sphi 0, %s192
                %p189 = scmp.ge.s32.totalorder %s188, 1
                %s193 = sphi %s182, %s182
                %s194 = sphi %s179, %s179
              $region31: #{discriminator_forward.7} parent=27 // loop_header_branch
                %191 = sbr.rel (%p189) target = $region35
              $region32: #{discriminator_forward.7} parent=27 // loop_body
                %v195 = vld [vmem:[%s193] sm:$0xff]
                %196 = vst [vmem:[%s194] sm:$0xff] %v195
                %v197 = vld [vmem:[%s193 + $0x8] sm:$0xff]
                %198 = vst [vmem:[%s194 + $0x8] sm:$0xff] %v197
                %v199 = vld [vmem:[%s193 + $0x10] sm:$0xff]
                %200 = vst [vmem:[%s194 + $0x10] sm:$0xff] %v199
                %v201 = vld [vmem:[%s193 + $0x18] sm:$0xff]
                %202 = vst [vmem:[%s194 + $0x18] sm:$0xff] %v201
                %v203 = vld [vmem:[%s193 + $0x20] sm:$0xff]
                %204 = vst [vmem:[%s194 + $0x20] sm:$0xff] %v203
                %v205 = vld [vmem:[%s193 + $0x28] sm:$0xff]
                %206 = vst [vmem:[%s194 + $0x28] sm:$0xff] %v205
                %v207 = vld [vmem:[%s193 + $0x30] sm:$0xff]
                %208 = vst [vmem:[%s194 + $0x30] sm:$0xff] %v207
                %v209 = vld [vmem:[%s193 + $0x38] sm:$0xff]
                %210 = vst [vmem:[%s194 + $0x38] sm:$0xff] %v209
                %v211 = vld [vmem:[%s193 + $0x80] sm:$0xff]
                %212 = vst [vmem:[%s194 + $0x40] sm:$0xff] %v211
                %v213 = vld [vmem:[%s193 + $0x88] sm:$0xff]
                %214 = vst [vmem:[%s194 + $0x48] sm:$0xff] %v213
                %v215 = vld [vmem:[%s193 + $0x90] sm:$0xff]
                %216 = vst [vmem:[%s194 + $0x50] sm:$0xff] %v215
                %v217 = vld [vmem:[%s193 + $0x98] sm:$0xff]
                %218 = vst [vmem:[%s194 + $0x58] sm:$0xff] %v217
                %v219 = vld [vmem:[%s193 + $0xa0] sm:$0xff]
                %220 = vst [vmem:[%s194 + $0x60] sm:$0xff] %v219
                %v221 = vld [vmem:[%s193 + $0xa8] sm:$0xff]
                %222 = vst [vmem:[%s194 + $0x68] sm:$0xff] %v221
                %v223 = vld [vmem:[%s193 + $0xb0] sm:$0xff]
                %224 = vst [vmem:[%s194 + $0x70] sm:$0xff] %v223
                %v225 = vld [vmem:[%s193 + $0xb8] sm:$0xff]
                %226 = vst [vmem:[%s194 + $0x78] sm:$0xff] %v225
                %v227 = vld [vmem:[%s193 + $0x100] sm:$0xff]
                %228 = vst [vmem:[%s194 + $0x80] sm:$0xff] %v227
                %v229 = vld [vmem:[%s193 + $0x108] sm:$0xff]
                %230 = vst [vmem:[%s194 + $0x88] sm:$0xff] %v229
                %v231 = vld [vmem:[%s193 + $0x110] sm:$0xff]
                %232 = vst [vmem:[%s194 + $0x90] sm:$0xff] %v231
                %v233 = vld [vmem:[%s193 + $0x118] sm:$0xff]
                %234 = vst [vmem:[%s194 + $0x98] sm:$0xff] %v233
                %v235 = vld [vmem:[%s193 + $0x120] sm:$0xff]
                %236 = vst [vmem:[%s194 + $0xa0] sm:$0xff] %v235
                %v237 = vld [vmem:[%s193 + $0x128] sm:$0xff]
                %238 = vst [vmem:[%s194 + $0xa8] sm:$0xff] %v237
                %v239 = vld [vmem:[%s193 + $0x130] sm:$0xff]
                %240 = vst [vmem:[%s194 + $0xb0] sm:$0xff] %v239
                %v241 = vld [vmem:[%s193 + $0x138] sm:$0xff]
                %242 = vst [vmem:[%s194 + $0xb8] sm:$0xff] %v241
                %v243 = vld [vmem:[%s193 + $0x180] sm:$0xff]
                %244 = vst [vmem:[%s194 + $0xc0] sm:$0xff] %v243
                %v245 = vld [vmem:[%s193 + $0x188] sm:$0xff]
                %246 = vst [vmem:[%s194 + $0xc8] sm:$0xff] %v245
                %v247 = vld [vmem:[%s193 + $0x190] sm:$0xff]
                %248 = vst [vmem:[%s194 + $0xd0] sm:$0xff] %v247
                %v249 = vld [vmem:[%s193 + $0x198] sm:$0xff]
                %250 = vst [vmem:[%s194 + $0xd8] sm:$0xff] %v249
                %v251 = vld [vmem:[%s193 + $0x1a0] sm:$0xff]
                %252 = vst [vmem:[%s194 + $0xe0] sm:$0xff] %v251
                %v253 = vld [vmem:[%s193 + $0x1a8] sm:$0xff]
                %254 = vst [vmem:[%s194 + $0xe8] sm:$0xff] %v253
                %v255 = vld [vmem:[%s193 + $0x1b0] sm:$0xff]
                %256 = vst [vmem:[%s194 + $0xf0] sm:$0xff] %v255
                %v257 = vld [vmem:[%s193 + $0x1b8] sm:$0xff]
                %258 = vst [vmem:[%s194 + $0xf8] sm:$0xff] %v257
              $region33: #{discriminator_forward.7} parent=27 // loop_footer
                %s192 = sadd.s32 1, %s188
              $region34: #{discriminator_forward.7} parent=27 // loop_footer_branch
                %187 = sbr.rel target = $region30
              $region35: #{discriminator_forward.7} parent=27 // loop_exit
                _
            $region28: #{discriminator_forward.7} parent=23 // pred_fallthru
              _
            // Predicated region
            $region36: #{discriminator_forward.7} parent=23 // pred_check
              _
            $region37: #{discriminator_forward.7} parent=23 // pred_check_branch
              %260 = sbr.rel target = $region39
            $region38: #{discriminator_forward.7} parent=23 // pred_region
              _
            $region39: #{discriminator_forward.7} parent=23 // pred_fallthru
              _
          $region24: #{discriminator_forward.7} parent=19 // pred_fallthru
            _
          %261 = vnop
        $region20: #{discriminator_forward.7} parent=15 // pred_fallthru
          _
        // Predicated region
        $region40: #{discriminator_forward.7} parent=15 // pred_check
          %p262 = pneg %p70
        $region41: #{discriminator_forward.7} parent=15 // pred_check_branch
          %264 = sbr.rel (%p262) target = $region43
        $region42: #{discriminator_forward.7} parent=15 // pred_region
          %s265 = sand.u32 %s60, 1
          %s266 = sand.u32 %s60, 1
          %s267 = smul.addr %s266, 2048
          %s268 = scalar_lea.vmem [#allocation4], %s267
          %s269 = smul.u32 256, %s18
          %s270 = smul.u32 2, %s17
          %s271 = smul.addr %s269, 4
          %s272 = sadd.s32 %s270, %s271
          %s273 = smul.addr %s272, 4
          %s274 = scalar_lea.vmem %s1, %s273
          // Predicated region
          $region44: #{discriminator_forward.7} parent=42 // pred_check
            _
          $region45: #{discriminator_forward.7} parent=42 // pred_check_branch
            %276 = sbr.rel (0) target = $region47
          $region46: #{discriminator_forward.7} parent=42 // pred_region
            // Predicated region
            $region48: #{discriminator_forward.7} parent=46 // pred_check
              _
            $region49: #{discriminator_forward.7} parent=46 // pred_check_branch
              %278 = sbr.rel (0) target = $region51
            $region50: #{discriminator_forward.7} parent=46 // pred_region
              // Predicated region
              $region63: #{discriminator_forward.7} parent=50 // pred_check
                _
              $region64: #{discriminator_forward.7} parent=50 // pred_check_branch
                %803 = sbr.rel (0) target = $region66
              $region65: #{discriminator_forward.7} parent=50 // pred_region
                loop: start=0, step=1, limit=1
                $region67: #{discriminator_forward.7} parent=65 // loop_pre_header
                  _
                $region68: #{discriminator_forward.7} parent=65 // loop_header
                  %s805 = sphi 0, %s809
                  %p806 = scmp.ge.s32.totalorder %s805, 1
                  %s810 = sphi %s274, %s274
                  %s811 = sphi %s268, %s268
                $region69: #{discriminator_forward.7} parent=65 // loop_header_branch
                  %808 = sbr.rel (%p806) target = $region73
                $region70: #{discriminator_forward.7} parent=65 // loop_body
                  %v812 = vld [vmem:[%s810] sm:$0xff]
                  %813 = vst [vmem:[%s811] sm:$0xff] %v812
                  %v814 = vld [vmem:[%s810 + $0x10] sm:$0xff]
                  %815 = vst [vmem:[%s811 + $0x8] sm:$0xff] %v814
                  %v816 = vld [vmem:[%s810 + $0x20] sm:$0xff]
                  %817 = vst [vmem:[%s811 + $0x10] sm:$0xff] %v816
                  %v818 = vld [vmem:[%s810 + $0x30] sm:$0xff]
                  %819 = vst [vmem:[%s811 + $0x18] sm:$0xff] %v818
                  %v820 = vld [vmem:[%s810 + $0x40] sm:$0xff]
                  %821 = vst [vmem:[%s811 + $0x20] sm:$0xff] %v820
                  %v822 = vld [vmem:[%s810 + $0x50] sm:$0xff]
                  %823 = vst [vmem:[%s811 + $0x28] sm:$0xff] %v822
                  %v824 = vld [vmem:[%s810 + $0x60] sm:$0xff]
                  %825 = vst [vmem:[%s811 + $0x30] sm:$0xff] %v824
                  %v826 = vld [vmem:[%s810 + $0x70] sm:$0xff]
                  %827 = vst [vmem:[%s811 + $0x38] sm:$0xff] %v826
                  %v828 = vld [vmem:[%s810 + $0x80] sm:$0xff]
                  %829 = vst [vmem:[%s811 + $0x40] sm:$0xff] %v828
                  %v830 = vld [vmem:[%s810 + $0x90] sm:$0xff]
                  %831 = vst [vmem:[%s811 + $0x48] sm:$0xff] %v830
                  %v832 = vld [vmem:[%s810 + $0xa0] sm:$0xff]
                  %833 = vst [vmem:[%s811 + $0x50] sm:$0xff] %v832
                  %v834 = vld [vmem:[%s810 + $0xb0] sm:$0xff]
                  %835 = vst [vmem:[%s811 + $0x58] sm:$0xff] %v834
                  %v836 = vld [vmem:[%s810 + $0xc0] sm:$0xff]
                  %837 = vst [vmem:[%s811 + $0x60] sm:$0xff] %v836
                  %v838 = vld [vmem:[%s810 + $0xd0] sm:$0xff]
                  %839 = vst [vmem:[%s811 + $0x68] sm:$0xff] %v838
                  %v840 = vld [vmem:[%s810 + $0xe0] sm:$0xff]
                  %841 = vst [vmem:[%s811 + $0x70] sm:$0xff] %v840
                  %v842 = vld [vmem:[%s810 + $0xf0] sm:$0xff]
                  %843 = vst [vmem:[%s811 + $0x78] sm:$0xff] %v842
                  %v844 = vld [vmem:[%s810 + $0x100] sm:$0xff]
                  %845 = vst [vmem:[%s811 + $0x80] sm:$0xff] %v844
                  %v846 = vld [vmem:[%s810 + $0x110] sm:$0xff]
                  %847 = vst [vmem:[%s811 + $0x88] sm:$0xff] %v846
                  %v848 = vld [vmem:[%s810 + $0x120] sm:$0xff]
                  %849 = vst [vmem:[%s811 + $0x90] sm:$0xff] %v848
                  %v850 = vld [vmem:[%s810 + $0x130] sm:$0xff]
                  %851 = vst [vmem:[%s811 + $0x98] sm:$0xff] %v850
                  %v852 = vld [vmem:[%s810 + $0x140] sm:$0xff]
                  %853 = vst [vmem:[%s811 + $0xa0] sm:$0xff] %v852
                  %v854 = vld [vmem:[%s810 + $0x150] sm:$0xff]
                  %855 = vst [vmem:[%s811 + $0xa8] sm:$0xff] %v854
                  %v856 = vld [vmem:[%s810 + $0x160] sm:$0xff]
                  %857 = vst [vmem:[%s811 + $0xb0] sm:$0xff] %v856
                  %v858 = vld [vmem:[%s810 + $0x170] sm:$0xff]
                  %859 = vst [vmem:[%s811 + $0xb8] sm:$0xff] %v858
                  %v860 = vld [vmem:[%s810 + $0x180] sm:$0xff]
                  %861 = vst [vmem:[%s811 + $0xc0] sm:$0xff] %v860
                  %v862 = vld [vmem:[%s810 + $0x190] sm:$0xff]
                  %863 = vst [vmem:[%s811 + $0xc8] sm:$0xff] %v862
                  %v864 = vld [vmem:[%s810 + $0x1a0] sm:$0xff]
                  %865 = vst [vmem:[%s811 + $0xd0] sm:$0xff] %v864
                  %v866 = vld [vmem:[%s810 + $0x1b0] sm:$0xff]
                  %867 = vst [vmem:[%s811 + $0xd8] sm:$0xff] %v866
                  %v868 = vld [vmem:[%s810 + $0x1c0] sm:$0xff]
                  %869 = vst [vmem:[%s811 + $0xe0] sm:$0xff] %v868
                  %v870 = vld [vmem:[%s810 + $0x1d0] sm:$0xff]
                  %871 = vst [vmem:[%s811 + $0xe8] sm:$0xff] %v870
                  %v872 = vld [vmem:[%s810 + $0x1e0] sm:$0xff]
                  %873 = vst [vmem:[%s811 + $0xf0] sm:$0xff] %v872
                  %v874 = vld [vmem:[%s810 + $0x1f0] sm:$0xff]
                  %875 = vst [vmem:[%s811 + $0xf8] sm:$0xff] %v874
                  %v876 = vld [vmem:[%s810 + $0x200] sm:$0xff]
                  %877 = vst [vmem:[%s811 + $0x100] sm:$0xff] %v876
                  %v878 = vld [vmem:[%s810 + $0x210] sm:$0xff]
                  %879 = vst [vmem:[%s811 + $0x108] sm:$0xff] %v878
                  %v880 = vld [vmem:[%s810 + $0x220] sm:$0xff]
                  %881 = vst [vmem:[%s811 + $0x110] sm:$0xff] %v880
                  %v882 = vld [vmem:[%s810 + $0x230] sm:$0xff]
                  %883 = vst [vmem:[%s811 + $0x118] sm:$0xff] %v882
                  %v884 = vld [vmem:[%s810 + $0x240] sm:$0xff]
                  %885 = vst [vmem:[%s811 + $0x120] sm:$0xff] %v884
                  %v886 = vld [vmem:[%s810 + $0x250] sm:$0xff]
                  %887 = vst [vmem:[%s811 + $0x128] sm:$0xff] %v886
                  %v888 = vld [vmem:[%s810 + $0x260] sm:$0xff]
                  %889 = vst [vmem:[%s811 + $0x130] sm:$0xff] %v888
                  %v890 = vld [vmem:[%s810 + $0x270] sm:$0xff]
                  %891 = vst [vmem:[%s811 + $0x138] sm:$0xff] %v890
                  %v892 = vld [vmem:[%s810 + $0x280] sm:$0xff]
                  %893 = vst [vmem:[%s811 + $0x140] sm:$0xff] %v892
                  %v894 = vld [vmem:[%s810 + $0x290] sm:$0xff]
                  %895 = vst [vmem:[%s811 + $0x148] sm:$0xff] %v894
                  %v896 = vld [vmem:[%s810 + $0x2a0] sm:$0xff]
                  %897 = vst [vmem:[%s811 + $0x150] sm:$0xff] %v896
                  %v898 = vld [vmem:[%s810 + $0x2b0] sm:$0xff]
                  %899 = vst [vmem:[%s811 + $0x158] sm:$0xff] %v898
                  %v900 = vld [vmem:[%s810 + $0x2c0] sm:$0xff]
                  %901 = vst [vmem:[%s811 + $0x160] sm:$0xff] %v900
                  %v902 = vld [vmem:[%s810 + $0x2d0] sm:$0xff]
                  %903 = vst [vmem:[%s811 + $0x168] sm:$0xff] %v902
                  %v904 = vld [vmem:[%s810 + $0x2e0] sm:$0xff]
                  %905 = vst [vmem:[%s811 + $0x170] sm:$0xff] %v904
                  %v906 = vld [vmem:[%s810 + $0x2f0] sm:$0xff]
                  %907 = vst [vmem:[%s811 + $0x178] sm:$0xff] %v906
                  %v908 = vld [vmem:[%s810 + $0x300] sm:$0xff]
                  %909 = vst [vmem:[%s811 + $0x180] sm:$0xff] %v908
                  %v910 = vld [vmem:[%s810 + $0x310] sm:$0xff]
                  %911 = vst [vmem:[%s811 + $0x188] sm:$0xff] %v910
                  %v912 = vld [vmem:[%s810 + $0x320] sm:$0xff]
                  %913 = vst [vmem:[%s811 + $0x190] sm:$0xff] %v912
                  %v914 = vld [vmem:[%s810 + $0x330] sm:$0xff]
                  %915 = vst [vmem:[%s811 + $0x198] sm:$0xff] %v914
                  %v916 = vld [vmem:[%s810 + $0x340] sm:$0xff]
                  %917 = vst [vmem:[%s811 + $0x1a0] sm:$0xff] %v916
                  %v918 = vld [vmem:[%s810 + $0x350] sm:$0xff]
                  %919 = vst [vmem:[%s811 + $0x1a8] sm:$0xff] %v918
                  %v920 = vld [vmem:[%s810 + $0x360] sm:$0xff]
                  %921 = vst [vmem:[%s811 + $0x1b0] sm:$0xff] %v920
                  %v922 = vld [vmem:[%s810 + $0x370] sm:$0xff]
                  %923 = vst [vmem:[%s811 + $0x1b8] sm:$0xff] %v922
                  %v924 = vld [vmem:[%s810 + $0x380] sm:$0xff]
                  %925 = vst [vmem:[%s811 + $0x1c0] sm:$0xff] %v924
                  %v926 = vld [vmem:[%s810 + $0x390] sm:$0xff]
                  %927 = vst [vmem:[%s811 + $0x1c8] sm:$0xff] %v926
                  %v928 = vld [vmem:[%s810 + $0x3a0] sm:$0xff]
                  %929 = vst [vmem:[%s811 + $0x1d0] sm:$0xff] %v928
                  %v930 = vld [vmem:[%s810 + $0x3b0] sm:$0xff]
                  %931 = vst [vmem:[%s811 + $0x1d8] sm:$0xff] %v930
                  %v932 = vld [vmem:[%s810 + $0x3c0] sm:$0xff]
                  %933 = vst [vmem:[%s811 + $0x1e0] sm:$0xff] %v932
                  %v934 = vld [vmem:[%s810 + $0x3d0] sm:$0xff]
                  %935 = vst [vmem:[%s811 + $0x1e8] sm:$0xff] %v934
                  %v936 = vld [vmem:[%s810 + $0x3e0] sm:$0xff]
                  %937 = vst [vmem:[%s811 + $0x1f0] sm:$0xff] %v936
                  %v938 = vld [vmem:[%s810 + $0x3f0] sm:$0xff]
                  %939 = vst [vmem:[%s811 + $0x1f8] sm:$0xff] %v938
                  %v940 = vld [vmem:[%s810 + $0x400] sm:$0xff]
                  %941 = vst [vmem:[%s811 + $0x200] sm:$0xff] %v940
                  %v942 = vld [vmem:[%s810 + $0x410] sm:$0xff]
                  %943 = vst [vmem:[%s811 + $0x208] sm:$0xff] %v942
                  %v944 = vld [vmem:[%s810 + $0x420] sm:$0xff]
                  %945 = vst [vmem:[%s811 + $0x210] sm:$0xff] %v944
                  %v946 = vld [vmem:[%s810 + $0x430] sm:$0xff]
                  %947 = vst [vmem:[%s811 + $0x218] sm:$0xff] %v946
                  %v948 = vld [vmem:[%s810 + $0x440] sm:$0xff]
                  %949 = vst [vmem:[%s811 + $0x220] sm:$0xff] %v948
                  %v950 = vld [vmem:[%s810 + $0x450] sm:$0xff]
                  %951 = vst [vmem:[%s811 + $0x228] sm:$0xff] %v950
                  %v952 = vld [vmem:[%s810 + $0x460] sm:$0xff]
                  %953 = vst [vmem:[%s811 + $0x230] sm:$0xff] %v952
                  %v954 = vld [vmem:[%s810 + $0x470] sm:$0xff]
                  %955 = vst [vmem:[%s811 + $0x238] sm:$0xff] %v954
                  %v956 = vld [vmem:[%s810 + $0x480] sm:$0xff]
                  %957 = vst [vmem:[%s811 + $0x240] sm:$0xff] %v956
                  %v958 = vld [vmem:[%s810 + $0x490] sm:$0xff]
                  %959 = vst [vmem:[%s811 + $0x248] sm:$0xff] %v958
                  %v960 = vld [vmem:[%s810 + $0x4a0] sm:$0xff]
                  %961 = vst [vmem:[%s811 + $0x250] sm:$0xff] %v960
                  %v962 = vld [vmem:[%s810 + $0x4b0] sm:$0xff]
                  %963 = vst [vmem:[%s811 + $0x258] sm:$0xff] %v962
                  %v964 = vld [vmem:[%s810 + $0x4c0] sm:$0xff]
                  %965 = vst [vmem:[%s811 + $0x260] sm:$0xff] %v964
                  %v966 = vld [vmem:[%s810 + $0x4d0] sm:$0xff]
                  %967 = vst [vmem:[%s811 + $0x268] sm:$0xff] %v966
                  %v968 = vld [vmem:[%s810 + $0x4e0] sm:$0xff]
                  %969 = vst [vmem:[%s811 + $0x270] sm:$0xff] %v968
                  %v970 = vld [vmem:[%s810 + $0x4f0] sm:$0xff]
                  %971 = vst [vmem:[%s811 + $0x278] sm:$0xff] %v970
                  %v972 = vld [vmem:[%s810 + $0x500] sm:$0xff]
                  %973 = vst [vmem:[%s811 + $0x280] sm:$0xff] %v972
                  %v974 = vld [vmem:[%s810 + $0x510] sm:$0xff]
                  %975 = vst [vmem:[%s811 + $0x288] sm:$0xff] %v974
                  %v976 = vld [vmem:[%s810 + $0x520] sm:$0xff]
                  %977 = vst [vmem:[%s811 + $0x290] sm:$0xff] %v976
                  %v978 = vld [vmem:[%s810 + $0x530] sm:$0xff]
                  %979 = vst [vmem:[%s811 + $0x298] sm:$0xff] %v978
                  %v980 = vld [vmem:[%s810 + $0x540] sm:$0xff]
                  %981 = vst [vmem:[%s811 + $0x2a0] sm:$0xff] %v980
                  %v982 = vld [vmem:[%s810 + $0x550] sm:$0xff]
                  %983 = vst [vmem:[%s811 + $0x2a8] sm:$0xff] %v982
                  %v984 = vld [vmem:[%s810 + $0x560] sm:$0xff]
                  %985 = vst [vmem:[%s811 + $0x2b0] sm:$0xff] %v984
                  %v986 = vld [vmem:[%s810 + $0x570] sm:$0xff]
                  %987 = vst [vmem:[%s811 + $0x2b8] sm:$0xff] %v986
                  %v988 = vld [vmem:[%s810 + $0x580] sm:$0xff]
                  %989 = vst [vmem:[%s811 + $0x2c0] sm:$0xff] %v988
                  %v990 = vld [vmem:[%s810 + $0x590] sm:$0xff]
                  %991 = vst [vmem:[%s811 + $0x2c8] sm:$0xff] %v990
                  %v992 = vld [vmem:[%s810 + $0x5a0] sm:$0xff]
                  %993 = vst [vmem:[%s811 + $0x2d0] sm:$0xff] %v992
                  %v994 = vld [vmem:[%s810 + $0x5b0] sm:$0xff]
                  %995 = vst [vmem:[%s811 + $0x2d8] sm:$0xff] %v994
                  %v996 = vld [vmem:[%s810 + $0x5c0] sm:$0xff]
                  %997 = vst [vmem:[%s811 + $0x2e0] sm:$0xff] %v996
                  %v998 = vld [vmem:[%s810 + $0x5d0] sm:$0xff]
                  %999 = vst [vmem:[%s811 + $0x2e8] sm:$0xff] %v998
                  %v1000 = vld [vmem:[%s810 + $0x5e0] sm:$0xff]
                  %1001 = vst [vmem:[%s811 + $0x2f0] sm:$0xff] %v1000
                  %v1002 = vld [vmem:[%s810 + $0x5f0] sm:$0xff]
                  %1003 = vst [vmem:[%s811 + $0x2f8] sm:$0xff] %v1002
                  %v1004 = vld [vmem:[%s810 + $0x600] sm:$0xff]
                  %1005 = vst [vmem:[%s811 + $0x300] sm:$0xff] %v1004
                  %v1006 = vld [vmem:[%s810 + $0x610] sm:$0xff]
                  %1007 = vst [vmem:[%s811 + $0x308] sm:$0xff] %v1006
                  %v1008 = vld [vmem:[%s810 + $0x620] sm:$0xff]
                  %1009 = vst [vmem:[%s811 + $0x310] sm:$0xff] %v1008
                  %v1010 = vld [vmem:[%s810 + $0x630] sm:$0xff]
                  %1011 = vst [vmem:[%s811 + $0x318] sm:$0xff] %v1010
                  %v1012 = vld [vmem:[%s810 + $0x640] sm:$0xff]
                  %1013 = vst [vmem:[%s811 + $0x320] sm:$0xff] %v1012
                  %v1014 = vld [vmem:[%s810 + $0x650] sm:$0xff]
                  %1015 = vst [vmem:[%s811 + $0x328] sm:$0xff] %v1014
                  %v1016 = vld [vmem:[%s810 + $0x660] sm:$0xff]
                  %1017 = vst [vmem:[%s811 + $0x330] sm:$0xff] %v1016
                  %v1018 = vld [vmem:[%s810 + $0x670] sm:$0xff]
                  %1019 = vst [vmem:[%s811 + $0x338] sm:$0xff] %v1018
                  %v1020 = vld [vmem:[%s810 + $0x680] sm:$0xff]
                  %1021 = vst [vmem:[%s811 + $0x340] sm:$0xff] %v1020
                  %v1022 = vld [vmem:[%s810 + $0x690] sm:$0xff]
                  %1023 = vst [vmem:[%s811 + $0x348] sm:$0xff] %v1022
                  %v1024 = vld [vmem:[%s810 + $0x6a0] sm:$0xff]
                  %1025 = vst [vmem:[%s811 + $0x350] sm:$0xff] %v1024
                  %v1026 = vld [vmem:[%s810 + $0x6b0] sm:$0xff]
                  %1027 = vst [vmem:[%s811 + $0x358] sm:$0xff] %v1026
                  %v1028 = vld [vmem:[%s810 + $0x6c0] sm:$0xff]
                  %1029 = vst [vmem:[%s811 + $0x360] sm:$0xff] %v1028
                  %v1030 = vld [vmem:[%s810 + $0x6d0] sm:$0xff]
                  %1031 = vst [vmem:[%s811 + $0x368] sm:$0xff] %v1030
                  %v1032 = vld [vmem:[%s810 + $0x6e0] sm:$0xff]
                  %1033 = vst [vmem:[%s811 + $0x370] sm:$0xff] %v1032
                  %v1034 = vld [vmem:[%s810 + $0x6f0] sm:$0xff]
                  %1035 = vst [vmem:[%s811 + $0x378] sm:$0xff] %v1034
                  %v1036 = vld [vmem:[%s810 + $0x700] sm:$0xff]
                  %1037 = vst [vmem:[%s811 + $0x380] sm:$0xff] %v1036
                  %v1038 = vld [vmem:[%s810 + $0x710] sm:$0xff]
                  %1039 = vst [vmem:[%s811 + $0x388] sm:$0xff] %v1038
                  %v1040 = vld [vmem:[%s810 + $0x720] sm:$0xff]
                  %1041 = vst [vmem:[%s811 + $0x390] sm:$0xff] %v1040
                  %v1042 = vld [vmem:[%s810 + $0x730] sm:$0xff]
                  %1043 = vst [vmem:[%s811 + $0x398] sm:$0xff] %v1042
                  %v1044 = vld [vmem:[%s810 + $0x740] sm:$0xff]
                  %1045 = vst [vmem:[%s811 + $0x3a0] sm:$0xff] %v1044
                  %v1046 = vld [vmem:[%s810 + $0x750] sm:$0xff]
                  %1047 = vst [vmem:[%s811 + $0x3a8] sm:$0xff] %v1046
                  %v1048 = vld [vmem:[%s810 + $0x760] sm:$0xff]
                  %1049 = vst [vmem:[%s811 + $0x3b0] sm:$0xff] %v1048
                  %v1050 = vld [vmem:[%s810 + $0x770] sm:$0xff]
                  %1051 = vst [vmem:[%s811 + $0x3b8] sm:$0xff] %v1050
                  %v1052 = vld [vmem:[%s810 + $0x780] sm:$0xff]
                  %1053 = vst [vmem:[%s811 + $0x3c0] sm:$0xff] %v1052
                  %v1054 = vld [vmem:[%s810 + $0x790] sm:$0xff]
                  %1055 = vst [vmem:[%s811 + $0x3c8] sm:$0xff] %v1054
                  %v1056 = vld [vmem:[%s810 + $0x7a0] sm:$0xff]
                  %1057 = vst [vmem:[%s811 + $0x3d0] sm:$0xff] %v1056
                  %v1058 = vld [vmem:[%s810 + $0x7b0] sm:$0xff]
                  %1059 = vst [vmem:[%s811 + $0x3d8] sm:$0xff] %v1058
                  %v1060 = vld [vmem:[%s810 + $0x7c0] sm:$0xff]
                  %1061 = vst [vmem:[%s811 + $0x3e0] sm:$0xff] %v1060
                  %v1062 = vld [vmem:[%s810 + $0x7d0] sm:$0xff]
                  %1063 = vst [vmem:[%s811 + $0x3e8] sm:$0xff] %v1062
                  %v1064 = vld [vmem:[%s810 + $0x7e0] sm:$0xff]
                  %1065 = vst [vmem:[%s811 + $0x3f0] sm:$0xff] %v1064
                  %v1066 = vld [vmem:[%s810 + $0x7f0] sm:$0xff]
                  %1067 = vst [vmem:[%s811 + $0x3f8] sm:$0xff] %v1066
                  %v1068 = vld [vmem:[%s810 + $0x800] sm:$0xff]
                  %1069 = vst [vmem:[%s811 + $0x400] sm:$0xff] %v1068
                  %v1070 = vld [vmem:[%s810 + $0x810] sm:$0xff]
                  %1071 = vst [vmem:[%s811 + $0x408] sm:$0xff] %v1070
                  %v1072 = vld [vmem:[%s810 + $0x820] sm:$0xff]
                  %1073 = vst [vmem:[%s811 + $0x410] sm:$0xff] %v1072
                  %v1074 = vld [vmem:[%s810 + $0x830] sm:$0xff]
                  %1075 = vst [vmem:[%s811 + $0x418] sm:$0xff] %v1074
                  %v1076 = vld [vmem:[%s810 + $0x840] sm:$0xff]
                  %1077 = vst [vmem:[%s811 + $0x420] sm:$0xff] %v1076
                  %v1078 = vld [vmem:[%s810 + $0x850] sm:$0xff]
                  %1079 = vst [vmem:[%s811 + $0x428] sm:$0xff] %v1078
                  %v1080 = vld [vmem:[%s810 + $0x860] sm:$0xff]
                  %1081 = vst [vmem:[%s811 + $0x430] sm:$0xff] %v1080
                  %v1082 = vld [vmem:[%s810 + $0x870] sm:$0xff]
                  %1083 = vst [vmem:[%s811 + $0x438] sm:$0xff] %v1082
                  %v1084 = vld [vmem:[%s810 + $0x880] sm:$0xff]
                  %1085 = vst [vmem:[%s811 + $0x440] sm:$0xff] %v1084
                  %v1086 = vld [vmem:[%s810 + $0x890] sm:$0xff]
                  %1087 = vst [vmem:[%s811 + $0x448] sm:$0xff] %v1086
                  %v1088 = vld [vmem:[%s810 + $0x8a0] sm:$0xff]
                  %1089 = vst [vmem:[%s811 + $0x450] sm:$0xff] %v1088
                  %v1090 = vld [vmem:[%s810 + $0x8b0] sm:$0xff]
                  %1091 = vst [vmem:[%s811 + $0x458] sm:$0xff] %v1090
                  %v1092 = vld [vmem:[%s810 + $0x8c0] sm:$0xff]
                  %1093 = vst [vmem:[%s811 + $0x460] sm:$0xff] %v1092
                  %v1094 = vld [vmem:[%s810 + $0x8d0] sm:$0xff]
                  %1095 = vst [vmem:[%s811 + $0x468] sm:$0xff] %v1094
                  %v1096 = vld [vmem:[%s810 + $0x8e0] sm:$0xff]
                  %1097 = vst [vmem:[%s811 + $0x470] sm:$0xff] %v1096
                  %v1098 = vld [vmem:[%s810 + $0x8f0] sm:$0xff]
                  %1099 = vst [vmem:[%s811 + $0x478] sm:$0xff] %v1098
                  %v1100 = vld [vmem:[%s810 + $0x900] sm:$0xff]
                  %1101 = vst [vmem:[%s811 + $0x480] sm:$0xff] %v1100
                  %v1102 = vld [vmem:[%s810 + $0x910] sm:$0xff]
                  %1103 = vst [vmem:[%s811 + $0x488] sm:$0xff] %v1102
                  %v1104 = vld [vmem:[%s810 + $0x920] sm:$0xff]
                  %1105 = vst [vmem:[%s811 + $0x490] sm:$0xff] %v1104
                  %v1106 = vld [vmem:[%s810 + $0x930] sm:$0xff]
                  %1107 = vst [vmem:[%s811 + $0x498] sm:$0xff] %v1106
                  %v1108 = vld [vmem:[%s810 + $0x940] sm:$0xff]
                  %1109 = vst [vmem:[%s811 + $0x4a0] sm:$0xff] %v1108
                  %v1110 = vld [vmem:[%s810 + $0x950] sm:$0xff]
                  %1111 = vst [vmem:[%s811 + $0x4a8] sm:$0xff] %v1110
                  %v1112 = vld [vmem:[%s810 + $0x960] sm:$0xff]
                  %1113 = vst [vmem:[%s811 + $0x4b0] sm:$0xff] %v1112
                  %v1114 = vld [vmem:[%s810 + $0x970] sm:$0xff]
                  %1115 = vst [vmem:[%s811 + $0x4b8] sm:$0xff] %v1114
                  %v1116 = vld [vmem:[%s810 + $0x980] sm:$0xff]
                  %1117 = vst [vmem:[%s811 + $0x4c0] sm:$0xff] %v1116
                  %v1118 = vld [vmem:[%s810 + $0x990] sm:$0xff]
                  %1119 = vst [vmem:[%s811 + $0x4c8] sm:$0xff] %v1118
                  %v1120 = vld [vmem:[%s810 + $0x9a0] sm:$0xff]
                  %1121 = vst [vmem:[%s811 + $0x4d0] sm:$0xff] %v1120
                  %v1122 = vld [vmem:[%s810 + $0x9b0] sm:$0xff]
                  %1123 = vst [vmem:[%s811 + $0x4d8] sm:$0xff] %v1122
                  %v1124 = vld [vmem:[%s810 + $0x9c0] sm:$0xff]
                  %1125 = vst [vmem:[%s811 + $0x4e0] sm:$0xff] %v1124
                  %v1126 = vld [vmem:[%s810 + $0x9d0] sm:$0xff]
                  %1127 = vst [vmem:[%s811 + $0x4e8] sm:$0xff] %v1126
                  %v1128 = vld [vmem:[%s810 + $0x9e0] sm:$0xff]
                  %1129 = vst [vmem:[%s811 + $0x4f0] sm:$0xff] %v1128
                  %v1130 = vld [vmem:[%s810 + $0x9f0] sm:$0xff]
                  %1131 = vst [vmem:[%s811 + $0x4f8] sm:$0xff] %v1130
                  %v1132 = vld [vmem:[%s810 + $0xa00] sm:$0xff]
                  %1133 = vst [vmem:[%s811 + $0x500] sm:$0xff] %v1132
                  %v1134 = vld [vmem:[%s810 + $0xa10] sm:$0xff]
                  %1135 = vst [vmem:[%s811 + $0x508] sm:$0xff] %v1134
                  %v1136 = vld [vmem:[%s810 + $0xa20] sm:$0xff]
                  %1137 = vst [vmem:[%s811 + $0x510] sm:$0xff] %v1136
                  %v1138 = vld [vmem:[%s810 + $0xa30] sm:$0xff]
                  %1139 = vst [vmem:[%s811 + $0x518] sm:$0xff] %v1138
                  %v1140 = vld [vmem:[%s810 + $0xa40] sm:$0xff]
                  %1141 = vst [vmem:[%s811 + $0x520] sm:$0xff] %v1140
                  %v1142 = vld [vmem:[%s810 + $0xa50] sm:$0xff]
                  %1143 = vst [vmem:[%s811 + $0x528] sm:$0xff] %v1142
                  %v1144 = vld [vmem:[%s810 + $0xa60] sm:$0xff]
                  %1145 = vst [vmem:[%s811 + $0x530] sm:$0xff] %v1144
                  %v1146 = vld [vmem:[%s810 + $0xa70] sm:$0xff]
                  %1147 = vst [vmem:[%s811 + $0x538] sm:$0xff] %v1146
                  %v1148 = vld [vmem:[%s810 + $0xa80] sm:$0xff]
                  %1149 = vst [vmem:[%s811 + $0x540] sm:$0xff] %v1148
                  %v1150 = vld [vmem:[%s810 + $0xa90] sm:$0xff]
                  %1151 = vst [vmem:[%s811 + $0x548] sm:$0xff] %v1150
                  %v1152 = vld [vmem:[%s810 + $0xaa0] sm:$0xff]
                  %1153 = vst [vmem:[%s811 + $0x550] sm:$0xff] %v1152
                  %v1154 = vld [vmem:[%s810 + $0xab0] sm:$0xff]
                  %1155 = vst [vmem:[%s811 + $0x558] sm:$0xff] %v1154
                  %v1156 = vld [vmem:[%s810 + $0xac0] sm:$0xff]
                  %1157 = vst [vmem:[%s811 + $0x560] sm:$0xff] %v1156
                  %v1158 = vld [vmem:[%s810 + $0xad0] sm:$0xff]
                  %1159 = vst [vmem:[%s811 + $0x568] sm:$0xff] %v1158
                  %v1160 = vld [vmem:[%s810 + $0xae0] sm:$0xff]
                  %1161 = vst [vmem:[%s811 + $0x570] sm:$0xff] %v1160
                  %v1162 = vld [vmem:[%s810 + $0xaf0] sm:$0xff]
                  %1163 = vst [vmem:[%s811 + $0x578] sm:$0xff] %v1162
                  %v1164 = vld [vmem:[%s810 + $0xb00] sm:$0xff]
                  %1165 = vst [vmem:[%s811 + $0x580] sm:$0xff] %v1164
                  %v1166 = vld [vmem:[%s810 + $0xb10] sm:$0xff]
                  %1167 = vst [vmem:[%s811 + $0x588] sm:$0xff] %v1166
                  %v1168 = vld [vmem:[%s810 + $0xb20] sm:$0xff]
                  %1169 = vst [vmem:[%s811 + $0x590] sm:$0xff] %v1168
                  %v1170 = vld [vmem:[%s810 + $0xb30] sm:$0xff]
                  %1171 = vst [vmem:[%s811 + $0x598] sm:$0xff] %v1170
                  %v1172 = vld [vmem:[%s810 + $0xb40] sm:$0xff]
                  %1173 = vst [vmem:[%s811 + $0x5a0] sm:$0xff] %v1172
                  %v1174 = vld [vmem:[%s810 + $0xb50] sm:$0xff]
                  %1175 = vst [vmem:[%s811 + $0x5a8] sm:$0xff] %v1174
                  %v1176 = vld [vmem:[%s810 + $0xb60] sm:$0xff]
                  %1177 = vst [vmem:[%s811 + $0x5b0] sm:$0xff] %v1176
                  %v1178 = vld [vmem:[%s810 + $0xb70] sm:$0xff]
                  %1179 = vst [vmem:[%s811 + $0x5b8] sm:$0xff] %v1178
                  %v1180 = vld [vmem:[%s810 + $0xb80] sm:$0xff]
                  %1181 = vst [vmem:[%s811 + $0x5c0] sm:$0xff] %v1180
                  %v1182 = vld [vmem:[%s810 + $0xb90] sm:$0xff]
                  %1183 = vst [vmem:[%s811 + $0x5c8] sm:$0xff] %v1182
                  %v1184 = vld [vmem:[%s810 + $0xba0] sm:$0xff]
                  %1185 = vst [vmem:[%s811 + $0x5d0] sm:$0xff] %v1184
                  %v1186 = vld [vmem:[%s810 + $0xbb0] sm:$0xff]
                  %1187 = vst [vmem:[%s811 + $0x5d8] sm:$0xff] %v1186
                  %v1188 = vld [vmem:[%s810 + $0xbc0] sm:$0xff]
                  %1189 = vst [vmem:[%s811 + $0x5e0] sm:$0xff] %v1188
                  %v1190 = vld [vmem:[%s810 + $0xbd0] sm:$0xff]
                  %1191 = vst [vmem:[%s811 + $0x5e8] sm:$0xff] %v1190
                  %v1192 = vld [vmem:[%s810 + $0xbe0] sm:$0xff]
                  %1193 = vst [vmem:[%s811 + $0x5f0] sm:$0xff] %v1192
                  %v1194 = vld [vmem:[%s810 + $0xbf0] sm:$0xff]
                  %1195 = vst [vmem:[%s811 + $0x5f8] sm:$0xff] %v1194
                  %v1196 = vld [vmem:[%s810 + $0xc00] sm:$0xff]
                  %1197 = vst [vmem:[%s811 + $0x600] sm:$0xff] %v1196
                  %v1198 = vld [vmem:[%s810 + $0xc10] sm:$0xff]
                  %1199 = vst [vmem:[%s811 + $0x608] sm:$0xff] %v1198
                  %v1200 = vld [vmem:[%s810 + $0xc20] sm:$0xff]
                  %1201 = vst [vmem:[%s811 + $0x610] sm:$0xff] %v1200
                  %v1202 = vld [vmem:[%s810 + $0xc30] sm:$0xff]
                  %1203 = vst [vmem:[%s811 + $0x618] sm:$0xff] %v1202
                  %v1204 = vld [vmem:[%s810 + $0xc40] sm:$0xff]
                  %1205 = vst [vmem:[%s811 + $0x620] sm:$0xff] %v1204
                  %v1206 = vld [vmem:[%s810 + $0xc50] sm:$0xff]
                  %1207 = vst [vmem:[%s811 + $0x628] sm:$0xff] %v1206
                  %v1208 = vld [vmem:[%s810 + $0xc60] sm:$0xff]
                  %1209 = vst [vmem:[%s811 + $0x630] sm:$0xff] %v1208
                  %v1210 = vld [vmem:[%s810 + $0xc70] sm:$0xff]
                  %1211 = vst [vmem:[%s811 + $0x638] sm:$0xff] %v1210
                  %v1212 = vld [vmem:[%s810 + $0xc80] sm:$0xff]
                  %1213 = vst [vmem:[%s811 + $0x640] sm:$0xff] %v1212
                  %v1214 = vld [vmem:[%s810 + $0xc90] sm:$0xff]
                  %1215 = vst [vmem:[%s811 + $0x648] sm:$0xff] %v1214
                  %v1216 = vld [vmem:[%s810 + $0xca0] sm:$0xff]
                  %1217 = vst [vmem:[%s811 + $0x650] sm:$0xff] %v1216
                  %v1218 = vld [vmem:[%s810 + $0xcb0] sm:$0xff]
                  %1219 = vst [vmem:[%s811 + $0x658] sm:$0xff] %v1218
                  %v1220 = vld [vmem:[%s810 + $0xcc0] sm:$0xff]
                  %1221 = vst [vmem:[%s811 + $0x660] sm:$0xff] %v1220
                  %v1222 = vld [vmem:[%s810 + $0xcd0] sm:$0xff]
                  %1223 = vst [vmem:[%s811 + $0x668] sm:$0xff] %v1222
                  %v1224 = vld [vmem:[%s810 + $0xce0] sm:$0xff]
                  %1225 = vst [vmem:[%s811 + $0x670] sm:$0xff] %v1224
                  %v1226 = vld [vmem:[%s810 + $0xcf0] sm:$0xff]
                  %1227 = vst [vmem:[%s811 + $0x678] sm:$0xff] %v1226
                  %v1228 = vld [vmem:[%s810 + $0xd00] sm:$0xff]
                  %1229 = vst [vmem:[%s811 + $0x680] sm:$0xff] %v1228
                  %v1230 = vld [vmem:[%s810 + $0xd10] sm:$0xff]
                  %1231 = vst [vmem:[%s811 + $0x688] sm:$0xff] %v1230
                  %v1232 = vld [vmem:[%s810 + $0xd20] sm:$0xff]
                  %1233 = vst [vmem:[%s811 + $0x690] sm:$0xff] %v1232
                  %v1234 = vld [vmem:[%s810 + $0xd30] sm:$0xff]
                  %1235 = vst [vmem:[%s811 + $0x698] sm:$0xff] %v1234
                  %v1236 = vld [vmem:[%s810 + $0xd40] sm:$0xff]
                  %1237 = vst [vmem:[%s811 + $0x6a0] sm:$0xff] %v1236
                  %v1238 = vld [vmem:[%s810 + $0xd50] sm:$0xff]
                  %1239 = vst [vmem:[%s811 + $0x6a8] sm:$0xff] %v1238
                  %v1240 = vld [vmem:[%s810 + $0xd60] sm:$0xff]
                  %1241 = vst [vmem:[%s811 + $0x6b0] sm:$0xff] %v1240
                  %v1242 = vld [vmem:[%s810 + $0xd70] sm:$0xff]
                  %1243 = vst [vmem:[%s811 + $0x6b8] sm:$0xff] %v1242
                  %v1244 = vld [vmem:[%s810 + $0xd80] sm:$0xff]
                  %1245 = vst [vmem:[%s811 + $0x6c0] sm:$0xff] %v1244
                  %v1246 = vld [vmem:[%s810 + $0xd90] sm:$0xff]
                  %1247 = vst [vmem:[%s811 + $0x6c8] sm:$0xff] %v1246
                  %v1248 = vld [vmem:[%s810 + $0xda0] sm:$0xff]
                  %1249 = vst [vmem:[%s811 + $0x6d0] sm:$0xff] %v1248
                  %v1250 = vld [vmem:[%s810 + $0xdb0] sm:$0xff]
                  %1251 = vst [vmem:[%s811 + $0x6d8] sm:$0xff] %v1250
                  %v1252 = vld [vmem:[%s810 + $0xdc0] sm:$0xff]
                  %1253 = vst [vmem:[%s811 + $0x6e0] sm:$0xff] %v1252
                  %v1254 = vld [vmem:[%s810 + $0xdd0] sm:$0xff]
                  %1255 = vst [vmem:[%s811 + $0x6e8] sm:$0xff] %v1254
                  %v1256 = vld [vmem:[%s810 + $0xde0] sm:$0xff]
                  %1257 = vst [vmem:[%s811 + $0x6f0] sm:$0xff] %v1256
                  %v1258 = vld [vmem:[%s810 + $0xdf0] sm:$0xff]
                  %1259 = vst [vmem:[%s811 + $0x6f8] sm:$0xff] %v1258
                  %v1260 = vld [vmem:[%s810 + $0xe00] sm:$0xff]
                  %1261 = vst [vmem:[%s811 + $0x700] sm:$0xff] %v1260
                  %v1262 = vld [vmem:[%s810 + $0xe10] sm:$0xff]
                  %1263 = vst [vmem:[%s811 + $0x708] sm:$0xff] %v1262
                  %v1264 = vld [vmem:[%s810 + $0xe20] sm:$0xff]
                  %1265 = vst [vmem:[%s811 + $0x710] sm:$0xff] %v1264
                  %v1266 = vld [vmem:[%s810 + $0xe30] sm:$0xff]
                  %1267 = vst [vmem:[%s811 + $0x718] sm:$0xff] %v1266
                  %v1268 = vld [vmem:[%s810 + $0xe40] sm:$0xff]
                  %1269 = vst [vmem:[%s811 + $0x720] sm:$0xff] %v1268
                  %v1270 = vld [vmem:[%s810 + $0xe50] sm:$0xff]
                  %1271 = vst [vmem:[%s811 + $0x728] sm:$0xff] %v1270
                  %v1272 = vld [vmem:[%s810 + $0xe60] sm:$0xff]
                  %1273 = vst [vmem:[%s811 + $0x730] sm:$0xff] %v1272
                  %v1274 = vld [vmem:[%s810 + $0xe70] sm:$0xff]
                  %1275 = vst [vmem:[%s811 + $0x738] sm:$0xff] %v1274
                  %v1276 = vld [vmem:[%s810 + $0xe80] sm:$0xff]
                  %1277 = vst [vmem:[%s811 + $0x740] sm:$0xff] %v1276
                  %v1278 = vld [vmem:[%s810 + $0xe90] sm:$0xff]
                  %1279 = vst [vmem:[%s811 + $0x748] sm:$0xff] %v1278
                  %v1280 = vld [vmem:[%s810 + $0xea0] sm:$0xff]
                  %1281 = vst [vmem:[%s811 + $0x750] sm:$0xff] %v1280
                  %v1282 = vld [vmem:[%s810 + $0xeb0] sm:$0xff]
                  %1283 = vst [vmem:[%s811 + $0x758] sm:$0xff] %v1282
                  %v1284 = vld [vmem:[%s810 + $0xec0] sm:$0xff]
                  %1285 = vst [vmem:[%s811 + $0x760] sm:$0xff] %v1284
                  %v1286 = vld [vmem:[%s810 + $0xed0] sm:$0xff]
                  %1287 = vst [vmem:[%s811 + $0x768] sm:$0xff] %v1286
                  %v1288 = vld [vmem:[%s810 + $0xee0] sm:$0xff]
                  %1289 = vst [vmem:[%s811 + $0x770] sm:$0xff] %v1288
                  %v1290 = vld [vmem:[%s810 + $0xef0] sm:$0xff]
                  %1291 = vst [vmem:[%s811 + $0x778] sm:$0xff] %v1290
                  %v1292 = vld [vmem:[%s810 + $0xf00] sm:$0xff]
                  %1293 = vst [vmem:[%s811 + $0x780] sm:$0xff] %v1292
                  %v1294 = vld [vmem:[%s810 + $0xf10] sm:$0xff]
                  %1295 = vst [vmem:[%s811 + $0x788] sm:$0xff] %v1294
                  %v1296 = vld [vmem:[%s810 + $0xf20] sm:$0xff]
                  %1297 = vst [vmem:[%s811 + $0x790] sm:$0xff] %v1296
                  %v1298 = vld [vmem:[%s810 + $0xf30] sm:$0xff]
                  %1299 = vst [vmem:[%s811 + $0x798] sm:$0xff] %v1298
                  %v1300 = vld [vmem:[%s810 + $0xf40] sm:$0xff]
                  %1301 = vst [vmem:[%s811 + $0x7a0] sm:$0xff] %v1300
                  %v1302 = vld [vmem:[%s810 + $0xf50] sm:$0xff]
                  %1303 = vst [vmem:[%s811 + $0x7a8] sm:$0xff] %v1302
                  %v1304 = vld [vmem:[%s810 + $0xf60] sm:$0xff]
                  %1305 = vst [vmem:[%s811 + $0x7b0] sm:$0xff] %v1304
                  %v1306 = vld [vmem:[%s810 + $0xf70] sm:$0xff]
                  %1307 = vst [vmem:[%s811 + $0x7b8] sm:$0xff] %v1306
                  %v1308 = vld [vmem:[%s810 + $0xf80] sm:$0xff]
                  %1309 = vst [vmem:[%s811 + $0x7c0] sm:$0xff] %v1308
                  %v1310 = vld [vmem:[%s810 + $0xf90] sm:$0xff]
                  %1311 = vst [vmem:[%s811 + $0x7c8] sm:$0xff] %v1310
                  %v1312 = vld [vmem:[%s810 + $0xfa0] sm:$0xff]
                  %1313 = vst [vmem:[%s811 + $0x7d0] sm:$0xff] %v1312
                  %v1314 = vld [vmem:[%s810 + $0xfb0] sm:$0xff]
                  %1315 = vst [vmem:[%s811 + $0x7d8] sm:$0xff] %v1314
                  %v1316 = vld [vmem:[%s810 + $0xfc0] sm:$0xff]
                  %1317 = vst [vmem:[%s811 + $0x7e0] sm:$0xff] %v1316
                  %v1318 = vld [vmem:[%s810 + $0xfd0] sm:$0xff]
                  %1319 = vst [vmem:[%s811 + $0x7e8] sm:$0xff] %v1318
                  %v1320 = vld [vmem:[%s810 + $0xfe0] sm:$0xff]
                  %1321 = vst [vmem:[%s811 + $0x7f0] sm:$0xff] %v1320
                  %v1322 = vld [vmem:[%s810 + $0xff0] sm:$0xff]
                  %1323 = vst [vmem:[%s811 + $0x7f8] sm:$0xff] %v1322
                $region71: #{discriminator_forward.7} parent=65 // loop_footer
                  %s809 = sadd.s32 1, %s805
                $region72: #{discriminator_forward.7} parent=65 // loop_footer_branch
                  %804 = sbr.rel target = $region68
                $region73: #{discriminator_forward.7} parent=65 // loop_exit
                  _
              $region66: #{discriminator_forward.7} parent=50 // pred_fallthru
                _
              // Predicated region
              $region74: #{discriminator_forward.7} parent=50 // pred_check
                _
              $region75: #{discriminator_forward.7} parent=50 // pred_check_branch
                %1325 = sbr.rel target = $region77
              $region76: #{discriminator_forward.7} parent=50 // pred_region
                _
              $region77: #{discriminator_forward.7} parent=50 // pred_fallthru
                _
            $region51: #{discriminator_forward.7} parent=46 // pred_fallthru
              _
            // Predicated region
            $region52: #{discriminator_forward.7} parent=46 // pred_check
              _
            $region53: #{discriminator_forward.7} parent=46 // pred_check_branch
              %280 = sbr.rel target = $region55
            $region54: #{discriminator_forward.7} parent=46 // pred_region
              loop: start=0, step=1, limit=1
              $region56: #{discriminator_forward.7} parent=54 // loop_pre_header
                _
              $region57: #{discriminator_forward.7} parent=54 // loop_header
                %s283 = sphi 0, %s287
                %p284 = scmp.ge.s32.totalorder %s283, 1
                %s288 = sphi %s274, %s274
                %s289 = sphi %s268, %s268
              $region58: #{discriminator_forward.7} parent=54 // loop_header_branch
                %286 = sbr.rel (%p284) target = $region62
              $region59: #{discriminator_forward.7} parent=54 // loop_body
                %v290 = vld [vmem:[%s288] sm:$0xff]
                %291 = vst [vmem:[%s289] sm:$0xff] %v290
                %v292 = vld [vmem:[%s288 + $0x10] sm:$0xff]
                %293 = vst [vmem:[%s289 + $0x8] sm:$0xff] %v292
                %v294 = vld [vmem:[%s288 + $0x20] sm:$0xff]
                %295 = vst [vmem:[%s289 + $0x10] sm:$0xff] %v294
                %v296 = vld [vmem:[%s288 + $0x30] sm:$0xff]
                %297 = vst [vmem:[%s289 + $0x18] sm:$0xff] %v296
                %v298 = vld [vmem:[%s288 + $0x40] sm:$0xff]
                %299 = vst [vmem:[%s289 + $0x20] sm:$0xff] %v298
                %v300 = vld [vmem:[%s288 + $0x50] sm:$0xff]
                %301 = vst [vmem:[%s289 + $0x28] sm:$0xff] %v300
                %v302 = vld [vmem:[%s288 + $0x60] sm:$0xff]
                %303 = vst [vmem:[%s289 + $0x30] sm:$0xff] %v302
                %v304 = vld [vmem:[%s288 + $0x70] sm:$0xff]
                %305 = vst [vmem:[%s289 + $0x38] sm:$0xff] %v304
                %v306 = vld [vmem:[%s288 + $0x80] sm:$0xff]
                %307 = vst [vmem:[%s289 + $0x40] sm:$0xff] %v306
                %v308 = vld [vmem:[%s288 + $0x90] sm:$0xff]
                %309 = vst [vmem:[%s289 + $0x48] sm:$0xff] %v308
                %v310 = vld [vmem:[%s288 + $0xa0] sm:$0xff]
                %311 = vst [vmem:[%s289 + $0x50] sm:$0xff] %v310
                %v312 = vld [vmem:[%s288 + $0xb0] sm:$0xff]
                %313 = vst [vmem:[%s289 + $0x58] sm:$0xff] %v312
                %v314 = vld [vmem:[%s288 + $0xc0] sm:$0xff]
                %315 = vst [vmem:[%s289 + $0x60] sm:$0xff] %v314
                %v316 = vld [vmem:[%s288 + $0xd0] sm:$0xff]
                %317 = vst [vmem:[%s289 + $0x68] sm:$0xff] %v316
                %v318 = vld [vmem:[%s288 + $0xe0] sm:$0xff]
                %319 = vst [vmem:[%s289 + $0x70] sm:$0xff] %v318
                %v320 = vld [vmem:[%s288 + $0xf0] sm:$0xff]
                %321 = vst [vmem:[%s289 + $0x78] sm:$0xff] %v320
                %v322 = vld [vmem:[%s288 + $0x100] sm:$0xff]
                %323 = vst [vmem:[%s289 + $0x80] sm:$0xff] %v322
                %v324 = vld [vmem:[%s288 + $0x110] sm:$0xff]
                %325 = vst [vmem:[%s289 + $0x88] sm:$0xff] %v324
                %v326 = vld [vmem:[%s288 + $0x120] sm:$0xff]
                %327 = vst [vmem:[%s289 + $0x90] sm:$0xff] %v326
                %v328 = vld [vmem:[%s288 + $0x130] sm:$0xff]
                %329 = vst [vmem:[%s289 + $0x98] sm:$0xff] %v328
                %v330 = vld [vmem:[%s288 + $0x140] sm:$0xff]
                %331 = vst [vmem:[%s289 + $0xa0] sm:$0xff] %v330
                %v332 = vld [vmem:[%s288 + $0x150] sm:$0xff]
                %333 = vst [vmem:[%s289 + $0xa8] sm:$0xff] %v332
                %v334 = vld [vmem:[%s288 + $0x160] sm:$0xff]
                %335 = vst [vmem:[%s289 + $0xb0] sm:$0xff] %v334
                %v336 = vld [vmem:[%s288 + $0x170] sm:$0xff]
                %337 = vst [vmem:[%s289 + $0xb8] sm:$0xff] %v336
                %v338 = vld [vmem:[%s288 + $0x180] sm:$0xff]
                %339 = vst [vmem:[%s289 + $0xc0] sm:$0xff] %v338
                %v340 = vld [vmem:[%s288 + $0x190] sm:$0xff]
                %341 = vst [vmem:[%s289 + $0xc8] sm:$0xff] %v340
                %v342 = vld [vmem:[%s288 + $0x1a0] sm:$0xff]
                %343 = vst [vmem:[%s289 + $0xd0] sm:$0xff] %v342
                %v344 = vld [vmem:[%s288 + $0x1b0] sm:$0xff]
                %345 = vst [vmem:[%s289 + $0xd8] sm:$0xff] %v344
                %v346 = vld [vmem:[%s288 + $0x1c0] sm:$0xff]
                %347 = vst [vmem:[%s289 + $0xe0] sm:$0xff] %v346
                %v348 = vld [vmem:[%s288 + $0x1d0] sm:$0xff]
                %349 = vst [vmem:[%s289 + $0xe8] sm:$0xff] %v348
                %v350 = vld [vmem:[%s288 + $0x1e0] sm:$0xff]
                %351 = vst [vmem:[%s289 + $0xf0] sm:$0xff] %v350
                %v352 = vld [vmem:[%s288 + $0x1f0] sm:$0xff]
                %353 = vst [vmem:[%s289 + $0xf8] sm:$0xff] %v352
                %v354 = vld [vmem:[%s288 + $0x200] sm:$0xff]
                %355 = vst [vmem:[%s289 + $0x100] sm:$0xff] %v354
                %v356 = vld [vmem:[%s288 + $0x210] sm:$0xff]
                %357 = vst [vmem:[%s289 + $0x108] sm:$0xff] %v356
                %v358 = vld [vmem:[%s288 + $0x220] sm:$0xff]
                %359 = vst [vmem:[%s289 + $0x110] sm:$0xff] %v358
                %v360 = vld [vmem:[%s288 + $0x230] sm:$0xff]
                %361 = vst [vmem:[%s289 + $0x118] sm:$0xff] %v360
                %v362 = vld [vmem:[%s288 + $0x240] sm:$0xff]
                %363 = vst [vmem:[%s289 + $0x120] sm:$0xff] %v362
                %v364 = vld [vmem:[%s288 + $0x250] sm:$0xff]
                %365 = vst [vmem:[%s289 + $0x128] sm:$0xff] %v364
                %v366 = vld [vmem:[%s288 + $0x260] sm:$0xff]
                %367 = vst [vmem:[%s289 + $0x130] sm:$0xff] %v366
                %v368 = vld [vmem:[%s288 + $0x270] sm:$0xff]
                %369 = vst [vmem:[%s289 + $0x138] sm:$0xff] %v368
                %v370 = vld [vmem:[%s288 + $0x280] sm:$0xff]
                %371 = vst [vmem:[%s289 + $0x140] sm:$0xff] %v370
                %v372 = vld [vmem:[%s288 + $0x290] sm:$0xff]
                %373 = vst [vmem:[%s289 + $0x148] sm:$0xff] %v372
                %v374 = vld [vmem:[%s288 + $0x2a0] sm:$0xff]
                %375 = vst [vmem:[%s289 + $0x150] sm:$0xff] %v374
                %v376 = vld [vmem:[%s288 + $0x2b0] sm:$0xff]
                %377 = vst [vmem:[%s289 + $0x158] sm:$0xff] %v376
                %v378 = vld [vmem:[%s288 + $0x2c0] sm:$0xff]
                %379 = vst [vmem:[%s289 + $0x160] sm:$0xff] %v378
                %v380 = vld [vmem:[%s288 + $0x2d0] sm:$0xff]
                %381 = vst [vmem:[%s289 + $0x168] sm:$0xff] %v380
                %v382 = vld [vmem:[%s288 + $0x2e0] sm:$0xff]
                %383 = vst [vmem:[%s289 + $0x170] sm:$0xff] %v382
                %v384 = vld [vmem:[%s288 + $0x2f0] sm:$0xff]
                %385 = vst [vmem:[%s289 + $0x178] sm:$0xff] %v384
                %v386 = vld [vmem:[%s288 + $0x300] sm:$0xff]
                %387 = vst [vmem:[%s289 + $0x180] sm:$0xff] %v386
                %v388 = vld [vmem:[%s288 + $0x310] sm:$0xff]
                %389 = vst [vmem:[%s289 + $0x188] sm:$0xff] %v388
                %v390 = vld [vmem:[%s288 + $0x320] sm:$0xff]
                %391 = vst [vmem:[%s289 + $0x190] sm:$0xff] %v390
                %v392 = vld [vmem:[%s288 + $0x330] sm:$0xff]
                %393 = vst [vmem:[%s289 + $0x198] sm:$0xff] %v392
                %v394 = vld [vmem:[%s288 + $0x340] sm:$0xff]
                %395 = vst [vmem:[%s289 + $0x1a0] sm:$0xff] %v394
                %v396 = vld [vmem:[%s288 + $0x350] sm:$0xff]
                %397 = vst [vmem:[%s289 + $0x1a8] sm:$0xff] %v396
                %v398 = vld [vmem:[%s288 + $0x360] sm:$0xff]
                %399 = vst [vmem:[%s289 + $0x1b0] sm:$0xff] %v398
                %v400 = vld [vmem:[%s288 + $0x370] sm:$0xff]
                %401 = vst [vmem:[%s289 + $0x1b8] sm:$0xff] %v400
                %v402 = vld [vmem:[%s288 + $0x380] sm:$0xff]
                %403 = vst [vmem:[%s289 + $0x1c0] sm:$0xff] %v402
                %v404 = vld [vmem:[%s288 + $0x390] sm:$0xff]
                %405 = vst [vmem:[%s289 + $0x1c8] sm:$0xff] %v404
                %v406 = vld [vmem:[%s288 + $0x3a0] sm:$0xff]
                %407 = vst [vmem:[%s289 + $0x1d0] sm:$0xff] %v406
                %v408 = vld [vmem:[%s288 + $0x3b0] sm:$0xff]
                %409 = vst [vmem:[%s289 + $0x1d8] sm:$0xff] %v408
                %v410 = vld [vmem:[%s288 + $0x3c0] sm:$0xff]
                %411 = vst [vmem:[%s289 + $0x1e0] sm:$0xff] %v410
                %v412 = vld [vmem:[%s288 + $0x3d0] sm:$0xff]
                %413 = vst [vmem:[%s289 + $0x1e8] sm:$0xff] %v412
                %v414 = vld [vmem:[%s288 + $0x3e0] sm:$0xff]
                %415 = vst [vmem:[%s289 + $0x1f0] sm:$0xff] %v414
                %v416 = vld [vmem:[%s288 + $0x3f0] sm:$0xff]
                %417 = vst [vmem:[%s289 + $0x1f8] sm:$0xff] %v416
                %v418 = vld [vmem:[%s288 + $0x400] sm:$0xff]
                %419 = vst [vmem:[%s289 + $0x200] sm:$0xff] %v418
                %v420 = vld [vmem:[%s288 + $0x410] sm:$0xff]
                %421 = vst [vmem:[%s289 + $0x208] sm:$0xff] %v420
                %v422 = vld [vmem:[%s288 + $0x420] sm:$0xff]
                %423 = vst [vmem:[%s289 + $0x210] sm:$0xff] %v422
                %v424 = vld [vmem:[%s288 + $0x430] sm:$0xff]
                %425 = vst [vmem:[%s289 + $0x218] sm:$0xff] %v424
                %v426 = vld [vmem:[%s288 + $0x440] sm:$0xff]
                %427 = vst [vmem:[%s289 + $0x220] sm:$0xff] %v426
                %v428 = vld [vmem:[%s288 + $0x450] sm:$0xff]
                %429 = vst [vmem:[%s289 + $0x228] sm:$0xff] %v428
                %v430 = vld [vmem:[%s288 + $0x460] sm:$0xff]
                %431 = vst [vmem:[%s289 + $0x230] sm:$0xff] %v430
                %v432 = vld [vmem:[%s288 + $0x470] sm:$0xff]
                %433 = vst [vmem:[%s289 + $0x238] sm:$0xff] %v432
                %v434 = vld [vmem:[%s288 + $0x480] sm:$0xff]
                %435 = vst [vmem:[%s289 + $0x240] sm:$0xff] %v434
                %v436 = vld [vmem:[%s288 + $0x490] sm:$0xff]
                %437 = vst [vmem:[%s289 + $0x248] sm:$0xff] %v436
                %v438 = vld [vmem:[%s288 + $0x4a0] sm:$0xff]
                %439 = vst [vmem:[%s289 + $0x250] sm:$0xff] %v438
                %v440 = vld [vmem:[%s288 + $0x4b0] sm:$0xff]
                %441 = vst [vmem:[%s289 + $0x258] sm:$0xff] %v440
                %v442 = vld [vmem:[%s288 + $0x4c0] sm:$0xff]
                %443 = vst [vmem:[%s289 + $0x260] sm:$0xff] %v442
                %v444 = vld [vmem:[%s288 + $0x4d0] sm:$0xff]
                %445 = vst [vmem:[%s289 + $0x268] sm:$0xff] %v444
                %v446 = vld [vmem:[%s288 + $0x4e0] sm:$0xff]
                %447 = vst [vmem:[%s289 + $0x270] sm:$0xff] %v446
                %v448 = vld [vmem:[%s288 + $0x4f0] sm:$0xff]
                %449 = vst [vmem:[%s289 + $0x278] sm:$0xff] %v448
                %v450 = vld [vmem:[%s288 + $0x500] sm:$0xff]
                %451 = vst [vmem:[%s289 + $0x280] sm:$0xff] %v450
                %v452 = vld [vmem:[%s288 + $0x510] sm:$0xff]
                %453 = vst [vmem:[%s289 + $0x288] sm:$0xff] %v452
                %v454 = vld [vmem:[%s288 + $0x520] sm:$0xff]
                %455 = vst [vmem:[%s289 + $0x290] sm:$0xff] %v454
                %v456 = vld [vmem:[%s288 + $0x530] sm:$0xff]
                %457 = vst [vmem:[%s289 + $0x298] sm:$0xff] %v456
                %v458 = vld [vmem:[%s288 + $0x540] sm:$0xff]
                %459 = vst [vmem:[%s289 + $0x2a0] sm:$0xff] %v458
                %v460 = vld [vmem:[%s288 + $0x550] sm:$0xff]
                %461 = vst [vmem:[%s289 + $0x2a8] sm:$0xff] %v460
                %v462 = vld [vmem:[%s288 + $0x560] sm:$0xff]
                %463 = vst [vmem:[%s289 + $0x2b0] sm:$0xff] %v462
                %v464 = vld [vmem:[%s288 + $0x570] sm:$0xff]
                %465 = vst [vmem:[%s289 + $0x2b8] sm:$0xff] %v464
                %v466 = vld [vmem:[%s288 + $0x580] sm:$0xff]
                %467 = vst [vmem:[%s289 + $0x2c0] sm:$0xff] %v466
                %v468 = vld [vmem:[%s288 + $0x590] sm:$0xff]
                %469 = vst [vmem:[%s289 + $0x2c8] sm:$0xff] %v468
                %v470 = vld [vmem:[%s288 + $0x5a0] sm:$0xff]
                %471 = vst [vmem:[%s289 + $0x2d0] sm:$0xff] %v470
                %v472 = vld [vmem:[%s288 + $0x5b0] sm:$0xff]
                %473 = vst [vmem:[%s289 + $0x2d8] sm:$0xff] %v472
                %v474 = vld [vmem:[%s288 + $0x5c0] sm:$0xff]
                %475 = vst [vmem:[%s289 + $0x2e0] sm:$0xff] %v474
                %v476 = vld [vmem:[%s288 + $0x5d0] sm:$0xff]
                %477 = vst [vmem:[%s289 + $0x2e8] sm:$0xff] %v476
                %v478 = vld [vmem:[%s288 + $0x5e0] sm:$0xff]
                %479 = vst [vmem:[%s289 + $0x2f0] sm:$0xff] %v478
                %v480 = vld [vmem:[%s288 + $0x5f0] sm:$0xff]
                %481 = vst [vmem:[%s289 + $0x2f8] sm:$0xff] %v480
                %v482 = vld [vmem:[%s288 + $0x600] sm:$0xff]
                %483 = vst [vmem:[%s289 + $0x300] sm:$0xff] %v482
                %v484 = vld [vmem:[%s288 + $0x610] sm:$0xff]
                %485 = vst [vmem:[%s289 + $0x308] sm:$0xff] %v484
                %v486 = vld [vmem:[%s288 + $0x620] sm:$0xff]
                %487 = vst [vmem:[%s289 + $0x310] sm:$0xff] %v486
                %v488 = vld [vmem:[%s288 + $0x630] sm:$0xff]
                %489 = vst [vmem:[%s289 + $0x318] sm:$0xff] %v488
                %v490 = vld [vmem:[%s288 + $0x640] sm:$0xff]
                %491 = vst [vmem:[%s289 + $0x320] sm:$0xff] %v490
                %v492 = vld [vmem:[%s288 + $0x650] sm:$0xff]
                %493 = vst [vmem:[%s289 + $0x328] sm:$0xff] %v492
                %v494 = vld [vmem:[%s288 + $0x660] sm:$0xff]
                %495 = vst [vmem:[%s289 + $0x330] sm:$0xff] %v494
                %v496 = vld [vmem:[%s288 + $0x670] sm:$0xff]
                %497 = vst [vmem:[%s289 + $0x338] sm:$0xff] %v496
                %v498 = vld [vmem:[%s288 + $0x680] sm:$0xff]
                %499 = vst [vmem:[%s289 + $0x340] sm:$0xff] %v498
                %v500 = vld [vmem:[%s288 + $0x690] sm:$0xff]
                %501 = vst [vmem:[%s289 + $0x348] sm:$0xff] %v500
                %v502 = vld [vmem:[%s288 + $0x6a0] sm:$0xff]
                %503 = vst [vmem:[%s289 + $0x350] sm:$0xff] %v502
                %v504 = vld [vmem:[%s288 + $0x6b0] sm:$0xff]
                %505 = vst [vmem:[%s289 + $0x358] sm:$0xff] %v504
                %v506 = vld [vmem:[%s288 + $0x6c0] sm:$0xff]
                %507 = vst [vmem:[%s289 + $0x360] sm:$0xff] %v506
                %v508 = vld [vmem:[%s288 + $0x6d0] sm:$0xff]
                %509 = vst [vmem:[%s289 + $0x368] sm:$0xff] %v508
                %v510 = vld [vmem:[%s288 + $0x6e0] sm:$0xff]
                %511 = vst [vmem:[%s289 + $0x370] sm:$0xff] %v510
                %v512 = vld [vmem:[%s288 + $0x6f0] sm:$0xff]
                %513 = vst [vmem:[%s289 + $0x378] sm:$0xff] %v512
                %v514 = vld [vmem:[%s288 + $0x700] sm:$0xff]
                %515 = vst [vmem:[%s289 + $0x380] sm:$0xff] %v514
                %v516 = vld [vmem:[%s288 + $0x710] sm:$0xff]
                %517 = vst [vmem:[%s289 + $0x388] sm:$0xff] %v516
                %v518 = vld [vmem:[%s288 + $0x720] sm:$0xff]
                %519 = vst [vmem:[%s289 + $0x390] sm:$0xff] %v518
                %v520 = vld [vmem:[%s288 + $0x730] sm:$0xff]
                %521 = vst [vmem:[%s289 + $0x398] sm:$0xff] %v520
                %v522 = vld [vmem:[%s288 + $0x740] sm:$0xff]
                %523 = vst [vmem:[%s289 + $0x3a0] sm:$0xff] %v522
                %v524 = vld [vmem:[%s288 + $0x750] sm:$0xff]
                %525 = vst [vmem:[%s289 + $0x3a8] sm:$0xff] %v524
                %v526 = vld [vmem:[%s288 + $0x760] sm:$0xff]
                %527 = vst [vmem:[%s289 + $0x3b0] sm:$0xff] %v526
                %v528 = vld [vmem:[%s288 + $0x770] sm:$0xff]
                %529 = vst [vmem:[%s289 + $0x3b8] sm:$0xff] %v528
                %v530 = vld [vmem:[%s288 + $0x780] sm:$0xff]
                %531 = vst [vmem:[%s289 + $0x3c0] sm:$0xff] %v530
                %v532 = vld [vmem:[%s288 + $0x790] sm:$0xff]
                %533 = vst [vmem:[%s289 + $0x3c8] sm:$0xff] %v532
                %v534 = vld [vmem:[%s288 + $0x7a0] sm:$0xff]
                %535 = vst [vmem:[%s289 + $0x3d0] sm:$0xff] %v534
                %v536 = vld [vmem:[%s288 + $0x7b0] sm:$0xff]
                %537 = vst [vmem:[%s289 + $0x3d8] sm:$0xff] %v536
                %v538 = vld [vmem:[%s288 + $0x7c0] sm:$0xff]
                %539 = vst [vmem:[%s289 + $0x3e0] sm:$0xff] %v538
                %v540 = vld [vmem:[%s288 + $0x7d0] sm:$0xff]
                %541 = vst [vmem:[%s289 + $0x3e8] sm:$0xff] %v540
                %v542 = vld [vmem:[%s288 + $0x7e0] sm:$0xff]
                %543 = vst [vmem:[%s289 + $0x3f0] sm:$0xff] %v542
                %v544 = vld [vmem:[%s288 + $0x7f0] sm:$0xff]
                %545 = vst [vmem:[%s289 + $0x3f8] sm:$0xff] %v544
                %v546 = vld [vmem:[%s288 + $0x800] sm:$0xff]
                %547 = vst [vmem:[%s289 + $0x400] sm:$0xff] %v546
                %v548 = vld [vmem:[%s288 + $0x810] sm:$0xff]
                %549 = vst [vmem:[%s289 + $0x408] sm:$0xff] %v548
                %v550 = vld [vmem:[%s288 + $0x820] sm:$0xff]
                %551 = vst [vmem:[%s289 + $0x410] sm:$0xff] %v550
                %v552 = vld [vmem:[%s288 + $0x830] sm:$0xff]
                %553 = vst [vmem:[%s289 + $0x418] sm:$0xff] %v552
                %v554 = vld [vmem:[%s288 + $0x840] sm:$0xff]
                %555 = vst [vmem:[%s289 + $0x420] sm:$0xff] %v554
                %v556 = vld [vmem:[%s288 + $0x850] sm:$0xff]
                %557 = vst [vmem:[%s289 + $0x428] sm:$0xff] %v556
                %v558 = vld [vmem:[%s288 + $0x860] sm:$0xff]
                %559 = vst [vmem:[%s289 + $0x430] sm:$0xff] %v558
                %v560 = vld [vmem:[%s288 + $0x870] sm:$0xff]
                %561 = vst [vmem:[%s289 + $0x438] sm:$0xff] %v560
                %v562 = vld [vmem:[%s288 + $0x880] sm:$0xff]
                %563 = vst [vmem:[%s289 + $0x440] sm:$0xff] %v562
                %v564 = vld [vmem:[%s288 + $0x890] sm:$0xff]
                %565 = vst [vmem:[%s289 + $0x448] sm:$0xff] %v564
                %v566 = vld [vmem:[%s288 + $0x8a0] sm:$0xff]
                %567 = vst [vmem:[%s289 + $0x450] sm:$0xff] %v566
                %v568 = vld [vmem:[%s288 + $0x8b0] sm:$0xff]
                %569 = vst [vmem:[%s289 + $0x458] sm:$0xff] %v568
                %v570 = vld [vmem:[%s288 + $0x8c0] sm:$0xff]
                %571 = vst [vmem:[%s289 + $0x460] sm:$0xff] %v570
                %v572 = vld [vmem:[%s288 + $0x8d0] sm:$0xff]
                %573 = vst [vmem:[%s289 + $0x468] sm:$0xff] %v572
                %v574 = vld [vmem:[%s288 + $0x8e0] sm:$0xff]
                %575 = vst [vmem:[%s289 + $0x470] sm:$0xff] %v574
                %v576 = vld [vmem:[%s288 + $0x8f0] sm:$0xff]
                %577 = vst [vmem:[%s289 + $0x478] sm:$0xff] %v576
                %v578 = vld [vmem:[%s288 + $0x900] sm:$0xff]
                %579 = vst [vmem:[%s289 + $0x480] sm:$0xff] %v578
                %v580 = vld [vmem:[%s288 + $0x910] sm:$0xff]
                %581 = vst [vmem:[%s289 + $0x488] sm:$0xff] %v580
                %v582 = vld [vmem:[%s288 + $0x920] sm:$0xff]
                %583 = vst [vmem:[%s289 + $0x490] sm:$0xff] %v582
                %v584 = vld [vmem:[%s288 + $0x930] sm:$0xff]
                %585 = vst [vmem:[%s289 + $0x498] sm:$0xff] %v584
                %v586 = vld [vmem:[%s288 + $0x940] sm:$0xff]
                %587 = vst [vmem:[%s289 + $0x4a0] sm:$0xff] %v586
                %v588 = vld [vmem:[%s288 + $0x950] sm:$0xff]
                %589 = vst [vmem:[%s289 + $0x4a8] sm:$0xff] %v588
                %v590 = vld [vmem:[%s288 + $0x960] sm:$0xff]
                %591 = vst [vmem:[%s289 + $0x4b0] sm:$0xff] %v590
                %v592 = vld [vmem:[%s288 + $0x970] sm:$0xff]
                %593 = vst [vmem:[%s289 + $0x4b8] sm:$0xff] %v592
                %v594 = vld [vmem:[%s288 + $0x980] sm:$0xff]
                %595 = vst [vmem:[%s289 + $0x4c0] sm:$0xff] %v594
                %v596 = vld [vmem:[%s288 + $0x990] sm:$0xff]
                %597 = vst [vmem:[%s289 + $0x4c8] sm:$0xff] %v596
                %v598 = vld [vmem:[%s288 + $0x9a0] sm:$0xff]
                %599 = vst [vmem:[%s289 + $0x4d0] sm:$0xff] %v598
                %v600 = vld [vmem:[%s288 + $0x9b0] sm:$0xff]
                %601 = vst [vmem:[%s289 + $0x4d8] sm:$0xff] %v600
                %v602 = vld [vmem:[%s288 + $0x9c0] sm:$0xff]
                %603 = vst [vmem:[%s289 + $0x4e0] sm:$0xff] %v602
                %v604 = vld [vmem:[%s288 + $0x9d0] sm:$0xff]
                %605 = vst [vmem:[%s289 + $0x4e8] sm:$0xff] %v604
                %v606 = vld [vmem:[%s288 + $0x9e0] sm:$0xff]
                %607 = vst [vmem:[%s289 + $0x4f0] sm:$0xff] %v606
                %v608 = vld [vmem:[%s288 + $0x9f0] sm:$0xff]
                %609 = vst [vmem:[%s289 + $0x4f8] sm:$0xff] %v608
                %v610 = vld [vmem:[%s288 + $0xa00] sm:$0xff]
                %611 = vst [vmem:[%s289 + $0x500] sm:$0xff] %v610
                %v612 = vld [vmem:[%s288 + $0xa10] sm:$0xff]
                %613 = vst [vmem:[%s289 + $0x508] sm:$0xff] %v612
                %v614 = vld [vmem:[%s288 + $0xa20] sm:$0xff]
                %615 = vst [vmem:[%s289 + $0x510] sm:$0xff] %v614
                %v616 = vld [vmem:[%s288 + $0xa30] sm:$0xff]
                %617 = vst [vmem:[%s289 + $0x518] sm:$0xff] %v616
                %v618 = vld [vmem:[%s288 + $0xa40] sm:$0xff]
                %619 = vst [vmem:[%s289 + $0x520] sm:$0xff] %v618
                %v620 = vld [vmem:[%s288 + $0xa50] sm:$0xff]
                %621 = vst [vmem:[%s289 + $0x528] sm:$0xff] %v620
                %v622 = vld [vmem:[%s288 + $0xa60] sm:$0xff]
                %623 = vst [vmem:[%s289 + $0x530] sm:$0xff] %v622
                %v624 = vld [vmem:[%s288 + $0xa70] sm:$0xff]
                %625 = vst [vmem:[%s289 + $0x538] sm:$0xff] %v624
                %v626 = vld [vmem:[%s288 + $0xa80] sm:$0xff]
                %627 = vst [vmem:[%s289 + $0x540] sm:$0xff] %v626
                %v628 = vld [vmem:[%s288 + $0xa90] sm:$0xff]
                %629 = vst [vmem:[%s289 + $0x548] sm:$0xff] %v628
                %v630 = vld [vmem:[%s288 + $0xaa0] sm:$0xff]
                %631 = vst [vmem:[%s289 + $0x550] sm:$0xff] %v630
                %v632 = vld [vmem:[%s288 + $0xab0] sm:$0xff]
                %633 = vst [vmem:[%s289 + $0x558] sm:$0xff] %v632
                %v634 = vld [vmem:[%s288 + $0xac0] sm:$0xff]
                %635 = vst [vmem:[%s289 + $0x560] sm:$0xff] %v634
                %v636 = vld [vmem:[%s288 + $0xad0] sm:$0xff]
                %637 = vst [vmem:[%s289 + $0x568] sm:$0xff] %v636
                %v638 = vld [vmem:[%s288 + $0xae0] sm:$0xff]
                %639 = vst [vmem:[%s289 + $0x570] sm:$0xff] %v638
                %v640 = vld [vmem:[%s288 + $0xaf0] sm:$0xff]
                %641 = vst [vmem:[%s289 + $0x578] sm:$0xff] %v640
                %v642 = vld [vmem:[%s288 + $0xb00] sm:$0xff]
                %643 = vst [vmem:[%s289 + $0x580] sm:$0xff] %v642
                %v644 = vld [vmem:[%s288 + $0xb10] sm:$0xff]
                %645 = vst [vmem:[%s289 + $0x588] sm:$0xff] %v644
                %v646 = vld [vmem:[%s288 + $0xb20] sm:$0xff]
                %647 = vst [vmem:[%s289 + $0x590] sm:$0xff] %v646
                %v648 = vld [vmem:[%s288 + $0xb30] sm:$0xff]
                %649 = vst [vmem:[%s289 + $0x598] sm:$0xff] %v648
                %v650 = vld [vmem:[%s288 + $0xb40] sm:$0xff]
                %651 = vst [vmem:[%s289 + $0x5a0] sm:$0xff] %v650
                %v652 = vld [vmem:[%s288 + $0xb50] sm:$0xff]
                %653 = vst [vmem:[%s289 + $0x5a8] sm:$0xff] %v652
                %v654 = vld [vmem:[%s288 + $0xb60] sm:$0xff]
                %655 = vst [vmem:[%s289 + $0x5b0] sm:$0xff] %v654
                %v656 = vld [vmem:[%s288 + $0xb70] sm:$0xff]
                %657 = vst [vmem:[%s289 + $0x5b8] sm:$0xff] %v656
                %v658 = vld [vmem:[%s288 + $0xb80] sm:$0xff]
                %659 = vst [vmem:[%s289 + $0x5c0] sm:$0xff] %v658
                %v660 = vld [vmem:[%s288 + $0xb90] sm:$0xff]
                %661 = vst [vmem:[%s289 + $0x5c8] sm:$0xff] %v660
                %v662 = vld [vmem:[%s288 + $0xba0] sm:$0xff]
                %663 = vst [vmem:[%s289 + $0x5d0] sm:$0xff] %v662
                %v664 = vld [vmem:[%s288 + $0xbb0] sm:$0xff]
                %665 = vst [vmem:[%s289 + $0x5d8] sm:$0xff] %v664
                %v666 = vld [vmem:[%s288 + $0xbc0] sm:$0xff]
                %667 = vst [vmem:[%s289 + $0x5e0] sm:$0xff] %v666
                %v668 = vld [vmem:[%s288 + $0xbd0] sm:$0xff]
                %669 = vst [vmem:[%s289 + $0x5e8] sm:$0xff] %v668
                %v670 = vld [vmem:[%s288 + $0xbe0] sm:$0xff]
                %671 = vst [vmem:[%s289 + $0x5f0] sm:$0xff] %v670
                %v672 = vld [vmem:[%s288 + $0xbf0] sm:$0xff]
                %673 = vst [vmem:[%s289 + $0x5f8] sm:$0xff] %v672
                %v674 = vld [vmem:[%s288 + $0xc00] sm:$0xff]
                %675 = vst [vmem:[%s289 + $0x600] sm:$0xff] %v674
                %v676 = vld [vmem:[%s288 + $0xc10] sm:$0xff]
                %677 = vst [vmem:[%s289 + $0x608] sm:$0xff] %v676
                %v678 = vld [vmem:[%s288 + $0xc20] sm:$0xff]
                %679 = vst [vmem:[%s289 + $0x610] sm:$0xff] %v678
                %v680 = vld [vmem:[%s288 + $0xc30] sm:$0xff]
                %681 = vst [vmem:[%s289 + $0x618] sm:$0xff] %v680
                %v682 = vld [vmem:[%s288 + $0xc40] sm:$0xff]
                %683 = vst [vmem:[%s289 + $0x620] sm:$0xff] %v682
                %v684 = vld [vmem:[%s288 + $0xc50] sm:$0xff]
                %685 = vst [vmem:[%s289 + $0x628] sm:$0xff] %v684
                %v686 = vld [vmem:[%s288 + $0xc60] sm:$0xff]
                %687 = vst [vmem:[%s289 + $0x630] sm:$0xff] %v686
                %v688 = vld [vmem:[%s288 + $0xc70] sm:$0xff]
                %689 = vst [vmem:[%s289 + $0x638] sm:$0xff] %v688
                %v690 = vld [vmem:[%s288 + $0xc80] sm:$0xff]
                %691 = vst [vmem:[%s289 + $0x640] sm:$0xff] %v690
                %v692 = vld [vmem:[%s288 + $0xc90] sm:$0xff]
                %693 = vst [vmem:[%s289 + $0x648] sm:$0xff] %v692
                %v694 = vld [vmem:[%s288 + $0xca0] sm:$0xff]
                %695 = vst [vmem:[%s289 + $0x650] sm:$0xff] %v694
                %v696 = vld [vmem:[%s288 + $0xcb0] sm:$0xff]
                %697 = vst [vmem:[%s289 + $0x658] sm:$0xff] %v696
                %v698 = vld [vmem:[%s288 + $0xcc0] sm:$0xff]
                %699 = vst [vmem:[%s289 + $0x660] sm:$0xff] %v698
                %v700 = vld [vmem:[%s288 + $0xcd0] sm:$0xff]
                %701 = vst [vmem:[%s289 + $0x668] sm:$0xff] %v700
                %v702 = vld [vmem:[%s288 + $0xce0] sm:$0xff]
                %703 = vst [vmem:[%s289 + $0x670] sm:$0xff] %v702
                %v704 = vld [vmem:[%s288 + $0xcf0] sm:$0xff]
                %705 = vst [vmem:[%s289 + $0x678] sm:$0xff] %v704
                %v706 = vld [vmem:[%s288 + $0xd00] sm:$0xff]
                %707 = vst [vmem:[%s289 + $0x680] sm:$0xff] %v706
                %v708 = vld [vmem:[%s288 + $0xd10] sm:$0xff]
                %709 = vst [vmem:[%s289 + $0x688] sm:$0xff] %v708
                %v710 = vld [vmem:[%s288 + $0xd20] sm:$0xff]
                %711 = vst [vmem:[%s289 + $0x690] sm:$0xff] %v710
                %v712 = vld [vmem:[%s288 + $0xd30] sm:$0xff]
                %713 = vst [vmem:[%s289 + $0x698] sm:$0xff] %v712
                %v714 = vld [vmem:[%s288 + $0xd40] sm:$0xff]
                %715 = vst [vmem:[%s289 + $0x6a0] sm:$0xff] %v714
                %v716 = vld [vmem:[%s288 + $0xd50] sm:$0xff]
                %717 = vst [vmem:[%s289 + $0x6a8] sm:$0xff] %v716
                %v718 = vld [vmem:[%s288 + $0xd60] sm:$0xff]
                %719 = vst [vmem:[%s289 + $0x6b0] sm:$0xff] %v718
                %v720 = vld [vmem:[%s288 + $0xd70] sm:$0xff]
                %721 = vst [vmem:[%s289 + $0x6b8] sm:$0xff] %v720
                %v722 = vld [vmem:[%s288 + $0xd80] sm:$0xff]
                %723 = vst [vmem:[%s289 + $0x6c0] sm:$0xff] %v722
                %v724 = vld [vmem:[%s288 + $0xd90] sm:$0xff]
                %725 = vst [vmem:[%s289 + $0x6c8] sm:$0xff] %v724
                %v726 = vld [vmem:[%s288 + $0xda0] sm:$0xff]
                %727 = vst [vmem:[%s289 + $0x6d0] sm:$0xff] %v726
                %v728 = vld [vmem:[%s288 + $0xdb0] sm:$0xff]
                %729 = vst [vmem:[%s289 + $0x6d8] sm:$0xff] %v728
                %v730 = vld [vmem:[%s288 + $0xdc0] sm:$0xff]
                %731 = vst [vmem:[%s289 + $0x6e0] sm:$0xff] %v730
                %v732 = vld [vmem:[%s288 + $0xdd0] sm:$0xff]
                %733 = vst [vmem:[%s289 + $0x6e8] sm:$0xff] %v732
                %v734 = vld [vmem:[%s288 + $0xde0] sm:$0xff]
                %735 = vst [vmem:[%s289 + $0x6f0] sm:$0xff] %v734
                %v736 = vld [vmem:[%s288 + $0xdf0] sm:$0xff]
                %737 = vst [vmem:[%s289 + $0x6f8] sm:$0xff] %v736
                %v738 = vld [vmem:[%s288 + $0xe00] sm:$0xff]
                %739 = vst [vmem:[%s289 + $0x700] sm:$0xff] %v738
                %v740 = vld [vmem:[%s288 + $0xe10] sm:$0xff]
                %741 = vst [vmem:[%s289 + $0x708] sm:$0xff] %v740
                %v742 = vld [vmem:[%s288 + $0xe20] sm:$0xff]
                %743 = vst [vmem:[%s289 + $0x710] sm:$0xff] %v742
                %v744 = vld [vmem:[%s288 + $0xe30] sm:$0xff]
                %745 = vst [vmem:[%s289 + $0x718] sm:$0xff] %v744
                %v746 = vld [vmem:[%s288 + $0xe40] sm:$0xff]
                %747 = vst [vmem:[%s289 + $0x720] sm:$0xff] %v746
                %v748 = vld [vmem:[%s288 + $0xe50] sm:$0xff]
                %749 = vst [vmem:[%s289 + $0x728] sm:$0xff] %v748
                %v750 = vld [vmem:[%s288 + $0xe60] sm:$0xff]
                %751 = vst [vmem:[%s289 + $0x730] sm:$0xff] %v750
                %v752 = vld [vmem:[%s288 + $0xe70] sm:$0xff]
                %753 = vst [vmem:[%s289 + $0x738] sm:$0xff] %v752
                %v754 = vld [vmem:[%s288 + $0xe80] sm:$0xff]
                %755 = vst [vmem:[%s289 + $0x740] sm:$0xff] %v754
                %v756 = vld [vmem:[%s288 + $0xe90] sm:$0xff]
                %757 = vst [vmem:[%s289 + $0x748] sm:$0xff] %v756
                %v758 = vld [vmem:[%s288 + $0xea0] sm:$0xff]
                %759 = vst [vmem:[%s289 + $0x750] sm:$0xff] %v758
                %v760 = vld [vmem:[%s288 + $0xeb0] sm:$0xff]
                %761 = vst [vmem:[%s289 + $0x758] sm:$0xff] %v760
                %v762 = vld [vmem:[%s288 + $0xec0] sm:$0xff]
                %763 = vst [vmem:[%s289 + $0x760] sm:$0xff] %v762
                %v764 = vld [vmem:[%s288 + $0xed0] sm:$0xff]
                %765 = vst [vmem:[%s289 + $0x768] sm:$0xff] %v764
                %v766 = vld [vmem:[%s288 + $0xee0] sm:$0xff]
                %767 = vst [vmem:[%s289 + $0x770] sm:$0xff] %v766
                %v768 = vld [vmem:[%s288 + $0xef0] sm:$0xff]
                %769 = vst [vmem:[%s289 + $0x778] sm:$0xff] %v768
                %v770 = vld [vmem:[%s288 + $0xf00] sm:$0xff]
                %771 = vst [vmem:[%s289 + $0x780] sm:$0xff] %v770
                %v772 = vld [vmem:[%s288 + $0xf10] sm:$0xff]
                %773 = vst [vmem:[%s289 + $0x788] sm:$0xff] %v772
                %v774 = vld [vmem:[%s288 + $0xf20] sm:$0xff]
                %775 = vst [vmem:[%s289 + $0x790] sm:$0xff] %v774
                %v776 = vld [vmem:[%s288 + $0xf30] sm:$0xff]
                %777 = vst [vmem:[%s289 + $0x798] sm:$0xff] %v776
                %v778 = vld [vmem:[%s288 + $0xf40] sm:$0xff]
                %779 = vst [vmem:[%s289 + $0x7a0] sm:$0xff] %v778
                %v780 = vld [vmem:[%s288 + $0xf50] sm:$0xff]
                %781 = vst [vmem:[%s289 + $0x7a8] sm:$0xff] %v780
                %v782 = vld [vmem:[%s288 + $0xf60] sm:$0xff]
                %783 = vst [vmem:[%s289 + $0x7b0] sm:$0xff] %v782
                %v784 = vld [vmem:[%s288 + $0xf70] sm:$0xff]
                %785 = vst [vmem:[%s289 + $0x7b8] sm:$0xff] %v784
                %v786 = vld [vmem:[%s288 + $0xf80] sm:$0xff]
                %787 = vst [vmem:[%s289 + $0x7c0] sm:$0xff] %v786
                %v788 = vld [vmem:[%s288 + $0xf90] sm:$0xff]
                %789 = vst [vmem:[%s289 + $0x7c8] sm:$0xff] %v788
                %v790 = vld [vmem:[%s288 + $0xfa0] sm:$0xff]
                %791 = vst [vmem:[%s289 + $0x7d0] sm:$0xff] %v790
                %v792 = vld [vmem:[%s288 + $0xfb0] sm:$0xff]
                %793 = vst [vmem:[%s289 + $0x7d8] sm:$0xff] %v792
                %v794 = vld [vmem:[%s288 + $0xfc0] sm:$0xff]
                %795 = vst [vmem:[%s289 + $0x7e0] sm:$0xff] %v794
                %v796 = vld [vmem:[%s288 + $0xfd0] sm:$0xff]
                %797 = vst [vmem:[%s289 + $0x7e8] sm:$0xff] %v796
                %v798 = vld [vmem:[%s288 + $0xfe0] sm:$0xff]
                %799 = vst [vmem:[%s289 + $0x7f0] sm:$0xff] %v798
                %v800 = vld [vmem:[%s288 + $0xff0] sm:$0xff]
                %801 = vst [vmem:[%s289 + $0x7f8] sm:$0xff] %v800
              $region60: #{discriminator_forward.7} parent=54 // loop_footer
                %s287 = sadd.s32 1, %s283
              $region61: #{discriminator_forward.7} parent=54 // loop_footer_branch
                %282 = sbr.rel target = $region57
              $region62: #{discriminator_forward.7} parent=54 // loop_exit
                _
            $region55: #{discriminator_forward.7} parent=46 // pred_fallthru
              _
          $region47: #{discriminator_forward.7} parent=42 // pred_fallthru
            _
          %1326 = vnop
        $region43: #{discriminator_forward.7} parent=15 // pred_fallthru
          _
        // Predicated region
        $region78: #{discriminator_forward.7} parent=15 // pred_check
          %p1327 = pneg %p96
        $region79: #{discriminator_forward.7} parent=15 // pred_check_branch
          %1329 = sbr.rel (%p1327) target = $region81
        $region80: #{discriminator_forward.7} parent=15 // pred_region
          %s1330 = smul.u32 2, %s17
          %p1331 = scmp.lt.s32.totalorder %s1330, 3
          %s1332 = scalar_select %p1331, %s1330, 3
          %s1333 = scalar_lea.vmem %s2, %s1332
          %s1334 = smul.u32 2, %s17
        $region81: #{discriminator_forward.7} parent=15 // pred_fallthru
          _
        // Predicated region
        $region82: #{discriminator_forward.7} parent=15 // pred_check
          %p1335 = pneg %p122
        $region83: #{discriminator_forward.7} parent=15 // pred_check_branch
          %1337 = sbr.rel (%p1335) target = $region85
        $region84: #{discriminator_forward.7} parent=15 // pred_region
          %s1338 = smul.u32 2, %s17
          %p1339 = scmp.lt.s32.totalorder %s1338, 3
          %s1340 = scalar_select %p1339, %s1338, 3
          %s1341 = scalar_lea.vmem %s3, %s1340
          %s1342 = smul.u32 2, %s17
        $region85: #{discriminator_forward.7} parent=15 // pred_fallthru
          _
      $region16: #{discriminator_forward.7} parent=5 // pred_fallthru
        _
      %p1343 = scmp.le.s32.totalorder 1, %s10
      %p1344 = scmp.lt.s32.totalorder %s10, 5
      %p1345 = pnand %p1343, %p1344
      %p1346 = pneg %p1345
      // Predicated region
      $region86: #{discriminator_forward.7} parent=5 // pred_check
        _
      $region87: #{discriminator_forward.7} parent=5 // pred_check_branch
        %1348 = sbr.rel (%p1345) target = $region89
      $region88: #{discriminator_forward.7} parent=5 // pred_region
        %s1349 = ssub.s32 %s10, 1
        %s1350 = sand.u32 %s35, 1
        %s1351 = sand.u32 %s35, 1
        %s1352 = smul.addr %s1351, 256
        %s1353 = scalar_lea.vmem [#allocation3], %s1352
        // Predicated region
        $region90: #{discriminator_forward.7} parent=88 // pred_check
          %p1354 = pneg %p48
        $region91: #{discriminator_forward.7} parent=88 // pred_check_branch
          %1356 = sbr.rel (%p1354) target = $region93
        $region92: #{discriminator_forward.7} parent=88 // pred_region
          _
        $region93: #{discriminator_forward.7} parent=88 // pred_fallthru
          _
        %s1357 = sand.u32 %s63, 1
        %s1358 = sand.u32 %s63, 1
        %s1359 = smul.addr %s1358, 2048
        %s1360 = scalar_lea.vmem [#allocation4], %s1359
        // Predicated region
        $region94: #{discriminator_forward.7} parent=88 // pred_check
          %p1361 = pneg %p76
        $region95: #{discriminator_forward.7} parent=88 // pred_check_branch
          %1363 = sbr.rel (%p1361) target = $region97
        $region96: #{discriminator_forward.7} parent=88 // pred_region
          _
        $region97: #{discriminator_forward.7} parent=88 // pred_fallthru
          _
        %s1364 = sand.u32 %s35, 1
        %s1365 = sand.u32 %s35, 1
        %s1366 = smul.addr %s1365, 256
        %s1367 = scalar_lea.vmem [#allocation3], %s1366
        %p1368 = pneg %p48
        %p1369 = pneg %p45
        %s1370 = sand.u32 %s63, 1
        %s1371 = sand.u32 %s63, 1
        %s1372 = smul.addr %s1371, 2048
        %s1373 = scalar_lea.vmem [#allocation4], %s1372
        %p1374 = pneg %p76
        %p1375 = pneg %p73
        %s1376 = smul.u32 2, %s19
        %p1377 = scmp.lt.s32.totalorder %s1376, 3
        %s1378 = scalar_select %p1377, %s1376, 3
        %s1379 = scalar_lea.vmem %s2, %s1378
        %p1380 = pneg %p102
        %p1381 = pneg %p99
        %s1382 = smul.u32 2, %s19
        %p1383 = scmp.lt.s32.totalorder %s1382, 3
        %s1384 = scalar_select %p1383, %s1382, 3
        %s1385 = scalar_lea.vmem %s3, %s1384
        %p1386 = pneg %p128
        %p1387 = pneg %p125
        %p1388 = pneg %p154
        %p1389 = pneg %p151
        %s1390 = sand.u32 %s141, 1
        %s1391 = sand.u32 %s141, 1
        %s1392 = smul.addr %s1391, 32
        %s1393 = scalar_lea.vmem [#allocation5], %s1392
        %s1394 = smul.u32 16, %s20
        %s1395 = smul.u32 256, %s20
        %s1396 = smul.u32 2, %s19
        %s1397 = smul.u32 2, %s19
        %p1398 = scmp.lt.s32.totalorder %s1397, 3
        %s1399 = scalar_select %p1398, %s1397, 3
        %s1400 = scalar_lea.vmem %s2, %s1399
        %s1401 = smul.u32 2, %s19
        %s1402 = smul.u32 2, %s19
        %p1403 = scmp.lt.s32.totalorder %s1402, 3
        %s1404 = scalar_select %p1403, %s1402, 3
        %s1405 = scalar_lea.vmem %s3, %s1404
        %s1406 = smul.u32 2, %s19
        %s1407 = smul.u32 2, %s19
        %p1408 = scmp.eq.s32.totalorder %s20, 0
        // Predicated region
        $region98: #{discriminator_forward.7} parent=88 // pred_check
          %p1409 = pneg %p1408
        $region99: #{discriminator_forward.7} parent=88 // pred_check_branch
          %1411 = sbr.rel (%p1409) target = $region101
        $region100: #{discriminator_forward.7} parent=88 // pred_region
          %1412 = vst [vmem:[#allocation2] sm:$0xff] 0.0
          %1413 = vst [vmem:[#allocation2 + $0x8] sm:$0xff] 0.0
          %1414 = vst [vmem:[#allocation2 + $0x10] sm:$0xff] 0.0
          %1415 = vst [vmem:[#allocation2 + $0x18] sm:$0xff] 0.0
          %1416 = vst [vmem:[#allocation2 + $0x20] sm:$0xff] 0.0
          %1417 = vst [vmem:[#allocation2 + $0x28] sm:$0xff] 0.0
          %1418 = vst [vmem:[#allocation2 + $0x30] sm:$0xff] 0.0
          %1419 = vst [vmem:[#allocation2 + $0x38] sm:$0xff] 0.0
        $region101: #{discriminator_forward.7} parent=88 // pred_fallthru
          _
        %v1420 = vld [vmem:[#allocation2] sm:$0xff]
        %v1421 = vld [vmem:[#allocation2 + $0x8] sm:$0xff]
        %v1422 = vld [vmem:[#allocation2 + $0x10] sm:$0xff]
        %v1423 = vld [vmem:[#allocation2 + $0x18] sm:$0xff]
        %v1424 = vld [vmem:[#allocation2 + $0x20] sm:$0xff]
        %v1425 = vld [vmem:[#allocation2 + $0x28] sm:$0xff]
        %v1426 = vld [vmem:[#allocation2 + $0x30] sm:$0xff]
        %v1427 = vld [vmem:[#allocation2 + $0x38] sm:$0xff]
        %v1428 = vld [vmem:[%s1353] sm:$0xff]
        %v1429 = vld [vmem:[%s1353 + $0x8] sm:$0xff]
        %v1430 = vld [vmem:[%s1353 + $0x10] sm:$0xff]
        %v1431 = vld [vmem:[%s1353 + $0x18] sm:$0xff]
        %v1432 = vld [vmem:[%s1353 + $0x20] sm:$0xff]
        %v1433 = vld [vmem:[%s1353 + $0x28] sm:$0xff]
        %v1434 = vld [vmem:[%s1353 + $0x30] sm:$0xff]
        %v1435 = vld [vmem:[%s1353 + $0x38] sm:$0xff]
        %v1436 = vld [vmem:[%s1353 + $0x40] sm:$0xff]
        %v1437 = vld [vmem:[%s1353 + $0x48] sm:$0xff]
        %v1438 = vld [vmem:[%s1353 + $0x50] sm:$0xff]
        %v1439 = vld [vmem:[%s1353 + $0x58] sm:$0xff]
        %v1440 = vld [vmem:[%s1353 + $0x60] sm:$0xff]
        %v1441 = vld [vmem:[%s1353 + $0x68] sm:$0xff]
        %v1442 = vld [vmem:[%s1353 + $0x70] sm:$0xff]
        %v1443 = vld [vmem:[%s1353 + $0x78] sm:$0xff]
        %v1444 = vld [vmem:[%s1353 + $0x80] sm:$0xff]
        %v1445 = vld [vmem:[%s1353 + $0x88] sm:$0xff]
        %v1446 = vld [vmem:[%s1353 + $0x90] sm:$0xff]
        %v1447 = vld [vmem:[%s1353 + $0x98] sm:$0xff]
        %v1448 = vld [vmem:[%s1353 + $0xa0] sm:$0xff]
        %v1449 = vld [vmem:[%s1353 + $0xa8] sm:$0xff]
        %v1450 = vld [vmem:[%s1353 + $0xb0] sm:$0xff]
        %v1451 = vld [vmem:[%s1353 + $0xb8] sm:$0xff]
        %v1452 = vld [vmem:[%s1353 + $0xc0] sm:$0xff]
        %v1453 = vld [vmem:[%s1353 + $0xc8] sm:$0xff]
        %v1454 = vld [vmem:[%s1353 + $0xd0] sm:$0xff]
        %v1455 = vld [vmem:[%s1353 + $0xd8] sm:$0xff]
        %v1456 = vld [vmem:[%s1353 + $0xe0] sm:$0xff]
        %v1457 = vld [vmem:[%s1353 + $0xe8] sm:$0xff]
        %v1458 = vld [vmem:[%s1353 + $0xf0] sm:$0xff]
        %v1459 = vld [vmem:[%s1353 + $0xf8] sm:$0xff]
        %v1460 = vld [vmem:[%s1360] sm:$0xff]
        %v1461 = vld [vmem:[%s1360 + $0x8] sm:$0xff]
        %v1462 = vld [vmem:[%s1360 + $0x10] sm:$0xff]
        %v1463 = vld [vmem:[%s1360 + $0x18] sm:$0xff]
        %v1464 = vld [vmem:[%s1360 + $0x20] sm:$0xff]
        %v1465 = vld [vmem:[%s1360 + $0x28] sm:$0xff]
        %v1466 = vld [vmem:[%s1360 + $0x30] sm:$0xff]
        %v1467 = vld [vmem:[%s1360 + $0x38] sm:$0xff]
        %v1468 = vld [vmem:[%s1360 + $0x40] sm:$0xff]
        %v1469 = vld [vmem:[%s1360 + $0x48] sm:$0xff]
        %v1470 = vld [vmem:[%s1360 + $0x50] sm:$0xff]
        %v1471 = vld [vmem:[%s1360 + $0x58] sm:$0xff]
        %v1472 = vld [vmem:[%s1360 + $0x60] sm:$0xff]
        %v1473 = vld [vmem:[%s1360 + $0x68] sm:$0xff]
        %v1474 = vld [vmem:[%s1360 + $0x70] sm:$0xff]
        %v1475 = vld [vmem:[%s1360 + $0x78] sm:$0xff]
        %v1476 = vld [vmem:[%s1360 + $0x80] sm:$0xff]
        %v1477 = vld [vmem:[%s1360 + $0x88] sm:$0xff]
        %v1478 = vld [vmem:[%s1360 + $0x90] sm:$0xff]
        %v1479 = vld [vmem:[%s1360 + $0x98] sm:$0xff]
        %v1480 = vld [vmem:[%s1360 + $0xa0] sm:$0xff]
        %v1481 = vld [vmem:[%s1360 + $0xa8] sm:$0xff]
        %v1482 = vld [vmem:[%s1360 + $0xb0] sm:$0xff]
        %v1483 = vld [vmem:[%s1360 + $0xb8] sm:$0xff]
        %v1484 = vld [vmem:[%s1360 + $0xc0] sm:$0xff]
        %v1485 = vld [vmem:[%s1360 + $0xc8] sm:$0xff]
        %v1486 = vld [vmem:[%s1360 + $0xd0] sm:$0xff]
        %v1487 = vld [vmem:[%s1360 + $0xd8] sm:$0xff]
        %v1488 = vld [vmem:[%s1360 + $0xe0] sm:$0xff]
        %v1489 = vld [vmem:[%s1360 + $0xe8] sm:$0xff]
        %v1490 = vld [vmem:[%s1360 + $0xf0] sm:$0xff]
        %v1491 = vld [vmem:[%s1360 + $0xf8] sm:$0xff]
        %v1492 = vld [vmem:[%s1360 + $0x100] sm:$0xff]
        %v1493 = vld [vmem:[%s1360 + $0x108] sm:$0xff]
        %v1494 = vld [vmem:[%s1360 + $0x110] sm:$0xff]
        %v1495 = vld [vmem:[%s1360 + $0x118] sm:$0xff]
        %v1496 = vld [vmem:[%s1360 + $0x120] sm:$0xff]
        %v1497 = vld [vmem:[%s1360 + $0x128] sm:$0xff]
        %v1498 = vld [vmem:[%s1360 + $0x130] sm:$0xff]
        %v1499 = vld [vmem:[%s1360 + $0x138] sm:$0xff]
        %v1500 = vld [vmem:[%s1360 + $0x140] sm:$0xff]
        %v1501 = vld [vmem:[%s1360 + $0x148] sm:$0xff]
        %v1502 = vld [vmem:[%s1360 + $0x150] sm:$0xff]
        %v1503 = vld [vmem:[%s1360 + $0x158] sm:$0xff]
        %v1504 = vld [vmem:[%s1360 + $0x160] sm:$0xff]
        %v1505 = vld [vmem:[%s1360 + $0x168] sm:$0xff]
        %v1506 = vld [vmem:[%s1360 + $0x170] sm:$0xff]
        %v1507 = vld [vmem:[%s1360 + $0x178] sm:$0xff]
        %v1508 = vld [vmem:[%s1360 + $0x180] sm:$0xff]
        %v1509 = vld [vmem:[%s1360 + $0x188] sm:$0xff]
        %v1510 = vld [vmem:[%s1360 + $0x190] sm:$0xff]
        %v1511 = vld [vmem:[%s1360 + $0x198] sm:$0xff]
        %v1512 = vld [vmem:[%s1360 + $0x1a0] sm:$0xff]
        %v1513 = vld [vmem:[%s1360 + $0x1a8] sm:$0xff]
        %v1514 = vld [vmem:[%s1360 + $0x1b0] sm:$0xff]
        %v1515 = vld [vmem:[%s1360 + $0x1b8] sm:$0xff]
        %v1516 = vld [vmem:[%s1360 + $0x1c0] sm:$0xff]
        %v1517 = vld [vmem:[%s1360 + $0x1c8] sm:$0xff]
        %v1518 = vld [vmem:[%s1360 + $0x1d0] sm:$0xff]
        %v1519 = vld [vmem:[%s1360 + $0x1d8] sm:$0xff]
        %v1520 = vld [vmem:[%s1360 + $0x1e0] sm:$0xff]
        %v1521 = vld [vmem:[%s1360 + $0x1e8] sm:$0xff]
        %v1522 = vld [vmem:[%s1360 + $0x1f0] sm:$0xff]
        %v1523 = vld [vmem:[%s1360 + $0x1f8] sm:$0xff]
        %v1524 = vld [vmem:[%s1360 + $0x200] sm:$0xff]
        %v1525 = vld [vmem:[%s1360 + $0x208] sm:$0xff]
        %v1526 = vld [vmem:[%s1360 + $0x210] sm:$0xff]
        %v1527 = vld [vmem:[%s1360 + $0x218] sm:$0xff]
        %v1528 = vld [vmem:[%s1360 + $0x220] sm:$0xff]
        %v1529 = vld [vmem:[%s1360 + $0x228] sm:$0xff]
        %v1530 = vld [vmem:[%s1360 + $0x230] sm:$0xff]
        %v1531 = vld [vmem:[%s1360 + $0x238] sm:$0xff]
        %v1532 = vld [vmem:[%s1360 + $0x240] sm:$0xff]
        %v1533 = vld [vmem:[%s1360 + $0x248] sm:$0xff]
        %v1534 = vld [vmem:[%s1360 + $0x250] sm:$0xff]
        %v1535 = vld [vmem:[%s1360 + $0x258] sm:$0xff]
        %v1536 = vld [vmem:[%s1360 + $0x260] sm:$0xff]
        %v1537 = vld [vmem:[%s1360 + $0x268] sm:$0xff]
        %v1538 = vld [vmem:[%s1360 + $0x270] sm:$0xff]
        %v1539 = vld [vmem:[%s1360 + $0x278] sm:$0xff]
        %v1540 = vld [vmem:[%s1360 + $0x280] sm:$0xff]
        %v1541 = vld [vmem:[%s1360 + $0x288] sm:$0xff]
        %v1542 = vld [vmem:[%s1360 + $0x290] sm:$0xff]
        %v1543 = vld [vmem:[%s1360 + $0x298] sm:$0xff]
        %v1544 = vld [vmem:[%s1360 + $0x2a0] sm:$0xff]
        %v1545 = vld [vmem:[%s1360 + $0x2a8] sm:$0xff]
        %v1546 = vld [vmem:[%s1360 + $0x2b0] sm:$0xff]
        %v1547 = vld [vmem:[%s1360 + $0x2b8] sm:$0xff]
        %v1548 = vld [vmem:[%s1360 + $0x2c0] sm:$0xff]
        %v1549 = vld [vmem:[%s1360 + $0x2c8] sm:$0xff]
        %v1550 = vld [vmem:[%s1360 + $0x2d0] sm:$0xff]
        %v1551 = vld [vmem:[%s1360 + $0x2d8] sm:$0xff]
        %v1552 = vld [vmem:[%s1360 + $0x2e0] sm:$0xff]
        %v1553 = vld [vmem:[%s1360 + $0x2e8] sm:$0xff]
        %v1554 = vld [vmem:[%s1360 + $0x2f0] sm:$0xff]
        %v1555 = vld [vmem:[%s1360 + $0x2f8] sm:$0xff]
        %v1556 = vld [vmem:[%s1360 + $0x300] sm:$0xff]
        %v1557 = vld [vmem:[%s1360 + $0x308] sm:$0xff]
        %v1558 = vld [vmem:[%s1360 + $0x310] sm:$0xff]
        %v1559 = vld [vmem:[%s1360 + $0x318] sm:$0xff]
        %v1560 = vld [vmem:[%s1360 + $0x320] sm:$0xff]
        %v1561 = vld [vmem:[%s1360 + $0x328] sm:$0xff]
        %v1562 = vld [vmem:[%s1360 + $0x330] sm:$0xff]
        %v1563 = vld [vmem:[%s1360 + $0x338] sm:$0xff]
        %v1564 = vld [vmem:[%s1360 + $0x340] sm:$0xff]
        %v1565 = vld [vmem:[%s1360 + $0x348] sm:$0xff]
        %v1566 = vld [vmem:[%s1360 + $0x350] sm:$0xff]
        %v1567 = vld [vmem:[%s1360 + $0x358] sm:$0xff]
        %v1568 = vld [vmem:[%s1360 + $0x360] sm:$0xff]
        %v1569 = vld [vmem:[%s1360 + $0x368] sm:$0xff]
        %v1570 = vld [vmem:[%s1360 + $0x370] sm:$0xff]
        %v1571 = vld [vmem:[%s1360 + $0x378] sm:$0xff]
        %v1572 = vld [vmem:[%s1360 + $0x380] sm:$0xff]
        %v1573 = vld [vmem:[%s1360 + $0x388] sm:$0xff]
        %v1574 = vld [vmem:[%s1360 + $0x390] sm:$0xff]
        %v1575 = vld [vmem:[%s1360 + $0x398] sm:$0xff]
        %v1576 = vld [vmem:[%s1360 + $0x3a0] sm:$0xff]
        %v1577 = vld [vmem:[%s1360 + $0x3a8] sm:$0xff]
        %v1578 = vld [vmem:[%s1360 + $0x3b0] sm:$0xff]
        %v1579 = vld [vmem:[%s1360 + $0x3b8] sm:$0xff]
        %v1580 = vld [vmem:[%s1360 + $0x3c0] sm:$0xff]
        %v1581 = vld [vmem:[%s1360 + $0x3c8] sm:$0xff]
        %v1582 = vld [vmem:[%s1360 + $0x3d0] sm:$0xff]
        %v1583 = vld [vmem:[%s1360 + $0x3d8] sm:$0xff]
        %v1584 = vld [vmem:[%s1360 + $0x3e0] sm:$0xff]
        %v1585 = vld [vmem:[%s1360 + $0x3e8] sm:$0xff]
        %v1586 = vld [vmem:[%s1360 + $0x3f0] sm:$0xff]
        %v1587 = vld [vmem:[%s1360 + $0x3f8] sm:$0xff]
        %v1588 = vld [vmem:[%s1360 + $0x400] sm:$0xff]
        %v1589 = vld [vmem:[%s1360 + $0x408] sm:$0xff]
        %v1590 = vld [vmem:[%s1360 + $0x410] sm:$0xff]
        %v1591 = vld [vmem:[%s1360 + $0x418] sm:$0xff]
        %v1592 = vld [vmem:[%s1360 + $0x420] sm:$0xff]
        %v1593 = vld [vmem:[%s1360 + $0x428] sm:$0xff]
        %v1594 = vld [vmem:[%s1360 + $0x430] sm:$0xff]
        %v1595 = vld [vmem:[%s1360 + $0x438] sm:$0xff]
        %v1596 = vld [vmem:[%s1360 + $0x440] sm:$0xff]
        %v1597 = vld [vmem:[%s1360 + $0x448] sm:$0xff]
        %v1598 = vld [vmem:[%s1360 + $0x450] sm:$0xff]
        %v1599 = vld [vmem:[%s1360 + $0x458] sm:$0xff]
        %v1600 = vld [vmem:[%s1360 + $0x460] sm:$0xff]
        %v1601 = vld [vmem:[%s1360 + $0x468] sm:$0xff]
        %v1602 = vld [vmem:[%s1360 + $0x470] sm:$0xff]
        %v1603 = vld [vmem:[%s1360 + $0x478] sm:$0xff]
        %v1604 = vld [vmem:[%s1360 + $0x480] sm:$0xff]
        %v1605 = vld [vmem:[%s1360 + $0x488] sm:$0xff]
        %v1606 = vld [vmem:[%s1360 + $0x490] sm:$0xff]
        %v1607 = vld [vmem:[%s1360 + $0x498] sm:$0xff]
        %v1608 = vld [vmem:[%s1360 + $0x4a0] sm:$0xff]
        %v1609 = vld [vmem:[%s1360 + $0x4a8] sm:$0xff]
        %v1610 = vld [vmem:[%s1360 + $0x4b0] sm:$0xff]
        %v1611 = vld [vmem:[%s1360 + $0x4b8] sm:$0xff]
        %v1612 = vld [vmem:[%s1360 + $0x4c0] sm:$0xff]
        %v1613 = vld [vmem:[%s1360 + $0x4c8] sm:$0xff]
        %v1614 = vld [vmem:[%s1360 + $0x4d0] sm:$0xff]
        %v1615 = vld [vmem:[%s1360 + $0x4d8] sm:$0xff]
        %v1616 = vld [vmem:[%s1360 + $0x4e0] sm:$0xff]
        %v1617 = vld [vmem:[%s1360 + $0x4e8] sm:$0xff]
        %v1618 = vld [vmem:[%s1360 + $0x4f0] sm:$0xff]
        %v1619 = vld [vmem:[%s1360 + $0x4f8] sm:$0xff]
        %v1620 = vld [vmem:[%s1360 + $0x500] sm:$0xff]
        %v1621 = vld [vmem:[%s1360 + $0x508] sm:$0xff]
        %v1622 = vld [vmem:[%s1360 + $0x510] sm:$0xff]
        %v1623 = vld [vmem:[%s1360 + $0x518] sm:$0xff]
        %v1624 = vld [vmem:[%s1360 + $0x520] sm:$0xff]
        %v1625 = vld [vmem:[%s1360 + $0x528] sm:$0xff]
        %v1626 = vld [vmem:[%s1360 + $0x530] sm:$0xff]
        %v1627 = vld [vmem:[%s1360 + $0x538] sm:$0xff]
        %v1628 = vld [vmem:[%s1360 + $0x540] sm:$0xff]
        %v1629 = vld [vmem:[%s1360 + $0x548] sm:$0xff]
        %v1630 = vld [vmem:[%s1360 + $0x550] sm:$0xff]
        %v1631 = vld [vmem:[%s1360 + $0x558] sm:$0xff]
        %v1632 = vld [vmem:[%s1360 + $0x560] sm:$0xff]
        %v1633 = vld [vmem:[%s1360 + $0x568] sm:$0xff]
        %v1634 = vld [vmem:[%s1360 + $0x570] sm:$0xff]
        %v1635 = vld [vmem:[%s1360 + $0x578] sm:$0xff]
        %v1636 = vld [vmem:[%s1360 + $0x580] sm:$0xff]
        %v1637 = vld [vmem:[%s1360 + $0x588] sm:$0xff]
        %v1638 = vld [vmem:[%s1360 + $0x590] sm:$0xff]
        %v1639 = vld [vmem:[%s1360 + $0x598] sm:$0xff]
        %v1640 = vld [vmem:[%s1360 + $0x5a0] sm:$0xff]
        %v1641 = vld [vmem:[%s1360 + $0x5a8] sm:$0xff]
        %v1642 = vld [vmem:[%s1360 + $0x5b0] sm:$0xff]
        %v1643 = vld [vmem:[%s1360 + $0x5b8] sm:$0xff]
        %v1644 = vld [vmem:[%s1360 + $0x5c0] sm:$0xff]
        %v1645 = vld [vmem:[%s1360 + $0x5c8] sm:$0xff]
        %v1646 = vld [vmem:[%s1360 + $0x5d0] sm:$0xff]
        %v1647 = vld [vmem:[%s1360 + $0x5d8] sm:$0xff]
        %v1648 = vld [vmem:[%s1360 + $0x5e0] sm:$0xff]
        %v1649 = vld [vmem:[%s1360 + $0x5e8] sm:$0xff]
        %v1650 = vld [vmem:[%s1360 + $0x5f0] sm:$0xff]
        %v1651 = vld [vmem:[%s1360 + $0x5f8] sm:$0xff]
        %v1652 = vld [vmem:[%s1360 + $0x600] sm:$0xff]
        %v1653 = vld [vmem:[%s1360 + $0x608] sm:$0xff]
        %v1654 = vld [vmem:[%s1360 + $0x610] sm:$0xff]
        %v1655 = vld [vmem:[%s1360 + $0x618] sm:$0xff]
        %v1656 = vld [vmem:[%s1360 + $0x620] sm:$0xff]
        %v1657 = vld [vmem:[%s1360 + $0x628] sm:$0xff]
        %v1658 = vld [vmem:[%s1360 + $0x630] sm:$0xff]
        %v1659 = vld [vmem:[%s1360 + $0x638] sm:$0xff]
        %v1660 = vld [vmem:[%s1360 + $0x640] sm:$0xff]
        %v1661 = vld [vmem:[%s1360 + $0x648] sm:$0xff]
        %v1662 = vld [vmem:[%s1360 + $0x650] sm:$0xff]
        %v1663 = vld [vmem:[%s1360 + $0x658] sm:$0xff]
        %v1664 = vld [vmem:[%s1360 + $0x660] sm:$0xff]
        %v1665 = vld [vmem:[%s1360 + $0x668] sm:$0xff]
        %v1666 = vld [vmem:[%s1360 + $0x670] sm:$0xff]
        %v1667 = vld [vmem:[%s1360 + $0x678] sm:$0xff]
        %v1668 = vld [vmem:[%s1360 + $0x680] sm:$0xff]
        %v1669 = vld [vmem:[%s1360 + $0x688] sm:$0xff]
        %v1670 = vld [vmem:[%s1360 + $0x690] sm:$0xff]
        %v1671 = vld [vmem:[%s1360 + $0x698] sm:$0xff]
        %v1672 = vld [vmem:[%s1360 + $0x6a0] sm:$0xff]
        %v1673 = vld [vmem:[%s1360 + $0x6a8] sm:$0xff]
        %v1674 = vld [vmem:[%s1360 + $0x6b0] sm:$0xff]
        %v1675 = vld [vmem:[%s1360 + $0x6b8] sm:$0xff]
        %v1676 = vld [vmem:[%s1360 + $0x6c0] sm:$0xff]
        %v1677 = vld [vmem:[%s1360 + $0x6c8] sm:$0xff]
        %v1678 = vld [vmem:[%s1360 + $0x6d0] sm:$0xff]
        %v1679 = vld [vmem:[%s1360 + $0x6d8] sm:$0xff]
        %v1680 = vld [vmem:[%s1360 + $0x6e0] sm:$0xff]
        %v1681 = vld [vmem:[%s1360 + $0x6e8] sm:$0xff]
        %v1682 = vld [vmem:[%s1360 + $0x6f0] sm:$0xff]
        %v1683 = vld [vmem:[%s1360 + $0x6f8] sm:$0xff]
        %v1684 = vld [vmem:[%s1360 + $0x700] sm:$0xff]
        %v1685 = vld [vmem:[%s1360 + $0x708] sm:$0xff]
        %v1686 = vld [vmem:[%s1360 + $0x710] sm:$0xff]
        %v1687 = vld [vmem:[%s1360 + $0x718] sm:$0xff]
        %v1688 = vld [vmem:[%s1360 + $0x720] sm:$0xff]
        %v1689 = vld [vmem:[%s1360 + $0x728] sm:$0xff]
        %v1690 = vld [vmem:[%s1360 + $0x730] sm:$0xff]
        %v1691 = vld [vmem:[%s1360 + $0x738] sm:$0xff]
        %v1692 = vld [vmem:[%s1360 + $0x740] sm:$0xff]
        %v1693 = vld [vmem:[%s1360 + $0x748] sm:$0xff]
        %v1694 = vld [vmem:[%s1360 + $0x750] sm:$0xff]
        %v1695 = vld [vmem:[%s1360 + $0x758] sm:$0xff]
        %v1696 = vld [vmem:[%s1360 + $0x760] sm:$0xff]
        %v1697 = vld [vmem:[%s1360 + $0x768] sm:$0xff]
        %v1698 = vld [vmem:[%s1360 + $0x770] sm:$0xff]
        %v1699 = vld [vmem:[%s1360 + $0x778] sm:$0xff]
        %v1700 = vld [vmem:[%s1360 + $0x780] sm:$0xff]
        %v1701 = vld [vmem:[%s1360 + $0x788] sm:$0xff]
        %v1702 = vld [vmem:[%s1360 + $0x790] sm:$0xff]
        %v1703 = vld [vmem:[%s1360 + $0x798] sm:$0xff]
        %v1704 = vld [vmem:[%s1360 + $0x7a0] sm:$0xff]
        %v1705 = vld [vmem:[%s1360 + $0x7a8] sm:$0xff]
        %v1706 = vld [vmem:[%s1360 + $0x7b0] sm:$0xff]
        %v1707 = vld [vmem:[%s1360 + $0x7b8] sm:$0xff]
        %v1708 = vld [vmem:[%s1360 + $0x7c0] sm:$0xff]
        %v1709 = vld [vmem:[%s1360 + $0x7c8] sm:$0xff]
        %v1710 = vld [vmem:[%s1360 + $0x7d0] sm:$0xff]
        %v1711 = vld [vmem:[%s1360 + $0x7d8] sm:$0xff]
        %v1712 = vld [vmem:[%s1360 + $0x7e0] sm:$0xff]
        %v1713 = vld [vmem:[%s1360 + $0x7e8] sm:$0xff]
        %v1714 = vld [vmem:[%s1360 + $0x7f0] sm:$0xff]
        %v1715 = vld [vmem:[%s1360 + $0x7f8] sm:$0xff]
        %v1748 = vunpack.c.l.b16 %v1428
        %v1749 = vunpack.c.h.b16 %v1428
        %v1750 = vunpack.c.l.b16 %v1429
        %v1751 = vunpack.c.h.b16 %v1429
        %v1752 = vunpack.c.l.b16 %v1430
        %v1753 = vunpack.c.h.b16 %v1430
        %v1754 = vunpack.c.l.b16 %v1431
        %v1755 = vunpack.c.h.b16 %v1431
        %v1756 = vunpack.c.l.b16 %v1432
        %v1757 = vunpack.c.h.b16 %v1432
        %v1758 = vunpack.c.l.b16 %v1433
        %v1759 = vunpack.c.h.b16 %v1433
        %v1760 = vunpack.c.l.b16 %v1434
        %v1761 = vunpack.c.h.b16 %v1434
        %v1762 = vunpack.c.l.b16 %v1435
        %v1763 = vunpack.c.h.b16 %v1435
        %v1764 = vunpack.c.l.b16 %v1436
        %v1765 = vunpack.c.h.b16 %v1436
        %v1766 = vunpack.c.l.b16 %v1437
        %v1767 = vunpack.c.h.b16 %v1437
        %v1768 = vunpack.c.l.b16 %v1438
        %v1769 = vunpack.c.h.b16 %v1438
        %v1770 = vunpack.c.l.b16 %v1439
        %v1771 = vunpack.c.h.b16 %v1439
        %v1772 = vunpack.c.l.b16 %v1440
        %v1773 = vunpack.c.h.b16 %v1440
        %v1774 = vunpack.c.l.b16 %v1441
        %v1775 = vunpack.c.h.b16 %v1441
        %v1776 = vunpack.c.l.b16 %v1442
        %v1777 = vunpack.c.h.b16 %v1442
        %v1778 = vunpack.c.l.b16 %v1443
        %v1779 = vunpack.c.h.b16 %v1443
        %v1780 = vunpack.c.l.b16 %v1444
        %v1781 = vunpack.c.h.b16 %v1444
        %v1782 = vunpack.c.l.b16 %v1445
        %v1783 = vunpack.c.h.b16 %v1445
        %v1784 = vunpack.c.l.b16 %v1446
        %v1785 = vunpack.c.h.b16 %v1446
        %v1786 = vunpack.c.l.b16 %v1447
        %v1787 = vunpack.c.h.b16 %v1447
        %v1788 = vunpack.c.l.b16 %v1448
        %v1789 = vunpack.c.h.b16 %v1448
        %v1790 = vunpack.c.l.b16 %v1449
        %v1791 = vunpack.c.h.b16 %v1449
        %v1792 = vunpack.c.l.b16 %v1450
        %v1793 = vunpack.c.h.b16 %v1450
        %v1794 = vunpack.c.l.b16 %v1451
        %v1795 = vunpack.c.h.b16 %v1451
        %v1796 = vunpack.c.l.b16 %v1452
        %v1797 = vunpack.c.h.b16 %v1452
        %v1798 = vunpack.c.l.b16 %v1453
        %v1799 = vunpack.c.h.b16 %v1453
        %v1800 = vunpack.c.l.b16 %v1454
        %v1801 = vunpack.c.h.b16 %v1454
        %v1802 = vunpack.c.l.b16 %v1455
        %v1803 = vunpack.c.h.b16 %v1455
        %v1804 = vunpack.c.l.b16 %v1456
        %v1805 = vunpack.c.h.b16 %v1456
        %v1806 = vunpack.c.l.b16 %v1457
        %v1807 = vunpack.c.h.b16 %v1457
        %v1808 = vunpack.c.l.b16 %v1458
        %v1809 = vunpack.c.h.b16 %v1458
        %v1810 = vunpack.c.l.b16 %v1459
        %v1811 = vunpack.c.h.b16 %v1459
        %v1812 = vpack.c.b16 %v1764, %v1748
        %v1813 = vpack.c.b16 %v1765, %v1749
        %v1814 = vpack.c.b16 %v1766, %v1750
        %v1815 = vpack.c.b16 %v1767, %v1751
        %v1816 = vpack.c.b16 %v1768, %v1752
        %v1817 = vpack.c.b16 %v1769, %v1753
        %v1818 = vpack.c.b16 %v1770, %v1754
        %v1819 = vpack.c.b16 %v1771, %v1755
        %v1820 = vpack.c.b16 %v1772, %v1756
        %v1821 = vpack.c.b16 %v1773, %v1757
        %v1822 = vpack.c.b16 %v1774, %v1758
        %v1823 = vpack.c.b16 %v1775, %v1759
        %v1824 = vpack.c.b16 %v1776, %v1760
        %v1825 = vpack.c.b16 %v1777, %v1761
        %v1826 = vpack.c.b16 %v1778, %v1762
        %v1827 = vpack.c.b16 %v1779, %v1763
        %v1828 = vpack.c.b16 %v1796, %v1780
        %v1829 = vpack.c.b16 %v1797, %v1781
        %v1830 = vpack.c.b16 %v1798, %v1782
        %v1831 = vpack.c.b16 %v1799, %v1783
        %v1832 = vpack.c.b16 %v1800, %v1784
        %v1833 = vpack.c.b16 %v1801, %v1785
        %v1834 = vpack.c.b16 %v1802, %v1786
        %v1835 = vpack.c.b16 %v1803, %v1787
        %v1836 = vpack.c.b16 %v1804, %v1788
        %v1837 = vpack.c.b16 %v1805, %v1789
        %v1838 = vpack.c.b16 %v1806, %v1790
        %v1839 = vpack.c.b16 %v1807, %v1791
        %v1840 = vpack.c.b16 %v1808, %v1792
        %v1841 = vpack.c.b16 %v1809, %v1793
        %v1842 = vpack.c.b16 %v1810, %v1794
        %v1843 = vpack.c.b16 %v1811, %v1795
        %v2132 = vunpack.c.l.b16 %v1460
        %v2133 = vunpack.c.h.b16 %v1460
        %v2134 = vunpack.c.l.b16 %v1461
        %v2135 = vunpack.c.h.b16 %v1461
        %v2136 = vunpack.c.l.b16 %v1462
        %v2137 = vunpack.c.h.b16 %v1462
        %v2138 = vunpack.c.l.b16 %v1463
        %v2139 = vunpack.c.h.b16 %v1463
        %v2140 = vunpack.c.l.b16 %v1464
        %v2141 = vunpack.c.h.b16 %v1464
        %v2142 = vunpack.c.l.b16 %v1465
        %v2143 = vunpack.c.h.b16 %v1465
        %v2144 = vunpack.c.l.b16 %v1466
        %v2145 = vunpack.c.h.b16 %v1466
        %v2146 = vunpack.c.l.b16 %v1467
        %v2147 = vunpack.c.h.b16 %v1467
        %v2148 = vunpack.c.l.b16 %v1468
        %v2149 = vunpack.c.h.b16 %v1468
        %v2150 = vunpack.c.l.b16 %v1469
        %v2151 = vunpack.c.h.b16 %v1469
        %v2152 = vunpack.c.l.b16 %v1470
        %v2153 = vunpack.c.h.b16 %v1470
        %v2154 = vunpack.c.l.b16 %v1471
        %v2155 = vunpack.c.h.b16 %v1471
        %v2156 = vunpack.c.l.b16 %v1472
        %v2157 = vunpack.c.h.b16 %v1472
        %v2158 = vunpack.c.l.b16 %v1473
        %v2159 = vunpack.c.h.b16 %v1473
        %v2160 = vunpack.c.l.b16 %v1474
        %v2161 = vunpack.c.h.b16 %v1474
        %v2162 = vunpack.c.l.b16 %v1475
        %v2163 = vunpack.c.h.b16 %v1475
        %v2164 = vunpack.c.l.b16 %v1476
        %v2165 = vunpack.c.h.b16 %v1476
        %v2166 = vunpack.c.l.b16 %v1477
        %v2167 = vunpack.c.h.b16 %v1477
        %v2168 = vunpack.c.l.b16 %v1478
        %v2169 = vunpack.c.h.b16 %v1478
        %v2170 = vunpack.c.l.b16 %v1479
        %v2171 = vunpack.c.h.b16 %v1479
        %v2172 = vunpack.c.l.b16 %v1480
        %v2173 = vunpack.c.h.b16 %v1480
        %v2174 = vunpack.c.l.b16 %v1481
        %v2175 = vunpack.c.h.b16 %v1481
        %v2176 = vunpack.c.l.b16 %v1482
        %v2177 = vunpack.c.h.b16 %v1482
        %v2178 = vunpack.c.l.b16 %v1483
        %v2179 = vunpack.c.h.b16 %v1483
        %v2180 = vunpack.c.l.b16 %v1484
        %v2181 = vunpack.c.h.b16 %v1484
        %v2182 = vunpack.c.l.b16 %v1485
        %v2183 = vunpack.c.h.b16 %v1485
        %v2184 = vunpack.c.l.b16 %v1486
        %v2185 = vunpack.c.h.b16 %v1486
        %v2186 = vunpack.c.l.b16 %v1487
        %v2187 = vunpack.c.h.b16 %v1487
        %v2188 = vunpack.c.l.b16 %v1488
        %v2189 = vunpack.c.h.b16 %v1488
        %v2190 = vunpack.c.l.b16 %v1489
        %v2191 = vunpack.c.h.b16 %v1489
        %v2192 = vunpack.c.l.b16 %v1490
        %v2193 = vunpack.c.h.b16 %v1490
        %v2194 = vunpack.c.l.b16 %v1491
        %v2195 = vunpack.c.h.b16 %v1491
        %v2196 = vunpack.c.l.b16 %v1492
        %v2197 = vunpack.c.h.b16 %v1492
        %v2198 = vunpack.c.l.b16 %v1493
        %v2199 = vunpack.c.h.b16 %v1493
        %v2200 = vunpack.c.l.b16 %v1494
        %v2201 = vunpack.c.h.b16 %v1494
        %v2202 = vunpack.c.l.b16 %v1495
        %v2203 = vunpack.c.h.b16 %v1495
        %v2204 = vunpack.c.l.b16 %v1496
        %v2205 = vunpack.c.h.b16 %v1496
        %v2206 = vunpack.c.l.b16 %v1497
        %v2207 = vunpack.c.h.b16 %v1497
        %v2208 = vunpack.c.l.b16 %v1498
        %v2209 = vunpack.c.h.b16 %v1498
        %v2210 = vunpack.c.l.b16 %v1499
        %v2211 = vunpack.c.h.b16 %v1499
        %v2212 = vunpack.c.l.b16 %v1500
        %v2213 = vunpack.c.h.b16 %v1500
        %v2214 = vunpack.c.l.b16 %v1501
        %v2215 = vunpack.c.h.b16 %v1501
        %v2216 = vunpack.c.l.b16 %v1502
        %v2217 = vunpack.c.h.b16 %v1502
        %v2218 = vunpack.c.l.b16 %v1503
        %v2219 = vunpack.c.h.b16 %v1503
        %v2220 = vunpack.c.l.b16 %v1504
        %v2221 = vunpack.c.h.b16 %v1504
        %v2222 = vunpack.c.l.b16 %v1505
        %v2223 = vunpack.c.h.b16 %v1505
        %v2224 = vunpack.c.l.b16 %v1506
        %v2225 = vunpack.c.h.b16 %v1506
        %v2226 = vunpack.c.l.b16 %v1507
        %v2227 = vunpack.c.h.b16 %v1507
        %v2228 = vunpack.c.l.b16 %v1508
        %v2229 = vunpack.c.h.b16 %v1508
        %v2230 = vunpack.c.l.b16 %v1509
        %v2231 = vunpack.c.h.b16 %v1509
        %v2232 = vunpack.c.l.b16 %v1510
        %v2233 = vunpack.c.h.b16 %v1510
        %v2234 = vunpack.c.l.b16 %v1511
        %v2235 = vunpack.c.h.b16 %v1511
        %v2236 = vunpack.c.l.b16 %v1512
        %v2237 = vunpack.c.h.b16 %v1512
        %v2238 = vunpack.c.l.b16 %v1513
        %v2239 = vunpack.c.h.b16 %v1513
        %v2240 = vunpack.c.l.b16 %v1514
        %v2241 = vunpack.c.h.b16 %v1514
        %v2242 = vunpack.c.l.b16 %v1515
        %v2243 = vunpack.c.h.b16 %v1515
        %v2244 = vunpack.c.l.b16 %v1516
        %v2245 = vunpack.c.h.b16 %v1516
        %v2246 = vunpack.c.l.b16 %v1517
        %v2247 = vunpack.c.h.b16 %v1517
        %v2248 = vunpack.c.l.b16 %v1518
        %v2249 = vunpack.c.h.b16 %v1518
        %v2250 = vunpack.c.l.b16 %v1519
        %v2251 = vunpack.c.h.b16 %v1519
        %v2252 = vunpack.c.l.b16 %v1520
        %v2253 = vunpack.c.h.b16 %v1520
        %v2254 = vunpack.c.l.b16 %v1521
        %v2255 = vunpack.c.h.b16 %v1521
        %v2256 = vunpack.c.l.b16 %v1522
        %v2257 = vunpack.c.h.b16 %v1522
        %v2258 = vunpack.c.l.b16 %v1523
        %v2259 = vunpack.c.h.b16 %v1523
        %v2260 = vunpack.c.l.b16 %v1524
        %v2261 = vunpack.c.h.b16 %v1524
        %v2262 = vunpack.c.l.b16 %v1525
        %v2263 = vunpack.c.h.b16 %v1525
        %v2264 = vunpack.c.l.b16 %v1526
        %v2265 = vunpack.c.h.b16 %v1526
        %v2266 = vunpack.c.l.b16 %v1527
        %v2267 = vunpack.c.h.b16 %v1527
        %v2268 = vunpack.c.l.b16 %v1528
        %v2269 = vunpack.c.h.b16 %v1528
        %v2270 = vunpack.c.l.b16 %v1529
        %v2271 = vunpack.c.h.b16 %v1529
        %v2272 = vunpack.c.l.b16 %v1530
        %v2273 = vunpack.c.h.b16 %v1530
        %v2274 = vunpack.c.l.b16 %v1531
        %v2275 = vunpack.c.h.b16 %v1531
        %v2276 = vunpack.c.l.b16 %v1532
        %v2277 = vunpack.c.h.b16 %v1532
        %v2278 = vunpack.c.l.b16 %v1533
        %v2279 = vunpack.c.h.b16 %v1533
        %v2280 = vunpack.c.l.b16 %v1534
        %v2281 = vunpack.c.h.b16 %v1534
        %v2282 = vunpack.c.l.b16 %v1535
        %v2283 = vunpack.c.h.b16 %v1535
        %v2284 = vunpack.c.l.b16 %v1536
        %v2285 = vunpack.c.h.b16 %v1536
        %v2286 = vunpack.c.l.b16 %v1537
        %v2287 = vunpack.c.h.b16 %v1537
        %v2288 = vunpack.c.l.b16 %v1538
        %v2289 = vunpack.c.h.b16 %v1538
        %v2290 = vunpack.c.l.b16 %v1539
        %v2291 = vunpack.c.h.b16 %v1539
        %v2292 = vunpack.c.l.b16 %v1540
        %v2293 = vunpack.c.h.b16 %v1540
        %v2294 = vunpack.c.l.b16 %v1541
        %v2295 = vunpack.c.h.b16 %v1541
        %v2296 = vunpack.c.l.b16 %v1542
        %v2297 = vunpack.c.h.b16 %v1542
        %v2298 = vunpack.c.l.b16 %v1543
        %v2299 = vunpack.c.h.b16 %v1543
        %v2300 = vunpack.c.l.b16 %v1544
        %v2301 = vunpack.c.h.b16 %v1544
        %v2302 = vunpack.c.l.b16 %v1545
        %v2303 = vunpack.c.h.b16 %v1545
        %v2304 = vunpack.c.l.b16 %v1546
        %v2305 = vunpack.c.h.b16 %v1546
        %v2306 = vunpack.c.l.b16 %v1547
        %v2307 = vunpack.c.h.b16 %v1547
        %v2308 = vunpack.c.l.b16 %v1548
        %v2309 = vunpack.c.h.b16 %v1548
        %v2310 = vunpack.c.l.b16 %v1549
        %v2311 = vunpack.c.h.b16 %v1549
        %v2312 = vunpack.c.l.b16 %v1550
        %v2313 = vunpack.c.h.b16 %v1550
        %v2314 = vunpack.c.l.b16 %v1551
        %v2315 = vunpack.c.h.b16 %v1551
        %v2316 = vunpack.c.l.b16 %v1552
        %v2317 = vunpack.c.h.b16 %v1552
        %v2318 = vunpack.c.l.b16 %v1553
        %v2319 = vunpack.c.h.b16 %v1553
        %v2320 = vunpack.c.l.b16 %v1554
        %v2321 = vunpack.c.h.b16 %v1554
        %v2322 = vunpack.c.l.b16 %v1555
        %v2323 = vunpack.c.h.b16 %v1555
        %v2324 = vunpack.c.l.b16 %v1556
        %v2325 = vunpack.c.h.b16 %v1556
        %v2326 = vunpack.c.l.b16 %v1557
        %v2327 = vunpack.c.h.b16 %v1557
        %v2328 = vunpack.c.l.b16 %v1558
        %v2329 = vunpack.c.h.b16 %v1558
        %v2330 = vunpack.c.l.b16 %v1559
        %v2331 = vunpack.c.h.b16 %v1559
        %v2332 = vunpack.c.l.b16 %v1560
        %v2333 = vunpack.c.h.b16 %v1560
        %v2334 = vunpack.c.l.b16 %v1561
        %v2335 = vunpack.c.h.b16 %v1561
        %v2336 = vunpack.c.l.b16 %v1562
        %v2337 = vunpack.c.h.b16 %v1562
        %v2338 = vunpack.c.l.b16 %v1563
        %v2339 = vunpack.c.h.b16 %v1563
        %v2340 = vunpack.c.l.b16 %v1564
        %v2341 = vunpack.c.h.b16 %v1564
        %v2342 = vunpack.c.l.b16 %v1565
        %v2343 = vunpack.c.h.b16 %v1565
        %v2344 = vunpack.c.l.b16 %v1566
        %v2345 = vunpack.c.h.b16 %v1566
        %v2346 = vunpack.c.l.b16 %v1567
        %v2347 = vunpack.c.h.b16 %v1567
        %v2348 = vunpack.c.l.b16 %v1568
        %v2349 = vunpack.c.h.b16 %v1568
        %v2350 = vunpack.c.l.b16 %v1569
        %v2351 = vunpack.c.h.b16 %v1569
        %v2352 = vunpack.c.l.b16 %v1570
        %v2353 = vunpack.c.h.b16 %v1570
        %v2354 = vunpack.c.l.b16 %v1571
        %v2355 = vunpack.c.h.b16 %v1571
        %v2356 = vunpack.c.l.b16 %v1572
        %v2357 = vunpack.c.h.b16 %v1572
        %v2358 = vunpack.c.l.b16 %v1573
        %v2359 = vunpack.c.h.b16 %v1573
        %v2360 = vunpack.c.l.b16 %v1574
        %v2361 = vunpack.c.h.b16 %v1574
        %v2362 = vunpack.c.l.b16 %v1575
        %v2363 = vunpack.c.h.b16 %v1575
        %v2364 = vunpack.c.l.b16 %v1576
        %v2365 = vunpack.c.h.b16 %v1576
        %v2366 = vunpack.c.l.b16 %v1577
        %v2367 = vunpack.c.h.b16 %v1577
        %v2368 = vunpack.c.l.b16 %v1578
        %v2369 = vunpack.c.h.b16 %v1578
        %v2370 = vunpack.c.l.b16 %v1579
        %v2371 = vunpack.c.h.b16 %v1579
        %v2372 = vunpack.c.l.b16 %v1580
        %v2373 = vunpack.c.h.b16 %v1580
        %v2374 = vunpack.c.l.b16 %v1581
        %v2375 = vunpack.c.h.b16 %v1581
        %v2376 = vunpack.c.l.b16 %v1582
        %v2377 = vunpack.c.h.b16 %v1582
        %v2378 = vunpack.c.l.b16 %v1583
        %v2379 = vunpack.c.h.b16 %v1583
        %v2380 = vunpack.c.l.b16 %v1584
        %v2381 = vunpack.c.h.b16 %v1584
        %v2382 = vunpack.c.l.b16 %v1585
        %v2383 = vunpack.c.h.b16 %v1585
        %v2384 = vunpack.c.l.b16 %v1586
        %v2385 = vunpack.c.h.b16 %v1586
        %v2386 = vunpack.c.l.b16 %v1587
        %v2387 = vunpack.c.h.b16 %v1587
        %v2388 = vunpack.c.l.b16 %v1588
        %v2389 = vunpack.c.h.b16 %v1588
        %v2390 = vunpack.c.l.b16 %v1589
        %v2391 = vunpack.c.h.b16 %v1589
        %v2392 = vunpack.c.l.b16 %v1590
        %v2393 = vunpack.c.h.b16 %v1590
        %v2394 = vunpack.c.l.b16 %v1591
        %v2395 = vunpack.c.h.b16 %v1591
        %v2396 = vunpack.c.l.b16 %v1592
        %v2397 = vunpack.c.h.b16 %v1592
        %v2398 = vunpack.c.l.b16 %v1593
        %v2399 = vunpack.c.h.b16 %v1593
        %v2400 = vunpack.c.l.b16 %v1594
        %v2401 = vunpack.c.h.b16 %v1594
        %v2402 = vunpack.c.l.b16 %v1595
        %v2403 = vunpack.c.h.b16 %v1595
        %v2404 = vunpack.c.l.b16 %v1596
        %v2405 = vunpack.c.h.b16 %v1596
        %v2406 = vunpack.c.l.b16 %v1597
        %v2407 = vunpack.c.h.b16 %v1597
        %v2408 = vunpack.c.l.b16 %v1598
        %v2409 = vunpack.c.h.b16 %v1598
        %v2410 = vunpack.c.l.b16 %v1599
        %v2411 = vunpack.c.h.b16 %v1599
        %v2412 = vunpack.c.l.b16 %v1600
        %v2413 = vunpack.c.h.b16 %v1600
        %v2414 = vunpack.c.l.b16 %v1601
        %v2415 = vunpack.c.h.b16 %v1601
        %v2416 = vunpack.c.l.b16 %v1602
        %v2417 = vunpack.c.h.b16 %v1602
        %v2418 = vunpack.c.l.b16 %v1603
        %v2419 = vunpack.c.h.b16 %v1603
        %v2420 = vunpack.c.l.b16 %v1604
        %v2421 = vunpack.c.h.b16 %v1604
        %v2422 = vunpack.c.l.b16 %v1605
        %v2423 = vunpack.c.h.b16 %v1605
        %v2424 = vunpack.c.l.b16 %v1606
        %v2425 = vunpack.c.h.b16 %v1606
        %v2426 = vunpack.c.l.b16 %v1607
        %v2427 = vunpack.c.h.b16 %v1607
        %v2428 = vunpack.c.l.b16 %v1608
        %v2429 = vunpack.c.h.b16 %v1608
        %v2430 = vunpack.c.l.b16 %v1609
        %v2431 = vunpack.c.h.b16 %v1609
        %v2432 = vunpack.c.l.b16 %v1610
        %v2433 = vunpack.c.h.b16 %v1610
        %v2434 = vunpack.c.l.b16 %v1611
        %v2435 = vunpack.c.h.b16 %v1611
        %v2436 = vunpack.c.l.b16 %v1612
        %v2437 = vunpack.c.h.b16 %v1612
        %v2438 = vunpack.c.l.b16 %v1613
        %v2439 = vunpack.c.h.b16 %v1613
        %v2440 = vunpack.c.l.b16 %v1614
        %v2441 = vunpack.c.h.b16 %v1614
        %v2442 = vunpack.c.l.b16 %v1615
        %v2443 = vunpack.c.h.b16 %v1615
        %v2444 = vunpack.c.l.b16 %v1616
        %v2445 = vunpack.c.h.b16 %v1616
        %v2446 = vunpack.c.l.b16 %v1617
        %v2447 = vunpack.c.h.b16 %v1617
        %v2448 = vunpack.c.l.b16 %v1618
        %v2449 = vunpack.c.h.b16 %v1618
        %v2450 = vunpack.c.l.b16 %v1619
        %v2451 = vunpack.c.h.b16 %v1619
        %v2452 = vunpack.c.l.b16 %v1620
        %v2453 = vunpack.c.h.b16 %v1620
        %v2454 = vunpack.c.l.b16 %v1621
        %v2455 = vunpack.c.h.b16 %v1621
        %v2456 = vunpack.c.l.b16 %v1622
        %v2457 = vunpack.c.h.b16 %v1622
        %v2458 = vunpack.c.l.b16 %v1623
        %v2459 = vunpack.c.h.b16 %v1623
        %v2460 = vunpack.c.l.b16 %v1624
        %v2461 = vunpack.c.h.b16 %v1624
        %v2462 = vunpack.c.l.b16 %v1625
        %v2463 = vunpack.c.h.b16 %v1625
        %v2464 = vunpack.c.l.b16 %v1626
        %v2465 = vunpack.c.h.b16 %v1626
        %v2466 = vunpack.c.l.b16 %v1627
        %v2467 = vunpack.c.h.b16 %v1627
        %v2468 = vunpack.c.l.b16 %v1628
        %v2469 = vunpack.c.h.b16 %v1628
        %v2470 = vunpack.c.l.b16 %v1629
        %v2471 = vunpack.c.h.b16 %v1629
        %v2472 = vunpack.c.l.b16 %v1630
        %v2473 = vunpack.c.h.b16 %v1630
        %v2474 = vunpack.c.l.b16 %v1631
        %v2475 = vunpack.c.h.b16 %v1631
        %v2476 = vunpack.c.l.b16 %v1632
        %v2477 = vunpack.c.h.b16 %v1632
        %v2478 = vunpack.c.l.b16 %v1633
        %v2479 = vunpack.c.h.b16 %v1633
        %v2480 = vunpack.c.l.b16 %v1634
        %v2481 = vunpack.c.h.b16 %v1634
        %v2482 = vunpack.c.l.b16 %v1635
        %v2483 = vunpack.c.h.b16 %v1635
        %v2484 = vunpack.c.l.b16 %v1636
        %v2485 = vunpack.c.h.b16 %v1636
        %v2486 = vunpack.c.l.b16 %v1637
        %v2487 = vunpack.c.h.b16 %v1637
        %v2488 = vunpack.c.l.b16 %v1638
        %v2489 = vunpack.c.h.b16 %v1638
        %v2490 = vunpack.c.l.b16 %v1639
        %v2491 = vunpack.c.h.b16 %v1639
        %v2492 = vunpack.c.l.b16 %v1640
        %v2493 = vunpack.c.h.b16 %v1640
        %v2494 = vunpack.c.l.b16 %v1641
        %v2495 = vunpack.c.h.b16 %v1641
        %v2496 = vunpack.c.l.b16 %v1642
        %v2497 = vunpack.c.h.b16 %v1642
        %v2498 = vunpack.c.l.b16 %v1643
        %v2499 = vunpack.c.h.b16 %v1643
        %v2500 = vunpack.c.l.b16 %v1644
        %v2501 = vunpack.c.h.b16 %v1644
        %v2502 = vunpack.c.l.b16 %v1645
        %v2503 = vunpack.c.h.b16 %v1645
        %v2504 = vunpack.c.l.b16 %v1646
        %v2505 = vunpack.c.h.b16 %v1646
        %v2506 = vunpack.c.l.b16 %v1647
        %v2507 = vunpack.c.h.b16 %v1647
        %v2508 = vunpack.c.l.b16 %v1648
        %v2509 = vunpack.c.h.b16 %v1648
        %v2510 = vunpack.c.l.b16 %v1649
        %v2511 = vunpack.c.h.b16 %v1649
        %v2512 = vunpack.c.l.b16 %v1650
        %v2513 = vunpack.c.h.b16 %v1650
        %v2514 = vunpack.c.l.b16 %v1651
        %v2515 = vunpack.c.h.b16 %v1651
        %v2516 = vunpack.c.l.b16 %v1652
        %v2517 = vunpack.c.h.b16 %v1652
        %v2518 = vunpack.c.l.b16 %v1653
        %v2519 = vunpack.c.h.b16 %v1653
        %v2520 = vunpack.c.l.b16 %v1654
        %v2521 = vunpack.c.h.b16 %v1654
        %v2522 = vunpack.c.l.b16 %v1655
        %v2523 = vunpack.c.h.b16 %v1655
        %v2524 = vunpack.c.l.b16 %v1656
        %v2525 = vunpack.c.h.b16 %v1656
        %v2526 = vunpack.c.l.b16 %v1657
        %v2527 = vunpack.c.h.b16 %v1657
        %v2528 = vunpack.c.l.b16 %v1658
        %v2529 = vunpack.c.h.b16 %v1658
        %v2530 = vunpack.c.l.b16 %v1659
        %v2531 = vunpack.c.h.b16 %v1659
        %v2532 = vunpack.c.l.b16 %v1660
        %v2533 = vunpack.c.h.b16 %v1660
        %v2534 = vunpack.c.l.b16 %v1661
        %v2535 = vunpack.c.h.b16 %v1661
        %v2536 = vunpack.c.l.b16 %v1662
        %v2537 = vunpack.c.h.b16 %v1662
        %v2538 = vunpack.c.l.b16 %v1663
        %v2539 = vunpack.c.h.b16 %v1663
        %v2540 = vunpack.c.l.b16 %v1664
        %v2541 = vunpack.c.h.b16 %v1664
        %v2542 = vunpack.c.l.b16 %v1665
        %v2543 = vunpack.c.h.b16 %v1665
        %v2544 = vunpack.c.l.b16 %v1666
        %v2545 = vunpack.c.h.b16 %v1666
        %v2546 = vunpack.c.l.b16 %v1667
        %v2547 = vunpack.c.h.b16 %v1667
        %v2548 = vunpack.c.l.b16 %v1668
        %v2549 = vunpack.c.h.b16 %v1668
        %v2550 = vunpack.c.l.b16 %v1669
        %v2551 = vunpack.c.h.b16 %v1669
        %v2552 = vunpack.c.l.b16 %v1670
        %v2553 = vunpack.c.h.b16 %v1670
        %v2554 = vunpack.c.l.b16 %v1671
        %v2555 = vunpack.c.h.b16 %v1671
        %v2556 = vunpack.c.l.b16 %v1672
        %v2557 = vunpack.c.h.b16 %v1672
        %v2558 = vunpack.c.l.b16 %v1673
        %v2559 = vunpack.c.h.b16 %v1673
        %v2560 = vunpack.c.l.b16 %v1674
        %v2561 = vunpack.c.h.b16 %v1674
        %v2562 = vunpack.c.l.b16 %v1675
        %v2563 = vunpack.c.h.b16 %v1675
        %v2564 = vunpack.c.l.b16 %v1676
        %v2565 = vunpack.c.h.b16 %v1676
        %v2566 = vunpack.c.l.b16 %v1677
        %v2567 = vunpack.c.h.b16 %v1677
        %v2568 = vunpack.c.l.b16 %v1678
        %v2569 = vunpack.c.h.b16 %v1678
        %v2570 = vunpack.c.l.b16 %v1679
        %v2571 = vunpack.c.h.b16 %v1679
        %v2572 = vunpack.c.l.b16 %v1680
        %v2573 = vunpack.c.h.b16 %v1680
        %v2574 = vunpack.c.l.b16 %v1681
        %v2575 = vunpack.c.h.b16 %v1681
        %v2576 = vunpack.c.l.b16 %v1682
        %v2577 = vunpack.c.h.b16 %v1682
        %v2578 = vunpack.c.l.b16 %v1683
        %v2579 = vunpack.c.h.b16 %v1683
        %v2580 = vunpack.c.l.b16 %v1684
        %v2581 = vunpack.c.h.b16 %v1684
        %v2582 = vunpack.c.l.b16 %v1685
        %v2583 = vunpack.c.h.b16 %v1685
        %v2584 = vunpack.c.l.b16 %v1686
        %v2585 = vunpack.c.h.b16 %v1686
        %v2586 = vunpack.c.l.b16 %v1687
        %v2587 = vunpack.c.h.b16 %v1687
        %v2588 = vunpack.c.l.b16 %v1688
        %v2589 = vunpack.c.h.b16 %v1688
        %v2590 = vunpack.c.l.b16 %v1689
        %v2591 = vunpack.c.h.b16 %v1689
        %v2592 = vunpack.c.l.b16 %v1690
        %v2593 = vunpack.c.h.b16 %v1690
        %v2594 = vunpack.c.l.b16 %v1691
        %v2595 = vunpack.c.h.b16 %v1691
        %v2596 = vunpack.c.l.b16 %v1692
        %v2597 = vunpack.c.h.b16 %v1692
        %v2598 = vunpack.c.l.b16 %v1693
        %v2599 = vunpack.c.h.b16 %v1693
        %v2600 = vunpack.c.l.b16 %v1694
        %v2601 = vunpack.c.h.b16 %v1694
        %v2602 = vunpack.c.l.b16 %v1695
        %v2603 = vunpack.c.h.b16 %v1695
        %v2604 = vunpack.c.l.b16 %v1696
        %v2605 = vunpack.c.h.b16 %v1696
        %v2606 = vunpack.c.l.b16 %v1697
        %v2607 = vunpack.c.h.b16 %v1697
        %v2608 = vunpack.c.l.b16 %v1698
        %v2609 = vunpack.c.h.b16 %v1698
        %v2610 = vunpack.c.l.b16 %v1699
        %v2611 = vunpack.c.h.b16 %v1699
        %v2612 = vunpack.c.l.b16 %v1700
        %v2613 = vunpack.c.h.b16 %v1700
        %v2614 = vunpack.c.l.b16 %v1701
        %v2615 = vunpack.c.h.b16 %v1701
        %v2616 = vunpack.c.l.b16 %v1702
        %v2617 = vunpack.c.h.b16 %v1702
        %v2618 = vunpack.c.l.b16 %v1703
        %v2619 = vunpack.c.h.b16 %v1703
        %v2620 = vunpack.c.l.b16 %v1704
        %v2621 = vunpack.c.h.b16 %v1704
        %v2622 = vunpack.c.l.b16 %v1705
        %v2623 = vunpack.c.h.b16 %v1705
        %v2624 = vunpack.c.l.b16 %v1706
        %v2625 = vunpack.c.h.b16 %v1706
        %v2626 = vunpack.c.l.b16 %v1707
        %v2627 = vunpack.c.h.b16 %v1707
        %v2628 = vunpack.c.l.b16 %v1708
        %v2629 = vunpack.c.h.b16 %v1708
        %v2630 = vunpack.c.l.b16 %v1709
        %v2631 = vunpack.c.h.b16 %v1709
        %v2632 = vunpack.c.l.b16 %v1710
        %v2633 = vunpack.c.h.b16 %v1710
        %v2634 = vunpack.c.l.b16 %v1711
        %v2635 = vunpack.c.h.b16 %v1711
        %v2636 = vunpack.c.l.b16 %v1712
        %v2637 = vunpack.c.h.b16 %v1712
        %v2638 = vunpack.c.l.b16 %v1713
        %v2639 = vunpack.c.h.b16 %v1713
        %v2640 = vunpack.c.l.b16 %v1714
        %v2641 = vunpack.c.h.b16 %v1714
        %v2642 = vunpack.c.l.b16 %v1715
        %v2643 = vunpack.c.h.b16 %v1715
        %v2644 = vpack.c.b16 %v2134, %v2132
        %v2645 = vpack.c.b16 %v2135, %v2133
        %v2646 = vpack.c.b16 %v2138, %v2136
        %v2647 = vpack.c.b16 %v2139, %v2137
        %v2648 = vpack.c.b16 %v2142, %v2140
        %v2649 = vpack.c.b16 %v2143, %v2141
        %v2650 = vpack.c.b16 %v2146, %v2144
        %v2651 = vpack.c.b16 %v2147, %v2145
        %v2652 = vpack.c.b16 %v2150, %v2148
        %v2653 = vpack.c.b16 %v2151, %v2149
        %v2654 = vpack.c.b16 %v2154, %v2152
        %v2655 = vpack.c.b16 %v2155, %v2153
        %v2656 = vpack.c.b16 %v2158, %v2156
        %v2657 = vpack.c.b16 %v2159, %v2157
        %v2658 = vpack.c.b16 %v2162, %v2160
        %v2659 = vpack.c.b16 %v2163, %v2161
        %v2660 = vpack.c.b16 %v2166, %v2164
        %v2661 = vpack.c.b16 %v2167, %v2165
        %v2662 = vpack.c.b16 %v2170, %v2168
        %v2663 = vpack.c.b16 %v2171, %v2169
        %v2664 = vpack.c.b16 %v2174, %v2172
        %v2665 = vpack.c.b16 %v2175, %v2173
        %v2666 = vpack.c.b16 %v2178, %v2176
        %v2667 = vpack.c.b16 %v2179, %v2177
        %v2668 = vpack.c.b16 %v2182, %v2180
        %v2669 = vpack.c.b16 %v2183, %v2181
        %v2670 = vpack.c.b16 %v2186, %v2184
        %v2671 = vpack.c.b16 %v2187, %v2185
        %v2672 = vpack.c.b16 %v2190, %v2188
        %v2673 = vpack.c.b16 %v2191, %v2189
        %v2674 = vpack.c.b16 %v2194, %v2192
        %v2675 = vpack.c.b16 %v2195, %v2193
        %v2676 = vpack.c.b16 %v2198, %v2196
        %v2677 = vpack.c.b16 %v2199, %v2197
        %v2678 = vpack.c.b16 %v2202, %v2200
        %v2679 = vpack.c.b16 %v2203, %v2201
        %v2680 = vpack.c.b16 %v2206, %v2204
        %v2681 = vpack.c.b16 %v2207, %v2205
        %v2682 = vpack.c.b16 %v2210, %v2208
        %v2683 = vpack.c.b16 %v2211, %v2209
        %v2684 = vpack.c.b16 %v2214, %v2212
        %v2685 = vpack.c.b16 %v2215, %v2213
        %v2686 = vpack.c.b16 %v2218, %v2216
        %v2687 = vpack.c.b16 %v2219, %v2217
        %v2688 = vpack.c.b16 %v2222, %v2220
        %v2689 = vpack.c.b16 %v2223, %v2221
        %v2690 = vpack.c.b16 %v2226, %v2224
        %v2691 = vpack.c.b16 %v2227, %v2225
        %v2692 = vpack.c.b16 %v2230, %v2228
        %v2693 = vpack.c.b16 %v2231, %v2229
        %v2694 = vpack.c.b16 %v2234, %v2232
        %v2695 = vpack.c.b16 %v2235, %v2233
        %v2696 = vpack.c.b16 %v2238, %v2236
        %v2697 = vpack.c.b16 %v2239, %v2237
        %v2698 = vpack.c.b16 %v2242, %v2240
        %v2699 = vpack.c.b16 %v2243, %v2241
        %v2700 = vpack.c.b16 %v2246, %v2244
        %v2701 = vpack.c.b16 %v2247, %v2245
        %v2702 = vpack.c.b16 %v2250, %v2248
        %v2703 = vpack.c.b16 %v2251, %v2249
        %v2704 = vpack.c.b16 %v2254, %v2252
        %v2705 = vpack.c.b16 %v2255, %v2253
        %v2706 = vpack.c.b16 %v2258, %v2256
        %v2707 = vpack.c.b16 %v2259, %v2257
        %v2708 = vpack.c.b16 %v2262, %v2260
        %v2709 = vpack.c.b16 %v2263, %v2261
        %v2710 = vpack.c.b16 %v2266, %v2264
        %v2711 = vpack.c.b16 %v2267, %v2265
        %v2712 = vpack.c.b16 %v2270, %v2268
        %v2713 = vpack.c.b16 %v2271, %v2269
        %v2714 = vpack.c.b16 %v2274, %v2272
        %v2715 = vpack.c.b16 %v2275, %v2273
        %v2716 = vpack.c.b16 %v2278, %v2276
        %v2717 = vpack.c.b16 %v2279, %v2277
        %v2718 = vpack.c.b16 %v2282, %v2280
        %v2719 = vpack.c.b16 %v2283, %v2281
        %v2720 = vpack.c.b16 %v2286, %v2284
        %v2721 = vpack.c.b16 %v2287, %v2285
        %v2722 = vpack.c.b16 %v2290, %v2288
        %v2723 = vpack.c.b16 %v2291, %v2289
        %v2724 = vpack.c.b16 %v2294, %v2292
        %v2725 = vpack.c.b16 %v2295, %v2293
        %v2726 = vpack.c.b16 %v2298, %v2296
        %v2727 = vpack.c.b16 %v2299, %v2297
        %v2728 = vpack.c.b16 %v2302, %v2300
        %v2729 = vpack.c.b16 %v2303, %v2301
        %v2730 = vpack.c.b16 %v2306, %v2304
        %v2731 = vpack.c.b16 %v2307, %v2305
        %v2732 = vpack.c.b16 %v2310, %v2308
        %v2733 = vpack.c.b16 %v2311, %v2309
        %v2734 = vpack.c.b16 %v2314, %v2312
        %v2735 = vpack.c.b16 %v2315, %v2313
        %v2736 = vpack.c.b16 %v2318, %v2316
        %v2737 = vpack.c.b16 %v2319, %v2317
        %v2738 = vpack.c.b16 %v2322, %v2320
        %v2739 = vpack.c.b16 %v2323, %v2321
        %v2740 = vpack.c.b16 %v2326, %v2324
        %v2741 = vpack.c.b16 %v2327, %v2325
        %v2742 = vpack.c.b16 %v2330, %v2328
        %v2743 = vpack.c.b16 %v2331, %v2329
        %v2744 = vpack.c.b16 %v2334, %v2332
        %v2745 = vpack.c.b16 %v2335, %v2333
        %v2746 = vpack.c.b16 %v2338, %v2336
        %v2747 = vpack.c.b16 %v2339, %v2337
        %v2748 = vpack.c.b16 %v2342, %v2340
        %v2749 = vpack.c.b16 %v2343, %v2341
        %v2750 = vpack.c.b16 %v2346, %v2344
        %v2751 = vpack.c.b16 %v2347, %v2345
        %v2752 = vpack.c.b16 %v2350, %v2348
        %v2753 = vpack.c.b16 %v2351, %v2349
        %v2754 = vpack.c.b16 %v2354, %v2352
        %v2755 = vpack.c.b16 %v2355, %v2353
        %v2756 = vpack.c.b16 %v2358, %v2356
        %v2757 = vpack.c.b16 %v2359, %v2357
        %v2758 = vpack.c.b16 %v2362, %v2360
        %v2759 = vpack.c.b16 %v2363, %v2361
        %v2760 = vpack.c.b16 %v2366, %v2364
        %v2761 = vpack.c.b16 %v2367, %v2365
        %v2762 = vpack.c.b16 %v2370, %v2368
        %v2763 = vpack.c.b16 %v2371, %v2369
        %v2764 = vpack.c.b16 %v2374, %v2372
        %v2765 = vpack.c.b16 %v2375, %v2373
        %v2766 = vpack.c.b16 %v2378, %v2376
        %v2767 = vpack.c.b16 %v2379, %v2377
        %v2768 = vpack.c.b16 %v2382, %v2380
        %v2769 = vpack.c.b16 %v2383, %v2381
        %v2770 = vpack.c.b16 %v2386, %v2384
        %v2771 = vpack.c.b16 %v2387, %v2385
        %v2772 = vpack.c.b16 %v2390, %v2388
        %v2773 = vpack.c.b16 %v2391, %v2389
        %v2774 = vpack.c.b16 %v2394, %v2392
        %v2775 = vpack.c.b16 %v2395, %v2393
        %v2776 = vpack.c.b16 %v2398, %v2396
        %v2777 = vpack.c.b16 %v2399, %v2397
        %v2778 = vpack.c.b16 %v2402, %v2400
        %v2779 = vpack.c.b16 %v2403, %v2401
        %v2780 = vpack.c.b16 %v2406, %v2404
        %v2781 = vpack.c.b16 %v2407, %v2405
        %v2782 = vpack.c.b16 %v2410, %v2408
        %v2783 = vpack.c.b16 %v2411, %v2409
        %v2784 = vpack.c.b16 %v2414, %v2412
        %v2785 = vpack.c.b16 %v2415, %v2413
        %v2786 = vpack.c.b16 %v2418, %v2416
        %v2787 = vpack.c.b16 %v2419, %v2417
        %v2788 = vpack.c.b16 %v2422, %v2420
        %v2789 = vpack.c.b16 %v2423, %v2421
        %v2790 = vpack.c.b16 %v2426, %v2424
        %v2791 = vpack.c.b16 %v2427, %v2425
        %v2792 = vpack.c.b16 %v2430, %v2428
        %v2793 = vpack.c.b16 %v2431, %v2429
        %v2794 = vpack.c.b16 %v2434, %v2432
        %v2795 = vpack.c.b16 %v2435, %v2433
        %v2796 = vpack.c.b16 %v2438, %v2436
        %v2797 = vpack.c.b16 %v2439, %v2437
        %v2798 = vpack.c.b16 %v2442, %v2440
        %v2799 = vpack.c.b16 %v2443, %v2441
        %v2800 = vpack.c.b16 %v2446, %v2444
        %v2801 = vpack.c.b16 %v2447, %v2445
        %v2802 = vpack.c.b16 %v2450, %v2448
        %v2803 = vpack.c.b16 %v2451, %v2449
        %v2804 = vpack.c.b16 %v2454, %v2452
        %v2805 = vpack.c.b16 %v2455, %v2453
        %v2806 = vpack.c.b16 %v2458, %v2456
        %v2807 = vpack.c.b16 %v2459, %v2457
        %v2808 = vpack.c.b16 %v2462, %v2460
        %v2809 = vpack.c.b16 %v2463, %v2461
        %v2810 = vpack.c.b16 %v2466, %v2464
        %v2811 = vpack.c.b16 %v2467, %v2465
        %v2812 = vpack.c.b16 %v2470, %v2468
        %v2813 = vpack.c.b16 %v2471, %v2469
        %v2814 = vpack.c.b16 %v2474, %v2472
        %v2815 = vpack.c.b16 %v2475, %v2473
        %v2816 = vpack.c.b16 %v2478, %v2476
        %v2817 = vpack.c.b16 %v2479, %v2477
        %v2818 = vpack.c.b16 %v2482, %v2480
        %v2819 = vpack.c.b16 %v2483, %v2481
        %v2820 = vpack.c.b16 %v2486, %v2484
        %v2821 = vpack.c.b16 %v2487, %v2485
        %v2822 = vpack.c.b16 %v2490, %v2488
        %v2823 = vpack.c.b16 %v2491, %v2489
        %v2824 = vpack.c.b16 %v2494, %v2492
        %v2825 = vpack.c.b16 %v2495, %v2493
        %v2826 = vpack.c.b16 %v2498, %v2496
        %v2827 = vpack.c.b16 %v2499, %v2497
        %v2828 = vpack.c.b16 %v2502, %v2500
        %v2829 = vpack.c.b16 %v2503, %v2501
        %v2830 = vpack.c.b16 %v2506, %v2504
        %v2831 = vpack.c.b16 %v2507, %v2505
        %v2832 = vpack.c.b16 %v2510, %v2508
        %v2833 = vpack.c.b16 %v2511, %v2509
        %v2834 = vpack.c.b16 %v2514, %v2512
        %v2835 = vpack.c.b16 %v2515, %v2513
        %v2836 = vpack.c.b16 %v2518, %v2516
        %v2837 = vpack.c.b16 %v2519, %v2517
        %v2838 = vpack.c.b16 %v2522, %v2520
        %v2839 = vpack.c.b16 %v2523, %v2521
        %v2840 = vpack.c.b16 %v2526, %v2524
        %v2841 = vpack.c.b16 %v2527, %v2525
        %v2842 = vpack.c.b16 %v2530, %v2528
        %v2843 = vpack.c.b16 %v2531, %v2529
        %v2844 = vpack.c.b16 %v2534, %v2532
        %v2845 = vpack.c.b16 %v2535, %v2533
        %v2846 = vpack.c.b16 %v2538, %v2536
        %v2847 = vpack.c.b16 %v2539, %v2537
        %v2848 = vpack.c.b16 %v2542, %v2540
        %v2849 = vpack.c.b16 %v2543, %v2541
        %v2850 = vpack.c.b16 %v2546, %v2544
        %v2851 = vpack.c.b16 %v2547, %v2545
        %v2852 = vpack.c.b16 %v2550, %v2548
        %v2853 = vpack.c.b16 %v2551, %v2549
        %v2854 = vpack.c.b16 %v2554, %v2552
        %v2855 = vpack.c.b16 %v2555, %v2553
        %v2856 = vpack.c.b16 %v2558, %v2556
        %v2857 = vpack.c.b16 %v2559, %v2557
        %v2858 = vpack.c.b16 %v2562, %v2560
        %v2859 = vpack.c.b16 %v2563, %v2561
        %v2860 = vpack.c.b16 %v2566, %v2564
        %v2861 = vpack.c.b16 %v2567, %v2565
        %v2862 = vpack.c.b16 %v2570, %v2568
        %v2863 = vpack.c.b16 %v2571, %v2569
        %v2864 = vpack.c.b16 %v2574, %v2572
        %v2865 = vpack.c.b16 %v2575, %v2573
        %v2866 = vpack.c.b16 %v2578, %v2576
        %v2867 = vpack.c.b16 %v2579, %v2577
        %v2868 = vpack.c.b16 %v2582, %v2580
        %v2869 = vpack.c.b16 %v2583, %v2581
        %v2870 = vpack.c.b16 %v2586, %v2584
        %v2871 = vpack.c.b16 %v2587, %v2585
        %v2872 = vpack.c.b16 %v2590, %v2588
        %v2873 = vpack.c.b16 %v2591, %v2589
        %v2874 = vpack.c.b16 %v2594, %v2592
        %v2875 = vpack.c.b16 %v2595, %v2593
        %v2876 = vpack.c.b16 %v2598, %v2596
        %v2877 = vpack.c.b16 %v2599, %v2597
        %v2878 = vpack.c.b16 %v2602, %v2600
        %v2879 = vpack.c.b16 %v2603, %v2601
        %v2880 = vpack.c.b16 %v2606, %v2604
        %v2881 = vpack.c.b16 %v2607, %v2605
        %v2882 = vpack.c.b16 %v2610, %v2608
        %v2883 = vpack.c.b16 %v2611, %v2609
        %v2884 = vpack.c.b16 %v2614, %v2612
        %v2885 = vpack.c.b16 %v2615, %v2613
        %v2886 = vpack.c.b16 %v2618, %v2616
        %v2887 = vpack.c.b16 %v2619, %v2617
        %v2888 = vpack.c.b16 %v2622, %v2620
        %v2889 = vpack.c.b16 %v2623, %v2621
        %v2890 = vpack.c.b16 %v2626, %v2624
        %v2891 = vpack.c.b16 %v2627, %v2625
        %v2892 = vpack.c.b16 %v2630, %v2628
        %v2893 = vpack.c.b16 %v2631, %v2629
        %v2894 = vpack.c.b16 %v2634, %v2632
        %v2895 = vpack.c.b16 %v2635, %v2633
        %v2896 = vpack.c.b16 %v2638, %v2636
        %v2897 = vpack.c.b16 %v2639, %v2637
        %v2898 = vpack.c.b16 %v2642, %v2640
        %v2899 = vpack.c.b16 %v2643, %v2641
        %3156 = vmatprep.subr.bf16.mxu0 %v2645
        %3157 = vmatpush1.bf16.msra.mxu0 %v2644
        %3158 = vmatprep.subr.bf16.mxu0 %v2647
        %3159 = vmatpush1.bf16.msra.mxu0 %v2646
        %3160 = vmatprep.subr.bf16.mxu0 %v2649
        %3161 = vmatpush1.bf16.msra.mxu0 %v2648
        %3162 = vmatprep.subr.bf16.mxu0 %v2651
        %3163 = vmatpush1.bf16.msra.mxu0 %v2650
        %3164 = vmatprep.subr.bf16.mxu0 %v2653
        %3165 = vmatpush1.bf16.msra.mxu0 %v2652
        %3166 = vmatprep.subr.bf16.mxu0 %v2655
        %3167 = vmatpush1.bf16.msra.mxu0 %v2654
        %3168 = vmatprep.subr.bf16.mxu0 %v2657
        %3169 = vmatpush1.bf16.msra.mxu0 %v2656
        %3170 = vmatprep.subr.bf16.mxu0 %v2659
        %3171 = vmatpush1.bf16.msra.mxu0 %v2658
        %3172 = vmatprep.subr.bf16.mxu0 %v2661
        %3173 = vmatpush1.bf16.msra.mxu0 %v2660
        %3174 = vmatprep.subr.bf16.mxu0 %v2663
        %3175 = vmatpush1.bf16.msra.mxu0 %v2662
        %3176 = vmatprep.subr.bf16.mxu0 %v2665
        %3177 = vmatpush1.bf16.msra.mxu0 %v2664
        %3178 = vmatprep.subr.bf16.mxu0 %v2667
        %3179 = vmatpush1.bf16.msra.mxu0 %v2666
        %3180 = vmatprep.subr.bf16.mxu0 %v2669
        %3181 = vmatpush1.bf16.msra.mxu0 %v2668
        %3182 = vmatprep.subr.bf16.mxu0 %v2671
        %3183 = vmatpush1.bf16.msra.mxu0 %v2670
        %3184 = vmatprep.subr.bf16.mxu0 %v2673
        %3185 = vmatpush1.bf16.msra.mxu0 %v2672
        %3186 = vmatprep.subr.bf16.mxu0 %v2675
        %3187 = vmatpush1.bf16.msra.mxu0 %v2674
        %3188 = vmatprep.mubr.bf16.mxu0 %v1813
        %3189 = vmatmul.mubr.bf16.gmra.mrb[0].mxu0 %v1812
        %v3190 = vpop.f32.mrb[0].mxu0
        %v3191 = vadd.f32 0.0, %v3190
        %v3192 = vpop.f32.mrb[0].mxu0
        %v3193 = vadd.f32 0.0, %v3192
        %v3194 = vpop.f32.mrb[0].mxu0
        %v3195 = vadd.f32 0.0, %v3194
        %v3196 = vpop.f32.mrb[0].mxu0
        %v3197 = vadd.f32 0.0, %v3196
        %3198 = vmatprep.mubr.bf16.mxu0 %v1829
        %3199 = vmatmul.mubr.bf16.gmra.mrb[0].mxu0 %v1828
        %v3200 = vpop.f32.mrb[0].mxu0
        %v3201 = vadd.f32 0.0, %v3200
        %v3202 = vpop.f32.mrb[0].mxu0
        %v3203 = vadd.f32 0.0, %v3202
        %v3204 = vpop.f32.mrb[0].mxu0
        %v3205 = vadd.f32 0.0, %v3204
        %v3206 = vpop.f32.mrb[0].mxu0
        %v3207 = vadd.f32 0.0, %v3206
        %3208 = vdwg.mxu0
        %3209 = vmatprep.subr.bf16.mxu0 %v2677
        %3210 = vmatpush1.bf16.msra.mxu0 %v2676
        %3211 = vmatprep.subr.bf16.mxu0 %v2679
        %3212 = vmatpush1.bf16.msra.mxu0 %v2678
        %3213 = vmatprep.subr.bf16.mxu0 %v2681
        %3214 = vmatpush1.bf16.msra.mxu0 %v2680
        %3215 = vmatprep.subr.bf16.mxu0 %v2683
        %3216 = vmatpush1.bf16.msra.mxu0 %v2682
        %3217 = vmatprep.subr.bf16.mxu0 %v2685
        %3218 = vmatpush1.bf16.msra.mxu0 %v2684
        %3219 = vmatprep.subr.bf16.mxu0 %v2687
        %3220 = vmatpush1.bf16.msra.mxu0 %v2686
        %3221 = vmatprep.subr.bf16.mxu0 %v2689
        %3222 = vmatpush1.bf16.msra.mxu0 %v2688
        %3223 = vmatprep.subr.bf16.mxu0 %v2691
        %3224 = vmatpush1.bf16.msra.mxu0 %v2690
        %3225 = vmatprep.subr.bf16.mxu0 %v2693
        %3226 = vmatpush1.bf16.msra.mxu0 %v2692
        %3227 = vmatprep.subr.bf16.mxu0 %v2695
        %3228 = vmatpush1.bf16.msra.mxu0 %v2694
        %3229 = vmatprep.subr.bf16.mxu0 %v2697
        %3230 = vmatpush1.bf16.msra.mxu0 %v2696
        %3231 = vmatprep.subr.bf16.mxu0 %v2699
        %3232 = vmatpush1.bf16.msra.mxu0 %v2698
        %3233 = vmatprep.subr.bf16.mxu0 %v2701
        %3234 = vmatpush1.bf16.msra.mxu0 %v2700
        %3235 = vmatprep.subr.bf16.mxu0 %v2703
        %3236 = vmatpush1.bf16.msra.mxu0 %v2702
        %3237 = vmatprep.subr.bf16.mxu0 %v2705
        %3238 = vmatpush1.bf16.msra.mxu0 %v2704
        %3239 = vmatprep.subr.bf16.mxu0 %v2707
        %3240 = vmatpush1.bf16.msra.mxu0 %v2706
        %3241 = vmatprep.mubr.bf16.mxu0 %v1815
        %3242 = vmatmul.mubr.bf16.gmra.mrb[0].mxu0 %v1814
        %v3243 = vpop.f32.mrb[0].mxu0
        %v3244 = vadd.f32 %v3191, %v3243
        %v3245 = vpop.f32.mrb[0].mxu0
        %v3246 = vadd.f32 %v3193, %v3245
        %v3247 = vpop.f32.mrb[0].mxu0
        %v3248 = vadd.f32 %v3195, %v3247
        %v3249 = vpop.f32.mrb[0].mxu0
        %v3250 = vadd.f32 %v3197, %v3249
        %3251 = vmatprep.mubr.bf16.mxu0 %v1831
        %3252 = vmatmul.mubr.bf16.gmra.mrb[0].mxu0 %v1830
        %v3253 = vpop.f32.mrb[0].mxu0
        %v3254 = vadd.f32 %v3201, %v3253
        %v3255 = vpop.f32.mrb[0].mxu0
        %v3256 = vadd.f32 %v3203, %v3255
        %v3257 = vpop.f32.mrb[0].mxu0
        %v3258 = vadd.f32 %v3205, %v3257
        %v3259 = vpop.f32.mrb[0].mxu0
        %v3260 = vadd.f32 %v3207, %v3259
        %3261 = vdwg.mxu0
        %3262 = vmatprep.subr.bf16.mxu0 %v2709
        %3263 = vmatpush1.bf16.msra.mxu0 %v2708
        %3264 = vmatprep.subr.bf16.mxu0 %v2711
        %3265 = vmatpush1.bf16.msra.mxu0 %v2710
        %3266 = vmatprep.subr.bf16.mxu0 %v2713
        %3267 = vmatpush1.bf16.msra.mxu0 %v2712
        %3268 = vmatprep.subr.bf16.mxu0 %v2715
        %3269 = vmatpush1.bf16.msra.mxu0 %v2714
        %3270 = vmatprep.subr.bf16.mxu0 %v2717
        %3271 = vmatpush1.bf16.msra.mxu0 %v2716
        %3272 = vmatprep.subr.bf16.mxu0 %v2719
        %3273 = vmatpush1.bf16.msra.mxu0 %v2718
        %3274 = vmatprep.subr.bf16.mxu0 %v2721
        %3275 = vmatpush1.bf16.msra.mxu0 %v2720
        %3276 = vmatprep.subr.bf16.mxu0 %v2723
        %3277 = vmatpush1.bf16.msra.mxu0 %v2722
        %3278 = vmatprep.subr.bf16.mxu0 %v2725
        %3279 = vmatpush1.bf16.msra.mxu0 %v2724
        %3280 = vmatprep.subr.bf16.mxu0 %v2727
        %3281 = vmatpush1.bf16.msra.mxu0 %v2726
        %3282 = vmatprep.subr.bf16.mxu0 %v2729
        %3283 = vmatpush1.bf16.msra.mxu0 %v2728
        %3284 = vmatprep.subr.bf16.mxu0 %v2731
        %3285 = vmatpush1.bf16.msra.mxu0 %v2730
        %3286 = vmatprep.subr.bf16.mxu0 %v2733
        %3287 = vmatpush1.bf16.msra.mxu0 %v2732
        %3288 = vmatprep.subr.bf16.mxu0 %v2735
        %3289 = vmatpush1.bf16.msra.mxu0 %v2734
        %3290 = vmatprep.subr.bf16.mxu0 %v2737
        %3291 = vmatpush1.bf16.msra.mxu0 %v2736
        %3292 = vmatprep.subr.bf16.mxu0 %v2739
        %3293 = vmatpush1.bf16.msra.mxu0 %v2738
        %3294 = vmatprep.mubr.bf16.mxu0 %v1817
        %3295 = vmatmul.mubr.bf16.gmra.mrb[0].mxu0 %v1816
        %v3296 = vpop.f32.mrb[0].mxu0
        %v3297 = vadd.f32 %v3244, %v3296
        %v3298 = vpop.f32.mrb[0].mxu0
        %v3299 = vadd.f32 %v3246, %v3298
        %v3300 = vpop.f32.mrb[0].mxu0
        %v3301 = vadd.f32 %v3248, %v3300
        %v3302 = vpop.f32.mrb[0].mxu0
        %v3303 = vadd.f32 %v3250, %v3302
        %3304 = vmatprep.mubr.bf16.mxu0 %v1833
        %3305 = vmatmul.mubr.bf16.gmra.mrb[0].mxu0 %v1832
        %v3306 = vpop.f32.mrb[0].mxu0
        %v3307 = vadd.f32 %v3254, %v3306
        %v3308 = vpop.f32.mrb[0].mxu0
        %v3309 = vadd.f32 %v3256, %v3308
        %v3310 = vpop.f32.mrb[0].mxu0
        %v3311 = vadd.f32 %v3258, %v3310
        %v3312 = vpop.f32.mrb[0].mxu0
        %v3313 = vadd.f32 %v3260, %v3312
        %3314 = vdwg.mxu0
        %3315 = vmatprep.subr.bf16.mxu0 %v2741
        %3316 = vmatpush1.bf16.msra.mxu0 %v2740
        %3317 = vmatprep.subr.bf16.mxu0 %v2743
        %3318 = vmatpush1.bf16.msra.mxu0 %v2742
        %3319 = vmatprep.subr.bf16.mxu0 %v2745
        %3320 = vmatpush1.bf16.msra.mxu0 %v2744
        %3321 = vmatprep.subr.bf16.mxu0 %v2747
        %3322 = vmatpush1.bf16.msra.mxu0 %v2746
        %3323 = vmatprep.subr.bf16.mxu0 %v2749
        %3324 = vmatpush1.bf16.msra.mxu0 %v2748
        %3325 = vmatprep.subr.bf16.mxu0 %v2751
        %3326 = vmatpush1.bf16.msra.mxu0 %v2750
        %3327 = vmatprep.subr.bf16.mxu0 %v2753
        %3328 = vmatpush1.bf16.msra.mxu0 %v2752
        %3329 = vmatprep.subr.bf16.mxu0 %v2755
        %3330 = vmatpush1.bf16.msra.mxu0 %v2754
        %3331 = vmatprep.subr.bf16.mxu0 %v2757
        %3332 = vmatpush1.bf16.msra.mxu0 %v2756
        %3333 = vmatprep.subr.bf16.mxu0 %v2759
        %3334 = vmatpush1.bf16.msra.mxu0 %v2758
        %3335 = vmatprep.subr.bf16.mxu0 %v2761
        %3336 = vmatpush1.bf16.msra.mxu0 %v2760
        %3337 = vmatprep.subr.bf16.mxu0 %v2763
        %3338 = vmatpush1.bf16.msra.mxu0 %v2762
        %3339 = vmatprep.subr.bf16.mxu0 %v2765
        %3340 = vmatpush1.bf16.msra.mxu0 %v2764
        %3341 = vmatprep.subr.bf16.mxu0 %v2767
        %3342 = vmatpush1.bf16.msra.mxu0 %v2766
        %3343 = vmatprep.subr.bf16.mxu0 %v2769
        %3344 = vmatpush1.bf16.msra.mxu0 %v2768
        %3345 = vmatprep.subr.bf16.mxu0 %v2771
        %3346 = vmatpush1.bf16.msra.mxu0 %v2770
        %3347 = vmatprep.mubr.bf16.mxu0 %v1819
        %3348 = vmatmul.mubr.bf16.gmra.mrb[0].mxu0 %v1818
        %v3349 = vpop.f32.mrb[0].mxu0
        %v3350 = vadd.f32 %v3297, %v3349
        %v3351 = vpop.f32.mrb[0].mxu0
        %v3352 = vadd.f32 %v3299, %v3351
        %v3353 = vpop.f32.mrb[0].mxu0
        %v3354 = vadd.f32 %v3301, %v3353
        %v3355 = vpop.f32.mrb[0].mxu0
        %v3356 = vadd.f32 %v3303, %v3355
        %3357 = vmatprep.mubr.bf16.mxu0 %v1835
        %3358 = vmatmul.mubr.bf16.gmra.mrb[0].mxu0 %v1834
        %v3359 = vpop.f32.mrb[0].mxu0
        %v3360 = vadd.f32 %v3307, %v3359
        %v3361 = vpop.f32.mrb[0].mxu0
        %v3362 = vadd.f32 %v3309, %v3361
        %v3363 = vpop.f32.mrb[0].mxu0
        %v3364 = vadd.f32 %v3311, %v3363
        %v3365 = vpop.f32.mrb[0].mxu0
        %v3366 = vadd.f32 %v3313, %v3365
        %3367 = vdwg.mxu0
        %3368 = vmatprep.subr.bf16.mxu0 %v2773
        %3369 = vmatpush1.bf16.msra.mxu0 %v2772
        %3370 = vmatprep.subr.bf16.mxu0 %v2775
        %3371 = vmatpush1.bf16.msra.mxu0 %v2774
        %3372 = vmatprep.subr.bf16.mxu0 %v2777
        %3373 = vmatpush1.bf16.msra.mxu0 %v2776
        %3374 = vmatprep.subr.bf16.mxu0 %v2779
        %3375 = vmatpush1.bf16.msra.mxu0 %v2778
        %3376 = vmatprep.subr.bf16.mxu0 %v2781
        %3377 = vmatpush1.bf16.msra.mxu0 %v2780
        %3378 = vmatprep.subr.bf16.mxu0 %v2783
        %3379 = vmatpush1.bf16.msra.mxu0 %v2782
        %3380 = vmatprep.subr.bf16.mxu0 %v2785
        %3381 = vmatpush1.bf16.msra.mxu0 %v2784
        %3382 = vmatprep.subr.bf16.mxu0 %v2787
        %3383 = vmatpush1.bf16.msra.mxu0 %v2786
        %3384 = vmatprep.subr.bf16.mxu0 %v2789
        %3385 = vmatpush1.bf16.msra.mxu0 %v2788
        %3386 = vmatprep.subr.bf16.mxu0 %v2791
        %3387 = vmatpush1.bf16.msra.mxu0 %v2790
        %3388 = vmatprep.subr.bf16.mxu0 %v2793
        %3389 = vmatpush1.bf16.msra.mxu0 %v2792
        %3390 = vmatprep.subr.bf16.mxu0 %v2795
        %3391 = vmatpush1.bf16.msra.mxu0 %v2794
        %3392 = vmatprep.subr.bf16.mxu0 %v2797
        %3393 = vmatpush1.bf16.msra.mxu0 %v2796
        %3394 = vmatprep.subr.bf16.mxu0 %v2799
        %3395 = vmatpush1.bf16.msra.mxu0 %v2798
        %3396 = vmatprep.subr.bf16.mxu0 %v2801
        %3397 = vmatpush1.bf16.msra.mxu0 %v2800
        %3398 = vmatprep.subr.bf16.mxu0 %v2803
        %3399 = vmatpush1.bf16.msra.mxu0 %v2802
        %3400 = vmatprep.mubr.bf16.mxu0 %v1821
        %3401 = vmatmul.mubr.bf16.gmra.mrb[0].mxu0 %v1820
        %v3402 = vpop.f32.mrb[0].mxu0
        %v3403 = vadd.f32 %v3350, %v3402
        %v3404 = vpop.f32.mrb[0].mxu0
        %v3405 = vadd.f32 %v3352, %v3404
        %v3406 = vpop.f32.mrb[0].mxu0
        %v3407 = vadd.f32 %v3354, %v3406
        %v3408 = vpop.f32.mrb[0].mxu0
        %v3409 = vadd.f32 %v3356, %v3408
        %3410 = vmatprep.mubr.bf16.mxu0 %v1837
        %3411 = vmatmul.mubr.bf16.gmra.mrb[0].mxu0 %v1836
        %v3412 = vpop.f32.mrb[0].mxu0
        %v3413 = vadd.f32 %v3360, %v3412
        %v3414 = vpop.f32.mrb[0].mxu0
        %v3415 = vadd.f32 %v3362, %v3414
        %v3416 = vpop.f32.mrb[0].mxu0
        %v3417 = vadd.f32 %v3364, %v3416
        %v3418 = vpop.f32.mrb[0].mxu0
        %v3419 = vadd.f32 %v3366, %v3418
        %3420 = vdwg.mxu0
        %3421 = vmatprep.subr.bf16.mxu0 %v2805
        %3422 = vmatpush1.bf16.msra.mxu0 %v2804
        %3423 = vmatprep.subr.bf16.mxu0 %v2807
        %3424 = vmatpush1.bf16.msra.mxu0 %v2806
        %3425 = vmatprep.subr.bf16.mxu0 %v2809
        %3426 = vmatpush1.bf16.msra.mxu0 %v2808
        %3427 = vmatprep.subr.bf16.mxu0 %v2811
        %3428 = vmatpush1.bf16.msra.mxu0 %v2810
        %3429 = vmatprep.subr.bf16.mxu0 %v2813
        %3430 = vmatpush1.bf16.msra.mxu0 %v2812
        %3431 = vmatprep.subr.bf16.mxu0 %v2815
        %3432 = vmatpush1.bf16.msra.mxu0 %v2814
        %3433 = vmatprep.subr.bf16.mxu0 %v2817
        %3434 = vmatpush1.bf16.msra.mxu0 %v2816
        %3435 = vmatprep.subr.bf16.mxu0 %v2819
        %3436 = vmatpush1.bf16.msra.mxu0 %v2818
        %3437 = vmatprep.subr.bf16.mxu0 %v2821
        %3438 = vmatpush1.bf16.msra.mxu0 %v2820
        %3439 = vmatprep.subr.bf16.mxu0 %v2823
        %3440 = vmatpush1.bf16.msra.mxu0 %v2822
        %3441 = vmatprep.subr.bf16.mxu0 %v2825
        %3442 = vmatpush1.bf16.msra.mxu0 %v2824
        %3443 = vmatprep.subr.bf16.mxu0 %v2827
        %3444 = vmatpush1.bf16.msra.mxu0 %v2826
        %3445 = vmatprep.subr.bf16.mxu0 %v2829
        %3446 = vmatpush1.bf16.msra.mxu0 %v2828
        %3447 = vmatprep.subr.bf16.mxu0 %v2831
        %3448 = vmatpush1.bf16.msra.mxu0 %v2830
        %3449 = vmatprep.subr.bf16.mxu0 %v2833
        %3450 = vmatpush1.bf16.msra.mxu0 %v2832
        %3451 = vmatprep.subr.bf16.mxu0 %v2835
        %3452 = vmatpush1.bf16.msra.mxu0 %v2834
        %3453 = vmatprep.mubr.bf16.mxu0 %v1823
        %3454 = vmatmul.mubr.bf16.gmra.mrb[0].mxu0 %v1822
        %v3455 = vpop.f32.mrb[0].mxu0
        %v3456 = vadd.f32 %v3403, %v3455
        %v3457 = vpop.f32.mrb[0].mxu0
        %v3458 = vadd.f32 %v3405, %v3457
        %v3459 = vpop.f32.mrb[0].mxu0
        %v3460 = vadd.f32 %v3407, %v3459
        %v3461 = vpop.f32.mrb[0].mxu0
        %v3462 = vadd.f32 %v3409, %v3461
        %3463 = vmatprep.mubr.bf16.mxu0 %v1839
        %3464 = vmatmul.mubr.bf16.gmra.mrb[0].mxu0 %v1838
        %v3465 = vpop.f32.mrb[0].mxu0
        %v3466 = vadd.f32 %v3413, %v3465
        %v3467 = vpop.f32.mrb[0].mxu0
        %v3468 = vadd.f32 %v3415, %v3467
        %v3469 = vpop.f32.mrb[0].mxu0
        %v3470 = vadd.f32 %v3417, %v3469
        %v3471 = vpop.f32.mrb[0].mxu0
        %v3472 = vadd.f32 %v3419, %v3471
        %3473 = vdwg.mxu0
        %3474 = vmatprep.subr.bf16.mxu0 %v2837
        %3475 = vmatpush1.bf16.msra.mxu0 %v2836
        %3476 = vmatprep.subr.bf16.mxu0 %v2839
        %3477 = vmatpush1.bf16.msra.mxu0 %v2838
        %3478 = vmatprep.subr.bf16.mxu0 %v2841
        %3479 = vmatpush1.bf16.msra.mxu0 %v2840
        %3480 = vmatprep.subr.bf16.mxu0 %v2843
        %3481 = vmatpush1.bf16.msra.mxu0 %v2842
        %3482 = vmatprep.subr.bf16.mxu0 %v2845
        %3483 = vmatpush1.bf16.msra.mxu0 %v2844
        %3484 = vmatprep.subr.bf16.mxu0 %v2847
        %3485 = vmatpush1.bf16.msra.mxu0 %v2846
        %3486 = vmatprep.subr.bf16.mxu0 %v2849
        %3487 = vmatpush1.bf16.msra.mxu0 %v2848
        %3488 = vmatprep.subr.bf16.mxu0 %v2851
        %3489 = vmatpush1.bf16.msra.mxu0 %v2850
        %3490 = vmatprep.subr.bf16.mxu0 %v2853
        %3491 = vmatpush1.bf16.msra.mxu0 %v2852
        %3492 = vmatprep.subr.bf16.mxu0 %v2855
        %3493 = vmatpush1.bf16.msra.mxu0 %v2854
        %3494 = vmatprep.subr.bf16.mxu0 %v2857
        %3495 = vmatpush1.bf16.msra.mxu0 %v2856
        %3496 = vmatprep.subr.bf16.mxu0 %v2859
        %3497 = vmatpush1.bf16.msra.mxu0 %v2858
        %3498 = vmatprep.subr.bf16.mxu0 %v2861
        %3499 = vmatpush1.bf16.msra.mxu0 %v2860
        %3500 = vmatprep.subr.bf16.mxu0 %v2863
        %3501 = vmatpush1.bf16.msra.mxu0 %v2862
        %3502 = vmatprep.subr.bf16.mxu0 %v2865
        %3503 = vmatpush1.bf16.msra.mxu0 %v2864
        %3504 = vmatprep.subr.bf16.mxu0 %v2867
        %3505 = vmatpush1.bf16.msra.mxu0 %v2866
        %3506 = vmatprep.mubr.bf16.mxu0 %v1825
        %3507 = vmatmul.mubr.bf16.gmra.mrb[0].mxu0 %v1824
        %v3508 = vpop.f32.mrb[0].mxu0
        %v3509 = vadd.f32 %v3456, %v3508
        %v3510 = vpop.f32.mrb[0].mxu0
        %v3511 = vadd.f32 %v3458, %v3510
        %v3512 = vpop.f32.mrb[0].mxu0
        %v3513 = vadd.f32 %v3460, %v3512
        %v3514 = vpop.f32.mrb[0].mxu0
        %v3515 = vadd.f32 %v3462, %v3514
        %3516 = vmatprep.mubr.bf16.mxu0 %v1841
        %3517 = vmatmul.mubr.bf16.gmra.mrb[0].mxu0 %v1840
        %v3518 = vpop.f32.mrb[0].mxu0
        %v3519 = vadd.f32 %v3466, %v3518
        %v3520 = vpop.f32.mrb[0].mxu0
        %v3521 = vadd.f32 %v3468, %v3520
        %v3522 = vpop.f32.mrb[0].mxu0
        %v3523 = vadd.f32 %v3470, %v3522
        %v3524 = vpop.f32.mrb[0].mxu0
        %v3525 = vadd.f32 %v3472, %v3524
        %3526 = vdwg.mxu0
        %3527 = vmatprep.subr.bf16.mxu0 %v2869
        %3528 = vmatpush1.bf16.msra.mxu0 %v2868
        %3529 = vmatprep.subr.bf16.mxu0 %v2871
        %3530 = vmatpush1.bf16.msra.mxu0 %v2870
        %3531 = vmatprep.subr.bf16.mxu0 %v2873
        %3532 = vmatpush1.bf16.msra.mxu0 %v2872
        %3533 = vmatprep.subr.bf16.mxu0 %v2875
        %3534 = vmatpush1.bf16.msra.mxu0 %v2874
        %3535 = vmatprep.subr.bf16.mxu0 %v2877
        %3536 = vmatpush1.bf16.msra.mxu0 %v2876
        %3537 = vmatprep.subr.bf16.mxu0 %v2879
        %3538 = vmatpush1.bf16.msra.mxu0 %v2878
        %3539 = vmatprep.subr.bf16.mxu0 %v2881
        %3540 = vmatpush1.bf16.msra.mxu0 %v2880
        %3541 = vmatprep.subr.bf16.mxu0 %v2883
        %3542 = vmatpush1.bf16.msra.mxu0 %v2882
        %3543 = vmatprep.subr.bf16.mxu0 %v2885
        %3544 = vmatpush1.bf16.msra.mxu0 %v2884
        %3545 = vmatprep.subr.bf16.mxu0 %v2887
        %3546 = vmatpush1.bf16.msra.mxu0 %v2886
        %3547 = vmatprep.subr.bf16.mxu0 %v2889
        %3548 = vmatpush1.bf16.msra.mxu0 %v2888
        %3549 = vmatprep.subr.bf16.mxu0 %v2891
        %3550 = vmatpush1.bf16.msra.mxu0 %v2890
        %3551 = vmatprep.subr.bf16.mxu0 %v2893
        %3552 = vmatpush1.bf16.msra.mxu0 %v2892
        %3553 = vmatprep.subr.bf16.mxu0 %v2895
        %3554 = vmatpush1.bf16.msra.mxu0 %v2894
        %3555 = vmatprep.subr.bf16.mxu0 %v2897
        %3556 = vmatpush1.bf16.msra.mxu0 %v2896
        %3557 = vmatprep.subr.bf16.mxu0 %v2899
        %3558 = vmatpush1.bf16.msra.mxu0 %v2898
        %3559 = vmatprep.mubr.bf16.mxu0 %v1827
        %3560 = vmatmul.mubr.bf16.gmra.mrb[0].mxu0 %v1826
        %v3561 = vpop.f32.mrb[0].mxu0
        %v3562 = vadd.f32 %v3509, %v3561
        %v3563 = vpop.f32.mrb[0].mxu0
        %v3564 = vadd.f32 %v3511, %v3563
        %v3565 = vpop.f32.mrb[0].mxu0
        %v3566 = vadd.f32 %v3513, %v3565
        %v3567 = vpop.f32.mrb[0].mxu0
        %v3568 = vadd.f32 %v3515, %v3567
        %3569 = vmatprep.mubr.bf16.mxu0 %v1843
        %3570 = vmatmul.mubr.bf16.gmra.mrb[0].mxu0 %v1842
        %v3571 = vpop.f32.mrb[0].mxu0
        %v3572 = vadd.f32 %v3519, %v3571
        %v3573 = vpop.f32.mrb[0].mxu0
        %v3574 = vadd.f32 %v3521, %v3573
        %v3575 = vpop.f32.mrb[0].mxu0
        %v3576 = vadd.f32 %v3523, %v3575
        %v3577 = vpop.f32.mrb[0].mxu0
        %v3578 = vadd.f32 %v3525, %v3577
        %3579 = vdwg.mxu0
        %v3580 = vadd.f32 %v1420, %v3562
        %v3581 = vadd.f32 %v1421, %v3564
        %v3582 = vadd.f32 %v1422, %v3566
        %v3583 = vadd.f32 %v1423, %v3568
        %v3584 = vadd.f32 %v1424, %v3572
        %v3585 = vadd.f32 %v1425, %v3574
        %v3586 = vadd.f32 %v1426, %v3576
        %v3587 = vadd.f32 %v1427, %v3578
        %3588 = vst [vmem:[#allocation2] sm:$0xff] %v3580
        %3589 = vst [vmem:[#allocation2 + $0x8] sm:$0xff] %v3581
        %3590 = vst [vmem:[#allocation2 + $0x10] sm:$0xff] %v3582
        %3591 = vst [vmem:[#allocation2 + $0x18] sm:$0xff] %v3583
        %3592 = vst [vmem:[#allocation2 + $0x20] sm:$0xff] %v3584
        %3593 = vst [vmem:[#allocation2 + $0x28] sm:$0xff] %v3585
        %3594 = vst [vmem:[#allocation2 + $0x30] sm:$0xff] %v3586
        %3595 = vst [vmem:[#allocation2 + $0x38] sm:$0xff] %v3587
        %p3596 = scmp.eq.s32.totalorder %s20, 1
        // Predicated region
        $region102: #{discriminator_forward.7} parent=88 // pred_check
          %p3597 = pneg %p3596
        $region103: #{discriminator_forward.7} parent=88 // pred_check_branch
          %3599 = sbr.rel (%p3597) target = $region105
        $region104: #{discriminator_forward.7} parent=88 // pred_region
          %v3600 = vld [vmem:[#allocation2] sm:$0xff]
          %v3601 = vld [vmem:[#allocation2 + $0x8] sm:$0xff]
          %v3602 = vld [vmem:[#allocation2 + $0x10] sm:$0xff]
          %v3603 = vld [vmem:[#allocation2 + $0x18] sm:$0xff]
          %v3604 = vld [vmem:[#allocation2 + $0x20] sm:$0xff]
          %v3605 = vld [vmem:[#allocation2 + $0x28] sm:$0xff]
          %v3606 = vld [vmem:[#allocation2 + $0x30] sm:$0xff]
          %v3607 = vld [vmem:[#allocation2 + $0x38] sm:$0xff]
          %v3608 = vadd.f32 %v3600, %v3602
          %v3609 = vadd.f32 %v3608, %v3604
          %v3610 = vadd.f32 %v3609, %v3606
          %v3611 = vrot.slane %v3610, 4
          %v3612 = vadd.f32 %v3610, %v3611
          %v3613 = vrot.slane %v3612, 2
          %v3614 = vadd.f32 %v3612, %v3613
          %v3615 = vrot.slane %v3614, 1
          %v3616 = vadd.f32 %v3614, %v3615
          %v3617 = vadd.f32 %v3601, %v3603
          %v3618 = vadd.f32 %v3617, %v3605
          %v3619 = vadd.f32 %v3618, %v3607
          %v3620 = vrot.slane %v3619, 4
          %v3621 = vadd.f32 %v3619, %v3620
          %v3622 = vrot.slane %v3621, 2
          %v3623 = vadd.f32 %v3621, %v3622
          %v3624 = vrot.slane %v3623, 1
          %v3625 = vadd.f32 %v3623, %v3624
          %v3626 = vmul.f32 %v3616, 0.055555556
          %v3627 = vmul.f32 %v3625, 0.055555556
          %v3628 = vmul.f32 %v3600, %v3600
          %v3629 = vmul.f32 %v3601, %v3601
          %v3630 = vmul.f32 %v3602, %v3602
          %v3631 = vmul.f32 %v3603, %v3603
          %v3632 = vmul.f32 %v3604, %v3604
          %v3633 = vmul.f32 %v3605, %v3605
          %v3634 = vmul.f32 %v3606, %v3606
          %v3635 = vmul.f32 %v3607, %v3607
          %v3636 = vadd.f32 %v3628, %v3630
          %v3637 = vadd.f32 %v3636, %v3632
          %v3638 = vadd.f32 %v3637, %v3634
          %v3639 = vrot.slane %v3638, 4
          %v3640 = vadd.f32 %v3638, %v3639
          %v3641 = vrot.slane %v3640, 2
          %v3642 = vadd.f32 %v3640, %v3641
          %v3643 = vrot.slane %v3642, 1
          %v3644 = vadd.f32 %v3642, %v3643
          %v3645 = vadd.f32 %v3629, %v3631
          %v3646 = vadd.f32 %v3645, %v3633
          %v3647 = vadd.f32 %v3646, %v3635
          %v3648 = vrot.slane %v3647, 4
          %v3649 = vadd.f32 %v3647, %v3648
          %v3650 = vrot.slane %v3649, 2
          %v3651 = vadd.f32 %v3649, %v3650
          %v3652 = vrot.slane %v3651, 1
          %v3653 = vadd.f32 %v3651, %v3652
          %v3654 = vmul.f32 %v3644, 0.055555556
          %v3655 = vmul.f32 %v3653, 0.055555556
          %v3656 = vmul.f32 %v3626, %v3626
          %v3657 = vmul.f32 %v3627, %v3627
          %v3658 = vsub.f32 %v3654, %v3656
          %v3659 = vsub.f32 %v3655, %v3657
          %v3660 = vld [vmem:[%s1400] sm:$0x3]
          %v3661 = vadd.f32 %v3658, 1e-05
          %v3662 = vadd.f32 %v3659, 1e-05
          %v3663 = vrsqrt.pop %v3661
          %v3664 = vrsqrt.pop %v3662
          %v3667 = vcombine.low %v3663, %v3664
          %v3669 = vunpack.c.l.s4 1966171168
          %v3670 = vunpack.c.0.s8 %v3669
          %v3671 = vlaneseq
          %v3672 = vshrl.u32 %v3671, 7
          %v3673 = vsub.s32 %v3670, %v3672
          %v3674 = vrot.slane %v3667, %v3673
          %v3676 = vunpack.c.l.s4 1966171168
          %v3677 = vunpack.c.0.s8 %v3676
          %v3678 = vlaneseq
          %v3679 = vshrl.u32 %v3678, 7
          %v3680 = vsub.s32 %v3677, %v3679
          %v3681 = vrot.slane %v3674, %v3680
          %v3683 = vmul.f32 %v3660, %v3681
          %v3684 = vld [vmem:[%s1405] sm:$0x3]
          %v3686 = vlaneseq
          %v3687 = vshrl.u32 %v3686, 7
          %v3688 = vsub.s32 0, %v3687
          %v3689 = vrot.slane %v3683, %v3688
          %v3690 = vlaneseq
          %v3691 = vshrl.u32 %v3690, 7
          %v3692 = vsub.s32 1, %v3691
          %v3693 = vrot.slane %v3683, %v3692
          %v3696 = vmul.f32 %v3626, %v3689
          %v3697 = vmul.f32 %v3627, %v3693
          %v3700 = vcombine.low %v3696, %v3697
          %v3702 = vunpack.c.l.s4 1966171168
          %v3703 = vunpack.c.0.s8 %v3702
          %v3704 = vlaneseq
          %v3705 = vshrl.u32 %v3704, 7
          %v3706 = vsub.s32 %v3703, %v3705
          %v3707 = vrot.slane %v3700, %v3706
          %v3709 = vunpack.c.l.s4 1966171168
          %v3710 = vunpack.c.0.s8 %v3709
          %v3711 = vlaneseq
          %v3712 = vshrl.u32 %v3711, 7
          %v3713 = vsub.s32 %v3710, %v3712
          %v3714 = vrot.slane %v3707, %v3713
          %v3716 = vsub.f32 %v3684, %v3714
          %v3717 = vmul.f32 %v3600, %v3689
          %v3718 = vmul.f32 %v3601, %v3693
          %v3719 = vmul.f32 %v3602, %v3689
          %v3720 = vmul.f32 %v3603, %v3693
          %v3721 = vmul.f32 %v3604, %v3689
          %v3722 = vmul.f32 %v3605, %v3693
          %v3723 = vmul.f32 %v3606, %v3689
          %v3724 = vmul.f32 %v3607, %v3693
          %v3726 = vlaneseq
          %v3727 = vshrl.u32 %v3726, 7
          %v3728 = vsub.s32 0, %v3727
          %v3729 = vrot.slane %v3716, %v3728
          %v3730 = vlaneseq
          %v3731 = vshrl.u32 %v3730, 7
          %v3732 = vsub.s32 1, %v3731
          %v3733 = vrot.slane %v3716, %v3732
          %v3736 = vadd.f32 %v3717, %v3729
          %v3737 = vadd.f32 %v3718, %v3733
          %v3738 = vadd.f32 %v3719, %v3729
          %v3739 = vadd.f32 %v3720, %v3733
          %v3740 = vadd.f32 %v3721, %v3729
          %v3741 = vadd.f32 %v3722, %v3733
          %v3742 = vadd.f32 %v3723, %v3729
          %v3743 = vadd.f32 %v3724, %v3733
          %vm3744 = vcmp.ge.f32.partialorder %v3736, 0.0
          %vm3745 = vcmp.ge.f32.partialorder %v3737, 0.0
          %vm3746 = vcmp.ge.f32.partialorder %v3738, 0.0
          %vm3747 = vcmp.ge.f32.partialorder %v3739, 0.0
          %vm3748 = vcmp.ge.f32.partialorder %v3740, 0.0
          %vm3749 = vcmp.ge.f32.partialorder %v3741, 0.0
          %vm3750 = vcmp.ge.f32.partialorder %v3742, 0.0
          %vm3751 = vcmp.ge.f32.partialorder %v3743, 0.0
          %v3752 = vmul.f32 %v3736, 0.2
          %v3753 = vmul.f32 %v3737, 0.2
          %v3754 = vmul.f32 %v3738, 0.2
          %v3755 = vmul.f32 %v3739, 0.2
          %v3756 = vmul.f32 %v3740, 0.2
          %v3757 = vmul.f32 %v3741, 0.2
          %v3758 = vmul.f32 %v3742, 0.2
          %v3759 = vmul.f32 %v3743, 0.2
          %v3760 = vsel %vm3744, %v3736, %v3752
          %v3761 = vsel %vm3745, %v3737, %v3753
          %v3762 = vsel %vm3746, %v3738, %v3754
          %v3763 = vsel %vm3747, %v3739, %v3755
          %v3764 = vsel %vm3748, %v3740, %v3756
          %v3765 = vsel %vm3749, %v3741, %v3757
          %v3766 = vsel %vm3750, %v3742, %v3758
          %v3767 = vsel %vm3751, %v3743, %v3759
          %v3768 = vpack.c.bf16 %v3762, %v3760
          %v3769 = vpack.c.bf16 %v3763, %v3761
          %v3770 = vpack.c.bf16 %v3766, %v3764
          %v3771 = vpack.c.bf16 %v3767, %v3765
          %v3776 = vunpack.c.l.b16 %v3768
          %v3777 = vunpack.c.l.b16 %v3769
          %v3778 = vunpack.c.h.b16 %v3768
          %v3779 = vunpack.c.h.b16 %v3769
          %v3780 = vunpack.c.l.b16 %v3770
          %v3781 = vunpack.c.l.b16 %v3771
          %v3782 = vunpack.c.h.b16 %v3770
          %v3783 = vunpack.c.h.b16 %v3771
          %v3784 = vpack.c.b16 %v3777, %v3776
          %v3785 = vpack.c.b16 %v3779, %v3778
          %v3786 = vpack.c.b16 %v3781, %v3780
          %v3787 = vpack.c.b16 %v3783, %v3782
          %3792 = vst [vmem:[%s1393] sm:$0xff] %v3784
          %3793 = vst [vmem:[%s1393 + $0x8] sm:$0xff] %v3785
          %3794 = vst [vmem:[%s1393 + $0x10] sm:$0xff] %v3786
          %3795 = vst [vmem:[%s1393 + $0x18] sm:$0xff] %v3787
        $region105: #{discriminator_forward.7} parent=88 // pred_fallthru
          _
        %s3796 = sand.u32 %s141, 1
        %s3797 = sand.u32 %s141, 1
        %s3798 = smul.addr %s3797, 32
        %s3799 = scalar_lea.vmem [#allocation5], %s3798
        // Predicated region
        $region106: #{discriminator_forward.7} parent=88 // pred_check
          %p3800 = pneg %p151
        $region107: #{discriminator_forward.7} parent=88 // pred_check_branch
          %3802 = sbr.rel (%p3800) target = $region109
        $region108: #{discriminator_forward.7} parent=88 // pred_region
          %s3803 = smul.u32 2, %s19
          %s3804 = smul.addr %s3803, 4
          %s3805 = scalar_lea.vmem %s4, %s3804
          // Predicated region
          $region110: #{discriminator_forward.7} parent=108 // pred_check
            _
          $region111: #{discriminator_forward.7} parent=108 // pred_check_branch
            %3807 = sbr.rel (0) target = $region113
          $region112: #{discriminator_forward.7} parent=108 // pred_region
            // Predicated region
            $region114: #{discriminator_forward.7} parent=112 // pred_check
              _
            $region115: #{discriminator_forward.7} parent=112 // pred_check_branch
              %3809 = sbr.rel (0) target = $region117
            $region116: #{discriminator_forward.7} parent=112 // pred_region
              // Predicated region
              $region129: #{discriminator_forward.7} parent=116 // pred_check
                _
              $region130: #{discriminator_forward.7} parent=116 // pred_check_branch
                %3830 = sbr.rel (0) target = $region132
              $region131: #{discriminator_forward.7} parent=116 // pred_region
                loop: start=0, step=1, limit=1
                $region133: #{discriminator_forward.7} parent=131 // loop_pre_header
                  _
                $region134: #{discriminator_forward.7} parent=131 // loop_header
                  %s3832 = sphi 0, %s3836
                  %p3833 = scmp.ge.s32.totalorder %s3832, 1
                  %s3837 = sphi %s3799, %s3799
                  %s3838 = sphi %s3805, %s3805
                $region135: #{discriminator_forward.7} parent=131 // loop_header_branch
                  %3835 = sbr.rel (%p3833) target = $region139
                $region136: #{discriminator_forward.7} parent=131 // loop_body
                  %v3839 = vld [vmem:[%s3837] sm:$0xff]
                  %3840 = vst [vmem:[%s3838] sm:$0xff] %v3839
                  %v3841 = vld [vmem:[%s3837 + $0x8] sm:$0xff]
                  %3842 = vst [vmem:[%s3838 + $0x10] sm:$0xff] %v3841
                  %v3843 = vld [vmem:[%s3837 + $0x10] sm:$0xff]
                  %3844 = vst [vmem:[%s3838 + $0x20] sm:$0xff] %v3843
                  %v3845 = vld [vmem:[%s3837 + $0x18] sm:$0xff]
                  %3846 = vst [vmem:[%s3838 + $0x30] sm:$0xff] %v3845
                $region137: #{discriminator_forward.7} parent=131 // loop_footer
                  %s3836 = sadd.s32 1, %s3832
                $region138: #{discriminator_forward.7} parent=131 // loop_footer_branch
                  %3831 = sbr.rel target = $region134
                $region139: #{discriminator_forward.7} parent=131 // loop_exit
                  _
              $region132: #{discriminator_forward.7} parent=116 // pred_fallthru
                _
              // Predicated region
              $region140: #{discriminator_forward.7} parent=116 // pred_check
                _
              $region141: #{discriminator_forward.7} parent=116 // pred_check_branch
                %3848 = sbr.rel target = $region143
              $region142: #{discriminator_forward.7} parent=116 // pred_region
                _
              $region143: #{discriminator_forward.7} parent=116 // pred_fallthru
                _
            $region117: #{discriminator_forward.7} parent=112 // pred_fallthru
              _
            // Predicated region
            $region118: #{discriminator_forward.7} parent=112 // pred_check
              _
            $region119: #{discriminator_forward.7} parent=112 // pred_check_branch
              %3811 = sbr.rel target = $region121
            $region120: #{discriminator_forward.7} parent=112 // pred_region
              loop: start=0, step=1, limit=1
              $region122: #{discriminator_forward.7} parent=120 // loop_pre_header
                _
              $region123: #{discriminator_forward.7} parent=120 // loop_header
                %s3814 = sphi 0, %s3818
                %p3815 = scmp.ge.s32.totalorder %s3814, 1
                %s3819 = sphi %s3799, %s3799
                %s3820 = sphi %s3805, %s3805
              $region124: #{discriminator_forward.7} parent=120 // loop_header_branch
                %3817 = sbr.rel (%p3815) target = $region128
              $region125: #{discriminator_forward.7} parent=120 // loop_body
                %v3821 = vld [vmem:[%s3819] sm:$0xff]
                %3822 = vst [vmem:[%s3820] sm:$0xff] %v3821
                %v3823 = vld [vmem:[%s3819 + $0x8] sm:$0xff]
                %3824 = vst [vmem:[%s3820 + $0x10] sm:$0xff] %v3823
                %v3825 = vld [vmem:[%s3819 + $0x10] sm:$0xff]
                %3826 = vst [vmem:[%s3820 + $0x20] sm:$0xff] %v3825
                %v3827 = vld [vmem:[%s3819 + $0x18] sm:$0xff]
                %3828 = vst [vmem:[%s3820 + $0x30] sm:$0xff] %v3827
              $region126: #{discriminator_forward.7} parent=120 // loop_footer
                %s3818 = sadd.s32 1, %s3814
              $region127: #{discriminator_forward.7} parent=120 // loop_footer_branch
                %3813 = sbr.rel target = $region123
              $region128: #{discriminator_forward.7} parent=120 // loop_exit
                _
            $region121: #{discriminator_forward.7} parent=112 // pred_fallthru
              _
          $region113: #{discriminator_forward.7} parent=108 // pred_fallthru
            _
          %3849 = vnop
        $region109: #{discriminator_forward.7} parent=88 // pred_fallthru
          _
      $region89: #{discriminator_forward.7} parent=5 // pred_fallthru
        _
      %p3850 = scmp.le.s32.totalorder 2, %s10
      // Predicated region
      $region144: #{discriminator_forward.7} parent=5 // pred_check
        %p3851 = pneg %p3850
      $region145: #{discriminator_forward.7} parent=5 // pred_check_branch
        %3853 = sbr.rel (%p3851) target = $region147
      $region146: #{discriminator_forward.7} parent=5 // pred_region
        %s3854 = ssub.s32 %s10, 2
        // Predicated region
        $region148: #{discriminator_forward.7} parent=146 // pred_check
          %p3855 = pneg %p157
        $region149: #{discriminator_forward.7} parent=146 // pred_check_branch
          %3857 = sbr.rel (%p3855) target = $region151
        $region150: #{discriminator_forward.7} parent=146 // pred_region
          %s3858 = sand.u32 %s142, 1
          %s3859 = sand.u32 %s142, 1
          %s3860 = smul.addr %s3859, 32
          %s3861 = scalar_lea.vmem [#allocation5], %s3860
        $region151: #{discriminator_forward.7} parent=146 // pred_fallthru
          _
      $region147: #{discriminator_forward.7} parent=5 // pred_fallthru
        _
    $region6: #{discriminator_forward.7} parent=1 // loop_footer
      %s14 = sadd.s32 1, %s10
    $region7: #{discriminator_forward.7} parent=1 // loop_footer_branch
      %9 = sbr.rel target = $region3
    $region8: #{discriminator_forward.7} parent=1 // loop_exit
      _

</llo_original>
